<compile_context>
chip_gen: v5e
topology: v5e:2x2
jax: 0.10.0
libtpu: 0.0.40
codegen_flags: <defaults>
</compile_context>

<pallas_src>
import functools

import jax
import jax.numpy as jnp
from jax.experimental import pallas as pl
from jax.experimental.pallas import tpu as pltpu

BN_EPS = 1e-5


# ----------------------------------------------------------------------------
# Pallas kernel: the whole residual block for one batch element
# ----------------------------------------------------------------------------
def _resblock_kernel(xs_ref, w1_ref, w2_ref, aff_ref, mask_ref, o_ref,
                     col_ref, tpad_ref, *, H, W):
    """Fused conv1+bn1+swish -> conv2+bn2 -> +x for one sample.

    xs_ref   : (1, Hp*Wp, C) f32   zero-padded input, row-major "slab" layout
    w1_ref   : (9*C, C)      bf16  conv1 weights, fused K = tap*C + cin
    w2_ref   : (9*C, C)      bf16  conv2 weights
    aff_ref  : (4, C)        f32   [scale1, shift1, scale2, shift2] (BN+bias folded)
    mask_ref : (L, 1)        f32   1.0 for valid slab rows, 0.0 for row-wrap rows
    o_ref    : (1, L, C)     f32   output slab, row k = y*Wp + x  (x < W valid)
    col_ref  : (L, 9*C)      bf16  VMEM scratch: shared im2col buffer
    tpad_ref : (Hp*Wp, C)    f32   VMEM scratch: re-padded conv1 activation
    """
    Wp = W + 2
    L = (H - 1) * Wp + W                      # slab rows covering all outputs
    C = xs_ref.shape[2]
    S = xs_ref.shape[1]                       # Hp * Wp

    aff = aff_ref[...]
    scale1, shift1 = aff[0:1, :], aff[1:2, :]
    scale2, shift2 = aff[2:3, :], aff[3:4, :]

    # ---- conv1: build im2col (bf16, cast fused into the copy), one matmul ----
    for tap in range(9):
        off = (tap // 3) * Wp + (tap % 3)
        col_ref[:, tap * C:(tap + 1) * C] = (
            xs_ref[0, pl.ds(off, L), :].astype(jnp.bfloat16))
    acc = jnp.dot(col_ref[...], w1_ref[...], preferred_element_type=jnp.float32)

    # bn1 (folded affine) + swish; sigmoid via tanh keeps it on the EUP slot.
    t = acc * scale1 + shift1
    t = 0.5 * t * (1.0 + jnp.tanh(0.5 * t))          # == t * sigmoid(t)
    t = t * mask_ref[...]                            # zero row-wrap garbage rows

    # Re-pad for conv2.  Only the border rows need zeroing (the interior
    # [Wp+1, Wp+1+L) is fully overwritten each step); zeroing them every step
    # is ~38 rows instead of the whole (S, C) scratch and is megacore-safe.
    tpad_ref[pl.ds(0, Wp + 1), :] = jnp.zeros((Wp + 1, C), jnp.float32)
    tail = S - (Wp + 1 + L)
    tpad_ref[pl.ds(Wp + 1 + L, tail), :] = jnp.zeros((tail, C), jnp.float32)
    tpad_ref[pl.ds(Wp + 1, L), :] = t

    # ---- conv2: same im2col build (reusing the scratch), one matmul ----
    for tap in range(9):
        off = (tap // 3) * Wp + (tap % 3)
        col_ref[:, tap * C:(tap + 1) * C] = (
            tpad_ref[pl.ds(off, L), :].astype(jnp.bfloat16))
    acc2 = jnp.dot(col_ref[...], w2_ref[...], preferred_element_type=jnp.float32)

    # bn2 (folded affine) + exact-f32 residual add.
    resid = xs_ref[0, pl.ds(Wp + 1, L), :]
    o_ref[0, :, :] = (acc2 * scale2 + shift2 + resid).astype(o_ref.dtype)


# ----------------------------------------------------------------------------
# Wrapper: layout plumbing only (pad, flatten, weight/BN folding, un-slab)
# ----------------------------------------------------------------------------
def residual_block_forward(params, x_nchw):
    """x_nchw: (N, C, H, W) f32 (PyTorch layout).  Returns (N, C, H, W)."""
    x = jnp.transpose(x_nchw, (0, 2, 3, 1)).astype(jnp.float32)      # NHWC
    n, h, w, c = x.shape
    hp, wp = h + 2, w + 2
    s = hp * wp
    l = (h - 1) * wp + w

    # zero-pad (padding=1) and flatten the spatial dims -> "slab" (N, Hp*Wp, C)
    x_slab = jnp.pad(x, ((0, 0), (1, 1), (1, 1), (0, 0))).reshape(n, s, c)

    # weights: torch (Cout, Cin, 3, 3) -> fused-K (9*Cin, Cout), bf16 for the MXU
    def prep_w(wt):
        return (jnp.transpose(wt, (2, 3, 1, 0))            # (ky, kx, Cin, Cout)
                .reshape(9 * c, c).astype(jnp.bfloat16))   # K = tap*C + cin

    w1 = prep_w(params["conv1_w"])
    w2 = prep_w(params["conv2_w"])

    # fold conv bias + BatchNorm (inference running stats) into per-channel affines
    def fold(bias, bn):
        gamma, beta, mean, var = bn
        scale = gamma / jnp.sqrt(var + BN_EPS)
        shift = beta + (bias - mean) * scale
        return scale, shift

    sc1, sh1 = fold(params["conv1_b"], params["bn1"])
    sc2, sh2 = fold(params["conv2_b"], params["bn2"])
    aff = jnp.stack([sc1, sh1, sc2, sh2], axis=0).astype(jnp.float32)  # (4, C)

    # column-wrap mask precomputed once (avoids per-step integer mod on the VPU)
    k = jnp.arange(l, dtype=jnp.int32)
    mask = ((k % wp) < w).astype(jnp.float32).reshape(l, 1)

    flops = 4 * n * l * (9 * c) * c                   # 2 convs x 2*L*(9C)*C
    bytes_accessed = (x_slab.size * 4 + w1.size * 2 + w2.size * 2
                      + aff.size * 4 + mask.size * 4 + n * l * c * 4)

    out = pl.pallas_call(
        functools.partial(_resblock_kernel, H=h, W=w),
        out_shape=jax.ShapeDtypeStruct((n, l, c), jnp.float32),
        grid=(n,),
        in_specs=[
            pl.BlockSpec((1, s, c), lambda i: (i, 0, 0)),
            pl.BlockSpec((9 * c, c), lambda i: (0, 0)),
            pl.BlockSpec((9 * c, c), lambda i: (0, 0)),
            pl.BlockSpec((4, c), lambda i: (0, 0)),
            pl.BlockSpec((l, 1), lambda i: (0, 0)),
        ],
        out_specs=pl.BlockSpec((1, l, c), lambda i: (i, 0, 0)),
        scratch_shapes=[
            pltpu.VMEM((l, 9 * c), jnp.bfloat16),     # shared im2col buffer
            pltpu.VMEM((s, c), jnp.float32),          # re-padded conv1 activation
        ],
        compiler_params=pltpu.CompilerParams(
            dimension_semantics=("parallel",),
            vmem_limit_bytes=32 * 1024 * 1024),
        cost_estimate=pl.CostEstimate(flops=flops,
                                      transcendentals=n * l * c,
                                      bytes_accessed=bytes_accessed),
    )(x_slab, w1, w2, aff, mask)

    # slab -> (N, H, W, C): append the (Wp - W) unused tail rows, reshape, drop pad cols
    out = jnp.pad(out, ((0, 0), (0, wp - w), (0, 0)))
    out = out.reshape(n, h, wp, c)[:, :, :w, :]
    return jnp.transpose(out, (0, 3, 1, 2))                          # back to NCHW


# ----------------------------------------------------------------------------
# Pure-XLA f32 reference (same inference-BN semantics) for a sanity check
# ----------------------------------------------------------------------------
def _reference_forward(params, x_nchw):
    x = jnp.transpose(x_nchw, (0, 2, 3, 1)).astype(jnp.float32)

    def conv(v, wt):
        w_hwio = jnp.transpose(wt, (2, 3, 1, 0))
        return jax.lax.conv_general_dilated(
            v, w_hwio, window_strides=(1, 1), padding=((1, 1), (1, 1)),
            dimension_numbers=("NHWC", "HWIO", "NHWC"),
            precision=jax.lax.Precision.HIGHEST)

    def bn(v, bias, p):
        gamma, beta, mean, var = p
        return (v + bias - mean) / jnp.sqrt(var + BN_EPS) * gamma + beta

    t = bn(conv(x, params["conv1_w"]), params["conv1_b"], params["bn1"])
    t = t * jax.nn.sigmoid(t)
    t = bn(conv(t, params["conv2_w"]), params["conv2_b"], params["bn2"])
    return jnp.transpose(x + t, (0, 3, 1, 2))


# ----------------------------------------------------------------------------
# Deterministic parameter construction (shapes from the PyTorch __init__)
# ----------------------------------------------------------------------------
def make_params(key, channels):
    k1, k2, k3, k4, k5, k6 = jax.random.split(key, 6)

    def bn_params(k):
        kg, kb, km, kv = jax.random.split(k, 4)
        gamma = 1.0 + 0.1 * jax.random.normal(kg, (channels,), jnp.float32)
        beta = 0.05 * jax.random.normal(kb, (channels,), jnp.float32)
        mean = 0.1 * jax.random.normal(km, (channels,), jnp.float32)
        var = 0.5 + 0.1 * jnp.abs(jax.random.normal(kv, (channels,), jnp.float32))
        return (gamma, beta, mean, var)

    return {
        "conv1_w": 0.05 * jax.random.normal(k1, (channels, channels, 3, 3), jnp.float32),
        "conv1_b": 0.05 * jax.random.normal(k2, (channels,), jnp.float32),
        "conv2_w": 0.05 * jax.random.normal(k3, (channels, channels, 3, 3), jnp.float32),
        "conv2_b": 0.05 * jax.random.normal(k4, (channels,), jnp.float32),
        "bn1": bn_params(k5),
        "bn2": bn_params(k6),
    }


if __name__ == "__main__":
    key = jax.random.PRNGKey(0)
    pkey, xkey = jax.random.split(key)

    channels, spatial, batch = 64, 16, 2            # DeepHiC uses 64-channel blocks
    params = make_params(pkey, channels)
    x = jax.random.normal(xkey, (batch, channels, spatial, spatial), jnp.float32)

    fwd = jax.jit(functools.partial(residual_block_forward, params))
    out = fwd(x)
    jax.block_until_ready(out)

    assert out.shape == x.shape, out.shape
    assert bool(jnp.all(jnp.isfinite(out)))

    ref = _reference_forward(params, x)
    rel = jnp.linalg.norm(out - ref) / (jnp.linalg.norm(ref) + 1e-8)
    # bf16 MXU operands (documented accuracy decision) -> 5e-2 relative budget.
    assert float(rel) < 5e-2, f"relative error too large: {float(rel)}"

    print("KERNEL_OK")
</pallas_src>

<mosaic_0001>
module attributes {stable_mosaic.version = 11 : i64} {
  func.func @_resblock_kernel(%arg0: i32, %arg1: memref<1x324x64xf32, #tpu.memory_space<vmem>>, %arg2: memref<576x64xbf16, #tpu.memory_space<vmem>>, %arg3: memref<576x64xbf16, #tpu.memory_space<vmem>>, %arg4: memref<4x64xf32, #tpu.memory_space<vmem>>, %arg5: memref<286x1xf32, #tpu.memory_space<vmem>>, %arg6: memref<1x286x64xf32, #tpu.memory_space<vmem>>, %arg7: memref<286x576xbf16, #tpu.memory_space<vmem>>, %arg8: memref<324x64xf32, #tpu.memory_space<vmem>>) attributes {dimension_semantics = [#tpu.dimension_semantics<parallel>], iteration_bounds = array<i64: 2>, scalar_prefetch = 0 : i64, scratch_operands = 2 : i64, tpu.core_type = #tpu.core_type<tc>, window_params = [{transform_indices = @transform_0, window_bounds = array<i64: 1, 324, 64>}, {pipeline_mode = #tpu.pipeline_mode<synchronous>, transform_indices = @transform_1, window_bounds = array<i64: 576, 64>}, {pipeline_mode = #tpu.pipeline_mode<synchronous>, transform_indices = @transform_2, window_bounds = array<i64: 576, 64>}, {pipeline_mode = #tpu.pipeline_mode<synchronous>, transform_indices = @transform_3, window_bounds = array<i64: 4, 64>}, {pipeline_mode = #tpu.pipeline_mode<synchronous>, transform_indices = @transform_4, window_bounds = array<i64: 286, 1>}, {transform_indices = @transform_5, window_bounds = array<i64: 1, 286, 64>}]} {
    %c0 = arith.constant 0 : index
    %c0_0 = arith.constant 0 : index
    %0 = vector.load %arg4[%c0, %c0_0] : memref<4x64xf32, #tpu.memory_space<vmem>>, vector<4x64xf32>
    %1 = vector.extract_strided_slice %0 {offsets = [0, 0], sizes = [1, 64], strides = [1, 1]} : vector<4x64xf32> to vector<1x64xf32>
    %2 = vector.extract_strided_slice %0 {offsets = [1, 0], sizes = [1, 64], strides = [1, 1]} : vector<4x64xf32> to vector<1x64xf32>
    %3 = vector.extract_strided_slice %0 {offsets = [2, 0], sizes = [1, 64], strides = [1, 1]} : vector<4x64xf32> to vector<1x64xf32>
    %4 = vector.extract_strided_slice %0 {offsets = [3, 0], sizes = [1, 64], strides = [1, 1]} : vector<4x64xf32> to vector<1x64xf32>
    %c0_1 = arith.constant 0 : index
    %c0_2 = arith.constant 0 : index
    %c0_3 = arith.constant 0 : index
    %5 = vector.load %arg1[%c0_1, %c0_2, %c0_3] : memref<1x324x64xf32, #tpu.memory_space<vmem>>, vector<1x286x64xf32>
    %6 = vector.shape_cast %5 : vector<1x286x64xf32> to vector<286x64xf32>
    %7 = arith.truncf %6 : vector<286x64xf32> to vector<286x64xbf16>
    %c0_4 = arith.constant 0 : index
    %c0_5 = arith.constant 0 : index
    %8 = vector.load %arg7[%c0_4, %c0_5] : memref<286x576xbf16, #tpu.memory_space<vmem>>, vector<286x64xbf16>
    tpu.vector_store %arg7[%c0_4, %c0_5], %7 {strides = array<i32>} : memref<286x576xbf16, #tpu.memory_space<vmem>>, vector<286x64xbf16>,
    %c0_6 = arith.constant 0 : index
    %c1 = arith.constant 1 : index
    %c0_7 = arith.constant 0 : index
    %9 = vector.load %arg1[%c0_6, %c1, %c0_7] : memref<1x324x64xf32, #tpu.memory_space<vmem>>, vector<1x286x64xf32>
    %10 = vector.shape_cast %9 : vector<1x286x64xf32> to vector<286x64xf32>
    %11 = arith.truncf %10 : vector<286x64xf32> to vector<286x64xbf16>
    %c0_8 = arith.constant 0 : index
    %c64 = arith.constant 64 : index
    %12 = vector.load %arg7[%c0_8, %c64] : memref<286x576xbf16, #tpu.memory_space<vmem>>, vector<286x64xbf16>
    tpu.vector_store %arg7[%c0_8, %c64], %11 {strides = array<i32>} : memref<286x576xbf16, #tpu.memory_space<vmem>>, vector<286x64xbf16>,
    %c0_9 = arith.constant 0 : index
    %c2 = arith.constant 2 : index
    %c0_10 = arith.constant 0 : index
    %13 = vector.load %arg1[%c0_9, %c2, %c0_10] : memref<1x324x64xf32, #tpu.memory_space<vmem>>, vector<1x286x64xf32>
    %14 = vector.shape_cast %13 : vector<1x286x64xf32> to vector<286x64xf32>
    %15 = arith.truncf %14 : vector<286x64xf32> to vector<286x64xbf16>
    %c0_11 = arith.constant 0 : index
    %c128 = arith.constant 128 : index
    %16 = vector.load %arg7[%c0_11, %c128] : memref<286x576xbf16, #tpu.memory_space<vmem>>, vector<286x64xbf16>
    tpu.vector_store %arg7[%c0_11, %c128], %15 {strides = array<i32>} : memref<286x576xbf16, #tpu.memory_space<vmem>>, vector<286x64xbf16>,
    %c0_12 = arith.constant 0 : index
    %c18 = arith.constant 18 : index
    %c0_13 = arith.constant 0 : index
    %17 = vector.load %arg1[%c0_12, %c18, %c0_13] : memref<1x324x64xf32, #tpu.memory_space<vmem>>, vector<1x286x64xf32>
    %18 = vector.shape_cast %17 : vector<1x286x64xf32> to vector<286x64xf32>
    %19 = arith.truncf %18 : vector<286x64xf32> to vector<286x64xbf16>
    %c0_14 = arith.constant 0 : index
    %c192 = arith.constant 192 : index
    %20 = vector.load %arg7[%c0_14, %c192] : memref<286x576xbf16, #tpu.memory_space<vmem>>, vector<286x64xbf16>
    tpu.vector_store %arg7[%c0_14, %c192], %19 {strides = array<i32>} : memref<286x576xbf16, #tpu.memory_space<vmem>>, vector<286x64xbf16>,
    %c0_15 = arith.constant 0 : index
    %c19 = arith.constant 19 : index
    %c0_16 = arith.constant 0 : index
    %21 = vector.load %arg1[%c0_15, %c19, %c0_16] : memref<1x324x64xf32, #tpu.memory_space<vmem>>, vector<1x286x64xf32>
    %22 = vector.shape_cast %21 : vector<1x286x64xf32> to vector<286x64xf32>
    %23 = arith.truncf %22 : vector<286x64xf32> to vector<286x64xbf16>
    %c0_17 = arith.constant 0 : index
    %c256 = arith.constant 256 : index
    %24 = vector.load %arg7[%c0_17, %c256] : memref<286x576xbf16, #tpu.memory_space<vmem>>, vector<286x64xbf16>
    tpu.vector_store %arg7[%c0_17, %c256], %23 {strides = array<i32>} : memref<286x576xbf16, #tpu.memory_space<vmem>>, vector<286x64xbf16>,
    %c0_18 = arith.constant 0 : index
    %c20 = arith.constant 20 : index
    %c0_19 = arith.constant 0 : index
    %25 = vector.load %arg1[%c0_18, %c20, %c0_19] : memref<1x324x64xf32, #tpu.memory_space<vmem>>, vector<1x286x64xf32>
    %26 = vector.shape_cast %25 : vector<1x286x64xf32> to vector<286x64xf32>
    %27 = arith.truncf %26 : vector<286x64xf32> to vector<286x64xbf16>
    %c0_20 = arith.constant 0 : index
    %c320 = arith.constant 320 : index
    %28 = vector.load %arg7[%c0_20, %c320] : memref<286x576xbf16, #tpu.memory_space<vmem>>, vector<286x64xbf16>
    tpu.vector_store %arg7[%c0_20, %c320], %27 {strides = array<i32>} : memref<286x576xbf16, #tpu.memory_space<vmem>>, vector<286x64xbf16>,
    %c0_21 = arith.constant 0 : index
    %c36 = arith.constant 36 : index
    %c0_22 = arith.constant 0 : index
    %29 = vector.load %arg1[%c0_21, %c36, %c0_22] : memref<1x324x64xf32, #tpu.memory_space<vmem>>, vector<1x286x64xf32>
    %30 = vector.shape_cast %29 : vector<1x286x64xf32> to vector<286x64xf32>
    %31 = arith.truncf %30 : vector<286x64xf32> to vector<286x64xbf16>
    %c0_23 = arith.constant 0 : index
    %c384 = arith.constant 384 : index
    %32 = vector.load %arg7[%c0_23, %c384] : memref<286x576xbf16, #tpu.memory_space<vmem>>, vector<286x64xbf16>
    tpu.vector_store %arg7[%c0_23, %c384], %31 {strides = array<i32>} : memref<286x576xbf16, #tpu.memory_space<vmem>>, vector<286x64xbf16>,
    %c0_24 = arith.constant 0 : index
    %c37 = arith.constant 37 : index
    %c0_25 = arith.constant 0 : index
    %33 = vector.load %arg1[%c0_24, %c37, %c0_25] : memref<1x324x64xf32, #tpu.memory_space<vmem>>, vector<1x286x64xf32>
    %34 = vector.shape_cast %33 : vector<1x286x64xf32> to vector<286x64xf32>
    %35 = arith.truncf %34 : vector<286x64xf32> to vector<286x64xbf16>
    %c0_26 = arith.constant 0 : index
    %c448 = arith.constant 448 : index
    %36 = vector.load %arg7[%c0_26, %c448] : memref<286x576xbf16, #tpu.memory_space<vmem>>, vector<286x64xbf16>
    tpu.vector_store %arg7[%c0_26, %c448], %35 {strides = array<i32>} : memref<286x576xbf16, #tpu.memory_space<vmem>>, vector<286x64xbf16>,
    %c0_27 = arith.constant 0 : index
    %c38 = arith.constant 38 : index
    %c0_28 = arith.constant 0 : index
    %37 = vector.load %arg1[%c0_27, %c38, %c0_28] : memref<1x324x64xf32, #tpu.memory_space<vmem>>, vector<1x286x64xf32>
    %38 = vector.shape_cast %37 : vector<1x286x64xf32> to vector<286x64xf32>
    %39 = arith.truncf %38 : vector<286x64xf32> to vector<286x64xbf16>
    %c0_29 = arith.constant 0 : index
    %c512 = arith.constant 512 : index
    %40 = vector.load %arg7[%c0_29, %c512] : memref<286x576xbf16, #tpu.memory_space<vmem>>, vector<286x64xbf16>
    tpu.vector_store %arg7[%c0_29, %c512], %39 {strides = array<i32>} : memref<286x576xbf16, #tpu.memory_space<vmem>>, vector<286x64xbf16>,
    %c0_30 = arith.constant 0 : index
    %c0_31 = arith.constant 0 : index
    %41 = vector.load %arg7[%c0_30, %c0_31] : memref<286x576xbf16, #tpu.memory_space<vmem>>, vector<286x576xbf16>
    %c0_32 = arith.constant 0 : index
    %c0_33 = arith.constant 0 : index
    %42 = vector.load %arg2[%c0_32, %c0_33] : memref<576x64xbf16, #tpu.memory_space<vmem>>, vector<576x64xbf16>
    %cst = arith.constant dense<0.000000e+00> : vector<286x64xf32>
    %43 = tpu.matmul %41, %42, %cst {dimension_numbers = #tpu.dot_dimension_numbers<[1], [0], [0], [1], [0, 0, 1, 1], [], []>} : vector<286x576xbf16>, vector<576x64xbf16>, vector<286x64xf32> -> vector<286x64xf32>
    %44 = vector.broadcast %1 : vector<1x64xf32> to vector<286x64xf32>
    %45 = arith.mulf %43, %44 : vector<286x64xf32>
    %46 = vector.broadcast %2 : vector<1x64xf32> to vector<286x64xf32>
    %47 = arith.addf %45, %46 : vector<286x64xf32>
    %cst_34 = arith.constant 5.000000e-01 : f32
    %48 = vector.broadcast %cst_34 : f32 to vector<286x64xf32>
    %49 = arith.mulf %48, %47 : vector<286x64xf32>
    %cst_35 = arith.constant 5.000000e-01 : f32
    %50 = vector.broadcast %cst_35 : f32 to vector<286x64xf32>
    %51 = arith.mulf %50, %47 : vector<286x64xf32>
    %52 = math.tanh %51 : vector<286x64xf32>
    %cst_36 = arith.constant 1.000000e+00 : f32
    %53 = vector.broadcast %cst_36 : f32 to vector<286x64xf32>
    %54 = arith.addf %53, %52 : vector<286x64xf32>
    %55 = arith.mulf %49, %54 : vector<286x64xf32>
    %c0_37 = arith.constant 0 : index
    %c0_38 = arith.constant 0 : index
    %56 = vector.load %arg5[%c0_37, %c0_38] : memref<286x1xf32, #tpu.memory_space<vmem>>, vector<286x1xf32>
    %57 = vector.broadcast %56 : vector<286x1xf32> to vector<286x64xf32>
    %58 = arith.mulf %55, %57 : vector<286x64xf32>
    %cst_39 = arith.constant 0.000000e+00 : f32
    %59 = vector.broadcast %cst_39 : f32 to vector<19x64xf32>
    %c0_40 = arith.constant 0 : index
    %c0_41 = arith.constant 0 : index
    %60 = vector.load %arg8[%c0_40, %c0_41] : memref<324x64xf32, #tpu.memory_space<vmem>>, vector<19x64xf32>
    tpu.vector_store %arg8[%c0_40, %c0_41], %59 {strides = array<i32>} : memref<324x64xf32, #tpu.memory_space<vmem>>, vector<19x64xf32>,
    %cst_42 = arith.constant 0.000000e+00 : f32
    %61 = vector.broadcast %cst_42 : f32 to vector<19x64xf32>
    %c305 = arith.constant 305 : index
    %c0_43 = arith.constant 0 : index
    %62 = vector.load %arg8[%c305, %c0_43] : memref<324x64xf32, #tpu.memory_space<vmem>>, vector<19x64xf32>
    tpu.vector_store %arg8[%c305, %c0_43], %61 {strides = array<i32>} : memref<324x64xf32, #tpu.memory_space<vmem>>, vector<19x64xf32>,
    %c19_44 = arith.constant 19 : index
    %c0_45 = arith.constant 0 : index
    %63 = vector.load %arg8[%c19_44, %c0_45] : memref<324x64xf32, #tpu.memory_space<vmem>>, vector<286x64xf32>
    tpu.vector_store %arg8[%c19_44, %c0_45], %58 {strides = array<i32>} : memref<324x64xf32, #tpu.memory_space<vmem>>, vector<286x64xf32>,
    %c0_46 = arith.constant 0 : index
    %c0_47 = arith.constant 0 : index
    %64 = vector.load %arg8[%c0_46, %c0_47] : memref<324x64xf32, #tpu.memory_space<vmem>>, vector<286x64xf32>
    %65 = arith.truncf %64 : vector<286x64xf32> to vector<286x64xbf16>
    %c0_48 = arith.constant 0 : index
    %c0_49 = arith.constant 0 : index
    %66 = vector.load %arg7[%c0_48, %c0_49] : memref<286x576xbf16, #tpu.memory_space<vmem>>, vector<286x64xbf16>
    tpu.vector_store %arg7[%c0_48, %c0_49], %65 {strides = array<i32>} : memref<286x576xbf16, #tpu.memory_space<vmem>>, vector<286x64xbf16>,
    %c1_50 = arith.constant 1 : index
    %c0_51 = arith.constant 0 : index
    %67 = vector.load %arg8[%c1_50, %c0_51] : memref<324x64xf32, #tpu.memory_space<vmem>>, vector<286x64xf32>
    %68 = arith.truncf %67 : vector<286x64xf32> to vector<286x64xbf16>
    %c0_52 = arith.constant 0 : index
    %c64_53 = arith.constant 64 : index
    %69 = vector.load %arg7[%c0_52, %c64_53] : memref<286x576xbf16, #tpu.memory_space<vmem>>, vector<286x64xbf16>
    tpu.vector_store %arg7[%c0_52, %c64_53], %68 {strides = array<i32>} : memref<286x576xbf16, #tpu.memory_space<vmem>>, vector<286x64xbf16>,
    %c2_54 = arith.constant 2 : index
    %c0_55 = arith.constant 0 : index
    %70 = vector.load %arg8[%c2_54, %c0_55] : memref<324x64xf32, #tpu.memory_space<vmem>>, vector<286x64xf32>
    %71 = arith.truncf %70 : vector<286x64xf32> to vector<286x64xbf16>
    %c0_56 = arith.constant 0 : index
    %c128_57 = arith.constant 128 : index
    %72 = vector.load %arg7[%c0_56, %c128_57] : memref<286x576xbf16, #tpu.memory_space<vmem>>, vector<286x64xbf16>
    tpu.vector_store %arg7[%c0_56, %c128_57], %71 {strides = array<i32>} : memref<286x576xbf16, #tpu.memory_space<vmem>>, vector<286x64xbf16>,
    %c18_58 = arith.constant 18 : index
    %c0_59 = arith.constant 0 : index
    %73 = vector.load %arg8[%c18_58, %c0_59] : memref<324x64xf32, #tpu.memory_space<vmem>>, vector<286x64xf32>
    %74 = arith.truncf %73 : vector<286x64xf32> to vector<286x64xbf16>
    %c0_60 = arith.constant 0 : index
    %c192_61 = arith.constant 192 : index
    %75 = vector.load %arg7[%c0_60, %c192_61] : memref<286x576xbf16, #tpu.memory_space<vmem>>, vector<286x64xbf16>
    tpu.vector_store %arg7[%c0_60, %c192_61], %74 {strides = array<i32>} : memref<286x576xbf16, #tpu.memory_space<vmem>>, vector<286x64xbf16>,
    %c19_62 = arith.constant 19 : index
    %c0_63 = arith.constant 0 : index
    %76 = vector.load %arg8[%c19_62, %c0_63] : memref<324x64xf32, #tpu.memory_space<vmem>>, vector<286x64xf32>
    %77 = arith.truncf %76 : vector<286x64xf32> to vector<286x64xbf16>
    %c0_64 = arith.constant 0 : index
    %c256_65 = arith.constant 256 : index
    %78 = vector.load %arg7[%c0_64, %c256_65] : memref<286x576xbf16, #tpu.memory_space<vmem>>, vector<286x64xbf16>
    tpu.vector_store %arg7[%c0_64, %c256_65], %77 {strides = array<i32>} : memref<286x576xbf16, #tpu.memory_space<vmem>>, vector<286x64xbf16>,
    %c20_66 = arith.constant 20 : index
    %c0_67 = arith.constant 0 : index
    %79 = vector.load %arg8[%c20_66, %c0_67] : memref<324x64xf32, #tpu.memory_space<vmem>>, vector<286x64xf32>
    %80 = arith.truncf %79 : vector<286x64xf32> to vector<286x64xbf16>
    %c0_68 = arith.constant 0 : index
    %c320_69 = arith.constant 320 : index
    %81 = vector.load %arg7[%c0_68, %c320_69] : memref<286x576xbf16, #tpu.memory_space<vmem>>, vector<286x64xbf16>
    tpu.vector_store %arg7[%c0_68, %c320_69], %80 {strides = array<i32>} : memref<286x576xbf16, #tpu.memory_space<vmem>>, vector<286x64xbf16>,
    %c36_70 = arith.constant 36 : index
    %c0_71 = arith.constant 0 : index
    %82 = vector.load %arg8[%c36_70, %c0_71] : memref<324x64xf32, #tpu.memory_space<vmem>>, vector<286x64xf32>
    %83 = arith.truncf %82 : vector<286x64xf32> to vector<286x64xbf16>
    %c0_72 = arith.constant 0 : index
    %c384_73 = arith.constant 384 : index
    %84 = vector.load %arg7[%c0_72, %c384_73] : memref<286x576xbf16, #tpu.memory_space<vmem>>, vector<286x64xbf16>
    tpu.vector_store %arg7[%c0_72, %c384_73], %83 {strides = array<i32>} : memref<286x576xbf16, #tpu.memory_space<vmem>>, vector<286x64xbf16>,
    %c37_74 = arith.constant 37 : index
    %c0_75 = arith.constant 0 : index
    %85 = vector.load %arg8[%c37_74, %c0_75] : memref<324x64xf32, #tpu.memory_space<vmem>>, vector<286x64xf32>
    %86 = arith.truncf %85 : vector<286x64xf32> to vector<286x64xbf16>
    %c0_76 = arith.constant 0 : index
    %c448_77 = arith.constant 448 : index
    %87 = vector.load %arg7[%c0_76, %c448_77] : memref<286x576xbf16, #tpu.memory_space<vmem>>, vector<286x64xbf16>
    tpu.vector_store %arg7[%c0_76, %c448_77], %86 {strides = array<i32>} : memref<286x576xbf16, #tpu.memory_space<vmem>>, vector<286x64xbf16>,
    %c38_78 = arith.constant 38 : index
    %c0_79 = arith.constant 0 : index
    %88 = vector.load %arg8[%c38_78, %c0_79] : memref<324x64xf32, #tpu.memory_space<vmem>>, vector<286x64xf32>
    %89 = arith.truncf %88 : vector<286x64xf32> to vector<286x64xbf16>
    %c0_80 = arith.constant 0 : index
    %c512_81 = arith.constant 512 : index
    %90 = vector.load %arg7[%c0_80, %c512_81] : memref<286x576xbf16, #tpu.memory_space<vmem>>, vector<286x64xbf16>
    tpu.vector_store %arg7[%c0_80, %c512_81], %89 {strides = array<i32>} : memref<286x576xbf16, #tpu.memory_space<vmem>>, vector<286x64xbf16>,
    %c0_82 = arith.constant 0 : index
    %c0_83 = arith.constant 0 : index
    %91 = vector.load %arg7[%c0_82, %c0_83] : memref<286x576xbf16, #tpu.memory_space<vmem>>, vector<286x576xbf16>
    %c0_84 = arith.constant 0 : index
    %c0_85 = arith.constant 0 : index
    %92 = vector.load %arg3[%c0_84, %c0_85] : memref<576x64xbf16, #tpu.memory_space<vmem>>, vector<576x64xbf16>
    %cst_86 = arith.constant dense<0.000000e+00> : vector<286x64xf32>
    %93 = tpu.matmul %91, %92, %cst_86 {dimension_numbers = #tpu.dot_dimension_numbers<[1], [0], [0], [1], [0, 0, 1, 1], [], []>} : vector<286x576xbf16>, vector<576x64xbf16>, vector<286x64xf32> -> vector<286x64xf32>
    %c0_87 = arith.constant 0 : index
    %c19_88 = arith.constant 19 : index
    %c0_89 = arith.constant 0 : index
    %94 = vector.load %arg1[%c0_87, %c19_88, %c0_89] : memref<1x324x64xf32, #tpu.memory_space<vmem>>, vector<1x286x64xf32>
    %95 = vector.shape_cast %94 : vector<1x286x64xf32> to vector<286x64xf32>
    %96 = vector.broadcast %3 : vector<1x64xf32> to vector<286x64xf32>
    %97 = arith.mulf %93, %96 : vector<286x64xf32>
    %98 = vector.broadcast %4 : vector<1x64xf32> to vector<286x64xf32>
    %99 = arith.addf %97, %98 : vector<286x64xf32>
    %100 = arith.addf %99, %95 : vector<286x64xf32>
    %c0_90 = arith.constant 0 : index
    %c0_91 = arith.constant 0 : index
    %c0_92 = arith.constant 0 : index
    %101 = vector.load %arg6[%c0_90, %c0_91, %c0_92] : memref<1x286x64xf32, #tpu.memory_space<vmem>>, vector<1x286x64xf32>
    %102 = vector.shape_cast %101 : vector<1x286x64xf32> to vector<286x64xf32>
    %103 = vector.shape_cast %100 : vector<286x64xf32> to vector<1x286x64xf32>
    tpu.vector_store %arg6[%c0_90, %c0_91, %c0_92], %103 {strides = array<i32>} : memref<1x286x64xf32, #tpu.memory_space<vmem>>, vector<1x286x64xf32>,
    return
  }
  func.func @transform_0(%arg0: i32) -> (i32, i32, i32) {
    %c0_i32 = arith.constant 0 : i32
    %c0_i32_0 = arith.constant 0 : i32
    %c0_i32_1 = arith.constant 0 : i32
    return %arg0, %c0_i32, %c0_i32_0 : i32, i32, i32
  }
  func.func @transform_1(%arg0: i32) -> (i32, i32) {
    %c0_i32 = arith.constant 0 : i32
    %c0_i32_0 = arith.constant 0 : i32
    %c0_i32_1 = arith.constant 0 : i32
    return %c0_i32, %c0_i32_0 : i32, i32
  }
  func.func @transform_2(%arg0: i32) -> (i32, i32) {
    %c0_i32 = arith.constant 0 : i32
    %c0_i32_0 = arith.constant 0 : i32
    %c0_i32_1 = arith.constant 0 : i32
    return %c0_i32, %c0_i32_0 : i32, i32
  }
  func.func @transform_3(%arg0: i32) -> (i32, i32) {
    %c0_i32 = arith.constant 0 : i32
    %c0_i32_0 = arith.constant 0 : i32
    %c0_i32_1 = arith.constant 0 : i32
    return %c0_i32, %c0_i32_0 : i32, i32
  }
  func.func @transform_4(%arg0: i32) -> (i32, i32) {
    %c0_i32 = arith.constant 0 : i32
    %c0_i32_0 = arith.constant 0 : i32
    %c0_i32_1 = arith.constant 0 : i32
    return %c0_i32, %c0_i32_0 : i32, i32
  }
  func.func @transform_5(%arg0: i32) -> (i32, i32, i32) {
    %c0_i32 = arith.constant 0 : i32
    %c0_i32_0 = arith.constant 0 : i32
    %c0_i32_1 = arith.constant 0 : i32
    return %arg0, %c0_i32, %c0_i32_0 : i32, i32, i32
  }
}

</mosaic_0001>

<llo_original>
// kernel: residual_block_forward.1
$region0: #{residual_block_forward.1}
  #allocation0 [shape = 'u32[]', space=smem, size = 0x4, offset = 0x4, fixed_abs, tag = 'smem constant byte address 0x4 - core index']
  #allocation1 [shape = 'u32[72,128]{1,0:T(1,128)}', space=vmem, size = 0x9000, scoped, tag = 'internal scratch']
  #allocation2 [shape = 'bf16[286,576]{1,0:T(8,128)(2,1)}', space=vmem, size = 0x5a000, scoped, tag = 'scratch operand']
  #allocation3 [shape = 'f32[324,64]{1,0:T(8,128)}', space=vmem, size = 0x29000, scoped, tag = 'scratch operand']
  %s0 = inlined_call_operand.vmem [shape: f32[2,324,64], index: 0, kind: input, shape index: {}]
  %s1 = inlined_call_operand.vmem [shape: bf16[576,64], index: 1, kind: input, shape index: {}]
  %s2 = inlined_call_operand.vmem [shape: bf16[576,64], index: 2, kind: input, shape index: {}]
  %s3 = inlined_call_operand.vmem [shape: f32[4,64], index: 3, kind: input, shape index: {}]
  %s4 = inlined_call_operand.vmem [shape: f32[286,1], index: 4, kind: input, shape index: {}]
  %s5 = inlined_call_operand.vmem [shape: f32[2,286,64], index: 5, kind: output, shape index: {}]
  %s6 = sld [smem:[#allocation0]]
  $region53: #{residual_block_forward.1} parent=0
    _
  %s8 = ssub.s32 1, %s6
  %s9 = scalar_select 0, %s8, %s6
  loop: start=0, step=1, limit=4
  $region2: #{residual_block_forward.1} parent=0 // loop_pre_header
    _
  $region3: #{residual_block_forward.1} parent=0 // loop_header
    %s11 = sphi 0, %s15
    %p12 = scmp.ge.s32.totalorder %s11, 4
    %s21 = sphi 0, %s23
    %s24 = sphi 0, %s21
    %s25 = sphi 0, %s24
    %s41 = sphi 0, %s25
    %s45 = sphi 0, %s45
    %s47 = sphi 0, %s45
    %s48 = sphi 0, %s47
    %s62 = sphi 0, %s48
    %s66 = sphi 0, %s66
    %s68 = sphi 0, %s66
    %s69 = sphi 0, %s68
    %s83 = sphi 0, %s69
    %s87 = sphi 0, %s87
    %s89 = sphi 0, %s87
    %s90 = sphi 0, %s89
    %s104 = sphi 0, %s90
    %s108 = sphi 0, %s108
    %s110 = sphi 0, %s108
    %s111 = sphi 0, %s110
    %s125 = sphi 0, %s111
    %s131 = sphi 0, %s133
    %s134 = sphi 0, %s131
    %s135 = sphi 0, %s134
    %s151 = sphi 0, %s135
  $region4: #{residual_block_forward.1} parent=0 // loop_header_branch
    %14 = sbr.rel (%p12) target = $region8
  $region5: #{residual_block_forward.1} parent=0 // loop_body
    %s16 = ssub.s32 %s11, 1
    %s17 = ssub.s32 %s11, 2
    %s18 = sadd.s32 %s11, 1
    %s19 = ssub.s32 %s11, %s18
    %p20 = scmp.eq.s32.totalorder %s19, 0
    %s22 = sadd.s32 %s21, 1
    %s23 = scalar_select %p20, %s21, %s22
    %p26 = pneg %p20
    %p27 = scmp.eq.s32.totalorder %s11, 1
    %p28 = por %p26, %p27
    %p29 = scmp.ne.s32.totalorder %s21, %s24
    %p30 = scmp.eq.s32.totalorder %s11, 0
    %p31 = por %p29, %p30
    %p32 = scmp.ne.s32.totalorder %s21, %s24
    %p33 = scmp.eq.s32.totalorder %s16, 1
    %p34 = por %p32, %p33
    %p35 = scmp.ne.s32.totalorder %s24, %s25
    %p36 = scmp.eq.s32.totalorder %s16, 0
    %p37 = por %p35, %p36
    %p38 = scmp.ne.s32.totalorder %s24, %s25
    %p39 = scmp.eq.s32.totalorder %s17, 1
    %p40 = por %p38, %p39
    %p42 = scmp.ne.s32.totalorder %s25, %s41
    %p43 = scmp.eq.s32.totalorder %s17, 0
    %p44 = por %p42, %p43
    %s46 = sadd.s32 %s45, 1
    %p49 = scmp.eq.s32.totalorder %s11, 1
    %p50 = scmp.ne.s32.totalorder %s45, %s47
    %p51 = scmp.eq.s32.totalorder %s11, 0
    %p52 = por %p50, %p51
    %p53 = scmp.ne.s32.totalorder %s45, %s47
    %p54 = scmp.eq.s32.totalorder %s16, 1
    %p55 = por %p53, %p54
    %p56 = scmp.ne.s32.totalorder %s47, %s48
    %p57 = scmp.eq.s32.totalorder %s16, 0
    %p58 = por %p56, %p57
    %p59 = scmp.ne.s32.totalorder %s47, %s48
    %p60 = scmp.eq.s32.totalorder %s17, 1
    %p61 = por %p59, %p60
    %p63 = scmp.ne.s32.totalorder %s48, %s62
    %p64 = scmp.eq.s32.totalorder %s17, 0
    %p65 = por %p63, %p64
    %s67 = sadd.s32 %s66, 1
    %p70 = scmp.eq.s32.totalorder %s11, 1
    %p71 = scmp.ne.s32.totalorder %s66, %s68
    %p72 = scmp.eq.s32.totalorder %s11, 0
    %p73 = por %p71, %p72
    %p74 = scmp.ne.s32.totalorder %s66, %s68
    %p75 = scmp.eq.s32.totalorder %s16, 1
    %p76 = por %p74, %p75
    %p77 = scmp.ne.s32.totalorder %s68, %s69
    %p78 = scmp.eq.s32.totalorder %s16, 0
    %p79 = por %p77, %p78
    %p80 = scmp.ne.s32.totalorder %s68, %s69
    %p81 = scmp.eq.s32.totalorder %s17, 1
    %p82 = por %p80, %p81
    %p84 = scmp.ne.s32.totalorder %s69, %s83
    %p85 = scmp.eq.s32.totalorder %s17, 0
    %p86 = por %p84, %p85
    %s88 = sadd.s32 %s87, 1
    %p91 = scmp.eq.s32.totalorder %s11, 1
    %p92 = scmp.ne.s32.totalorder %s87, %s89
    %p93 = scmp.eq.s32.totalorder %s11, 0
    %p94 = por %p92, %p93
    %p95 = scmp.ne.s32.totalorder %s87, %s89
    %p96 = scmp.eq.s32.totalorder %s16, 1
    %p97 = por %p95, %p96
    %p98 = scmp.ne.s32.totalorder %s89, %s90
    %p99 = scmp.eq.s32.totalorder %s16, 0
    %p100 = por %p98, %p99
    %p101 = scmp.ne.s32.totalorder %s89, %s90
    %p102 = scmp.eq.s32.totalorder %s17, 1
    %p103 = por %p101, %p102
    %p105 = scmp.ne.s32.totalorder %s90, %s104
    %p106 = scmp.eq.s32.totalorder %s17, 0
    %p107 = por %p105, %p106
    %s109 = sadd.s32 %s108, 1
    %p112 = scmp.eq.s32.totalorder %s11, 1
    %p113 = scmp.ne.s32.totalorder %s108, %s110
    %p114 = scmp.eq.s32.totalorder %s11, 0
    %p115 = por %p113, %p114
    %p116 = scmp.ne.s32.totalorder %s108, %s110
    %p117 = scmp.eq.s32.totalorder %s16, 1
    %p118 = por %p116, %p117
    %p119 = scmp.ne.s32.totalorder %s110, %s111
    %p120 = scmp.eq.s32.totalorder %s16, 0
    %p121 = por %p119, %p120
    %p122 = scmp.ne.s32.totalorder %s110, %s111
    %p123 = scmp.eq.s32.totalorder %s17, 1
    %p124 = por %p122, %p123
    %p126 = scmp.ne.s32.totalorder %s111, %s125
    %p127 = scmp.eq.s32.totalorder %s17, 0
    %p128 = por %p126, %p127
    %s129 = ssub.s32 %s11, %s18
    %p130 = scmp.eq.s32.totalorder %s129, 0
    %s132 = sadd.s32 %s131, 1
    %s133 = scalar_select %p130, %s131, %s132
    %p136 = pneg %p130
    %p137 = scmp.eq.s32.totalorder %s11, 1
    %p138 = por %p136, %p137
    %p139 = scmp.ne.s32.totalorder %s131, %s134
    %p140 = scmp.eq.s32.totalorder %s11, 0
    %p141 = por %p139, %p140
    %p142 = scmp.ne.s32.totalorder %s131, %s134
    %p143 = scmp.eq.s32.totalorder %s16, 1
    %p144 = por %p142, %p143
    %p145 = scmp.ne.s32.totalorder %s134, %s135
    %p146 = scmp.eq.s32.totalorder %s16, 0
    %p147 = por %p145, %p146
    %p148 = scmp.ne.s32.totalorder %s134, %s135
    %p149 = scmp.eq.s32.totalorder %s17, 1
    %p150 = por %p148, %p149
    %p152 = scmp.ne.s32.totalorder %s135, %s151
    %p153 = scmp.eq.s32.totalorder %s17, 0
    %p154 = por %p152, %p153
    %p155 = scmp.le.s32.totalorder 1, %s11
    %p156 = scmp.lt.s32.totalorder %s11, 3
    %p157 = pnand %p155, %p156
    %p158 = pneg %p157
    // Predicated region
    $region9: #{residual_block_forward.1} parent=5 // pred_check
      _
    $region10: #{residual_block_forward.1} parent=5 // pred_check_branch
      %160 = sbr.rel (%p157) target = $region12
    $region11: #{residual_block_forward.1} parent=5 // pred_region
      %s161 = ssub.s32 %s11, 1
      // Predicated region
      $region13: #{residual_block_forward.1} parent=11 // pred_check
        %p162 = pneg %p58
      $region14: #{residual_block_forward.1} parent=11 // pred_check_branch
        %164 = sbr.rel (%p162) target = $region16
      $region15: #{residual_block_forward.1} parent=11 // pred_region
        _
      $region16: #{residual_block_forward.1} parent=11 // pred_fallthru
        _
      // Predicated region
      $region17: #{residual_block_forward.1} parent=11 // pred_check
        %p165 = pneg %p79
      $region18: #{residual_block_forward.1} parent=11 // pred_check_branch
        %167 = sbr.rel (%p165) target = $region20
      $region19: #{residual_block_forward.1} parent=11 // pred_region
        _
      $region20: #{residual_block_forward.1} parent=11 // pred_fallthru
        _
      // Predicated region
      $region21: #{residual_block_forward.1} parent=11 // pred_check
        %p168 = pneg %p100
      $region22: #{residual_block_forward.1} parent=11 // pred_check_branch
        %170 = sbr.rel (%p168) target = $region24
      $region23: #{residual_block_forward.1} parent=11 // pred_region
        _
      $region24: #{residual_block_forward.1} parent=11 // pred_fallthru
        _
      // Predicated region
      $region25: #{residual_block_forward.1} parent=11 // pred_check
        %p171 = pneg %p121
      $region26: #{residual_block_forward.1} parent=11 // pred_check_branch
        %173 = sbr.rel (%p171) target = $region28
      $region27: #{residual_block_forward.1} parent=11 // pred_region
        _
      $region28: #{residual_block_forward.1} parent=11 // pred_fallthru
        _
    $region12: #{residual_block_forward.1} parent=5 // pred_fallthru
      _
    %p174 = scmp.lt.s32.totalorder %s11, 2
    // Predicated region
    $region29: #{residual_block_forward.1} parent=5 // pred_check
      %p175 = pneg %p174
    $region30: #{residual_block_forward.1} parent=5 // pred_check_branch
      %177 = sbr.rel (%p175) target = $region32
    $region31: #{residual_block_forward.1} parent=5 // pred_region
      // Predicated region
      $region33: #{residual_block_forward.1} parent=31 // pred_check
        %p178 = pneg %p31
      $region34: #{residual_block_forward.1} parent=31 // pred_check_branch
        %180 = sbr.rel (%p178) target = $region36
      $region35: #{residual_block_forward.1} parent=31 // pred_region
        %p181 = scmp.lt.s32.totalorder %s11, 1
        %s182 = scalar_select %p181, %s11, 1
        %s183 = smul.addr %s182, 41
        %s184 = smul.addr %s183, 8
        %s185 = scalar_lea.vmem %s0, %s184
      $region36: #{residual_block_forward.1} parent=31 // pred_fallthru
        _
    $region32: #{residual_block_forward.1} parent=5 // pred_fallthru
      _
    %p186 = scmp.le.s32.totalorder 1, %s11
    %p187 = scmp.lt.s32.totalorder %s11, 3
    %p188 = pnand %p186, %p187
    %p189 = pneg %p188
    // Predicated region
    $region37: #{residual_block_forward.1} parent=5 // pred_check
      _
    $region38: #{residual_block_forward.1} parent=5 // pred_check_branch
      %191 = sbr.rel (%p188) target = $region40
    $region39: #{residual_block_forward.1} parent=5 // pred_region
      %s192 = ssub.s32 %s11, 1
      %p193 = scmp.lt.s32.totalorder %s16, 1
      %s194 = scalar_select %p193, %s16, 1
      %s195 = smul.addr %s194, 41
      %s196 = smul.addr %s195, 8
      %s197 = scalar_lea.vmem %s0, %s196
      %p198 = pneg %p37
      %p199 = pneg %p34
      %p200 = pneg %p58
      %p201 = pneg %p55
      %p202 = pneg %p79
      %p203 = pneg %p76
      %p204 = pneg %p100
      %p205 = pneg %p97
      %p206 = pneg %p121
      %p207 = pneg %p118
      %p208 = pneg %p147
      %p209 = pneg %p144
      %p210 = scmp.lt.s32.totalorder %s16, 1
      %s211 = scalar_select %p210, %s16, 1
      %s212 = smul.addr %s211, 36
      %s213 = smul.addr %s212, 8
      %s214 = scalar_lea.vmem %s5, %s213
      %p215 = scmp.lt.s32.totalorder %s16, 1
      %s216 = scalar_select %p215, %s16, 1
      %s217 = smul.addr %s216, 41
      %s218 = smul.addr %s217, 8
      %s219 = scalar_lea.vmem %s0, %s218
      %p220 = scmp.lt.s32.totalorder %s16, 1
      %s221 = scalar_select %p220, %s16, 1
      %s222 = smul.addr %s221, 36
      %s223 = smul.addr %s222, 8
      %s224 = scalar_lea.vmem %s5, %s223
      %v226 = vld [vmem:[%s3] sm:$0xf]
      %v227 = vld [vmem:[%s219] sm:$0xff]
      %v228 = vld [vmem:[%s219 + $0x8] sm:$0xff]
      %v229 = vld [vmem:[%s219 + $0x10] sm:$0xff]
      %v230 = vld [vmem:[%s219 + $0x18] sm:$0xff]
      %v231 = vld [vmem:[%s219 + $0x20] sm:$0xff]
      %v232 = vld [vmem:[%s219 + $0x28] sm:$0xff]
      %v233 = vld [vmem:[%s219 + $0x30] sm:$0xff]
      %v234 = vld [vmem:[%s219 + $0x38] sm:$0xff]
      %v235 = vld [vmem:[%s219 + $0x40] sm:$0xff]
      %v236 = vld [vmem:[%s219 + $0x48] sm:$0xff]
      %v237 = vld [vmem:[%s219 + $0x50] sm:$0xff]
      %v238 = vld [vmem:[%s219 + $0x58] sm:$0xff]
      %v239 = vld [vmem:[%s219 + $0x60] sm:$0xff]
      %v240 = vld [vmem:[%s219 + $0x68] sm:$0xff]
      %v241 = vld [vmem:[%s219 + $0x70] sm:$0xff]
      %v242 = vld [vmem:[%s219 + $0x78] sm:$0xff]
      %v243 = vld [vmem:[%s219 + $0x80] sm:$0xff]
      %v244 = vld [vmem:[%s219 + $0x88] sm:$0xff]
      %v245 = vld [vmem:[%s219 + $0x90] sm:$0xff]
      %v246 = vld [vmem:[%s219 + $0x98] sm:$0xff]
      %v247 = vld [vmem:[%s219 + $0xa0] sm:$0xff]
      %v248 = vld [vmem:[%s219 + $0xa8] sm:$0xff]
      %v249 = vld [vmem:[%s219 + $0xb0] sm:$0xff]
      %v250 = vld [vmem:[%s219 + $0xb8] sm:$0xff]
      %v251 = vld [vmem:[%s219 + $0xc0] sm:$0xff]
      %v252 = vld [vmem:[%s219 + $0xc8] sm:$0xff]
      %v253 = vld [vmem:[%s219 + $0xd0] sm:$0xff]
      %v254 = vld [vmem:[%s219 + $0xd8] sm:$0xff]
      %v255 = vld [vmem:[%s219 + $0xe0] sm:$0xff]
      %v256 = vld [vmem:[%s219 + $0xe8] sm:$0xff]
      %v257 = vld [vmem:[%s219 + $0xf0] sm:$0xff]
      %v258 = vld [vmem:[%s219 + $0xf8] sm:$0xff]
      %v259 = vld [vmem:[%s219 + $0x100] sm:$0xff]
      %v260 = vld [vmem:[%s219 + $0x108] sm:$0xff]
      %v261 = vld [vmem:[%s219 + $0x110] sm:$0xff]
      %v262 = vld [vmem:[%s219 + $0x118] sm:$0x3f]
      %v263 = vpack.c.bf16 %v227, %v227
      %v264 = vpack.c.bf16 %v228, %v228
      %v265 = vpack.c.bf16 %v229, %v229
      %v266 = vpack.c.bf16 %v230, %v230
      %v267 = vpack.c.bf16 %v231, %v231
      %v268 = vpack.c.bf16 %v232, %v232
      %v269 = vpack.c.bf16 %v233, %v233
      %v270 = vpack.c.bf16 %v234, %v234
      %v271 = vpack.c.bf16 %v235, %v235
      %v272 = vpack.c.bf16 %v236, %v236
      %v273 = vpack.c.bf16 %v237, %v237
      %v274 = vpack.c.bf16 %v238, %v238
      %v275 = vpack.c.bf16 %v239, %v239
      %v276 = vpack.c.bf16 %v240, %v240
      %v277 = vpack.c.bf16 %v241, %v241
      %v278 = vpack.c.bf16 %v242, %v242
      %v279 = vpack.c.bf16 %v243, %v243
      %v280 = vpack.c.bf16 %v244, %v244
      %v281 = vpack.c.bf16 %v245, %v245
      %v282 = vpack.c.bf16 %v246, %v246
      %v283 = vpack.c.bf16 %v247, %v247
      %v284 = vpack.c.bf16 %v248, %v248
      %v285 = vpack.c.bf16 %v249, %v249
      %v286 = vpack.c.bf16 %v250, %v250
      %v287 = vpack.c.bf16 %v251, %v251
      %v288 = vpack.c.bf16 %v252, %v252
      %v289 = vpack.c.bf16 %v253, %v253
      %v290 = vpack.c.bf16 %v254, %v254
      %v291 = vpack.c.bf16 %v255, %v255
      %v292 = vpack.c.bf16 %v256, %v256
      %v293 = vpack.c.bf16 %v257, %v257
      %v294 = vpack.c.bf16 %v258, %v258
      %v295 = vpack.c.bf16 %v259, %v259
      %v296 = vpack.c.bf16 %v260, %v260
      %v297 = vpack.c.bf16 %v261, %v261
      %v298 = vpack.c.bf16 %v262, %v262
      %vm299 = vcmask 519168
      %300 = vst.msk [vmem:[#allocation2] sm:$0xf] %vm299, %v263
      %301 = vst.msk [vmem:[#allocation2 + $0x14] sm:$0xf] %vm299, %v264
      %302 = vst.msk [vmem:[#allocation2 + $0x28] sm:$0xf] %vm299, %v265
      %303 = vst.msk [vmem:[#allocation2 + $0x3c] sm:$0xf] %vm299, %v266
      %304 = vst.msk [vmem:[#allocation2 + $0x50] sm:$0xf] %vm299, %v267
      %305 = vst.msk [vmem:[#allocation2 + $0x64] sm:$0xf] %vm299, %v268
      %306 = vst.msk [vmem:[#allocation2 + $0x78] sm:$0xf] %vm299, %v269
      %307 = vst.msk [vmem:[#allocation2 + $0x8c] sm:$0xf] %vm299, %v270
      %308 = vst.msk [vmem:[#allocation2 + $0xa0] sm:$0xf] %vm299, %v271
      %309 = vst.msk [vmem:[#allocation2 + $0xb4] sm:$0xf] %vm299, %v272
      %310 = vst.msk [vmem:[#allocation2 + $0xc8] sm:$0xf] %vm299, %v273
      %311 = vst.msk [vmem:[#allocation2 + $0xdc] sm:$0xf] %vm299, %v274
      %312 = vst.msk [vmem:[#allocation2 + $0xf0] sm:$0xf] %vm299, %v275
      %313 = vst.msk [vmem:[#allocation2 + $0x104] sm:$0xf] %vm299, %v276
      %314 = vst.msk [vmem:[#allocation2 + $0x118] sm:$0xf] %vm299, %v277
      %315 = vst.msk [vmem:[#allocation2 + $0x12c] sm:$0xf] %vm299, %v278
      %316 = vst.msk [vmem:[#allocation2 + $0x140] sm:$0xf] %vm299, %v279
      %317 = vst.msk [vmem:[#allocation2 + $0x154] sm:$0xf] %vm299, %v280
      %318 = vst.msk [vmem:[#allocation2 + $0x168] sm:$0xf] %vm299, %v281
      %319 = vst.msk [vmem:[#allocation2 + $0x17c] sm:$0xf] %vm299, %v282
      %320 = vst.msk [vmem:[#allocation2 + $0x190] sm:$0xf] %vm299, %v283
      %321 = vst.msk [vmem:[#allocation2 + $0x1a4] sm:$0xf] %vm299, %v284
      %322 = vst.msk [vmem:[#allocation2 + $0x1b8] sm:$0xf] %vm299, %v285
      %323 = vst.msk [vmem:[#allocation2 + $0x1cc] sm:$0xf] %vm299, %v286
      %324 = vst.msk [vmem:[#allocation2 + $0x1e0] sm:$0xf] %vm299, %v287
      %325 = vst.msk [vmem:[#allocation2 + $0x1f4] sm:$0xf] %vm299, %v288
      %326 = vst.msk [vmem:[#allocation2 + $0x208] sm:$0xf] %vm299, %v289
      %327 = vst.msk [vmem:[#allocation2 + $0x21c] sm:$0xf] %vm299, %v290
      %328 = vst.msk [vmem:[#allocation2 + $0x230] sm:$0xf] %vm299, %v291
      %329 = vst.msk [vmem:[#allocation2 + $0x244] sm:$0xf] %vm299, %v292
      %330 = vst.msk [vmem:[#allocation2 + $0x258] sm:$0xf] %vm299, %v293
      %331 = vst.msk [vmem:[#allocation2 + $0x26c] sm:$0xf] %vm299, %v294
      %332 = vst.msk [vmem:[#allocation2 + $0x280] sm:$0xf] %vm299, %v295
      %333 = vst.msk [vmem:[#allocation2 + $0x294] sm:$0xf] %vm299, %v296
      %334 = vst.msk [vmem:[#allocation2 + $0x2a8] sm:$0xf] %vm299, %v297
      %vm335 = vcmask 518144
      %336 = vst.msk [vmem:[#allocation2 + $0x2bc] sm:$0x7] %vm335, %v298
      %v337 = vld [vmem:[%s219 + $0x1] sm:$0xff]
      %v338 = vld [vmem:[%s219 + $0x9] sm:$0xff]
      %v339 = vld [vmem:[%s219 + $0x11] sm:$0xff]
      %v340 = vld [vmem:[%s219 + $0x19] sm:$0xff]
      %v341 = vld [vmem:[%s219 + $0x21] sm:$0xff]
      %v342 = vld [vmem:[%s219 + $0x29] sm:$0xff]
      %v343 = vld [vmem:[%s219 + $0x31] sm:$0xff]
      %v344 = vld [vmem:[%s219 + $0x39] sm:$0xff]
      %v345 = vld [vmem:[%s219 + $0x41] sm:$0xff]
      %v346 = vld [vmem:[%s219 + $0x49] sm:$0xff]
      %v347 = vld [vmem:[%s219 + $0x51] sm:$0xff]
      %v348 = vld [vmem:[%s219 + $0x59] sm:$0xff]
      %v349 = vld [vmem:[%s219 + $0x61] sm:$0xff]
      %v350 = vld [vmem:[%s219 + $0x69] sm:$0xff]
      %v351 = vld [vmem:[%s219 + $0x71] sm:$0xff]
      %v352 = vld [vmem:[%s219 + $0x79] sm:$0xff]
      %v353 = vld [vmem:[%s219 + $0x81] sm:$0xff]
      %v354 = vld [vmem:[%s219 + $0x89] sm:$0xff]
      %v355 = vld [vmem:[%s219 + $0x91] sm:$0xff]
      %v356 = vld [vmem:[%s219 + $0x99] sm:$0xff]
      %v357 = vld [vmem:[%s219 + $0xa1] sm:$0xff]
      %v358 = vld [vmem:[%s219 + $0xa9] sm:$0xff]
      %v359 = vld [vmem:[%s219 + $0xb1] sm:$0xff]
      %v360 = vld [vmem:[%s219 + $0xb9] sm:$0xff]
      %v361 = vld [vmem:[%s219 + $0xc1] sm:$0xff]
      %v362 = vld [vmem:[%s219 + $0xc9] sm:$0xff]
      %v363 = vld [vmem:[%s219 + $0xd1] sm:$0xff]
      %v364 = vld [vmem:[%s219 + $0xd9] sm:$0xff]
      %v365 = vld [vmem:[%s219 + $0xe1] sm:$0xff]
      %v366 = vld [vmem:[%s219 + $0xe9] sm:$0xff]
      %v367 = vld [vmem:[%s219 + $0xf1] sm:$0xff]
      %v368 = vld [vmem:[%s219 + $0xf9] sm:$0xff]
      %v369 = vld [vmem:[%s219 + $0x101] sm:$0xff]
      %v370 = vld [vmem:[%s219 + $0x109] sm:$0xff]
      %v371 = vld [vmem:[%s219 + $0x111] sm:$0xff]
      %v372 = vld [vmem:[%s219 + $0x119] sm:$0x3f]
      %v373 = vpack.c.bf16 %v337, %v337
      %v374 = vpack.c.bf16 %v338, %v338
      %v375 = vpack.c.bf16 %v339, %v339
      %v376 = vpack.c.bf16 %v340, %v340
      %v377 = vpack.c.bf16 %v341, %v341
      %v378 = vpack.c.bf16 %v342, %v342
      %v379 = vpack.c.bf16 %v343, %v343
      %v380 = vpack.c.bf16 %v344, %v344
      %v381 = vpack.c.bf16 %v345, %v345
      %v382 = vpack.c.bf16 %v346, %v346
      %v383 = vpack.c.bf16 %v347, %v347
      %v384 = vpack.c.bf16 %v348, %v348
      %v385 = vpack.c.bf16 %v349, %v349
      %v386 = vpack.c.bf16 %v350, %v350
      %v387 = vpack.c.bf16 %v351, %v351
      %v388 = vpack.c.bf16 %v352, %v352
      %v389 = vpack.c.bf16 %v353, %v353
      %v390 = vpack.c.bf16 %v354, %v354
      %v391 = vpack.c.bf16 %v355, %v355
      %v392 = vpack.c.bf16 %v356, %v356
      %v393 = vpack.c.bf16 %v357, %v357
      %v394 = vpack.c.bf16 %v358, %v358
      %v395 = vpack.c.bf16 %v359, %v359
      %v396 = vpack.c.bf16 %v360, %v360
      %v397 = vpack.c.bf16 %v361, %v361
      %v398 = vpack.c.bf16 %v362, %v362
      %v399 = vpack.c.bf16 %v363, %v363
      %v400 = vpack.c.bf16 %v364, %v364
      %v401 = vpack.c.bf16 %v365, %v365
      %v402 = vpack.c.bf16 %v366, %v366
      %v403 = vpack.c.bf16 %v367, %v367
      %v404 = vpack.c.bf16 %v368, %v368
      %v405 = vpack.c.bf16 %v369, %v369
      %v406 = vpack.c.bf16 %v370, %v370
      %v407 = vpack.c.bf16 %v371, %v371
      %v408 = vpack.c.bf16 %v372, %v372
      %445 = vrot.lane.b32.xlu0 %v373, 64
      %v446 = vpop.permute.xlu0 %445
      %447 = vrot.lane.b32.xlu0 %v374, 64
      %v448 = vpop.permute.xlu0 %447
      %449 = vrot.lane.b32.xlu0 %v375, 64
      %v450 = vpop.permute.xlu0 %449
      %451 = vrot.lane.b32.xlu0 %v376, 64
      %v452 = vpop.permute.xlu0 %451
      %453 = vrot.lane.b32.xlu0 %v377, 64
      %v454 = vpop.permute.xlu0 %453
      %455 = vrot.lane.b32.xlu0 %v378, 64
      %v456 = vpop.permute.xlu0 %455
      %457 = vrot.lane.b32.xlu0 %v379, 64
      %v458 = vpop.permute.xlu0 %457
      %459 = vrot.lane.b32.xlu0 %v380, 64
      %v460 = vpop.permute.xlu0 %459
      %461 = vrot.lane.b32.xlu0 %v381, 64
      %v462 = vpop.permute.xlu0 %461
      %463 = vrot.lane.b32.xlu0 %v382, 64
      %v464 = vpop.permute.xlu0 %463
      %465 = vrot.lane.b32.xlu0 %v383, 64
      %v466 = vpop.permute.xlu0 %465
      %467 = vrot.lane.b32.xlu0 %v384, 64
      %v468 = vpop.permute.xlu0 %467
      %469 = vrot.lane.b32.xlu0 %v385, 64
      %v470 = vpop.permute.xlu0 %469
      %471 = vrot.lane.b32.xlu0 %v386, 64
      %v472 = vpop.permute.xlu0 %471
      %473 = vrot.lane.b32.xlu0 %v387, 64
      %v474 = vpop.permute.xlu0 %473
      %475 = vrot.lane.b32.xlu0 %v388, 64
      %v476 = vpop.permute.xlu0 %475
      %477 = vrot.lane.b32.xlu0 %v389, 64
      %v478 = vpop.permute.xlu0 %477
      %479 = vrot.lane.b32.xlu0 %v390, 64
      %v480 = vpop.permute.xlu0 %479
      %481 = vrot.lane.b32.xlu0 %v391, 64
      %v482 = vpop.permute.xlu0 %481
      %483 = vrot.lane.b32.xlu0 %v392, 64
      %v484 = vpop.permute.xlu0 %483
      %485 = vrot.lane.b32.xlu0 %v393, 64
      %v486 = vpop.permute.xlu0 %485
      %487 = vrot.lane.b32.xlu0 %v394, 64
      %v488 = vpop.permute.xlu0 %487
      %489 = vrot.lane.b32.xlu0 %v395, 64
      %v490 = vpop.permute.xlu0 %489
      %491 = vrot.lane.b32.xlu0 %v396, 64
      %v492 = vpop.permute.xlu0 %491
      %493 = vrot.lane.b32.xlu0 %v397, 64
      %v494 = vpop.permute.xlu0 %493
      %495 = vrot.lane.b32.xlu0 %v398, 64
      %v496 = vpop.permute.xlu0 %495
      %497 = vrot.lane.b32.xlu0 %v399, 64
      %v498 = vpop.permute.xlu0 %497
      %499 = vrot.lane.b32.xlu0 %v400, 64
      %v500 = vpop.permute.xlu0 %499
      %501 = vrot.lane.b32.xlu0 %v401, 64
      %v502 = vpop.permute.xlu0 %501
      %503 = vrot.lane.b32.xlu0 %v402, 64
      %v504 = vpop.permute.xlu0 %503
      %505 = vrot.lane.b32.xlu0 %v403, 64
      %v506 = vpop.permute.xlu0 %505
      %507 = vrot.lane.b32.xlu0 %v404, 64
      %v508 = vpop.permute.xlu0 %507
      %509 = vrot.lane.b32.xlu0 %v405, 64
      %v510 = vpop.permute.xlu0 %509
      %511 = vrot.lane.b32.xlu0 %v406, 64
      %v512 = vpop.permute.xlu0 %511
      %513 = vrot.lane.b32.xlu0 %v407, 64
      %v514 = vpop.permute.xlu0 %513
      %515 = vrot.lane.b32.xlu0 %v408, 64
      %v516 = vpop.permute.xlu0 %515
      %vm553 = vcmask 1043968
      %554 = vst.msk [vmem:[#allocation2] sm:$0xf] %vm553, %v446
      %555 = vst.msk [vmem:[#allocation2 + $0x14] sm:$0xf] %vm553, %v448
      %556 = vst.msk [vmem:[#allocation2 + $0x28] sm:$0xf] %vm553, %v450
      %557 = vst.msk [vmem:[#allocation2 + $0x3c] sm:$0xf] %vm553, %v452
      %558 = vst.msk [vmem:[#allocation2 + $0x50] sm:$0xf] %vm553, %v454
      %559 = vst.msk [vmem:[#allocation2 + $0x64] sm:$0xf] %vm553, %v456
      %560 = vst.msk [vmem:[#allocation2 + $0x78] sm:$0xf] %vm553, %v458
      %561 = vst.msk [vmem:[#allocation2 + $0x8c] sm:$0xf] %vm553, %v460
      %562 = vst.msk [vmem:[#allocation2 + $0xa0] sm:$0xf] %vm553, %v462
      %563 = vst.msk [vmem:[#allocation2 + $0xb4] sm:$0xf] %vm553, %v464
      %564 = vst.msk [vmem:[#allocation2 + $0xc8] sm:$0xf] %vm553, %v466
      %565 = vst.msk [vmem:[#allocation2 + $0xdc] sm:$0xf] %vm553, %v468
      %566 = vst.msk [vmem:[#allocation2 + $0xf0] sm:$0xf] %vm553, %v470
      %567 = vst.msk [vmem:[#allocation2 + $0x104] sm:$0xf] %vm553, %v472
      %568 = vst.msk [vmem:[#allocation2 + $0x118] sm:$0xf] %vm553, %v474
      %569 = vst.msk [vmem:[#allocation2 + $0x12c] sm:$0xf] %vm553, %v476
      %570 = vst.msk [vmem:[#allocation2 + $0x140] sm:$0xf] %vm553, %v478
      %571 = vst.msk [vmem:[#allocation2 + $0x154] sm:$0xf] %vm553, %v480
      %572 = vst.msk [vmem:[#allocation2 + $0x168] sm:$0xf] %vm553, %v482
      %573 = vst.msk [vmem:[#allocation2 + $0x17c] sm:$0xf] %vm553, %v484
      %574 = vst.msk [vmem:[#allocation2 + $0x190] sm:$0xf] %vm553, %v486
      %575 = vst.msk [vmem:[#allocation2 + $0x1a4] sm:$0xf] %vm553, %v488
      %576 = vst.msk [vmem:[#allocation2 + $0x1b8] sm:$0xf] %vm553, %v490
      %577 = vst.msk [vmem:[#allocation2 + $0x1cc] sm:$0xf] %vm553, %v492
      %578 = vst.msk [vmem:[#allocation2 + $0x1e0] sm:$0xf] %vm553, %v494
      %579 = vst.msk [vmem:[#allocation2 + $0x1f4] sm:$0xf] %vm553, %v496
      %580 = vst.msk [vmem:[#allocation2 + $0x208] sm:$0xf] %vm553, %v498
      %581 = vst.msk [vmem:[#allocation2 + $0x21c] sm:$0xf] %vm553, %v500
      %582 = vst.msk [vmem:[#allocation2 + $0x230] sm:$0xf] %vm553, %v502
      %583 = vst.msk [vmem:[#allocation2 + $0x244] sm:$0xf] %vm553, %v504
      %584 = vst.msk [vmem:[#allocation2 + $0x258] sm:$0xf] %vm553, %v506
      %585 = vst.msk [vmem:[#allocation2 + $0x26c] sm:$0xf] %vm553, %v508
      %586 = vst.msk [vmem:[#allocation2 + $0x280] sm:$0xf] %vm553, %v510
      %587 = vst.msk [vmem:[#allocation2 + $0x294] sm:$0xf] %vm553, %v512
      %588 = vst.msk [vmem:[#allocation2 + $0x2a8] sm:$0xf] %vm553, %v514
      %vm589 = vcmask 1042944
      %590 = vst.msk [vmem:[#allocation2 + $0x2bc] sm:$0x7] %vm589, %v516
      %v591 = vld [vmem:[%s219 + $0x2] sm:$0xff]
      %v592 = vld [vmem:[%s219 + $0xa] sm:$0xff]
      %v593 = vld [vmem:[%s219 + $0x12] sm:$0xff]
      %v594 = vld [vmem:[%s219 + $0x1a] sm:$0xff]
      %v595 = vld [vmem:[%s219 + $0x22] sm:$0xff]
      %v596 = vld [vmem:[%s219 + $0x2a] sm:$0xff]
      %v597 = vld [vmem:[%s219 + $0x32] sm:$0xff]
      %v598 = vld [vmem:[%s219 + $0x3a] sm:$0xff]
      %v599 = vld [vmem:[%s219 + $0x42] sm:$0xff]
      %v600 = vld [vmem:[%s219 + $0x4a] sm:$0xff]
      %v601 = vld [vmem:[%s219 + $0x52] sm:$0xff]
      %v602 = vld [vmem:[%s219 + $0x5a] sm:$0xff]
      %v603 = vld [vmem:[%s219 + $0x62] sm:$0xff]
      %v604 = vld [vmem:[%s219 + $0x6a] sm:$0xff]
      %v605 = vld [vmem:[%s219 + $0x72] sm:$0xff]
      %v606 = vld [vmem:[%s219 + $0x7a] sm:$0xff]
      %v607 = vld [vmem:[%s219 + $0x82] sm:$0xff]
      %v608 = vld [vmem:[%s219 + $0x8a] sm:$0xff]
      %v609 = vld [vmem:[%s219 + $0x92] sm:$0xff]
      %v610 = vld [vmem:[%s219 + $0x9a] sm:$0xff]
      %v611 = vld [vmem:[%s219 + $0xa2] sm:$0xff]
      %v612 = vld [vmem:[%s219 + $0xaa] sm:$0xff]
      %v613 = vld [vmem:[%s219 + $0xb2] sm:$0xff]
      %v614 = vld [vmem:[%s219 + $0xba] sm:$0xff]
      %v615 = vld [vmem:[%s219 + $0xc2] sm:$0xff]
      %v616 = vld [vmem:[%s219 + $0xca] sm:$0xff]
      %v617 = vld [vmem:[%s219 + $0xd2] sm:$0xff]
      %v618 = vld [vmem:[%s219 + $0xda] sm:$0xff]
      %v619 = vld [vmem:[%s219 + $0xe2] sm:$0xff]
      %v620 = vld [vmem:[%s219 + $0xea] sm:$0xff]
      %v621 = vld [vmem:[%s219 + $0xf2] sm:$0xff]
      %v622 = vld [vmem:[%s219 + $0xfa] sm:$0xff]
      %v623 = vld [vmem:[%s219 + $0x102] sm:$0xff]
      %v624 = vld [vmem:[%s219 + $0x10a] sm:$0xff]
      %v625 = vld [vmem:[%s219 + $0x112] sm:$0xff]
      %v626 = vld [vmem:[%s219 + $0x11a] sm:$0x3f]
      %v627 = vpack.c.bf16 %v591, %v591
      %v628 = vpack.c.bf16 %v592, %v592
      %v629 = vpack.c.bf16 %v593, %v593
      %v630 = vpack.c.bf16 %v594, %v594
      %v631 = vpack.c.bf16 %v595, %v595
      %v632 = vpack.c.bf16 %v596, %v596
      %v633 = vpack.c.bf16 %v597, %v597
      %v634 = vpack.c.bf16 %v598, %v598
      %v635 = vpack.c.bf16 %v599, %v599
      %v636 = vpack.c.bf16 %v600, %v600
      %v637 = vpack.c.bf16 %v601, %v601
      %v638 = vpack.c.bf16 %v602, %v602
      %v639 = vpack.c.bf16 %v603, %v603
      %v640 = vpack.c.bf16 %v604, %v604
      %v641 = vpack.c.bf16 %v605, %v605
      %v642 = vpack.c.bf16 %v606, %v606
      %v643 = vpack.c.bf16 %v607, %v607
      %v644 = vpack.c.bf16 %v608, %v608
      %v645 = vpack.c.bf16 %v609, %v609
      %v646 = vpack.c.bf16 %v610, %v610
      %v647 = vpack.c.bf16 %v611, %v611
      %v648 = vpack.c.bf16 %v612, %v612
      %v649 = vpack.c.bf16 %v613, %v613
      %v650 = vpack.c.bf16 %v614, %v614
      %v651 = vpack.c.bf16 %v615, %v615
      %v652 = vpack.c.bf16 %v616, %v616
      %v653 = vpack.c.bf16 %v617, %v617
      %v654 = vpack.c.bf16 %v618, %v618
      %v655 = vpack.c.bf16 %v619, %v619
      %v656 = vpack.c.bf16 %v620, %v620
      %v657 = vpack.c.bf16 %v621, %v621
      %v658 = vpack.c.bf16 %v622, %v622
      %v659 = vpack.c.bf16 %v623, %v623
      %v660 = vpack.c.bf16 %v624, %v624
      %v661 = vpack.c.bf16 %v625, %v625
      %v662 = vpack.c.bf16 %v626, %v626
      %663 = vst.msk [vmem:[#allocation2 + $0x4] sm:$0xf] %vm299, %v627
      %664 = vst.msk [vmem:[#allocation2 + $0x18] sm:$0xf] %vm299, %v628
      %665 = vst.msk [vmem:[#allocation2 + $0x2c] sm:$0xf] %vm299, %v629
      %666 = vst.msk [vmem:[#allocation2 + $0x40] sm:$0xf] %vm299, %v630
      %667 = vst.msk [vmem:[#allocation2 + $0x54] sm:$0xf] %vm299, %v631
      %668 = vst.msk [vmem:[#allocation2 + $0x68] sm:$0xf] %vm299, %v632
      %669 = vst.msk [vmem:[#allocation2 + $0x7c] sm:$0xf] %vm299, %v633
      %670 = vst.msk [vmem:[#allocation2 + $0x90] sm:$0xf] %vm299, %v634
      %671 = vst.msk [vmem:[#allocation2 + $0xa4] sm:$0xf] %vm299, %v635
      %672 = vst.msk [vmem:[#allocation2 + $0xb8] sm:$0xf] %vm299, %v636
      %673 = vst.msk [vmem:[#allocation2 + $0xcc] sm:$0xf] %vm299, %v637
      %674 = vst.msk [vmem:[#allocation2 + $0xe0] sm:$0xf] %vm299, %v638
      %675 = vst.msk [vmem:[#allocation2 + $0xf4] sm:$0xf] %vm299, %v639
      %676 = vst.msk [vmem:[#allocation2 + $0x108] sm:$0xf] %vm299, %v640
      %677 = vst.msk [vmem:[#allocation2 + $0x11c] sm:$0xf] %vm299, %v641
      %678 = vst.msk [vmem:[#allocation2 + $0x130] sm:$0xf] %vm299, %v642
      %679 = vst.msk [vmem:[#allocation2 + $0x144] sm:$0xf] %vm299, %v643
      %680 = vst.msk [vmem:[#allocation2 + $0x158] sm:$0xf] %vm299, %v644
      %681 = vst.msk [vmem:[#allocation2 + $0x16c] sm:$0xf] %vm299, %v645
      %682 = vst.msk [vmem:[#allocation2 + $0x180] sm:$0xf] %vm299, %v646
      %683 = vst.msk [vmem:[#allocation2 + $0x194] sm:$0xf] %vm299, %v647
      %684 = vst.msk [vmem:[#allocation2 + $0x1a8] sm:$0xf] %vm299, %v648
      %685 = vst.msk [vmem:[#allocation2 + $0x1bc] sm:$0xf] %vm299, %v649
      %686 = vst.msk [vmem:[#allocation2 + $0x1d0] sm:$0xf] %vm299, %v650
      %687 = vst.msk [vmem:[#allocation2 + $0x1e4] sm:$0xf] %vm299, %v651
      %688 = vst.msk [vmem:[#allocation2 + $0x1f8] sm:$0xf] %vm299, %v652
      %689 = vst.msk [vmem:[#allocation2 + $0x20c] sm:$0xf] %vm299, %v653
      %690 = vst.msk [vmem:[#allocation2 + $0x220] sm:$0xf] %vm299, %v654
      %691 = vst.msk [vmem:[#allocation2 + $0x234] sm:$0xf] %vm299, %v655
      %692 = vst.msk [vmem:[#allocation2 + $0x248] sm:$0xf] %vm299, %v656
      %693 = vst.msk [vmem:[#allocation2 + $0x25c] sm:$0xf] %vm299, %v657
      %694 = vst.msk [vmem:[#allocation2 + $0x270] sm:$0xf] %vm299, %v658
      %695 = vst.msk [vmem:[#allocation2 + $0x284] sm:$0xf] %vm299, %v659
      %696 = vst.msk [vmem:[#allocation2 + $0x298] sm:$0xf] %vm299, %v660
      %697 = vst.msk [vmem:[#allocation2 + $0x2ac] sm:$0xf] %vm299, %v661
      %698 = vst.msk [vmem:[#allocation2 + $0x2c0] sm:$0x7] %vm335, %v662
      %v699 = vld [vmem:[%s219 + $0x12] sm:$0xff]
      %v700 = vld [vmem:[%s219 + $0x1a] sm:$0xff]
      %v701 = vld [vmem:[%s219 + $0x22] sm:$0xff]
      %v702 = vld [vmem:[%s219 + $0x2a] sm:$0xff]
      %v703 = vld [vmem:[%s219 + $0x32] sm:$0xff]
      %v704 = vld [vmem:[%s219 + $0x3a] sm:$0xff]
      %v705 = vld [vmem:[%s219 + $0x42] sm:$0xff]
      %v706 = vld [vmem:[%s219 + $0x4a] sm:$0xff]
      %v707 = vld [vmem:[%s219 + $0x52] sm:$0xff]
      %v708 = vld [vmem:[%s219 + $0x5a] sm:$0xff]
      %v709 = vld [vmem:[%s219 + $0x62] sm:$0xff]
      %v710 = vld [vmem:[%s219 + $0x6a] sm:$0xff]
      %v711 = vld [vmem:[%s219 + $0x72] sm:$0xff]
      %v712 = vld [vmem:[%s219 + $0x7a] sm:$0xff]
      %v713 = vld [vmem:[%s219 + $0x82] sm:$0xff]
      %v714 = vld [vmem:[%s219 + $0x8a] sm:$0xff]
      %v715 = vld [vmem:[%s219 + $0x92] sm:$0xff]
      %v716 = vld [vmem:[%s219 + $0x9a] sm:$0xff]
      %v717 = vld [vmem:[%s219 + $0xa2] sm:$0xff]
      %v718 = vld [vmem:[%s219 + $0xaa] sm:$0xff]
      %v719 = vld [vmem:[%s219 + $0xb2] sm:$0xff]
      %v720 = vld [vmem:[%s219 + $0xba] sm:$0xff]
      %v721 = vld [vmem:[%s219 + $0xc2] sm:$0xff]
      %v722 = vld [vmem:[%s219 + $0xca] sm:$0xff]
      %v723 = vld [vmem:[%s219 + $0xd2] sm:$0xff]
      %v724 = vld [vmem:[%s219 + $0xda] sm:$0xff]
      %v725 = vld [vmem:[%s219 + $0xe2] sm:$0xff]
      %v726 = vld [vmem:[%s219 + $0xea] sm:$0xff]
      %v727 = vld [vmem:[%s219 + $0xf2] sm:$0xff]
      %v728 = vld [vmem:[%s219 + $0xfa] sm:$0xff]
      %v729 = vld [vmem:[%s219 + $0x102] sm:$0xff]
      %v730 = vld [vmem:[%s219 + $0x10a] sm:$0xff]
      %v731 = vld [vmem:[%s219 + $0x112] sm:$0xff]
      %v732 = vld [vmem:[%s219 + $0x11a] sm:$0xff]
      %v733 = vld [vmem:[%s219 + $0x122] sm:$0xff]
      %v734 = vld [vmem:[%s219 + $0x12a] sm:$0x3f]
      %v735 = vpack.c.bf16 %v699, %v699
      %v736 = vpack.c.bf16 %v700, %v700
      %v737 = vpack.c.bf16 %v701, %v701
      %v738 = vpack.c.bf16 %v702, %v702
      %v739 = vpack.c.bf16 %v703, %v703
      %v740 = vpack.c.bf16 %v704, %v704
      %v741 = vpack.c.bf16 %v705, %v705
      %v742 = vpack.c.bf16 %v706, %v706
      %v743 = vpack.c.bf16 %v707, %v707
      %v744 = vpack.c.bf16 %v708, %v708
      %v745 = vpack.c.bf16 %v709, %v709
      %v746 = vpack.c.bf16 %v710, %v710
      %v747 = vpack.c.bf16 %v711, %v711
      %v748 = vpack.c.bf16 %v712, %v712
      %v749 = vpack.c.bf16 %v713, %v713
      %v750 = vpack.c.bf16 %v714, %v714
      %v751 = vpack.c.bf16 %v715, %v715
      %v752 = vpack.c.bf16 %v716, %v716
      %v753 = vpack.c.bf16 %v717, %v717
      %v754 = vpack.c.bf16 %v718, %v718
      %v755 = vpack.c.bf16 %v719, %v719
      %v756 = vpack.c.bf16 %v720, %v720
      %v757 = vpack.c.bf16 %v721, %v721
      %v758 = vpack.c.bf16 %v722, %v722
      %v759 = vpack.c.bf16 %v723, %v723
      %v760 = vpack.c.bf16 %v724, %v724
      %v761 = vpack.c.bf16 %v725, %v725
      %v762 = vpack.c.bf16 %v726, %v726
      %v763 = vpack.c.bf16 %v727, %v727
      %v764 = vpack.c.bf16 %v728, %v728
      %v765 = vpack.c.bf16 %v729, %v729
      %v766 = vpack.c.bf16 %v730, %v730
      %v767 = vpack.c.bf16 %v731, %v731
      %v768 = vpack.c.bf16 %v732, %v732
      %v769 = vpack.c.bf16 %v733, %v733
      %v770 = vpack.c.bf16 %v734, %v734
      %807 = vrot.lane.b32.xlu0 %v735, 64
      %v808 = vpop.permute.xlu0 %807
      %809 = vrot.lane.b32.xlu0 %v736, 64
      %v810 = vpop.permute.xlu0 %809
      %811 = vrot.lane.b32.xlu0 %v737, 64
      %v812 = vpop.permute.xlu0 %811
      %813 = vrot.lane.b32.xlu0 %v738, 64
      %v814 = vpop.permute.xlu0 %813
      %815 = vrot.lane.b32.xlu0 %v739, 64
      %v816 = vpop.permute.xlu0 %815
      %817 = vrot.lane.b32.xlu0 %v740, 64
      %v818 = vpop.permute.xlu0 %817
      %819 = vrot.lane.b32.xlu0 %v741, 64
      %v820 = vpop.permute.xlu0 %819
      %821 = vrot.lane.b32.xlu0 %v742, 64
      %v822 = vpop.permute.xlu0 %821
      %823 = vrot.lane.b32.xlu0 %v743, 64
      %v824 = vpop.permute.xlu0 %823
      %825 = vrot.lane.b32.xlu0 %v744, 64
      %v826 = vpop.permute.xlu0 %825
      %827 = vrot.lane.b32.xlu0 %v745, 64
      %v828 = vpop.permute.xlu0 %827
      %829 = vrot.lane.b32.xlu0 %v746, 64
      %v830 = vpop.permute.xlu0 %829
      %831 = vrot.lane.b32.xlu0 %v747, 64
      %v832 = vpop.permute.xlu0 %831
      %833 = vrot.lane.b32.xlu0 %v748, 64
      %v834 = vpop.permute.xlu0 %833
      %835 = vrot.lane.b32.xlu0 %v749, 64
      %v836 = vpop.permute.xlu0 %835
      %837 = vrot.lane.b32.xlu0 %v750, 64
      %v838 = vpop.permute.xlu0 %837
      %839 = vrot.lane.b32.xlu0 %v751, 64
      %v840 = vpop.permute.xlu0 %839
      %841 = vrot.lane.b32.xlu0 %v752, 64
      %v842 = vpop.permute.xlu0 %841
      %843 = vrot.lane.b32.xlu0 %v753, 64
      %v844 = vpop.permute.xlu0 %843
      %845 = vrot.lane.b32.xlu0 %v754, 64
      %v846 = vpop.permute.xlu0 %845
      %847 = vrot.lane.b32.xlu0 %v755, 64
      %v848 = vpop.permute.xlu0 %847
      %849 = vrot.lane.b32.xlu0 %v756, 64
      %v850 = vpop.permute.xlu0 %849
      %851 = vrot.lane.b32.xlu0 %v757, 64
      %v852 = vpop.permute.xlu0 %851
      %853 = vrot.lane.b32.xlu0 %v758, 64
      %v854 = vpop.permute.xlu0 %853
      %855 = vrot.lane.b32.xlu0 %v759, 64
      %v856 = vpop.permute.xlu0 %855
      %857 = vrot.lane.b32.xlu0 %v760, 64
      %v858 = vpop.permute.xlu0 %857
      %859 = vrot.lane.b32.xlu0 %v761, 64
      %v860 = vpop.permute.xlu0 %859
      %861 = vrot.lane.b32.xlu0 %v762, 64
      %v862 = vpop.permute.xlu0 %861
      %863 = vrot.lane.b32.xlu0 %v763, 64
      %v864 = vpop.permute.xlu0 %863
      %865 = vrot.lane.b32.xlu0 %v764, 64
      %v866 = vpop.permute.xlu0 %865
      %867 = vrot.lane.b32.xlu0 %v765, 64
      %v868 = vpop.permute.xlu0 %867
      %869 = vrot.lane.b32.xlu0 %v766, 64
      %v870 = vpop.permute.xlu0 %869
      %871 = vrot.lane.b32.xlu0 %v767, 64
      %v872 = vpop.permute.xlu0 %871
      %873 = vrot.lane.b32.xlu0 %v768, 64
      %v874 = vpop.permute.xlu0 %873
      %875 = vrot.lane.b32.xlu0 %v769, 64
      %v876 = vpop.permute.xlu0 %875
      %877 = vrot.lane.b32.xlu0 %v770, 64
      %v878 = vpop.permute.xlu0 %877
      %915 = vst.msk [vmem:[#allocation2 + $0x4] sm:$0xf] %vm553, %v808
      %916 = vst.msk [vmem:[#allocation2 + $0x18] sm:$0xf] %vm553, %v810
      %917 = vst.msk [vmem:[#allocation2 + $0x2c] sm:$0xf] %vm553, %v812
      %918 = vst.msk [vmem:[#allocation2 + $0x40] sm:$0xf] %vm553, %v814
      %919 = vst.msk [vmem:[#allocation2 + $0x54] sm:$0xf] %vm553, %v816
      %920 = vst.msk [vmem:[#allocation2 + $0x68] sm:$0xf] %vm553, %v818
      %921 = vst.msk [vmem:[#allocation2 + $0x7c] sm:$0xf] %vm553, %v820
      %922 = vst.msk [vmem:[#allocation2 + $0x90] sm:$0xf] %vm553, %v822
      %923 = vst.msk [vmem:[#allocation2 + $0xa4] sm:$0xf] %vm553, %v824
      %924 = vst.msk [vmem:[#allocation2 + $0xb8] sm:$0xf] %vm553, %v826
      %925 = vst.msk [vmem:[#allocation2 + $0xcc] sm:$0xf] %vm553, %v828
      %926 = vst.msk [vmem:[#allocation2 + $0xe0] sm:$0xf] %vm553, %v830
      %927 = vst.msk [vmem:[#allocation2 + $0xf4] sm:$0xf] %vm553, %v832
      %928 = vst.msk [vmem:[#allocation2 + $0x108] sm:$0xf] %vm553, %v834
      %929 = vst.msk [vmem:[#allocation2 + $0x11c] sm:$0xf] %vm553, %v836
      %930 = vst.msk [vmem:[#allocation2 + $0x130] sm:$0xf] %vm553, %v838
      %931 = vst.msk [vmem:[#allocation2 + $0x144] sm:$0xf] %vm553, %v840
      %932 = vst.msk [vmem:[#allocation2 + $0x158] sm:$0xf] %vm553, %v842
      %933 = vst.msk [vmem:[#allocation2 + $0x16c] sm:$0xf] %vm553, %v844
      %934 = vst.msk [vmem:[#allocation2 + $0x180] sm:$0xf] %vm553, %v846
      %935 = vst.msk [vmem:[#allocation2 + $0x194] sm:$0xf] %vm553, %v848
      %936 = vst.msk [vmem:[#allocation2 + $0x1a8] sm:$0xf] %vm553, %v850
      %937 = vst.msk [vmem:[#allocation2 + $0x1bc] sm:$0xf] %vm553, %v852
      %938 = vst.msk [vmem:[#allocation2 + $0x1d0] sm:$0xf] %vm553, %v854
      %939 = vst.msk [vmem:[#allocation2 + $0x1e4] sm:$0xf] %vm553, %v856
      %940 = vst.msk [vmem:[#allocation2 + $0x1f8] sm:$0xf] %vm553, %v858
      %941 = vst.msk [vmem:[#allocation2 + $0x20c] sm:$0xf] %vm553, %v860
      %942 = vst.msk [vmem:[#allocation2 + $0x220] sm:$0xf] %vm553, %v862
      %943 = vst.msk [vmem:[#allocation2 + $0x234] sm:$0xf] %vm553, %v864
      %944 = vst.msk [vmem:[#allocation2 + $0x248] sm:$0xf] %vm553, %v866
      %945 = vst.msk [vmem:[#allocation2 + $0x25c] sm:$0xf] %vm553, %v868
      %946 = vst.msk [vmem:[#allocation2 + $0x270] sm:$0xf] %vm553, %v870
      %947 = vst.msk [vmem:[#allocation2 + $0x284] sm:$0xf] %vm553, %v872
      %948 = vst.msk [vmem:[#allocation2 + $0x298] sm:$0xf] %vm553, %v874
      %949 = vst.msk [vmem:[#allocation2 + $0x2ac] sm:$0xf] %vm553, %v876
      %950 = vst.msk [vmem:[#allocation2 + $0x2c0] sm:$0x7] %vm589, %v878
      %v951 = vld [vmem:[%s219 + $0x13] sm:$0xff]
      %v952 = vld [vmem:[%s219 + $0x1b] sm:$0xff]
      %v953 = vld [vmem:[%s219 + $0x23] sm:$0xff]
      %v954 = vld [vmem:[%s219 + $0x2b] sm:$0xff]
      %v955 = vld [vmem:[%s219 + $0x33] sm:$0xff]
      %v956 = vld [vmem:[%s219 + $0x3b] sm:$0xff]
      %v957 = vld [vmem:[%s219 + $0x43] sm:$0xff]
      %v958 = vld [vmem:[%s219 + $0x4b] sm:$0xff]
      %v959 = vld [vmem:[%s219 + $0x53] sm:$0xff]
      %v960 = vld [vmem:[%s219 + $0x5b] sm:$0xff]
      %v961 = vld [vmem:[%s219 + $0x63] sm:$0xff]
      %v962 = vld [vmem:[%s219 + $0x6b] sm:$0xff]
      %v963 = vld [vmem:[%s219 + $0x73] sm:$0xff]
      %v964 = vld [vmem:[%s219 + $0x7b] sm:$0xff]
      %v965 = vld [vmem:[%s219 + $0x83] sm:$0xff]
      %v966 = vld [vmem:[%s219 + $0x8b] sm:$0xff]
      %v967 = vld [vmem:[%s219 + $0x93] sm:$0xff]
      %v968 = vld [vmem:[%s219 + $0x9b] sm:$0xff]
      %v969 = vld [vmem:[%s219 + $0xa3] sm:$0xff]
      %v970 = vld [vmem:[%s219 + $0xab] sm:$0xff]
      %v971 = vld [vmem:[%s219 + $0xb3] sm:$0xff]
      %v972 = vld [vmem:[%s219 + $0xbb] sm:$0xff]
      %v973 = vld [vmem:[%s219 + $0xc3] sm:$0xff]
      %v974 = vld [vmem:[%s219 + $0xcb] sm:$0xff]
      %v975 = vld [vmem:[%s219 + $0xd3] sm:$0xff]
      %v976 = vld [vmem:[%s219 + $0xdb] sm:$0xff]
      %v977 = vld [vmem:[%s219 + $0xe3] sm:$0xff]
      %v978 = vld [vmem:[%s219 + $0xeb] sm:$0xff]
      %v979 = vld [vmem:[%s219 + $0xf3] sm:$0xff]
      %v980 = vld [vmem:[%s219 + $0xfb] sm:$0xff]
      %v981 = vld [vmem:[%s219 + $0x103] sm:$0xff]
      %v982 = vld [vmem:[%s219 + $0x10b] sm:$0xff]
      %v983 = vld [vmem:[%s219 + $0x113] sm:$0xff]
      %v984 = vld [vmem:[%s219 + $0x11b] sm:$0xff]
      %v985 = vld [vmem:[%s219 + $0x123] sm:$0xff]
      %v986 = vld [vmem:[%s219 + $0x12b] sm:$0x3f]
      %v987 = vpack.c.bf16 %v951, %v951
      %v988 = vpack.c.bf16 %v952, %v952
      %v989 = vpack.c.bf16 %v953, %v953
      %v990 = vpack.c.bf16 %v954, %v954
      %v991 = vpack.c.bf16 %v955, %v955
      %v992 = vpack.c.bf16 %v956, %v956
      %v993 = vpack.c.bf16 %v957, %v957
      %v994 = vpack.c.bf16 %v958, %v958
      %v995 = vpack.c.bf16 %v959, %v959
      %v996 = vpack.c.bf16 %v960, %v960
      %v997 = vpack.c.bf16 %v961, %v961
      %v998 = vpack.c.bf16 %v962, %v962
      %v999 = vpack.c.bf16 %v963, %v963
      %v1000 = vpack.c.bf16 %v964, %v964
      %v1001 = vpack.c.bf16 %v965, %v965
      %v1002 = vpack.c.bf16 %v966, %v966
      %v1003 = vpack.c.bf16 %v967, %v967
      %v1004 = vpack.c.bf16 %v968, %v968
      %v1005 = vpack.c.bf16 %v969, %v969
      %v1006 = vpack.c.bf16 %v970, %v970
      %v1007 = vpack.c.bf16 %v971, %v971
      %v1008 = vpack.c.bf16 %v972, %v972
      %v1009 = vpack.c.bf16 %v973, %v973
      %v1010 = vpack.c.bf16 %v974, %v974
      %v1011 = vpack.c.bf16 %v975, %v975
      %v1012 = vpack.c.bf16 %v976, %v976
      %v1013 = vpack.c.bf16 %v977, %v977
      %v1014 = vpack.c.bf16 %v978, %v978
      %v1015 = vpack.c.bf16 %v979, %v979
      %v1016 = vpack.c.bf16 %v980, %v980
      %v1017 = vpack.c.bf16 %v981, %v981
      %v1018 = vpack.c.bf16 %v982, %v982
      %v1019 = vpack.c.bf16 %v983, %v983
      %v1020 = vpack.c.bf16 %v984, %v984
      %v1021 = vpack.c.bf16 %v985, %v985
      %v1022 = vpack.c.bf16 %v986, %v986
      %1023 = vst.msk [vmem:[#allocation2 + $0x8] sm:$0xf] %vm299, %v987
      %1024 = vst.msk [vmem:[#allocation2 + $0x1c] sm:$0xf] %vm299, %v988
      %1025 = vst.msk [vmem:[#allocation2 + $0x30] sm:$0xf] %vm299, %v989
      %1026 = vst.msk [vmem:[#allocation2 + $0x44] sm:$0xf] %vm299, %v990
      %1027 = vst.msk [vmem:[#allocation2 + $0x58] sm:$0xf] %vm299, %v991
      %1028 = vst.msk [vmem:[#allocation2 + $0x6c] sm:$0xf] %vm299, %v992
      %1029 = vst.msk [vmem:[#allocation2 + $0x80] sm:$0xf] %vm299, %v993
      %1030 = vst.msk [vmem:[#allocation2 + $0x94] sm:$0xf] %vm299, %v994
      %1031 = vst.msk [vmem:[#allocation2 + $0xa8] sm:$0xf] %vm299, %v995
      %1032 = vst.msk [vmem:[#allocation2 + $0xbc] sm:$0xf] %vm299, %v996
      %1033 = vst.msk [vmem:[#allocation2 + $0xd0] sm:$0xf] %vm299, %v997
      %1034 = vst.msk [vmem:[#allocation2 + $0xe4] sm:$0xf] %vm299, %v998
      %1035 = vst.msk [vmem:[#allocation2 + $0xf8] sm:$0xf] %vm299, %v999
      %1036 = vst.msk [vmem:[#allocation2 + $0x10c] sm:$0xf] %vm299, %v1000
      %1037 = vst.msk [vmem:[#allocation2 + $0x120] sm:$0xf] %vm299, %v1001
      %1038 = vst.msk [vmem:[#allocation2 + $0x134] sm:$0xf] %vm299, %v1002
      %1039 = vst.msk [vmem:[#allocation2 + $0x148] sm:$0xf] %vm299, %v1003
      %1040 = vst.msk [vmem:[#allocation2 + $0x15c] sm:$0xf] %vm299, %v1004
      %1041 = vst.msk [vmem:[#allocation2 + $0x170] sm:$0xf] %vm299, %v1005
      %1042 = vst.msk [vmem:[#allocation2 + $0x184] sm:$0xf] %vm299, %v1006
      %1043 = vst.msk [vmem:[#allocation2 + $0x198] sm:$0xf] %vm299, %v1007
      %1044 = vst.msk [vmem:[#allocation2 + $0x1ac] sm:$0xf] %vm299, %v1008
      %1045 = vst.msk [vmem:[#allocation2 + $0x1c0] sm:$0xf] %vm299, %v1009
      %1046 = vst.msk [vmem:[#allocation2 + $0x1d4] sm:$0xf] %vm299, %v1010
      %1047 = vst.msk [vmem:[#allocation2 + $0x1e8] sm:$0xf] %vm299, %v1011
      %1048 = vst.msk [vmem:[#allocation2 + $0x1fc] sm:$0xf] %vm299, %v1012
      %1049 = vst.msk [vmem:[#allocation2 + $0x210] sm:$0xf] %vm299, %v1013
      %1050 = vst.msk [vmem:[#allocation2 + $0x224] sm:$0xf] %vm299, %v1014
      %1051 = vst.msk [vmem:[#allocation2 + $0x238] sm:$0xf] %vm299, %v1015
      %1052 = vst.msk [vmem:[#allocation2 + $0x24c] sm:$0xf] %vm299, %v1016
      %1053 = vst.msk [vmem:[#allocation2 + $0x260] sm:$0xf] %vm299, %v1017
      %1054 = vst.msk [vmem:[#allocation2 + $0x274] sm:$0xf] %vm299, %v1018
      %1055 = vst.msk [vmem:[#allocation2 + $0x288] sm:$0xf] %vm299, %v1019
      %1056 = vst.msk [vmem:[#allocation2 + $0x29c] sm:$0xf] %vm299, %v1020
      %1057 = vst.msk [vmem:[#allocation2 + $0x2b0] sm:$0xf] %vm299, %v1021
      %1058 = vst.msk [vmem:[#allocation2 + $0x2c4] sm:$0x7] %vm335, %v1022
      %v1059 = vld [vmem:[%s219 + $0x14] sm:$0xff]
      %v1060 = vld [vmem:[%s219 + $0x1c] sm:$0xff]
      %v1061 = vld [vmem:[%s219 + $0x24] sm:$0xff]
      %v1062 = vld [vmem:[%s219 + $0x2c] sm:$0xff]
      %v1063 = vld [vmem:[%s219 + $0x34] sm:$0xff]
      %v1064 = vld [vmem:[%s219 + $0x3c] sm:$0xff]
      %v1065 = vld [vmem:[%s219 + $0x44] sm:$0xff]
      %v1066 = vld [vmem:[%s219 + $0x4c] sm:$0xff]
      %v1067 = vld [vmem:[%s219 + $0x54] sm:$0xff]
      %v1068 = vld [vmem:[%s219 + $0x5c] sm:$0xff]
      %v1069 = vld [vmem:[%s219 + $0x64] sm:$0xff]
      %v1070 = vld [vmem:[%s219 + $0x6c] sm:$0xff]
      %v1071 = vld [vmem:[%s219 + $0x74] sm:$0xff]
      %v1072 = vld [vmem:[%s219 + $0x7c] sm:$0xff]
      %v1073 = vld [vmem:[%s219 + $0x84] sm:$0xff]
      %v1074 = vld [vmem:[%s219 + $0x8c] sm:$0xff]
      %v1075 = vld [vmem:[%s219 + $0x94] sm:$0xff]
      %v1076 = vld [vmem:[%s219 + $0x9c] sm:$0xff]
      %v1077 = vld [vmem:[%s219 + $0xa4] sm:$0xff]
      %v1078 = vld [vmem:[%s219 + $0xac] sm:$0xff]
      %v1079 = vld [vmem:[%s219 + $0xb4] sm:$0xff]
      %v1080 = vld [vmem:[%s219 + $0xbc] sm:$0xff]
      %v1081 = vld [vmem:[%s219 + $0xc4] sm:$0xff]
      %v1082 = vld [vmem:[%s219 + $0xcc] sm:$0xff]
      %v1083 = vld [vmem:[%s219 + $0xd4] sm:$0xff]
      %v1084 = vld [vmem:[%s219 + $0xdc] sm:$0xff]
      %v1085 = vld [vmem:[%s219 + $0xe4] sm:$0xff]
      %v1086 = vld [vmem:[%s219 + $0xec] sm:$0xff]
      %v1087 = vld [vmem:[%s219 + $0xf4] sm:$0xff]
      %v1088 = vld [vmem:[%s219 + $0xfc] sm:$0xff]
      %v1089 = vld [vmem:[%s219 + $0x104] sm:$0xff]
      %v1090 = vld [vmem:[%s219 + $0x10c] sm:$0xff]
      %v1091 = vld [vmem:[%s219 + $0x114] sm:$0xff]
      %v1092 = vld [vmem:[%s219 + $0x11c] sm:$0xff]
      %v1093 = vld [vmem:[%s219 + $0x124] sm:$0xff]
      %v1094 = vld [vmem:[%s219 + $0x12c] sm:$0x3f]
      %v1095 = vpack.c.bf16 %v1059, %v1059
      %v1096 = vpack.c.bf16 %v1060, %v1060
      %v1097 = vpack.c.bf16 %v1061, %v1061
      %v1098 = vpack.c.bf16 %v1062, %v1062
      %v1099 = vpack.c.bf16 %v1063, %v1063
      %v1100 = vpack.c.bf16 %v1064, %v1064
      %v1101 = vpack.c.bf16 %v1065, %v1065
      %v1102 = vpack.c.bf16 %v1066, %v1066
      %v1103 = vpack.c.bf16 %v1067, %v1067
      %v1104 = vpack.c.bf16 %v1068, %v1068
      %v1105 = vpack.c.bf16 %v1069, %v1069
      %v1106 = vpack.c.bf16 %v1070, %v1070
      %v1107 = vpack.c.bf16 %v1071, %v1071
      %v1108 = vpack.c.bf16 %v1072, %v1072
      %v1109 = vpack.c.bf16 %v1073, %v1073
      %v1110 = vpack.c.bf16 %v1074, %v1074
      %v1111 = vpack.c.bf16 %v1075, %v1075
      %v1112 = vpack.c.bf16 %v1076, %v1076
      %v1113 = vpack.c.bf16 %v1077, %v1077
      %v1114 = vpack.c.bf16 %v1078, %v1078
      %v1115 = vpack.c.bf16 %v1079, %v1079
      %v1116 = vpack.c.bf16 %v1080, %v1080
      %v1117 = vpack.c.bf16 %v1081, %v1081
      %v1118 = vpack.c.bf16 %v1082, %v1082
      %v1119 = vpack.c.bf16 %v1083, %v1083
      %v1120 = vpack.c.bf16 %v1084, %v1084
      %v1121 = vpack.c.bf16 %v1085, %v1085
      %v1122 = vpack.c.bf16 %v1086, %v1086
      %v1123 = vpack.c.bf16 %v1087, %v1087
      %v1124 = vpack.c.bf16 %v1088, %v1088
      %v1125 = vpack.c.bf16 %v1089, %v1089
      %v1126 = vpack.c.bf16 %v1090, %v1090
      %v1127 = vpack.c.bf16 %v1091, %v1091
      %v1128 = vpack.c.bf16 %v1092, %v1092
      %v1129 = vpack.c.bf16 %v1093, %v1093
      %v1130 = vpack.c.bf16 %v1094, %v1094
      %1167 = vrot.lane.b32.xlu0 %v1095, 64
      %v1168 = vpop.permute.xlu0 %1167
      %1169 = vrot.lane.b32.xlu0 %v1096, 64
      %v1170 = vpop.permute.xlu0 %1169
      %1171 = vrot.lane.b32.xlu0 %v1097, 64
      %v1172 = vpop.permute.xlu0 %1171
      %1173 = vrot.lane.b32.xlu0 %v1098, 64
      %v1174 = vpop.permute.xlu0 %1173
      %1175 = vrot.lane.b32.xlu0 %v1099, 64
      %v1176 = vpop.permute.xlu0 %1175
      %1177 = vrot.lane.b32.xlu0 %v1100, 64
      %v1178 = vpop.permute.xlu0 %1177
      %1179 = vrot.lane.b32.xlu0 %v1101, 64
      %v1180 = vpop.permute.xlu0 %1179
      %1181 = vrot.lane.b32.xlu0 %v1102, 64
      %v1182 = vpop.permute.xlu0 %1181
      %1183 = vrot.lane.b32.xlu0 %v1103, 64
      %v1184 = vpop.permute.xlu0 %1183
      %1185 = vrot.lane.b32.xlu0 %v1104, 64
      %v1186 = vpop.permute.xlu0 %1185
      %1187 = vrot.lane.b32.xlu0 %v1105, 64
      %v1188 = vpop.permute.xlu0 %1187
      %1189 = vrot.lane.b32.xlu0 %v1106, 64
      %v1190 = vpop.permute.xlu0 %1189
      %1191 = vrot.lane.b32.xlu0 %v1107, 64
      %v1192 = vpop.permute.xlu0 %1191
      %1193 = vrot.lane.b32.xlu0 %v1108, 64
      %v1194 = vpop.permute.xlu0 %1193
      %1195 = vrot.lane.b32.xlu0 %v1109, 64
      %v1196 = vpop.permute.xlu0 %1195
      %1197 = vrot.lane.b32.xlu0 %v1110, 64
      %v1198 = vpop.permute.xlu0 %1197
      %1199 = vrot.lane.b32.xlu0 %v1111, 64
      %v1200 = vpop.permute.xlu0 %1199
      %1201 = vrot.lane.b32.xlu0 %v1112, 64
      %v1202 = vpop.permute.xlu0 %1201
      %1203 = vrot.lane.b32.xlu0 %v1113, 64
      %v1204 = vpop.permute.xlu0 %1203
      %1205 = vrot.lane.b32.xlu0 %v1114, 64
      %v1206 = vpop.permute.xlu0 %1205
      %1207 = vrot.lane.b32.xlu0 %v1115, 64
      %v1208 = vpop.permute.xlu0 %1207
      %1209 = vrot.lane.b32.xlu0 %v1116, 64
      %v1210 = vpop.permute.xlu0 %1209
      %1211 = vrot.lane.b32.xlu0 %v1117, 64
      %v1212 = vpop.permute.xlu0 %1211
      %1213 = vrot.lane.b32.xlu0 %v1118, 64
      %v1214 = vpop.permute.xlu0 %1213
      %1215 = vrot.lane.b32.xlu0 %v1119, 64
      %v1216 = vpop.permute.xlu0 %1215
      %1217 = vrot.lane.b32.xlu0 %v1120, 64
      %v1218 = vpop.permute.xlu0 %1217
      %1219 = vrot.lane.b32.xlu0 %v1121, 64
      %v1220 = vpop.permute.xlu0 %1219
      %1221 = vrot.lane.b32.xlu0 %v1122, 64
      %v1222 = vpop.permute.xlu0 %1221
      %1223 = vrot.lane.b32.xlu0 %v1123, 64
      %v1224 = vpop.permute.xlu0 %1223
      %1225 = vrot.lane.b32.xlu0 %v1124, 64
      %v1226 = vpop.permute.xlu0 %1225
      %1227 = vrot.lane.b32.xlu0 %v1125, 64
      %v1228 = vpop.permute.xlu0 %1227
      %1229 = vrot.lane.b32.xlu0 %v1126, 64
      %v1230 = vpop.permute.xlu0 %1229
      %1231 = vrot.lane.b32.xlu0 %v1127, 64
      %v1232 = vpop.permute.xlu0 %1231
      %1233 = vrot.lane.b32.xlu0 %v1128, 64
      %v1234 = vpop.permute.xlu0 %1233
      %1235 = vrot.lane.b32.xlu0 %v1129, 64
      %v1236 = vpop.permute.xlu0 %1235
      %1237 = vrot.lane.b32.xlu0 %v1130, 64
      %v1238 = vpop.permute.xlu0 %1237
      %1275 = vst.msk [vmem:[#allocation2 + $0x8] sm:$0xf] %vm553, %v1168
      %1276 = vst.msk [vmem:[#allocation2 + $0x1c] sm:$0xf] %vm553, %v1170
      %1277 = vst.msk [vmem:[#allocation2 + $0x30] sm:$0xf] %vm553, %v1172
      %1278 = vst.msk [vmem:[#allocation2 + $0x44] sm:$0xf] %vm553, %v1174
      %1279 = vst.msk [vmem:[#allocation2 + $0x58] sm:$0xf] %vm553, %v1176
      %1280 = vst.msk [vmem:[#allocation2 + $0x6c] sm:$0xf] %vm553, %v1178
      %1281 = vst.msk [vmem:[#allocation2 + $0x80] sm:$0xf] %vm553, %v1180
      %1282 = vst.msk [vmem:[#allocation2 + $0x94] sm:$0xf] %vm553, %v1182
      %1283 = vst.msk [vmem:[#allocation2 + $0xa8] sm:$0xf] %vm553, %v1184
      %1284 = vst.msk [vmem:[#allocation2 + $0xbc] sm:$0xf] %vm553, %v1186
      %1285 = vst.msk [vmem:[#allocation2 + $0xd0] sm:$0xf] %vm553, %v1188
      %1286 = vst.msk [vmem:[#allocation2 + $0xe4] sm:$0xf] %vm553, %v1190
      %1287 = vst.msk [vmem:[#allocation2 + $0xf8] sm:$0xf] %vm553, %v1192
      %1288 = vst.msk [vmem:[#allocation2 + $0x10c] sm:$0xf] %vm553, %v1194
      %1289 = vst.msk [vmem:[#allocation2 + $0x120] sm:$0xf] %vm553, %v1196
      %1290 = vst.msk [vmem:[#allocation2 + $0x134] sm:$0xf] %vm553, %v1198
      %1291 = vst.msk [vmem:[#allocation2 + $0x148] sm:$0xf] %vm553, %v1200
      %1292 = vst.msk [vmem:[#allocation2 + $0x15c] sm:$0xf] %vm553, %v1202
      %1293 = vst.msk [vmem:[#allocation2 + $0x170] sm:$0xf] %vm553, %v1204
      %1294 = vst.msk [vmem:[#allocation2 + $0x184] sm:$0xf] %vm553, %v1206
      %1295 = vst.msk [vmem:[#allocation2 + $0x198] sm:$0xf] %vm553, %v1208
      %1296 = vst.msk [vmem:[#allocation2 + $0x1ac] sm:$0xf] %vm553, %v1210
      %1297 = vst.msk [vmem:[#allocation2 + $0x1c0] sm:$0xf] %vm553, %v1212
      %1298 = vst.msk [vmem:[#allocation2 + $0x1d4] sm:$0xf] %vm553, %v1214
      %1299 = vst.msk [vmem:[#allocation2 + $0x1e8] sm:$0xf] %vm553, %v1216
      %1300 = vst.msk [vmem:[#allocation2 + $0x1fc] sm:$0xf] %vm553, %v1218
      %1301 = vst.msk [vmem:[#allocation2 + $0x210] sm:$0xf] %vm553, %v1220
      %1302 = vst.msk [vmem:[#allocation2 + $0x224] sm:$0xf] %vm553, %v1222
      %1303 = vst.msk [vmem:[#allocation2 + $0x238] sm:$0xf] %vm553, %v1224
      %1304 = vst.msk [vmem:[#allocation2 + $0x24c] sm:$0xf] %vm553, %v1226
      %1305 = vst.msk [vmem:[#allocation2 + $0x260] sm:$0xf] %vm553, %v1228
      %1306 = vst.msk [vmem:[#allocation2 + $0x274] sm:$0xf] %vm553, %v1230
      %1307 = vst.msk [vmem:[#allocation2 + $0x288] sm:$0xf] %vm553, %v1232
      %1308 = vst.msk [vmem:[#allocation2 + $0x29c] sm:$0xf] %vm553, %v1234
      %1309 = vst.msk [vmem:[#allocation2 + $0x2b0] sm:$0xf] %vm553, %v1236
      %1310 = vst.msk [vmem:[#allocation2 + $0x2c4] sm:$0x7] %vm589, %v1238
      %v1311 = vld [vmem:[%s219 + $0x24] sm:$0xff]
      %v1312 = vld [vmem:[%s219 + $0x2c] sm:$0xff]
      %v1313 = vld [vmem:[%s219 + $0x34] sm:$0xff]
      %v1314 = vld [vmem:[%s219 + $0x3c] sm:$0xff]
      %v1315 = vld [vmem:[%s219 + $0x44] sm:$0xff]
      %v1316 = vld [vmem:[%s219 + $0x4c] sm:$0xff]
      %v1317 = vld [vmem:[%s219 + $0x54] sm:$0xff]
      %v1318 = vld [vmem:[%s219 + $0x5c] sm:$0xff]
      %v1319 = vld [vmem:[%s219 + $0x64] sm:$0xff]
      %v1320 = vld [vmem:[%s219 + $0x6c] sm:$0xff]
      %v1321 = vld [vmem:[%s219 + $0x74] sm:$0xff]
      %v1322 = vld [vmem:[%s219 + $0x7c] sm:$0xff]
      %v1323 = vld [vmem:[%s219 + $0x84] sm:$0xff]
      %v1324 = vld [vmem:[%s219 + $0x8c] sm:$0xff]
      %v1325 = vld [vmem:[%s219 + $0x94] sm:$0xff]
      %v1326 = vld [vmem:[%s219 + $0x9c] sm:$0xff]
      %v1327 = vld [vmem:[%s219 + $0xa4] sm:$0xff]
      %v1328 = vld [vmem:[%s219 + $0xac] sm:$0xff]
      %v1329 = vld [vmem:[%s219 + $0xb4] sm:$0xff]
      %v1330 = vld [vmem:[%s219 + $0xbc] sm:$0xff]
      %v1331 = vld [vmem:[%s219 + $0xc4] sm:$0xff]
      %v1332 = vld [vmem:[%s219 + $0xcc] sm:$0xff]
      %v1333 = vld [vmem:[%s219 + $0xd4] sm:$0xff]
      %v1334 = vld [vmem:[%s219 + $0xdc] sm:$0xff]
      %v1335 = vld [vmem:[%s219 + $0xe4] sm:$0xff]
      %v1336 = vld [vmem:[%s219 + $0xec] sm:$0xff]
      %v1337 = vld [vmem:[%s219 + $0xf4] sm:$0xff]
      %v1338 = vld [vmem:[%s219 + $0xfc] sm:$0xff]
      %v1339 = vld [vmem:[%s219 + $0x104] sm:$0xff]
      %v1340 = vld [vmem:[%s219 + $0x10c] sm:$0xff]
      %v1341 = vld [vmem:[%s219 + $0x114] sm:$0xff]
      %v1342 = vld [vmem:[%s219 + $0x11c] sm:$0xff]
      %v1343 = vld [vmem:[%s219 + $0x124] sm:$0xff]
      %v1344 = vld [vmem:[%s219 + $0x12c] sm:$0xff]
      %v1345 = vld [vmem:[%s219 + $0x134] sm:$0xff]
      %v1346 = vld [vmem:[%s219 + $0x13c] sm:$0x3f]
      %v1347 = vpack.c.bf16 %v1311, %v1311
      %v1348 = vpack.c.bf16 %v1312, %v1312
      %v1349 = vpack.c.bf16 %v1313, %v1313
      %v1350 = vpack.c.bf16 %v1314, %v1314
      %v1351 = vpack.c.bf16 %v1315, %v1315
      %v1352 = vpack.c.bf16 %v1316, %v1316
      %v1353 = vpack.c.bf16 %v1317, %v1317
      %v1354 = vpack.c.bf16 %v1318, %v1318
      %v1355 = vpack.c.bf16 %v1319, %v1319
      %v1356 = vpack.c.bf16 %v1320, %v1320
      %v1357 = vpack.c.bf16 %v1321, %v1321
      %v1358 = vpack.c.bf16 %v1322, %v1322
      %v1359 = vpack.c.bf16 %v1323, %v1323
      %v1360 = vpack.c.bf16 %v1324, %v1324
      %v1361 = vpack.c.bf16 %v1325, %v1325
      %v1362 = vpack.c.bf16 %v1326, %v1326
      %v1363 = vpack.c.bf16 %v1327, %v1327
      %v1364 = vpack.c.bf16 %v1328, %v1328
      %v1365 = vpack.c.bf16 %v1329, %v1329
      %v1366 = vpack.c.bf16 %v1330, %v1330
      %v1367 = vpack.c.bf16 %v1331, %v1331
      %v1368 = vpack.c.bf16 %v1332, %v1332
      %v1369 = vpack.c.bf16 %v1333, %v1333
      %v1370 = vpack.c.bf16 %v1334, %v1334
      %v1371 = vpack.c.bf16 %v1335, %v1335
      %v1372 = vpack.c.bf16 %v1336, %v1336
      %v1373 = vpack.c.bf16 %v1337, %v1337
      %v1374 = vpack.c.bf16 %v1338, %v1338
      %v1375 = vpack.c.bf16 %v1339, %v1339
      %v1376 = vpack.c.bf16 %v1340, %v1340
      %v1377 = vpack.c.bf16 %v1341, %v1341
      %v1378 = vpack.c.bf16 %v1342, %v1342
      %v1379 = vpack.c.bf16 %v1343, %v1343
      %v1380 = vpack.c.bf16 %v1344, %v1344
      %v1381 = vpack.c.bf16 %v1345, %v1345
      %v1382 = vpack.c.bf16 %v1346, %v1346
      %1383 = vst.msk [vmem:[#allocation2 + $0xc] sm:$0xf] %vm299, %v1347
      %1384 = vst.msk [vmem:[#allocation2 + $0x20] sm:$0xf] %vm299, %v1348
      %1385 = vst.msk [vmem:[#allocation2 + $0x34] sm:$0xf] %vm299, %v1349
      %1386 = vst.msk [vmem:[#allocation2 + $0x48] sm:$0xf] %vm299, %v1350
      %1387 = vst.msk [vmem:[#allocation2 + $0x5c] sm:$0xf] %vm299, %v1351
      %1388 = vst.msk [vmem:[#allocation2 + $0x70] sm:$0xf] %vm299, %v1352
      %1389 = vst.msk [vmem:[#allocation2 + $0x84] sm:$0xf] %vm299, %v1353
      %1390 = vst.msk [vmem:[#allocation2 + $0x98] sm:$0xf] %vm299, %v1354
      %1391 = vst.msk [vmem:[#allocation2 + $0xac] sm:$0xf] %vm299, %v1355
      %1392 = vst.msk [vmem:[#allocation2 + $0xc0] sm:$0xf] %vm299, %v1356
      %1393 = vst.msk [vmem:[#allocation2 + $0xd4] sm:$0xf] %vm299, %v1357
      %1394 = vst.msk [vmem:[#allocation2 + $0xe8] sm:$0xf] %vm299, %v1358
      %1395 = vst.msk [vmem:[#allocation2 + $0xfc] sm:$0xf] %vm299, %v1359
      %1396 = vst.msk [vmem:[#allocation2 + $0x110] sm:$0xf] %vm299, %v1360
      %1397 = vst.msk [vmem:[#allocation2 + $0x124] sm:$0xf] %vm299, %v1361
      %1398 = vst.msk [vmem:[#allocation2 + $0x138] sm:$0xf] %vm299, %v1362
      %1399 = vst.msk [vmem:[#allocation2 + $0x14c] sm:$0xf] %vm299, %v1363
      %1400 = vst.msk [vmem:[#allocation2 + $0x160] sm:$0xf] %vm299, %v1364
      %1401 = vst.msk [vmem:[#allocation2 + $0x174] sm:$0xf] %vm299, %v1365
      %1402 = vst.msk [vmem:[#allocation2 + $0x188] sm:$0xf] %vm299, %v1366
      %1403 = vst.msk [vmem:[#allocation2 + $0x19c] sm:$0xf] %vm299, %v1367
      %1404 = vst.msk [vmem:[#allocation2 + $0x1b0] sm:$0xf] %vm299, %v1368
      %1405 = vst.msk [vmem:[#allocation2 + $0x1c4] sm:$0xf] %vm299, %v1369
      %1406 = vst.msk [vmem:[#allocation2 + $0x1d8] sm:$0xf] %vm299, %v1370
      %1407 = vst.msk [vmem:[#allocation2 + $0x1ec] sm:$0xf] %vm299, %v1371
      %1408 = vst.msk [vmem:[#allocation2 + $0x200] sm:$0xf] %vm299, %v1372
      %1409 = vst.msk [vmem:[#allocation2 + $0x214] sm:$0xf] %vm299, %v1373
      %1410 = vst.msk [vmem:[#allocation2 + $0x228] sm:$0xf] %vm299, %v1374
      %1411 = vst.msk [vmem:[#allocation2 + $0x23c] sm:$0xf] %vm299, %v1375
      %1412 = vst.msk [vmem:[#allocation2 + $0x250] sm:$0xf] %vm299, %v1376
      %1413 = vst.msk [vmem:[#allocation2 + $0x264] sm:$0xf] %vm299, %v1377
      %1414 = vst.msk [vmem:[#allocation2 + $0x278] sm:$0xf] %vm299, %v1378
      %1415 = vst.msk [vmem:[#allocation2 + $0x28c] sm:$0xf] %vm299, %v1379
      %1416 = vst.msk [vmem:[#allocation2 + $0x2a0] sm:$0xf] %vm299, %v1380
      %1417 = vst.msk [vmem:[#allocation2 + $0x2b4] sm:$0xf] %vm299, %v1381
      %1418 = vst.msk [vmem:[#allocation2 + $0x2c8] sm:$0x7] %vm335, %v1382
      %v1419 = vld [vmem:[%s219 + $0x25] sm:$0xff]
      %v1420 = vld [vmem:[%s219 + $0x2d] sm:$0xff]
      %v1421 = vld [vmem:[%s219 + $0x35] sm:$0xff]
      %v1422 = vld [vmem:[%s219 + $0x3d] sm:$0xff]
      %v1423 = vld [vmem:[%s219 + $0x45] sm:$0xff]
      %v1424 = vld [vmem:[%s219 + $0x4d] sm:$0xff]
      %v1425 = vld [vmem:[%s219 + $0x55] sm:$0xff]
      %v1426 = vld [vmem:[%s219 + $0x5d] sm:$0xff]
      %v1427 = vld [vmem:[%s219 + $0x65] sm:$0xff]
      %v1428 = vld [vmem:[%s219 + $0x6d] sm:$0xff]
      %v1429 = vld [vmem:[%s219 + $0x75] sm:$0xff]
      %v1430 = vld [vmem:[%s219 + $0x7d] sm:$0xff]
      %v1431 = vld [vmem:[%s219 + $0x85] sm:$0xff]
      %v1432 = vld [vmem:[%s219 + $0x8d] sm:$0xff]
      %v1433 = vld [vmem:[%s219 + $0x95] sm:$0xff]
      %v1434 = vld [vmem:[%s219 + $0x9d] sm:$0xff]
      %v1435 = vld [vmem:[%s219 + $0xa5] sm:$0xff]
      %v1436 = vld [vmem:[%s219 + $0xad] sm:$0xff]
      %v1437 = vld [vmem:[%s219 + $0xb5] sm:$0xff]
      %v1438 = vld [vmem:[%s219 + $0xbd] sm:$0xff]
      %v1439 = vld [vmem:[%s219 + $0xc5] sm:$0xff]
      %v1440 = vld [vmem:[%s219 + $0xcd] sm:$0xff]
      %v1441 = vld [vmem:[%s219 + $0xd5] sm:$0xff]
      %v1442 = vld [vmem:[%s219 + $0xdd] sm:$0xff]
      %v1443 = vld [vmem:[%s219 + $0xe5] sm:$0xff]
      %v1444 = vld [vmem:[%s219 + $0xed] sm:$0xff]
      %v1445 = vld [vmem:[%s219 + $0xf5] sm:$0xff]
      %v1446 = vld [vmem:[%s219 + $0xfd] sm:$0xff]
      %v1447 = vld [vmem:[%s219 + $0x105] sm:$0xff]
      %v1448 = vld [vmem:[%s219 + $0x10d] sm:$0xff]
      %v1449 = vld [vmem:[%s219 + $0x115] sm:$0xff]
      %v1450 = vld [vmem:[%s219 + $0x11d] sm:$0xff]
      %v1451 = vld [vmem:[%s219 + $0x125] sm:$0xff]
      %v1452 = vld [vmem:[%s219 + $0x12d] sm:$0xff]
      %v1453 = vld [vmem:[%s219 + $0x135] sm:$0xff]
      %v1454 = vld [vmem:[%s219 + $0x13d] sm:$0x3f]
      %v1455 = vpack.c.bf16 %v1419, %v1419
      %v1456 = vpack.c.bf16 %v1420, %v1420
      %v1457 = vpack.c.bf16 %v1421, %v1421
      %v1458 = vpack.c.bf16 %v1422, %v1422
      %v1459 = vpack.c.bf16 %v1423, %v1423
      %v1460 = vpack.c.bf16 %v1424, %v1424
      %v1461 = vpack.c.bf16 %v1425, %v1425
      %v1462 = vpack.c.bf16 %v1426, %v1426
      %v1463 = vpack.c.bf16 %v1427, %v1427
      %v1464 = vpack.c.bf16 %v1428, %v1428
      %v1465 = vpack.c.bf16 %v1429, %v1429
      %v1466 = vpack.c.bf16 %v1430, %v1430
      %v1467 = vpack.c.bf16 %v1431, %v1431
      %v1468 = vpack.c.bf16 %v1432, %v1432
      %v1469 = vpack.c.bf16 %v1433, %v1433
      %v1470 = vpack.c.bf16 %v1434, %v1434
      %v1471 = vpack.c.bf16 %v1435, %v1435
      %v1472 = vpack.c.bf16 %v1436, %v1436
      %v1473 = vpack.c.bf16 %v1437, %v1437
      %v1474 = vpack.c.bf16 %v1438, %v1438
      %v1475 = vpack.c.bf16 %v1439, %v1439
      %v1476 = vpack.c.bf16 %v1440, %v1440
      %v1477 = vpack.c.bf16 %v1441, %v1441
      %v1478 = vpack.c.bf16 %v1442, %v1442
      %v1479 = vpack.c.bf16 %v1443, %v1443
      %v1480 = vpack.c.bf16 %v1444, %v1444
      %v1481 = vpack.c.bf16 %v1445, %v1445
      %v1482 = vpack.c.bf16 %v1446, %v1446
      %v1483 = vpack.c.bf16 %v1447, %v1447
      %v1484 = vpack.c.bf16 %v1448, %v1448
      %v1485 = vpack.c.bf16 %v1449, %v1449
      %v1486 = vpack.c.bf16 %v1450, %v1450
      %v1487 = vpack.c.bf16 %v1451, %v1451
      %v1488 = vpack.c.bf16 %v1452, %v1452
      %v1489 = vpack.c.bf16 %v1453, %v1453
      %v1490 = vpack.c.bf16 %v1454, %v1454
      %1527 = vrot.lane.b32.xlu0 %v1455, 64
      %v1528 = vpop.permute.xlu0 %1527
      %1529 = vrot.lane.b32.xlu0 %v1456, 64
      %v1530 = vpop.permute.xlu0 %1529
      %1531 = vrot.lane.b32.xlu0 %v1457, 64
      %v1532 = vpop.permute.xlu0 %1531
      %1533 = vrot.lane.b32.xlu0 %v1458, 64
      %v1534 = vpop.permute.xlu0 %1533
      %1535 = vrot.lane.b32.xlu0 %v1459, 64
      %v1536 = vpop.permute.xlu0 %1535
      %1537 = vrot.lane.b32.xlu0 %v1460, 64
      %v1538 = vpop.permute.xlu0 %1537
      %1539 = vrot.lane.b32.xlu0 %v1461, 64
      %v1540 = vpop.permute.xlu0 %1539
      %1541 = vrot.lane.b32.xlu0 %v1462, 64
      %v1542 = vpop.permute.xlu0 %1541
      %1543 = vrot.lane.b32.xlu0 %v1463, 64
      %v1544 = vpop.permute.xlu0 %1543
      %1545 = vrot.lane.b32.xlu0 %v1464, 64
      %v1546 = vpop.permute.xlu0 %1545
      %1547 = vrot.lane.b32.xlu0 %v1465, 64
      %v1548 = vpop.permute.xlu0 %1547
      %1549 = vrot.lane.b32.xlu0 %v1466, 64
      %v1550 = vpop.permute.xlu0 %1549
      %1551 = vrot.lane.b32.xlu0 %v1467, 64
      %v1552 = vpop.permute.xlu0 %1551
      %1553 = vrot.lane.b32.xlu0 %v1468, 64
      %v1554 = vpop.permute.xlu0 %1553
      %1555 = vrot.lane.b32.xlu0 %v1469, 64
      %v1556 = vpop.permute.xlu0 %1555
      %1557 = vrot.lane.b32.xlu0 %v1470, 64
      %v1558 = vpop.permute.xlu0 %1557
      %1559 = vrot.lane.b32.xlu0 %v1471, 64
      %v1560 = vpop.permute.xlu0 %1559
      %1561 = vrot.lane.b32.xlu0 %v1472, 64
      %v1562 = vpop.permute.xlu0 %1561
      %1563 = vrot.lane.b32.xlu0 %v1473, 64
      %v1564 = vpop.permute.xlu0 %1563
      %1565 = vrot.lane.b32.xlu0 %v1474, 64
      %v1566 = vpop.permute.xlu0 %1565
      %1567 = vrot.lane.b32.xlu0 %v1475, 64
      %v1568 = vpop.permute.xlu0 %1567
      %1569 = vrot.lane.b32.xlu0 %v1476, 64
      %v1570 = vpop.permute.xlu0 %1569
      %1571 = vrot.lane.b32.xlu0 %v1477, 64
      %v1572 = vpop.permute.xlu0 %1571
      %1573 = vrot.lane.b32.xlu0 %v1478, 64
      %v1574 = vpop.permute.xlu0 %1573
      %1575 = vrot.lane.b32.xlu0 %v1479, 64
      %v1576 = vpop.permute.xlu0 %1575
      %1577 = vrot.lane.b32.xlu0 %v1480, 64
      %v1578 = vpop.permute.xlu0 %1577
      %1579 = vrot.lane.b32.xlu0 %v1481, 64
      %v1580 = vpop.permute.xlu0 %1579
      %1581 = vrot.lane.b32.xlu0 %v1482, 64
      %v1582 = vpop.permute.xlu0 %1581
      %1583 = vrot.lane.b32.xlu0 %v1483, 64
      %v1584 = vpop.permute.xlu0 %1583
      %1585 = vrot.lane.b32.xlu0 %v1484, 64
      %v1586 = vpop.permute.xlu0 %1585
      %1587 = vrot.lane.b32.xlu0 %v1485, 64
      %v1588 = vpop.permute.xlu0 %1587
      %1589 = vrot.lane.b32.xlu0 %v1486, 64
      %v1590 = vpop.permute.xlu0 %1589
      %1591 = vrot.lane.b32.xlu0 %v1487, 64
      %v1592 = vpop.permute.xlu0 %1591
      %1593 = vrot.lane.b32.xlu0 %v1488, 64
      %v1594 = vpop.permute.xlu0 %1593
      %1595 = vrot.lane.b32.xlu0 %v1489, 64
      %v1596 = vpop.permute.xlu0 %1595
      %1597 = vrot.lane.b32.xlu0 %v1490, 64
      %v1598 = vpop.permute.xlu0 %1597
      %1635 = vst.msk [vmem:[#allocation2 + $0xc] sm:$0xf] %vm553, %v1528
      %1636 = vst.msk [vmem:[#allocation2 + $0x20] sm:$0xf] %vm553, %v1530
      %1637 = vst.msk [vmem:[#allocation2 + $0x34] sm:$0xf] %vm553, %v1532
      %1638 = vst.msk [vmem:[#allocation2 + $0x48] sm:$0xf] %vm553, %v1534
      %1639 = vst.msk [vmem:[#allocation2 + $0x5c] sm:$0xf] %vm553, %v1536
      %1640 = vst.msk [vmem:[#allocation2 + $0x70] sm:$0xf] %vm553, %v1538
      %1641 = vst.msk [vmem:[#allocation2 + $0x84] sm:$0xf] %vm553, %v1540
      %1642 = vst.msk [vmem:[#allocation2 + $0x98] sm:$0xf] %vm553, %v1542
      %1643 = vst.msk [vmem:[#allocation2 + $0xac] sm:$0xf] %vm553, %v1544
      %1644 = vst.msk [vmem:[#allocation2 + $0xc0] sm:$0xf] %vm553, %v1546
      %1645 = vst.msk [vmem:[#allocation2 + $0xd4] sm:$0xf] %vm553, %v1548
      %1646 = vst.msk [vmem:[#allocation2 + $0xe8] sm:$0xf] %vm553, %v1550
      %1647 = vst.msk [vmem:[#allocation2 + $0xfc] sm:$0xf] %vm553, %v1552
      %1648 = vst.msk [vmem:[#allocation2 + $0x110] sm:$0xf] %vm553, %v1554
      %1649 = vst.msk [vmem:[#allocation2 + $0x124] sm:$0xf] %vm553, %v1556
      %1650 = vst.msk [vmem:[#allocation2 + $0x138] sm:$0xf] %vm553, %v1558
      %1651 = vst.msk [vmem:[#allocation2 + $0x14c] sm:$0xf] %vm553, %v1560
      %1652 = vst.msk [vmem:[#allocation2 + $0x160] sm:$0xf] %vm553, %v1562
      %1653 = vst.msk [vmem:[#allocation2 + $0x174] sm:$0xf] %vm553, %v1564
      %1654 = vst.msk [vmem:[#allocation2 + $0x188] sm:$0xf] %vm553, %v1566
      %1655 = vst.msk [vmem:[#allocation2 + $0x19c] sm:$0xf] %vm553, %v1568
      %1656 = vst.msk [vmem:[#allocation2 + $0x1b0] sm:$0xf] %vm553, %v1570
      %1657 = vst.msk [vmem:[#allocation2 + $0x1c4] sm:$0xf] %vm553, %v1572
      %1658 = vst.msk [vmem:[#allocation2 + $0x1d8] sm:$0xf] %vm553, %v1574
      %1659 = vst.msk [vmem:[#allocation2 + $0x1ec] sm:$0xf] %vm553, %v1576
      %1660 = vst.msk [vmem:[#allocation2 + $0x200] sm:$0xf] %vm553, %v1578
      %1661 = vst.msk [vmem:[#allocation2 + $0x214] sm:$0xf] %vm553, %v1580
      %1662 = vst.msk [vmem:[#allocation2 + $0x228] sm:$0xf] %vm553, %v1582
      %1663 = vst.msk [vmem:[#allocation2 + $0x23c] sm:$0xf] %vm553, %v1584
      %1664 = vst.msk [vmem:[#allocation2 + $0x250] sm:$0xf] %vm553, %v1586
      %1665 = vst.msk [vmem:[#allocation2 + $0x264] sm:$0xf] %vm553, %v1588
      %1666 = vst.msk [vmem:[#allocation2 + $0x278] sm:$0xf] %vm553, %v1590
      %1667 = vst.msk [vmem:[#allocation2 + $0x28c] sm:$0xf] %vm553, %v1592
      %1668 = vst.msk [vmem:[#allocation2 + $0x2a0] sm:$0xf] %vm553, %v1594
      %1669 = vst.msk [vmem:[#allocation2 + $0x2b4] sm:$0xf] %vm553, %v1596
      %1670 = vst.msk [vmem:[#allocation2 + $0x2c8] sm:$0x7] %vm589, %v1598
      %v1671 = vld [vmem:[%s219 + $0x26] sm:$0xff]
      %v1672 = vld [vmem:[%s219 + $0x2e] sm:$0xff]
      %v1673 = vld [vmem:[%s219 + $0x36] sm:$0xff]
      %v1674 = vld [vmem:[%s219 + $0x3e] sm:$0xff]
      %v1675 = vld [vmem:[%s219 + $0x46] sm:$0xff]
      %v1676 = vld [vmem:[%s219 + $0x4e] sm:$0xff]
      %v1677 = vld [vmem:[%s219 + $0x56] sm:$0xff]
      %v1678 = vld [vmem:[%s219 + $0x5e] sm:$0xff]
      %v1679 = vld [vmem:[%s219 + $0x66] sm:$0xff]
      %v1680 = vld [vmem:[%s219 + $0x6e] sm:$0xff]
      %v1681 = vld [vmem:[%s219 + $0x76] sm:$0xff]
      %v1682 = vld [vmem:[%s219 + $0x7e] sm:$0xff]
      %v1683 = vld [vmem:[%s219 + $0x86] sm:$0xff]
      %v1684 = vld [vmem:[%s219 + $0x8e] sm:$0xff]
      %v1685 = vld [vmem:[%s219 + $0x96] sm:$0xff]
      %v1686 = vld [vmem:[%s219 + $0x9e] sm:$0xff]
      %v1687 = vld [vmem:[%s219 + $0xa6] sm:$0xff]
      %v1688 = vld [vmem:[%s219 + $0xae] sm:$0xff]
      %v1689 = vld [vmem:[%s219 + $0xb6] sm:$0xff]
      %v1690 = vld [vmem:[%s219 + $0xbe] sm:$0xff]
      %v1691 = vld [vmem:[%s219 + $0xc6] sm:$0xff]
      %v1692 = vld [vmem:[%s219 + $0xce] sm:$0xff]
      %v1693 = vld [vmem:[%s219 + $0xd6] sm:$0xff]
      %v1694 = vld [vmem:[%s219 + $0xde] sm:$0xff]
      %v1695 = vld [vmem:[%s219 + $0xe6] sm:$0xff]
      %v1696 = vld [vmem:[%s219 + $0xee] sm:$0xff]
      %v1697 = vld [vmem:[%s219 + $0xf6] sm:$0xff]
      %v1698 = vld [vmem:[%s219 + $0xfe] sm:$0xff]
      %v1699 = vld [vmem:[%s219 + $0x106] sm:$0xff]
      %v1700 = vld [vmem:[%s219 + $0x10e] sm:$0xff]
      %v1701 = vld [vmem:[%s219 + $0x116] sm:$0xff]
      %v1702 = vld [vmem:[%s219 + $0x11e] sm:$0xff]
      %v1703 = vld [vmem:[%s219 + $0x126] sm:$0xff]
      %v1704 = vld [vmem:[%s219 + $0x12e] sm:$0xff]
      %v1705 = vld [vmem:[%s219 + $0x136] sm:$0xff]
      %v1706 = vld [vmem:[%s219 + $0x13e] sm:$0x3f]
      %v1707 = vpack.c.bf16 %v1671, %v1671
      %v1708 = vpack.c.bf16 %v1672, %v1672
      %v1709 = vpack.c.bf16 %v1673, %v1673
      %v1710 = vpack.c.bf16 %v1674, %v1674
      %v1711 = vpack.c.bf16 %v1675, %v1675
      %v1712 = vpack.c.bf16 %v1676, %v1676
      %v1713 = vpack.c.bf16 %v1677, %v1677
      %v1714 = vpack.c.bf16 %v1678, %v1678
      %v1715 = vpack.c.bf16 %v1679, %v1679
      %v1716 = vpack.c.bf16 %v1680, %v1680
      %v1717 = vpack.c.bf16 %v1681, %v1681
      %v1718 = vpack.c.bf16 %v1682, %v1682
      %v1719 = vpack.c.bf16 %v1683, %v1683
      %v1720 = vpack.c.bf16 %v1684, %v1684
      %v1721 = vpack.c.bf16 %v1685, %v1685
      %v1722 = vpack.c.bf16 %v1686, %v1686
      %v1723 = vpack.c.bf16 %v1687, %v1687
      %v1724 = vpack.c.bf16 %v1688, %v1688
      %v1725 = vpack.c.bf16 %v1689, %v1689
      %v1726 = vpack.c.bf16 %v1690, %v1690
      %v1727 = vpack.c.bf16 %v1691, %v1691
      %v1728 = vpack.c.bf16 %v1692, %v1692
      %v1729 = vpack.c.bf16 %v1693, %v1693
      %v1730 = vpack.c.bf16 %v1694, %v1694
      %v1731 = vpack.c.bf16 %v1695, %v1695
      %v1732 = vpack.c.bf16 %v1696, %v1696
      %v1733 = vpack.c.bf16 %v1697, %v1697
      %v1734 = vpack.c.bf16 %v1698, %v1698
      %v1735 = vpack.c.bf16 %v1699, %v1699
      %v1736 = vpack.c.bf16 %v1700, %v1700
      %v1737 = vpack.c.bf16 %v1701, %v1701
      %v1738 = vpack.c.bf16 %v1702, %v1702
      %v1739 = vpack.c.bf16 %v1703, %v1703
      %v1740 = vpack.c.bf16 %v1704, %v1704
      %v1741 = vpack.c.bf16 %v1705, %v1705
      %v1742 = vpack.c.bf16 %v1706, %v1706
      %1743 = vst.msk [vmem:[#allocation2 + $0x10] sm:$0xf] %vm299, %v1707
      %1744 = vst.msk [vmem:[#allocation2 + $0x24] sm:$0xf] %vm299, %v1708
      %1745 = vst.msk [vmem:[#allocation2 + $0x38] sm:$0xf] %vm299, %v1709
      %1746 = vst.msk [vmem:[#allocation2 + $0x4c] sm:$0xf] %vm299, %v1710
      %1747 = vst.msk [vmem:[#allocation2 + $0x60] sm:$0xf] %vm299, %v1711
      %1748 = vst.msk [vmem:[#allocation2 + $0x74] sm:$0xf] %vm299, %v1712
      %1749 = vst.msk [vmem:[#allocation2 + $0x88] sm:$0xf] %vm299, %v1713
      %1750 = vst.msk [vmem:[#allocation2 + $0x9c] sm:$0xf] %vm299, %v1714
      %1751 = vst.msk [vmem:[#allocation2 + $0xb0] sm:$0xf] %vm299, %v1715
      %1752 = vst.msk [vmem:[#allocation2 + $0xc4] sm:$0xf] %vm299, %v1716
      %1753 = vst.msk [vmem:[#allocation2 + $0xd8] sm:$0xf] %vm299, %v1717
      %1754 = vst.msk [vmem:[#allocation2 + $0xec] sm:$0xf] %vm299, %v1718
      %1755 = vst.msk [vmem:[#allocation2 + $0x100] sm:$0xf] %vm299, %v1719
      %1756 = vst.msk [vmem:[#allocation2 + $0x114] sm:$0xf] %vm299, %v1720
      %1757 = vst.msk [vmem:[#allocation2 + $0x128] sm:$0xf] %vm299, %v1721
      %1758 = vst.msk [vmem:[#allocation2 + $0x13c] sm:$0xf] %vm299, %v1722
      %1759 = vst.msk [vmem:[#allocation2 + $0x150] sm:$0xf] %vm299, %v1723
      %1760 = vst.msk [vmem:[#allocation2 + $0x164] sm:$0xf] %vm299, %v1724
      %1761 = vst.msk [vmem:[#allocation2 + $0x178] sm:$0xf] %vm299, %v1725
      %1762 = vst.msk [vmem:[#allocation2 + $0x18c] sm:$0xf] %vm299, %v1726
      %1763 = vst.msk [vmem:[#allocation2 + $0x1a0] sm:$0xf] %vm299, %v1727
      %1764 = vst.msk [vmem:[#allocation2 + $0x1b4] sm:$0xf] %vm299, %v1728
      %1765 = vst.msk [vmem:[#allocation2 + $0x1c8] sm:$0xf] %vm299, %v1729
      %1766 = vst.msk [vmem:[#allocation2 + $0x1dc] sm:$0xf] %vm299, %v1730
      %1767 = vst.msk [vmem:[#allocation2 + $0x1f0] sm:$0xf] %vm299, %v1731
      %1768 = vst.msk [vmem:[#allocation2 + $0x204] sm:$0xf] %vm299, %v1732
      %1769 = vst.msk [vmem:[#allocation2 + $0x218] sm:$0xf] %vm299, %v1733
      %1770 = vst.msk [vmem:[#allocation2 + $0x22c] sm:$0xf] %vm299, %v1734
      %1771 = vst.msk [vmem:[#allocation2 + $0x240] sm:$0xf] %vm299, %v1735
      %1772 = vst.msk [vmem:[#allocation2 + $0x254] sm:$0xf] %vm299, %v1736
      %1773 = vst.msk [vmem:[#allocation2 + $0x268] sm:$0xf] %vm299, %v1737
      %1774 = vst.msk [vmem:[#allocation2 + $0x27c] sm:$0xf] %vm299, %v1738
      %1775 = vst.msk [vmem:[#allocation2 + $0x290] sm:$0xf] %vm299, %v1739
      %1776 = vst.msk [vmem:[#allocation2 + $0x2a4] sm:$0xf] %vm299, %v1740
      %1777 = vst.msk [vmem:[#allocation2 + $0x2b8] sm:$0xf] %vm299, %v1741
      %1778 = vst.msk [vmem:[#allocation2 + $0x2cc] sm:$0x7] %vm335, %v1742
      %v1779 = vld [vmem:[#allocation2] sm:$0xff]
      %v1780 = vld [vmem:[#allocation2 + $0x8] sm:$0xff]
      %v1781 = vld [vmem:[#allocation2 + $0x10] sm:$0xf]
      %v1782 = vld [vmem:[#allocation2 + $0x14] sm:$0xff]
      %v1783 = vld [vmem:[#allocation2 + $0x1c] sm:$0xff]
      %v1784 = vld [vmem:[#allocation2 + $0x24] sm:$0xf]
      %v1785 = vld [vmem:[#allocation2 + $0x28] sm:$0xff]
      %v1786 = vld [vmem:[#allocation2 + $0x30] sm:$0xff]
      %v1787 = vld [vmem:[#allocation2 + $0x38] sm:$0xf]
      %v1788 = vld [vmem:[#allocation2 + $0x3c] sm:$0xff]
      %v1789 = vld [vmem:[#allocation2 + $0x44] sm:$0xff]
      %v1790 = vld [vmem:[#allocation2 + $0x4c] sm:$0xf]
      %v1791 = vld [vmem:[#allocation2 + $0x50] sm:$0xff]
      %v1792 = vld [vmem:[#allocation2 + $0x58] sm:$0xff]
      %v1793 = vld [vmem:[#allocation2 + $0x60] sm:$0xf]
      %v1794 = vld [vmem:[#allocation2 + $0x64] sm:$0xff]
      %v1795 = vld [vmem:[#allocation2 + $0x6c] sm:$0xff]
      %v1796 = vld [vmem:[#allocation2 + $0x74] sm:$0xf]
      %v1797 = vld [vmem:[#allocation2 + $0x78] sm:$0xff]
      %v1798 = vld [vmem:[#allocation2 + $0x80] sm:$0xff]
      %v1799 = vld [vmem:[#allocation2 + $0x88] sm:$0xf]
      %v1800 = vld [vmem:[#allocation2 + $0x8c] sm:$0xff]
      %v1801 = vld [vmem:[#allocation2 + $0x94] sm:$0xff]
      %v1802 = vld [vmem:[#allocation2 + $0x9c] sm:$0xf]
      %v1803 = vld [vmem:[#allocation2 + $0xa0] sm:$0xff]
      %v1804 = vld [vmem:[#allocation2 + $0xa8] sm:$0xff]
      %v1805 = vld [vmem:[#allocation2 + $0xb0] sm:$0xf]
      %v1806 = vld [vmem:[#allocation2 + $0xb4] sm:$0xff]
      %v1807 = vld [vmem:[#allocation2 + $0xbc] sm:$0xff]
      %v1808 = vld [vmem:[#allocation2 + $0xc4] sm:$0xf]
      %v1809 = vld [vmem:[#allocation2 + $0xc8] sm:$0xff]
      %v1810 = vld [vmem:[#allocation2 + $0xd0] sm:$0xff]
      %v1811 = vld [vmem:[#allocation2 + $0xd8] sm:$0xf]
      %v1812 = vld [vmem:[#allocation2 + $0xdc] sm:$0xff]
      %v1813 = vld [vmem:[#allocation2 + $0xe4] sm:$0xff]
      %v1814 = vld [vmem:[#allocation2 + $0xec] sm:$0xf]
      %v1815 = vld [vmem:[#allocation2 + $0xf0] sm:$0xff]
      %v1816 = vld [vmem:[#allocation2 + $0xf8] sm:$0xff]
      %v1817 = vld [vmem:[#allocation2 + $0x100] sm:$0xf]
      %v1818 = vld [vmem:[#allocation2 + $0x104] sm:$0xff]
      %v1819 = vld [vmem:[#allocation2 + $0x10c] sm:$0xff]
      %v1820 = vld [vmem:[#allocation2 + $0x114] sm:$0xf]
      %v1821 = vld [vmem:[#allocation2 + $0x118] sm:$0xff]
      %v1822 = vld [vmem:[#allocation2 + $0x120] sm:$0xff]
      %v1823 = vld [vmem:[#allocation2 + $0x128] sm:$0xf]
      %v1824 = vld [vmem:[#allocation2 + $0x12c] sm:$0xff]
      %v1825 = vld [vmem:[#allocation2 + $0x134] sm:$0xff]
      %v1826 = vld [vmem:[#allocation2 + $0x13c] sm:$0xf]
      %v1827 = vld [vmem:[#allocation2 + $0x140] sm:$0xff]
      %v1828 = vld [vmem:[#allocation2 + $0x148] sm:$0xff]
      %v1829 = vld [vmem:[#allocation2 + $0x150] sm:$0xf]
      %v1830 = vld [vmem:[#allocation2 + $0x154] sm:$0xff]
      %v1831 = vld [vmem:[#allocation2 + $0x15c] sm:$0xff]
      %v1832 = vld [vmem:[#allocation2 + $0x164] sm:$0xf]
      %v1833 = vld [vmem:[#allocation2 + $0x168] sm:$0xff]
      %v1834 = vld [vmem:[#allocation2 + $0x170] sm:$0xff]
      %v1835 = vld [vmem:[#allocation2 + $0x178] sm:$0xf]
      %v1836 = vld [vmem:[#allocation2 + $0x17c] sm:$0xff]
      %v1837 = vld [vmem:[#allocation2 + $0x184] sm:$0xff]
      %v1838 = vld [vmem:[#allocation2 + $0x18c] sm:$0xf]
      %v1839 = vld [vmem:[#allocation2 + $0x190] sm:$0xff]
      %v1840 = vld [vmem:[#allocation2 + $0x198] sm:$0xff]
      %v1841 = vld [vmem:[#allocation2 + $0x1a0] sm:$0xf]
      %v1842 = vld [vmem:[#allocation2 + $0x1a4] sm:$0xff]
      %v1843 = vld [vmem:[#allocation2 + $0x1ac] sm:$0xff]
      %v1844 = vld [vmem:[#allocation2 + $0x1b4] sm:$0xf]
      %v1845 = vld [vmem:[#allocation2 + $0x1b8] sm:$0xff]
      %v1846 = vld [vmem:[#allocation2 + $0x1c0] sm:$0xff]
      %v1847 = vld [vmem:[#allocation2 + $0x1c8] sm:$0xf]
      %v1848 = vld [vmem:[#allocation2 + $0x1cc] sm:$0xff]
      %v1849 = vld [vmem:[#allocation2 + $0x1d4] sm:$0xff]
      %v1850 = vld [vmem:[#allocation2 + $0x1dc] sm:$0xf]
      %v1851 = vld [vmem:[#allocation2 + $0x1e0] sm:$0xff]
      %v1852 = vld [vmem:[#allocation2 + $0x1e8] sm:$0xff]
      %v1853 = vld [vmem:[#allocation2 + $0x1f0] sm:$0xf]
      %v1854 = vld [vmem:[#allocation2 + $0x1f4] sm:$0xff]
      %v1855 = vld [vmem:[#allocation2 + $0x1fc] sm:$0xff]
      %v1856 = vld [vmem:[#allocation2 + $0x204] sm:$0xf]
      %v1857 = vld [vmem:[#allocation2 + $0x208] sm:$0xff]
      %v1858 = vld [vmem:[#allocation2 + $0x210] sm:$0xff]
      %v1859 = vld [vmem:[#allocation2 + $0x218] sm:$0xf]
      %v1860 = vld [vmem:[#allocation2 + $0x21c] sm:$0xff]
      %v1861 = vld [vmem:[#allocation2 + $0x224] sm:$0xff]
      %v1862 = vld [vmem:[#allocation2 + $0x22c] sm:$0xf]
      %v1863 = vld [vmem:[#allocation2 + $0x230] sm:$0xff]
      %v1864 = vld [vmem:[#allocation2 + $0x238] sm:$0xff]
      %v1865 = vld [vmem:[#allocation2 + $0x240] sm:$0xf]
      %v1866 = vld [vmem:[#allocation2 + $0x244] sm:$0xff]
      %v1867 = vld [vmem:[#allocation2 + $0x24c] sm:$0xff]
      %v1868 = vld [vmem:[#allocation2 + $0x254] sm:$0xf]
      %v1869 = vld [vmem:[#allocation2 + $0x258] sm:$0xff]
      %v1870 = vld [vmem:[#allocation2 + $0x260] sm:$0xff]
      %v1871 = vld [vmem:[#allocation2 + $0x268] sm:$0xf]
      %v1872 = vld [vmem:[#allocation2 + $0x26c] sm:$0xff]
      %v1873 = vld [vmem:[#allocation2 + $0x274] sm:$0xff]
      %v1874 = vld [vmem:[#allocation2 + $0x27c] sm:$0xf]
      %v1875 = vld [vmem:[#allocation2 + $0x280] sm:$0xff]
      %v1876 = vld [vmem:[#allocation2 + $0x288] sm:$0xff]
      %v1877 = vld [vmem:[#allocation2 + $0x290] sm:$0xf]
      %v1878 = vld [vmem:[#allocation2 + $0x294] sm:$0xff]
      %v1879 = vld [vmem:[#allocation2 + $0x29c] sm:$0xff]
      %v1880 = vld [vmem:[#allocation2 + $0x2a4] sm:$0xf]
      %v1881 = vld [vmem:[#allocation2 + $0x2a8] sm:$0xff]
      %v1882 = vld [vmem:[#allocation2 + $0x2b0] sm:$0xff]
      %v1883 = vld [vmem:[#allocation2 + $0x2b8] sm:$0xf]
      %v1884 = vld [vmem:[#allocation2 + $0x2bc] sm:$0x77]
      %v1885 = vld [vmem:[#allocation2 + $0x2c4] sm:$0x77]
      %v1886 = vld [vmem:[#allocation2 + $0x2cc] sm:$0x7]
      %v1887 = vld [vmem:[%s1] sm:$0xf]
      %v1888 = vld [vmem:[%s1 + $0x4] sm:$0xf]
      %v1889 = vld [vmem:[%s1 + $0x8] sm:$0xf]
      %v1890 = vld [vmem:[%s1 + $0xc] sm:$0xf]
      %v1891 = vld [vmem:[%s1 + $0x10] sm:$0xf]
      %v1892 = vld [vmem:[%s1 + $0x14] sm:$0xf]
      %v1893 = vld [vmem:[%s1 + $0x18] sm:$0xf]
      %v1894 = vld [vmem:[%s1 + $0x1c] sm:$0xf]
      %v1895 = vld [vmem:[%s1 + $0x20] sm:$0xf]
      %v1896 = vld [vmem:[%s1 + $0x24] sm:$0xf]
      %v1897 = vld [vmem:[%s1 + $0x28] sm:$0xf]
      %v1898 = vld [vmem:[%s1 + $0x2c] sm:$0xf]
      %v1899 = vld [vmem:[%s1 + $0x30] sm:$0xf]
      %v1900 = vld [vmem:[%s1 + $0x34] sm:$0xf]
      %v1901 = vld [vmem:[%s1 + $0x38] sm:$0xf]
      %v1902 = vld [vmem:[%s1 + $0x3c] sm:$0xf]
      %v1903 = vld [vmem:[%s1 + $0x40] sm:$0xf]
      %v1904 = vld [vmem:[%s1 + $0x44] sm:$0xf]
      %v1905 = vld [vmem:[%s1 + $0x48] sm:$0xf]
      %v1906 = vld [vmem:[%s1 + $0x4c] sm:$0xf]
      %v1907 = vld [vmem:[%s1 + $0x50] sm:$0xf]
      %v1908 = vld [vmem:[%s1 + $0x54] sm:$0xf]
      %v1909 = vld [vmem:[%s1 + $0x58] sm:$0xf]
      %v1910 = vld [vmem:[%s1 + $0x5c] sm:$0xf]
      %v1911 = vld [vmem:[%s1 + $0x60] sm:$0xf]
      %v1912 = vld [vmem:[%s1 + $0x64] sm:$0xf]
      %v1913 = vld [vmem:[%s1 + $0x68] sm:$0xf]
      %v1914 = vld [vmem:[%s1 + $0x6c] sm:$0xf]
      %v1915 = vld [vmem:[%s1 + $0x70] sm:$0xf]
      %v1916 = vld [vmem:[%s1 + $0x74] sm:$0xf]
      %v1917 = vld [vmem:[%s1 + $0x78] sm:$0xf]
      %v1918 = vld [vmem:[%s1 + $0x7c] sm:$0xf]
      %v1919 = vld [vmem:[%s1 + $0x80] sm:$0xf]
      %v1920 = vld [vmem:[%s1 + $0x84] sm:$0xf]
      %v1921 = vld [vmem:[%s1 + $0x88] sm:$0xf]
      %v1922 = vld [vmem:[%s1 + $0x8c] sm:$0xf]
      %v1923 = vld [vmem:[%s1 + $0x90] sm:$0xf]
      %v1924 = vld [vmem:[%s1 + $0x94] sm:$0xf]
      %v1925 = vld [vmem:[%s1 + $0x98] sm:$0xf]
      %v1926 = vld [vmem:[%s1 + $0x9c] sm:$0xf]
      %v1927 = vld [vmem:[%s1 + $0xa0] sm:$0xf]
      %v1928 = vld [vmem:[%s1 + $0xa4] sm:$0xf]
      %v1929 = vld [vmem:[%s1 + $0xa8] sm:$0xf]
      %v1930 = vld [vmem:[%s1 + $0xac] sm:$0xf]
      %v1931 = vld [vmem:[%s1 + $0xb0] sm:$0xf]
      %v1932 = vld [vmem:[%s1 + $0xb4] sm:$0xf]
      %v1933 = vld [vmem:[%s1 + $0xb8] sm:$0xf]
      %v1934 = vld [vmem:[%s1 + $0xbc] sm:$0xf]
      %v1935 = vld [vmem:[%s1 + $0xc0] sm:$0xf]
      %v1936 = vld [vmem:[%s1 + $0xc4] sm:$0xf]
      %v1937 = vld [vmem:[%s1 + $0xc8] sm:$0xf]
      %v1938 = vld [vmem:[%s1 + $0xcc] sm:$0xf]
      %v1939 = vld [vmem:[%s1 + $0xd0] sm:$0xf]
      %v1940 = vld [vmem:[%s1 + $0xd4] sm:$0xf]
      %v1941 = vld [vmem:[%s1 + $0xd8] sm:$0xf]
      %v1942 = vld [vmem:[%s1 + $0xdc] sm:$0xf]
      %v1943 = vld [vmem:[%s1 + $0xe0] sm:$0xf]
      %v1944 = vld [vmem:[%s1 + $0xe4] sm:$0xf]
      %v1945 = vld [vmem:[%s1 + $0xe8] sm:$0xf]
      %v1946 = vld [vmem:[%s1 + $0xec] sm:$0xf]
      %v1947 = vld [vmem:[%s1 + $0xf0] sm:$0xf]
      %v1948 = vld [vmem:[%s1 + $0xf4] sm:$0xf]
      %v1949 = vld [vmem:[%s1 + $0xf8] sm:$0xf]
      %v1950 = vld [vmem:[%s1 + $0xfc] sm:$0xf]
      %v1951 = vld [vmem:[%s1 + $0x100] sm:$0xf]
      %v1952 = vld [vmem:[%s1 + $0x104] sm:$0xf]
      %v1953 = vld [vmem:[%s1 + $0x108] sm:$0xf]
      %v1954 = vld [vmem:[%s1 + $0x10c] sm:$0xf]
      %v1955 = vld [vmem:[%s1 + $0x110] sm:$0xf]
      %v1956 = vld [vmem:[%s1 + $0x114] sm:$0xf]
      %v1957 = vld [vmem:[%s1 + $0x118] sm:$0xf]
      %v1958 = vld [vmem:[%s1 + $0x11c] sm:$0xf]
      %v2067 = vunpack.c.l.b16 %v1779
      %v2068 = vunpack.c.h.b16 %v1779
      %v2069 = vunpack.c.l.b16 %v1780
      %v2070 = vunpack.c.h.b16 %v1780
      %v2071 = vunpack.c.l.b16 %v1781
      %v2072 = vunpack.c.l.b16 %v1782
      %v2073 = vunpack.c.h.b16 %v1782
      %v2074 = vunpack.c.l.b16 %v1783
      %v2075 = vunpack.c.h.b16 %v1783
      %v2076 = vunpack.c.l.b16 %v1784
      %v2077 = vunpack.c.l.b16 %v1785
      %v2078 = vunpack.c.h.b16 %v1785
      %v2079 = vunpack.c.l.b16 %v1786
      %v2080 = vunpack.c.h.b16 %v1786
      %v2081 = vunpack.c.l.b16 %v1787
      %v2082 = vunpack.c.l.b16 %v1788
      %v2083 = vunpack.c.h.b16 %v1788
      %v2084 = vunpack.c.l.b16 %v1789
      %v2085 = vunpack.c.h.b16 %v1789
      %v2086 = vunpack.c.l.b16 %v1790
      %v2087 = vunpack.c.l.b16 %v1791
      %v2088 = vunpack.c.h.b16 %v1791
      %v2089 = vunpack.c.l.b16 %v1792
      %v2090 = vunpack.c.h.b16 %v1792
      %v2091 = vunpack.c.l.b16 %v1793
      %v2092 = vunpack.c.l.b16 %v1794
      %v2093 = vunpack.c.h.b16 %v1794
      %v2094 = vunpack.c.l.b16 %v1795
      %v2095 = vunpack.c.h.b16 %v1795
      %v2096 = vunpack.c.l.b16 %v1796
      %v2097 = vunpack.c.l.b16 %v1797
      %v2098 = vunpack.c.h.b16 %v1797
      %v2099 = vunpack.c.l.b16 %v1798
      %v2100 = vunpack.c.h.b16 %v1798
      %v2101 = vunpack.c.l.b16 %v1799
      %v2102 = vunpack.c.l.b16 %v1800
      %v2103 = vunpack.c.h.b16 %v1800
      %v2104 = vunpack.c.l.b16 %v1801
      %v2105 = vunpack.c.h.b16 %v1801
      %v2106 = vunpack.c.l.b16 %v1802
      %v2107 = vunpack.c.l.b16 %v1803
      %v2108 = vunpack.c.h.b16 %v1803
      %v2109 = vunpack.c.l.b16 %v1804
      %v2110 = vunpack.c.h.b16 %v1804
      %v2111 = vunpack.c.l.b16 %v1805
      %v2112 = vunpack.c.l.b16 %v1806
      %v2113 = vunpack.c.h.b16 %v1806
      %v2114 = vunpack.c.l.b16 %v1807
      %v2115 = vunpack.c.h.b16 %v1807
      %v2116 = vunpack.c.l.b16 %v1808
      %v2117 = vunpack.c.l.b16 %v1809
      %v2118 = vunpack.c.h.b16 %v1809
      %v2119 = vunpack.c.l.b16 %v1810
      %v2120 = vunpack.c.h.b16 %v1810
      %v2121 = vunpack.c.l.b16 %v1811
      %v2122 = vunpack.c.l.b16 %v1812
      %v2123 = vunpack.c.h.b16 %v1812
      %v2124 = vunpack.c.l.b16 %v1813
      %v2125 = vunpack.c.h.b16 %v1813
      %v2126 = vunpack.c.l.b16 %v1814
      %v2127 = vunpack.c.l.b16 %v1815
      %v2128 = vunpack.c.h.b16 %v1815
      %v2129 = vunpack.c.l.b16 %v1816
      %v2130 = vunpack.c.h.b16 %v1816
      %v2131 = vunpack.c.l.b16 %v1817
      %v2132 = vunpack.c.l.b16 %v1818
      %v2133 = vunpack.c.h.b16 %v1818
      %v2134 = vunpack.c.l.b16 %v1819
      %v2135 = vunpack.c.h.b16 %v1819
      %v2136 = vunpack.c.l.b16 %v1820
      %v2137 = vunpack.c.l.b16 %v1821
      %v2138 = vunpack.c.h.b16 %v1821
      %v2139 = vunpack.c.l.b16 %v1822
      %v2140 = vunpack.c.h.b16 %v1822
      %v2141 = vunpack.c.l.b16 %v1823
      %v2142 = vunpack.c.l.b16 %v1824
      %v2143 = vunpack.c.h.b16 %v1824
      %v2144 = vunpack.c.l.b16 %v1825
      %v2145 = vunpack.c.h.b16 %v1825
      %v2146 = vunpack.c.l.b16 %v1826
      %v2147 = vunpack.c.l.b16 %v1827
      %v2148 = vunpack.c.h.b16 %v1827
      %v2149 = vunpack.c.l.b16 %v1828
      %v2150 = vunpack.c.h.b16 %v1828
      %v2151 = vunpack.c.l.b16 %v1829
      %v2152 = vunpack.c.l.b16 %v1830
      %v2153 = vunpack.c.h.b16 %v1830
      %v2154 = vunpack.c.l.b16 %v1831
      %v2155 = vunpack.c.h.b16 %v1831
      %v2156 = vunpack.c.l.b16 %v1832
      %v2157 = vunpack.c.l.b16 %v1833
      %v2158 = vunpack.c.h.b16 %v1833
      %v2159 = vunpack.c.l.b16 %v1834
      %v2160 = vunpack.c.h.b16 %v1834
      %v2161 = vunpack.c.l.b16 %v1835
      %v2162 = vunpack.c.l.b16 %v1836
      %v2163 = vunpack.c.h.b16 %v1836
      %v2164 = vunpack.c.l.b16 %v1837
      %v2165 = vunpack.c.h.b16 %v1837
      %v2166 = vunpack.c.l.b16 %v1838
      %v2167 = vunpack.c.l.b16 %v1839
      %v2168 = vunpack.c.h.b16 %v1839
      %v2169 = vunpack.c.l.b16 %v1840
      %v2170 = vunpack.c.h.b16 %v1840
      %v2171 = vunpack.c.l.b16 %v1841
      %v2172 = vunpack.c.l.b16 %v1842
      %v2173 = vunpack.c.h.b16 %v1842
      %v2174 = vunpack.c.l.b16 %v1843
      %v2175 = vunpack.c.h.b16 %v1843
      %v2176 = vunpack.c.l.b16 %v1844
      %v2177 = vunpack.c.l.b16 %v1845
      %v2178 = vunpack.c.h.b16 %v1845
      %v2179 = vunpack.c.l.b16 %v1846
      %v2180 = vunpack.c.h.b16 %v1846
      %v2181 = vunpack.c.l.b16 %v1847
      %v2182 = vunpack.c.l.b16 %v1848
      %v2183 = vunpack.c.h.b16 %v1848
      %v2184 = vunpack.c.l.b16 %v1849
      %v2185 = vunpack.c.h.b16 %v1849
      %v2186 = vunpack.c.l.b16 %v1850
      %v2187 = vunpack.c.l.b16 %v1851
      %v2188 = vunpack.c.h.b16 %v1851
      %v2189 = vunpack.c.l.b16 %v1852
      %v2190 = vunpack.c.h.b16 %v1852
      %v2191 = vunpack.c.l.b16 %v1853
      %v2192 = vunpack.c.l.b16 %v1854
      %v2193 = vunpack.c.h.b16 %v1854
      %v2194 = vunpack.c.l.b16 %v1855
      %v2195 = vunpack.c.h.b16 %v1855
      %v2196 = vunpack.c.l.b16 %v1856
      %v2197 = vunpack.c.l.b16 %v1857
      %v2198 = vunpack.c.h.b16 %v1857
      %v2199 = vunpack.c.l.b16 %v1858
      %v2200 = vunpack.c.h.b16 %v1858
      %v2201 = vunpack.c.l.b16 %v1859
      %v2202 = vunpack.c.l.b16 %v1860
      %v2203 = vunpack.c.h.b16 %v1860
      %v2204 = vunpack.c.l.b16 %v1861
      %v2205 = vunpack.c.h.b16 %v1861
      %v2206 = vunpack.c.l.b16 %v1862
      %v2207 = vunpack.c.l.b16 %v1863
      %v2208 = vunpack.c.h.b16 %v1863
      %v2209 = vunpack.c.l.b16 %v1864
      %v2210 = vunpack.c.h.b16 %v1864
      %v2211 = vunpack.c.l.b16 %v1865
      %v2212 = vunpack.c.l.b16 %v1866
      %v2213 = vunpack.c.h.b16 %v1866
      %v2214 = vunpack.c.l.b16 %v1867
      %v2215 = vunpack.c.h.b16 %v1867
      %v2216 = vunpack.c.l.b16 %v1868
      %v2217 = vunpack.c.l.b16 %v1869
      %v2218 = vunpack.c.h.b16 %v1869
      %v2219 = vunpack.c.l.b16 %v1870
      %v2220 = vunpack.c.h.b16 %v1870
      %v2221 = vunpack.c.l.b16 %v1871
      %v2222 = vunpack.c.l.b16 %v1872
      %v2223 = vunpack.c.h.b16 %v1872
      %v2224 = vunpack.c.l.b16 %v1873
      %v2225 = vunpack.c.h.b16 %v1873
      %v2226 = vunpack.c.l.b16 %v1874
      %v2227 = vunpack.c.l.b16 %v1875
      %v2228 = vunpack.c.h.b16 %v1875
      %v2229 = vunpack.c.l.b16 %v1876
      %v2230 = vunpack.c.h.b16 %v1876
      %v2231 = vunpack.c.l.b16 %v1877
      %v2232 = vunpack.c.l.b16 %v1878
      %v2233 = vunpack.c.h.b16 %v1878
      %v2234 = vunpack.c.l.b16 %v1879
      %v2235 = vunpack.c.h.b16 %v1879
      %v2236 = vunpack.c.l.b16 %v1880
      %v2237 = vunpack.c.l.b16 %v1881
      %v2238 = vunpack.c.h.b16 %v1881
      %v2239 = vunpack.c.l.b16 %v1882
      %v2240 = vunpack.c.h.b16 %v1882
      %v2241 = vunpack.c.l.b16 %v1883
      %v2242 = vunpack.c.l.b16 %v1884
      %v2243 = vunpack.c.h.b16 %v1884
      %v2244 = vunpack.c.l.b16 %v1885
      %v2245 = vunpack.c.h.b16 %v1885
      %v2246 = vunpack.c.l.b16 %v1886
      %v2247 = vpack.c.b16 %v2072, %v2067
      %v2248 = vpack.c.b16 %v2073, %v2068
      %v2249 = vpack.c.b16 %v2074, %v2069
      %v2250 = vpack.c.b16 %v2075, %v2070
      %v2251 = vpack.c.b16 %v2076, %v2071
      %v2252 = vpack.c.b16 %v2082, %v2077
      %v2253 = vpack.c.b16 %v2083, %v2078
      %v2254 = vpack.c.b16 %v2084, %v2079
      %v2255 = vpack.c.b16 %v2085, %v2080
      %v2256 = vpack.c.b16 %v2086, %v2081
      %v2257 = vpack.c.b16 %v2092, %v2087
      %v2258 = vpack.c.b16 %v2093, %v2088
      %v2259 = vpack.c.b16 %v2094, %v2089
      %v2260 = vpack.c.b16 %v2095, %v2090
      %v2261 = vpack.c.b16 %v2096, %v2091
      %v2262 = vpack.c.b16 %v2102, %v2097
      %v2263 = vpack.c.b16 %v2103, %v2098
      %v2264 = vpack.c.b16 %v2104, %v2099
      %v2265 = vpack.c.b16 %v2105, %v2100
      %v2266 = vpack.c.b16 %v2106, %v2101
      %v2267 = vpack.c.b16 %v2112, %v2107
      %v2268 = vpack.c.b16 %v2113, %v2108
      %v2269 = vpack.c.b16 %v2114, %v2109
      %v2270 = vpack.c.b16 %v2115, %v2110
      %v2271 = vpack.c.b16 %v2116, %v2111
      %v2272 = vpack.c.b16 %v2122, %v2117
      %v2273 = vpack.c.b16 %v2123, %v2118
      %v2274 = vpack.c.b16 %v2124, %v2119
      %v2275 = vpack.c.b16 %v2125, %v2120
      %v2276 = vpack.c.b16 %v2126, %v2121
      %v2277 = vpack.c.b16 %v2132, %v2127
      %v2278 = vpack.c.b16 %v2133, %v2128
      %v2279 = vpack.c.b16 %v2134, %v2129
      %v2280 = vpack.c.b16 %v2135, %v2130
      %v2281 = vpack.c.b16 %v2136, %v2131
      %v2282 = vpack.c.b16 %v2142, %v2137
      %v2283 = vpack.c.b16 %v2143, %v2138
      %v2284 = vpack.c.b16 %v2144, %v2139
      %v2285 = vpack.c.b16 %v2145, %v2140
      %v2286 = vpack.c.b16 %v2146, %v2141
      %v2287 = vpack.c.b16 %v2152, %v2147
      %v2288 = vpack.c.b16 %v2153, %v2148
      %v2289 = vpack.c.b16 %v2154, %v2149
      %v2290 = vpack.c.b16 %v2155, %v2150
      %v2291 = vpack.c.b16 %v2156, %v2151
      %v2292 = vpack.c.b16 %v2162, %v2157
      %v2293 = vpack.c.b16 %v2163, %v2158
      %v2294 = vpack.c.b16 %v2164, %v2159
      %v2295 = vpack.c.b16 %v2165, %v2160
      %v2296 = vpack.c.b16 %v2166, %v2161
      %v2297 = vpack.c.b16 %v2172, %v2167
      %v2298 = vpack.c.b16 %v2173, %v2168
      %v2299 = vpack.c.b16 %v2174, %v2169
      %v2300 = vpack.c.b16 %v2175, %v2170
      %v2301 = vpack.c.b16 %v2176, %v2171
      %v2302 = vpack.c.b16 %v2182, %v2177
      %v2303 = vpack.c.b16 %v2183, %v2178
      %v2304 = vpack.c.b16 %v2184, %v2179
      %v2305 = vpack.c.b16 %v2185, %v2180
      %v2306 = vpack.c.b16 %v2186, %v2181
      %v2307 = vpack.c.b16 %v2192, %v2187
      %v2308 = vpack.c.b16 %v2193, %v2188
      %v2309 = vpack.c.b16 %v2194, %v2189
      %v2310 = vpack.c.b16 %v2195, %v2190
      %v2311 = vpack.c.b16 %v2196, %v2191
      %v2312 = vpack.c.b16 %v2202, %v2197
      %v2313 = vpack.c.b16 %v2203, %v2198
      %v2314 = vpack.c.b16 %v2204, %v2199
      %v2315 = vpack.c.b16 %v2205, %v2200
      %v2316 = vpack.c.b16 %v2206, %v2201
      %v2317 = vpack.c.b16 %v2212, %v2207
      %v2318 = vpack.c.b16 %v2213, %v2208
      %v2319 = vpack.c.b16 %v2214, %v2209
      %v2320 = vpack.c.b16 %v2215, %v2210
      %v2321 = vpack.c.b16 %v2216, %v2211
      %v2322 = vpack.c.b16 %v2222, %v2217
      %v2323 = vpack.c.b16 %v2223, %v2218
      %v2324 = vpack.c.b16 %v2224, %v2219
      %v2325 = vpack.c.b16 %v2225, %v2220
      %v2326 = vpack.c.b16 %v2226, %v2221
      %v2327 = vpack.c.b16 %v2232, %v2227
      %v2328 = vpack.c.b16 %v2233, %v2228
      %v2329 = vpack.c.b16 %v2234, %v2229
      %v2330 = vpack.c.b16 %v2235, %v2230
      %v2331 = vpack.c.b16 %v2236, %v2231
      %v2332 = vpack.c.b16 %v2242, %v2237
      %v2333 = vpack.c.b16 %v2243, %v2238
      %v2334 = vpack.c.b16 %v2244, %v2239
      %v2335 = vpack.c.b16 %v2245, %v2240
      %v2336 = vpack.c.b16 %v2246, %v2241
      %v2481 = vunpack.c.l.b16 %v1887
      %v2482 = vunpack.c.l.b16 %v1888
      %v2483 = vunpack.c.l.b16 %v1889
      %v2484 = vunpack.c.l.b16 %v1890
      %v2485 = vunpack.c.l.b16 %v1891
      %v2486 = vunpack.c.l.b16 %v1892
      %v2487 = vunpack.c.l.b16 %v1893
      %v2488 = vunpack.c.l.b16 %v1894
      %v2489 = vunpack.c.l.b16 %v1895
      %v2490 = vunpack.c.l.b16 %v1896
      %v2491 = vunpack.c.l.b16 %v1897
      %v2492 = vunpack.c.l.b16 %v1898
      %v2493 = vunpack.c.l.b16 %v1899
      %v2494 = vunpack.c.l.b16 %v1900
      %v2495 = vunpack.c.l.b16 %v1901
      %v2496 = vunpack.c.l.b16 %v1902
      %v2497 = vunpack.c.l.b16 %v1903
      %v2498 = vunpack.c.l.b16 %v1904
      %v2499 = vunpack.c.l.b16 %v1905
      %v2500 = vunpack.c.l.b16 %v1906
      %v2501 = vunpack.c.l.b16 %v1907
      %v2502 = vunpack.c.l.b16 %v1908
      %v2503 = vunpack.c.l.b16 %v1909
      %v2504 = vunpack.c.l.b16 %v1910
      %v2505 = vunpack.c.l.b16 %v1911
      %v2506 = vunpack.c.l.b16 %v1912
      %v2507 = vunpack.c.l.b16 %v1913
      %v2508 = vunpack.c.l.b16 %v1914
      %v2509 = vunpack.c.l.b16 %v1915
      %v2510 = vunpack.c.l.b16 %v1916
      %v2511 = vunpack.c.l.b16 %v1917
      %v2512 = vunpack.c.l.b16 %v1918
      %v2513 = vunpack.c.l.b16 %v1919
      %v2514 = vunpack.c.l.b16 %v1920
      %v2515 = vunpack.c.l.b16 %v1921
      %v2516 = vunpack.c.l.b16 %v1922
      %v2517 = vunpack.c.l.b16 %v1923
      %v2518 = vunpack.c.l.b16 %v1924
      %v2519 = vunpack.c.l.b16 %v1925
      %v2520 = vunpack.c.l.b16 %v1926
      %v2521 = vunpack.c.l.b16 %v1927
      %v2522 = vunpack.c.l.b16 %v1928
      %v2523 = vunpack.c.l.b16 %v1929
      %v2524 = vunpack.c.l.b16 %v1930
      %v2525 = vunpack.c.l.b16 %v1931
      %v2526 = vunpack.c.l.b16 %v1932
      %v2527 = vunpack.c.l.b16 %v1933
      %v2528 = vunpack.c.l.b16 %v1934
      %v2529 = vunpack.c.l.b16 %v1935
      %v2530 = vunpack.c.l.b16 %v1936
      %v2531 = vunpack.c.l.b16 %v1937
      %v2532 = vunpack.c.l.b16 %v1938
      %v2533 = vunpack.c.l.b16 %v1939
      %v2534 = vunpack.c.l.b16 %v1940
      %v2535 = vunpack.c.l.b16 %v1941
      %v2536 = vunpack.c.l.b16 %v1942
      %v2537 = vunpack.c.l.b16 %v1943
      %v2538 = vunpack.c.l.b16 %v1944
      %v2539 = vunpack.c.l.b16 %v1945
      %v2540 = vunpack.c.l.b16 %v1946
      %v2541 = vunpack.c.l.b16 %v1947
      %v2542 = vunpack.c.l.b16 %v1948
      %v2543 = vunpack.c.l.b16 %v1949
      %v2544 = vunpack.c.l.b16 %v1950
      %v2545 = vunpack.c.l.b16 %v1951
      %v2546 = vunpack.c.l.b16 %v1952
      %v2547 = vunpack.c.l.b16 %v1953
      %v2548 = vunpack.c.l.b16 %v1954
      %v2549 = vunpack.c.l.b16 %v1955
      %v2550 = vunpack.c.l.b16 %v1956
      %v2551 = vunpack.c.l.b16 %v1957
      %v2552 = vunpack.c.l.b16 %v1958
      %v2553 = vpack.c.b16 %v2482, %v2481
      %v2554 = vpack.c.b16 %v2484, %v2483
      %v2555 = vpack.c.b16 %v2486, %v2485
      %v2556 = vpack.c.b16 %v2488, %v2487
      %v2557 = vpack.c.b16 %v2490, %v2489
      %v2558 = vpack.c.b16 %v2492, %v2491
      %v2559 = vpack.c.b16 %v2494, %v2493
      %v2560 = vpack.c.b16 %v2496, %v2495
      %v2561 = vpack.c.b16 %v2498, %v2497
      %v2562 = vpack.c.b16 %v2500, %v2499
      %v2563 = vpack.c.b16 %v2502, %v2501
      %v2564 = vpack.c.b16 %v2504, %v2503
      %v2565 = vpack.c.b16 %v2506, %v2505
      %v2566 = vpack.c.b16 %v2508, %v2507
      %v2567 = vpack.c.b16 %v2510, %v2509
      %v2568 = vpack.c.b16 %v2512, %v2511
      %v2569 = vpack.c.b16 %v2514, %v2513
      %v2570 = vpack.c.b16 %v2516, %v2515
      %v2571 = vpack.c.b16 %v2518, %v2517
      %v2572 = vpack.c.b16 %v2520, %v2519
      %v2573 = vpack.c.b16 %v2522, %v2521
      %v2574 = vpack.c.b16 %v2524, %v2523
      %v2575 = vpack.c.b16 %v2526, %v2525
      %v2576 = vpack.c.b16 %v2528, %v2527
      %v2577 = vpack.c.b16 %v2530, %v2529
      %v2578 = vpack.c.b16 %v2532, %v2531
      %v2579 = vpack.c.b16 %v2534, %v2533
      %v2580 = vpack.c.b16 %v2536, %v2535
      %v2581 = vpack.c.b16 %v2538, %v2537
      %v2582 = vpack.c.b16 %v2540, %v2539
      %v2583 = vpack.c.b16 %v2542, %v2541
      %v2584 = vpack.c.b16 %v2544, %v2543
      %v2585 = vpack.c.b16 %v2546, %v2545
      %v2586 = vpack.c.b16 %v2548, %v2547
      %v2587 = vpack.c.b16 %v2550, %v2549
      %v2588 = vpack.c.b16 %v2552, %v2551
      %vm2625 = vcmask 523264
      %v2627 = vsel %vm2625, %v2251, 0
      %v2630 = vsel %vm2625, %v2256, 0
      %v2633 = vsel %vm2625, %v2261, 0
      %v2636 = vsel %vm2625, %v2266, 0
      %v2639 = vsel %vm2625, %v2271, 0
      %v2642 = vsel %vm2625, %v2276, 0
      %v2645 = vsel %vm2625, %v2281, 0
      %v2648 = vsel %vm2625, %v2286, 0
      %v2651 = vsel %vm2625, %v2291, 0
      %v2654 = vsel %vm2625, %v2296, 0
      %v2657 = vsel %vm2625, %v2301, 0
      %v2660 = vsel %vm2625, %v2306, 0
      %v2663 = vsel %vm2625, %v2311, 0
      %v2666 = vsel %vm2625, %v2316, 0
      %v2669 = vsel %vm2625, %v2321, 0
      %v2672 = vsel %vm2625, %v2326, 0
      %v2675 = vsel %vm2625, %v2331, 0
      %v2678 = vsel %vm2625, %v2336, 0
      %2680 = vmatpush.bf16.msra.mxu0 %v2560
      %2681 = vmatpush.bf16.msra.mxu0 %v2559
      %2682 = vmatpush.bf16.msra.mxu0 %v2558
      %2683 = vmatpush.bf16.msra.mxu0 %v2557
      %2684 = vmatpush.bf16.msra.mxu0 %v2556
      %2685 = vmatpush.bf16.msra.mxu0 %v2555
      %2686 = vmatpush.bf16.msra.mxu0 %v2554
      %2687 = vmatpush.bf16.msra.mxu0 %v2553
      %2688 = vmatmul.bf16.gmra.mxu0 %v2247
      %v2689 = vpop.f32.mrf.mxu0
      %v2690 = vadd.f32 0.0, %v2689
      %v2691 = vpop.f32.mrf.mxu0
      %v2692 = vadd.f32 0.0, %v2691
      %2693 = vmatmul.bf16.gmra.mxu0 %v2252
      %v2694 = vpop.f32.mrf.mxu0
      %v2695 = vadd.f32 0.0, %v2694
      %v2696 = vpop.f32.mrf.mxu0
      %v2697 = vadd.f32 0.0, %v2696
      %2698 = vmatmul.bf16.gmra.mxu0 %v2257
      %v2699 = vpop.f32.mrf.mxu0
      %v2700 = vadd.f32 0.0, %v2699
      %v2701 = vpop.f32.mrf.mxu0
      %v2702 = vadd.f32 0.0, %v2701
      %2703 = vmatmul.bf16.gmra.mxu0 %v2262
      %v2704 = vpop.f32.mrf.mxu0
      %v2705 = vadd.f32 0.0, %v2704
      %v2706 = vpop.f32.mrf.mxu0
      %v2707 = vadd.f32 0.0, %v2706
      %2708 = vmatmul.bf16.gmra.mxu0 %v2267
      %v2709 = vpop.f32.mrf.mxu0
      %v2710 = vadd.f32 0.0, %v2709
      %v2711 = vpop.f32.mrf.mxu0
      %v2712 = vadd.f32 0.0, %v2711
      %2713 = vmatmul.bf16.gmra.mxu0 %v2272
      %v2714 = vpop.f32.mrf.mxu0
      %v2715 = vadd.f32 0.0, %v2714
      %v2716 = vpop.f32.mrf.mxu0
      %v2717 = vadd.f32 0.0, %v2716
      %2718 = vmatmul.bf16.gmra.mxu0 %v2277
      %v2719 = vpop.f32.mrf.mxu0
      %v2720 = vadd.f32 0.0, %v2719
      %v2721 = vpop.f32.mrf.mxu0
      %v2722 = vadd.f32 0.0, %v2721
      %2723 = vmatmul.bf16.gmra.mxu0 %v2282
      %v2724 = vpop.f32.mrf.mxu0
      %v2725 = vadd.f32 0.0, %v2724
      %v2726 = vpop.f32.mrf.mxu0
      %v2727 = vadd.f32 0.0, %v2726
      %2728 = vmatmul.bf16.gmra.mxu0 %v2287
      %v2729 = vpop.f32.mrf.mxu0
      %v2730 = vadd.f32 0.0, %v2729
      %v2731 = vpop.f32.mrf.mxu0
      %v2732 = vadd.f32 0.0, %v2731
      %2733 = vmatmul.bf16.gmra.mxu0 %v2292
      %v2734 = vpop.f32.mrf.mxu0
      %v2735 = vadd.f32 0.0, %v2734
      %v2736 = vpop.f32.mrf.mxu0
      %v2737 = vadd.f32 0.0, %v2736
      %2738 = vmatmul.bf16.gmra.mxu0 %v2297
      %v2739 = vpop.f32.mrf.mxu0
      %v2740 = vadd.f32 0.0, %v2739
      %v2741 = vpop.f32.mrf.mxu0
      %v2742 = vadd.f32 0.0, %v2741
      %2743 = vmatmul.bf16.gmra.mxu0 %v2302
      %v2744 = vpop.f32.mrf.mxu0
      %v2745 = vadd.f32 0.0, %v2744
      %v2746 = vpop.f32.mrf.mxu0
      %v2747 = vadd.f32 0.0, %v2746
      %2748 = vmatmul.bf16.gmra.mxu0 %v2307
      %v2749 = vpop.f32.mrf.mxu0
      %v2750 = vadd.f32 0.0, %v2749
      %v2751 = vpop.f32.mrf.mxu0
      %v2752 = vadd.f32 0.0, %v2751
      %2753 = vmatmul.bf16.gmra.mxu0 %v2312
      %v2754 = vpop.f32.mrf.mxu0
      %v2755 = vadd.f32 0.0, %v2754
      %v2756 = vpop.f32.mrf.mxu0
      %v2757 = vadd.f32 0.0, %v2756
      %2758 = vmatmul.bf16.gmra.mxu0 %v2317
      %v2759 = vpop.f32.mrf.mxu0
      %v2760 = vadd.f32 0.0, %v2759
      %v2761 = vpop.f32.mrf.mxu0
      %v2762 = vadd.f32 0.0, %v2761
      %2763 = vmatmul.bf16.gmra.mxu0 %v2322
      %v2764 = vpop.f32.mrf.mxu0
      %v2765 = vadd.f32 0.0, %v2764
      %v2766 = vpop.f32.mrf.mxu0
      %v2767 = vadd.f32 0.0, %v2766
      %2768 = vmatmul.bf16.gmra.mxu0 %v2327
      %v2769 = vpop.f32.mrf.mxu0
      %v2770 = vadd.f32 0.0, %v2769
      %v2771 = vpop.f32.mrf.mxu0
      %v2772 = vadd.f32 0.0, %v2771
      %2773 = vmatmul.bf16.gmra.mxu0 %v2332
      %v2774 = vpop.f32.mrf.mxu0
      %v2775 = vadd.f32 0.0, %v2774
      %v2776 = vpop.f32.mrf.mxu0
      %v2777 = vadd.f32 0.0, %v2776
      %2778 = vdwg.mxu0
      %2779 = vmatpush.bf16.msra.mxu0 %v2568
      %2780 = vmatpush.bf16.msra.mxu0 %v2567
      %2781 = vmatpush.bf16.msra.mxu0 %v2566
      %2782 = vmatpush.bf16.msra.mxu0 %v2565
      %2783 = vmatpush.bf16.msra.mxu0 %v2564
      %2784 = vmatpush.bf16.msra.mxu0 %v2563
      %2785 = vmatpush.bf16.msra.mxu0 %v2562
      %2786 = vmatpush.bf16.msra.mxu0 %v2561
      %2787 = vmatmul.bf16.gmra.mxu0 %v2248
      %v2788 = vpop.f32.mrf.mxu0
      %v2789 = vadd.f32 %v2690, %v2788
      %v2790 = vpop.f32.mrf.mxu0
      %v2791 = vadd.f32 %v2692, %v2790
      %2792 = vmatmul.bf16.gmra.mxu0 %v2253
      %v2793 = vpop.f32.mrf.mxu0
      %v2794 = vadd.f32 %v2695, %v2793
      %v2795 = vpop.f32.mrf.mxu0
      %v2796 = vadd.f32 %v2697, %v2795
      %2797 = vmatmul.bf16.gmra.mxu0 %v2258
      %v2798 = vpop.f32.mrf.mxu0
      %v2799 = vadd.f32 %v2700, %v2798
      %v2800 = vpop.f32.mrf.mxu0
      %v2801 = vadd.f32 %v2702, %v2800
      %2802 = vmatmul.bf16.gmra.mxu0 %v2263
      %v2803 = vpop.f32.mrf.mxu0
      %v2804 = vadd.f32 %v2705, %v2803
      %v2805 = vpop.f32.mrf.mxu0
      %v2806 = vadd.f32 %v2707, %v2805
      %2807 = vmatmul.bf16.gmra.mxu0 %v2268
      %v2808 = vpop.f32.mrf.mxu0
      %v2809 = vadd.f32 %v2710, %v2808
      %v2810 = vpop.f32.mrf.mxu0
      %v2811 = vadd.f32 %v2712, %v2810
      %2812 = vmatmul.bf16.gmra.mxu0 %v2273
      %v2813 = vpop.f32.mrf.mxu0
      %v2814 = vadd.f32 %v2715, %v2813
      %v2815 = vpop.f32.mrf.mxu0
      %v2816 = vadd.f32 %v2717, %v2815
      %2817 = vmatmul.bf16.gmra.mxu0 %v2278
      %v2818 = vpop.f32.mrf.mxu0
      %v2819 = vadd.f32 %v2720, %v2818
      %v2820 = vpop.f32.mrf.mxu0
      %v2821 = vadd.f32 %v2722, %v2820
      %2822 = vmatmul.bf16.gmra.mxu0 %v2283
      %v2823 = vpop.f32.mrf.mxu0
      %v2824 = vadd.f32 %v2725, %v2823
      %v2825 = vpop.f32.mrf.mxu0
      %v2826 = vadd.f32 %v2727, %v2825
      %2827 = vmatmul.bf16.gmra.mxu0 %v2288
      %v2828 = vpop.f32.mrf.mxu0
      %v2829 = vadd.f32 %v2730, %v2828
      %v2830 = vpop.f32.mrf.mxu0
      %v2831 = vadd.f32 %v2732, %v2830
      %2832 = vmatmul.bf16.gmra.mxu0 %v2293
      %v2833 = vpop.f32.mrf.mxu0
      %v2834 = vadd.f32 %v2735, %v2833
      %v2835 = vpop.f32.mrf.mxu0
      %v2836 = vadd.f32 %v2737, %v2835
      %2837 = vmatmul.bf16.gmra.mxu0 %v2298
      %v2838 = vpop.f32.mrf.mxu0
      %v2839 = vadd.f32 %v2740, %v2838
      %v2840 = vpop.f32.mrf.mxu0
      %v2841 = vadd.f32 %v2742, %v2840
      %2842 = vmatmul.bf16.gmra.mxu0 %v2303
      %v2843 = vpop.f32.mrf.mxu0
      %v2844 = vadd.f32 %v2745, %v2843
      %v2845 = vpop.f32.mrf.mxu0
      %v2846 = vadd.f32 %v2747, %v2845
      %2847 = vmatmul.bf16.gmra.mxu0 %v2308
      %v2848 = vpop.f32.mrf.mxu0
      %v2849 = vadd.f32 %v2750, %v2848
      %v2850 = vpop.f32.mrf.mxu0
      %v2851 = vadd.f32 %v2752, %v2850
      %2852 = vmatmul.bf16.gmra.mxu0 %v2313
      %v2853 = vpop.f32.mrf.mxu0
      %v2854 = vadd.f32 %v2755, %v2853
      %v2855 = vpop.f32.mrf.mxu0
      %v2856 = vadd.f32 %v2757, %v2855
      %2857 = vmatmul.bf16.gmra.mxu0 %v2318
      %v2858 = vpop.f32.mrf.mxu0
      %v2859 = vadd.f32 %v2760, %v2858
      %v2860 = vpop.f32.mrf.mxu0
      %v2861 = vadd.f32 %v2762, %v2860
      %2862 = vmatmul.bf16.gmra.mxu0 %v2323
      %v2863 = vpop.f32.mrf.mxu0
      %v2864 = vadd.f32 %v2765, %v2863
      %v2865 = vpop.f32.mrf.mxu0
      %v2866 = vadd.f32 %v2767, %v2865
      %2867 = vmatmul.bf16.gmra.mxu0 %v2328
      %v2868 = vpop.f32.mrf.mxu0
      %v2869 = vadd.f32 %v2770, %v2868
      %v2870 = vpop.f32.mrf.mxu0
      %v2871 = vadd.f32 %v2772, %v2870
      %2872 = vmatmul.bf16.gmra.mxu0 %v2333
      %v2873 = vpop.f32.mrf.mxu0
      %v2874 = vadd.f32 %v2775, %v2873
      %v2875 = vpop.f32.mrf.mxu0
      %v2876 = vadd.f32 %v2777, %v2875
      %2877 = vdwg.mxu0
      %2878 = vmatpush.bf16.msra.mxu0 %v2576
      %2879 = vmatpush.bf16.msra.mxu0 %v2575
      %2880 = vmatpush.bf16.msra.mxu0 %v2574
      %2881 = vmatpush.bf16.msra.mxu0 %v2573
      %2882 = vmatpush.bf16.msra.mxu0 %v2572
      %2883 = vmatpush.bf16.msra.mxu0 %v2571
      %2884 = vmatpush.bf16.msra.mxu0 %v2570
      %2885 = vmatpush.bf16.msra.mxu0 %v2569
      %2886 = vmatmul.bf16.gmra.mxu0 %v2249
      %v2887 = vpop.f32.mrf.mxu0
      %v2888 = vadd.f32 %v2789, %v2887
      %v2889 = vpop.f32.mrf.mxu0
      %v2890 = vadd.f32 %v2791, %v2889
      %2891 = vmatmul.bf16.gmra.mxu0 %v2254
      %v2892 = vpop.f32.mrf.mxu0
      %v2893 = vadd.f32 %v2794, %v2892
      %v2894 = vpop.f32.mrf.mxu0
      %v2895 = vadd.f32 %v2796, %v2894
      %2896 = vmatmul.bf16.gmra.mxu0 %v2259
      %v2897 = vpop.f32.mrf.mxu0
      %v2898 = vadd.f32 %v2799, %v2897
      %v2899 = vpop.f32.mrf.mxu0
      %v2900 = vadd.f32 %v2801, %v2899
      %2901 = vmatmul.bf16.gmra.mxu0 %v2264
      %v2902 = vpop.f32.mrf.mxu0
      %v2903 = vadd.f32 %v2804, %v2902
      %v2904 = vpop.f32.mrf.mxu0
      %v2905 = vadd.f32 %v2806, %v2904
      %2906 = vmatmul.bf16.gmra.mxu0 %v2269
      %v2907 = vpop.f32.mrf.mxu0
      %v2908 = vadd.f32 %v2809, %v2907
      %v2909 = vpop.f32.mrf.mxu0
      %v2910 = vadd.f32 %v2811, %v2909
      %2911 = vmatmul.bf16.gmra.mxu0 %v2274
      %v2912 = vpop.f32.mrf.mxu0
      %v2913 = vadd.f32 %v2814, %v2912
      %v2914 = vpop.f32.mrf.mxu0
      %v2915 = vadd.f32 %v2816, %v2914
      %2916 = vmatmul.bf16.gmra.mxu0 %v2279
      %v2917 = vpop.f32.mrf.mxu0
      %v2918 = vadd.f32 %v2819, %v2917
      %v2919 = vpop.f32.mrf.mxu0
      %v2920 = vadd.f32 %v2821, %v2919
      %2921 = vmatmul.bf16.gmra.mxu0 %v2284
      %v2922 = vpop.f32.mrf.mxu0
      %v2923 = vadd.f32 %v2824, %v2922
      %v2924 = vpop.f32.mrf.mxu0
      %v2925 = vadd.f32 %v2826, %v2924
      %2926 = vmatmul.bf16.gmra.mxu0 %v2289
      %v2927 = vpop.f32.mrf.mxu0
      %v2928 = vadd.f32 %v2829, %v2927
      %v2929 = vpop.f32.mrf.mxu0
      %v2930 = vadd.f32 %v2831, %v2929
      %2931 = vmatmul.bf16.gmra.mxu0 %v2294
      %v2932 = vpop.f32.mrf.mxu0
      %v2933 = vadd.f32 %v2834, %v2932
      %v2934 = vpop.f32.mrf.mxu0
      %v2935 = vadd.f32 %v2836, %v2934
      %2936 = vmatmul.bf16.gmra.mxu0 %v2299
      %v2937 = vpop.f32.mrf.mxu0
      %v2938 = vadd.f32 %v2839, %v2937
      %v2939 = vpop.f32.mrf.mxu0
      %v2940 = vadd.f32 %v2841, %v2939
      %2941 = vmatmul.bf16.gmra.mxu0 %v2304
      %v2942 = vpop.f32.mrf.mxu0
      %v2943 = vadd.f32 %v2844, %v2942
      %v2944 = vpop.f32.mrf.mxu0
      %v2945 = vadd.f32 %v2846, %v2944
      %2946 = vmatmul.bf16.gmra.mxu0 %v2309
      %v2947 = vpop.f32.mrf.mxu0
      %v2948 = vadd.f32 %v2849, %v2947
      %v2949 = vpop.f32.mrf.mxu0
      %v2950 = vadd.f32 %v2851, %v2949
      %2951 = vmatmul.bf16.gmra.mxu0 %v2314
      %v2952 = vpop.f32.mrf.mxu0
      %v2953 = vadd.f32 %v2854, %v2952
      %v2954 = vpop.f32.mrf.mxu0
      %v2955 = vadd.f32 %v2856, %v2954
      %2956 = vmatmul.bf16.gmra.mxu0 %v2319
      %v2957 = vpop.f32.mrf.mxu0
      %v2958 = vadd.f32 %v2859, %v2957
      %v2959 = vpop.f32.mrf.mxu0
      %v2960 = vadd.f32 %v2861, %v2959
      %2961 = vmatmul.bf16.gmra.mxu0 %v2324
      %v2962 = vpop.f32.mrf.mxu0
      %v2963 = vadd.f32 %v2864, %v2962
      %v2964 = vpop.f32.mrf.mxu0
      %v2965 = vadd.f32 %v2866, %v2964
      %2966 = vmatmul.bf16.gmra.mxu0 %v2329
      %v2967 = vpop.f32.mrf.mxu0
      %v2968 = vadd.f32 %v2869, %v2967
      %v2969 = vpop.f32.mrf.mxu0
      %v2970 = vadd.f32 %v2871, %v2969
      %2971 = vmatmul.bf16.gmra.mxu0 %v2334
      %v2972 = vpop.f32.mrf.mxu0
      %v2973 = vadd.f32 %v2874, %v2972
      %v2974 = vpop.f32.mrf.mxu0
      %v2975 = vadd.f32 %v2876, %v2974
      %2976 = vdwg.mxu0
      %2977 = vmatpush.bf16.msra.mxu0 %v2584
      %2978 = vmatpush.bf16.msra.mxu0 %v2583
      %2979 = vmatpush.bf16.msra.mxu0 %v2582
      %2980 = vmatpush.bf16.msra.mxu0 %v2581
      %2981 = vmatpush.bf16.msra.mxu0 %v2580
      %2982 = vmatpush.bf16.msra.mxu0 %v2579
      %2983 = vmatpush.bf16.msra.mxu0 %v2578
      %2984 = vmatpush.bf16.msra.mxu0 %v2577
      %2985 = vmatmul.bf16.gmra.mxu0 %v2250
      %v2986 = vpop.f32.mrf.mxu0
      %v2987 = vadd.f32 %v2888, %v2986
      %v2988 = vpop.f32.mrf.mxu0
      %v2989 = vadd.f32 %v2890, %v2988
      %2990 = vmatmul.bf16.gmra.mxu0 %v2255
      %v2991 = vpop.f32.mrf.mxu0
      %v2992 = vadd.f32 %v2893, %v2991
      %v2993 = vpop.f32.mrf.mxu0
      %v2994 = vadd.f32 %v2895, %v2993
      %2995 = vmatmul.bf16.gmra.mxu0 %v2260
      %v2996 = vpop.f32.mrf.mxu0
      %v2997 = vadd.f32 %v2898, %v2996
      %v2998 = vpop.f32.mrf.mxu0
      %v2999 = vadd.f32 %v2900, %v2998
      %3000 = vmatmul.bf16.gmra.mxu0 %v2265
      %v3001 = vpop.f32.mrf.mxu0
      %v3002 = vadd.f32 %v2903, %v3001
      %v3003 = vpop.f32.mrf.mxu0
      %v3004 = vadd.f32 %v2905, %v3003
      %3005 = vmatmul.bf16.gmra.mxu0 %v2270
      %v3006 = vpop.f32.mrf.mxu0
      %v3007 = vadd.f32 %v2908, %v3006
      %v3008 = vpop.f32.mrf.mxu0
      %v3009 = vadd.f32 %v2910, %v3008
      %3010 = vmatmul.bf16.gmra.mxu0 %v2275
      %v3011 = vpop.f32.mrf.mxu0
      %v3012 = vadd.f32 %v2913, %v3011
      %v3013 = vpop.f32.mrf.mxu0
      %v3014 = vadd.f32 %v2915, %v3013
      %3015 = vmatmul.bf16.gmra.mxu0 %v2280
      %v3016 = vpop.f32.mrf.mxu0
      %v3017 = vadd.f32 %v2918, %v3016
      %v3018 = vpop.f32.mrf.mxu0
      %v3019 = vadd.f32 %v2920, %v3018
      %3020 = vmatmul.bf16.gmra.mxu0 %v2285
      %v3021 = vpop.f32.mrf.mxu0
      %v3022 = vadd.f32 %v2923, %v3021
      %v3023 = vpop.f32.mrf.mxu0
      %v3024 = vadd.f32 %v2925, %v3023
      %3025 = vmatmul.bf16.gmra.mxu0 %v2290
      %v3026 = vpop.f32.mrf.mxu0
      %v3027 = vadd.f32 %v2928, %v3026
      %v3028 = vpop.f32.mrf.mxu0
      %v3029 = vadd.f32 %v2930, %v3028
      %3030 = vmatmul.bf16.gmra.mxu0 %v2295
      %v3031 = vpop.f32.mrf.mxu0
      %v3032 = vadd.f32 %v2933, %v3031
      %v3033 = vpop.f32.mrf.mxu0
      %v3034 = vadd.f32 %v2935, %v3033
      %3035 = vmatmul.bf16.gmra.mxu0 %v2300
      %v3036 = vpop.f32.mrf.mxu0
      %v3037 = vadd.f32 %v2938, %v3036
      %v3038 = vpop.f32.mrf.mxu0
      %v3039 = vadd.f32 %v2940, %v3038
      %3040 = vmatmul.bf16.gmra.mxu0 %v2305
      %v3041 = vpop.f32.mrf.mxu0
      %v3042 = vadd.f32 %v2943, %v3041
      %v3043 = vpop.f32.mrf.mxu0
      %v3044 = vadd.f32 %v2945, %v3043
      %3045 = vmatmul.bf16.gmra.mxu0 %v2310
      %v3046 = vpop.f32.mrf.mxu0
      %v3047 = vadd.f32 %v2948, %v3046
      %v3048 = vpop.f32.mrf.mxu0
      %v3049 = vadd.f32 %v2950, %v3048
      %3050 = vmatmul.bf16.gmra.mxu0 %v2315
      %v3051 = vpop.f32.mrf.mxu0
      %v3052 = vadd.f32 %v2953, %v3051
      %v3053 = vpop.f32.mrf.mxu0
      %v3054 = vadd.f32 %v2955, %v3053
      %3055 = vmatmul.bf16.gmra.mxu0 %v2320
      %v3056 = vpop.f32.mrf.mxu0
      %v3057 = vadd.f32 %v2958, %v3056
      %v3058 = vpop.f32.mrf.mxu0
      %v3059 = vadd.f32 %v2960, %v3058
      %3060 = vmatmul.bf16.gmra.mxu0 %v2325
      %v3061 = vpop.f32.mrf.mxu0
      %v3062 = vadd.f32 %v2963, %v3061
      %v3063 = vpop.f32.mrf.mxu0
      %v3064 = vadd.f32 %v2965, %v3063
      %3065 = vmatmul.bf16.gmra.mxu0 %v2330
      %v3066 = vpop.f32.mrf.mxu0
      %v3067 = vadd.f32 %v2968, %v3066
      %v3068 = vpop.f32.mrf.mxu0
      %v3069 = vadd.f32 %v2970, %v3068
      %3070 = vmatmul.bf16.gmra.mxu0 %v2335
      %v3071 = vpop.f32.mrf.mxu0
      %v3072 = vadd.f32 %v2973, %v3071
      %v3073 = vpop.f32.mrf.mxu0
      %v3074 = vadd.f32 %v2975, %v3073
      %3075 = vdwg.mxu0
      %3076 = vmatpush.bf16.msra.mxu0 0
      %3077 = vmatpush.bf16.msra.mxu0 0
      %3078 = vmatpush.bf16.msra.mxu0 0
      %3079 = vmatpush.bf16.msra.mxu0 0
      %3080 = vmatpush.bf16.msra.mxu0 %v2588
      %3081 = vmatpush.bf16.msra.mxu0 %v2587
      %3082 = vmatpush.bf16.msra.mxu0 %v2586
      %3083 = vmatpush.bf16.msra.mxu0 %v2585
      %3084 = vmatmul.bf16.gmra.mxu0 %v2627
      %v3085 = vpop.f32.mrf.mxu0
      %v3086 = vadd.f32 %v2987, %v3085
      %v3087 = vpop.f32.mrf.mxu0
      %v3088 = vadd.f32 %v2989, %v3087
      %3089 = vmatmul.bf16.gmra.mxu0 %v2630
      %v3090 = vpop.f32.mrf.mxu0
      %v3091 = vadd.f32 %v2992, %v3090
      %v3092 = vpop.f32.mrf.mxu0
      %v3093 = vadd.f32 %v2994, %v3092
      %3094 = vmatmul.bf16.gmra.mxu0 %v2633
      %v3095 = vpop.f32.mrf.mxu0
      %v3096 = vadd.f32 %v2997, %v3095
      %v3097 = vpop.f32.mrf.mxu0
      %v3098 = vadd.f32 %v2999, %v3097
      %3099 = vmatmul.bf16.gmra.mxu0 %v2636
      %v3100 = vpop.f32.mrf.mxu0
      %v3101 = vadd.f32 %v3002, %v3100
      %v3102 = vpop.f32.mrf.mxu0
      %v3103 = vadd.f32 %v3004, %v3102
      %3104 = vmatmul.bf16.gmra.mxu0 %v2639
      %v3105 = vpop.f32.mrf.mxu0
      %v3106 = vadd.f32 %v3007, %v3105
      %v3107 = vpop.f32.mrf.mxu0
      %v3108 = vadd.f32 %v3009, %v3107
      %3109 = vmatmul.bf16.gmra.mxu0 %v2642
      %v3110 = vpop.f32.mrf.mxu0
      %v3111 = vadd.f32 %v3012, %v3110
      %v3112 = vpop.f32.mrf.mxu0
      %v3113 = vadd.f32 %v3014, %v3112
      %3114 = vmatmul.bf16.gmra.mxu0 %v2645
      %v3115 = vpop.f32.mrf.mxu0
      %v3116 = vadd.f32 %v3017, %v3115
      %v3117 = vpop.f32.mrf.mxu0
      %v3118 = vadd.f32 %v3019, %v3117
      %3119 = vmatmul.bf16.gmra.mxu0 %v2648
      %v3120 = vpop.f32.mrf.mxu0
      %v3121 = vadd.f32 %v3022, %v3120
      %v3122 = vpop.f32.mrf.mxu0
      %v3123 = vadd.f32 %v3024, %v3122
      %3124 = vmatmul.bf16.gmra.mxu0 %v2651
      %v3125 = vpop.f32.mrf.mxu0
      %v3126 = vadd.f32 %v3027, %v3125
      %v3127 = vpop.f32.mrf.mxu0
      %v3128 = vadd.f32 %v3029, %v3127
      %3129 = vmatmul.bf16.gmra.mxu0 %v2654
      %v3130 = vpop.f32.mrf.mxu0
      %v3131 = vadd.f32 %v3032, %v3130
      %v3132 = vpop.f32.mrf.mxu0
      %v3133 = vadd.f32 %v3034, %v3132
      %3134 = vmatmul.bf16.gmra.mxu0 %v2657
      %v3135 = vpop.f32.mrf.mxu0
      %v3136 = vadd.f32 %v3037, %v3135
      %v3137 = vpop.f32.mrf.mxu0
      %v3138 = vadd.f32 %v3039, %v3137
      %3139 = vmatmul.bf16.gmra.mxu0 %v2660
      %v3140 = vpop.f32.mrf.mxu0
      %v3141 = vadd.f32 %v3042, %v3140
      %v3142 = vpop.f32.mrf.mxu0
      %v3143 = vadd.f32 %v3044, %v3142
      %3144 = vmatmul.bf16.gmra.mxu0 %v2663
      %v3145 = vpop.f32.mrf.mxu0
      %v3146 = vadd.f32 %v3047, %v3145
      %v3147 = vpop.f32.mrf.mxu0
      %v3148 = vadd.f32 %v3049, %v3147
      %3149 = vmatmul.bf16.gmra.mxu0 %v2666
      %v3150 = vpop.f32.mrf.mxu0
      %v3151 = vadd.f32 %v3052, %v3150
      %v3152 = vpop.f32.mrf.mxu0
      %v3153 = vadd.f32 %v3054, %v3152
      %3154 = vmatmul.bf16.gmra.mxu0 %v2669
      %v3155 = vpop.f32.mrf.mxu0
      %v3156 = vadd.f32 %v3057, %v3155
      %v3157 = vpop.f32.mrf.mxu0
      %v3158 = vadd.f32 %v3059, %v3157
      %3159 = vmatmul.bf16.gmra.mxu0 %v2672
      %v3160 = vpop.f32.mrf.mxu0
      %v3161 = vadd.f32 %v3062, %v3160
      %v3162 = vpop.f32.mrf.mxu0
      %v3163 = vadd.f32 %v3064, %v3162
      %3164 = vmatmul.bf16.gmra.mxu0 %v2675
      %v3165 = vpop.f32.mrf.mxu0
      %v3166 = vadd.f32 %v3067, %v3165
      %v3167 = vpop.f32.mrf.mxu0
      %v3168 = vadd.f32 %v3069, %v3167
      %3169 = vmatmul.bf16.gmra.mxu0 %v2678
      %v3170 = vpop.f32.mrf.mxu0
      %v3171 = vadd.f32 %v3072, %v3170
      %v3172 = vpop.f32.mrf.mxu0
      %v3173 = vadd.f32 %v3074, %v3172
      %3174 = vdwg.mxu0
      %v3175 = vperm.slane %v226, 0
      %v3176 = vmul.f32 %v3086, %v3175
      %v3177 = vmul.f32 %v3088, %v3175
      %v3178 = vmul.f32 %v3091, %v3175
      %v3179 = vmul.f32 %v3093, %v3175
      %v3180 = vmul.f32 %v3096, %v3175
      %v3181 = vmul.f32 %v3098, %v3175
      %v3182 = vmul.f32 %v3101, %v3175
      %v3183 = vmul.f32 %v3103, %v3175
      %v3184 = vmul.f32 %v3106, %v3175
      %v3185 = vmul.f32 %v3108, %v3175
      %v3186 = vmul.f32 %v3111, %v3175
      %v3187 = vmul.f32 %v3113, %v3175
      %v3188 = vmul.f32 %v3116, %v3175
      %v3189 = vmul.f32 %v3118, %v3175
      %v3190 = vmul.f32 %v3121, %v3175
      %v3191 = vmul.f32 %v3123, %v3175
      %v3192 = vmul.f32 %v3126, %v3175
      %v3193 = vmul.f32 %v3128, %v3175
      %v3194 = vmul.f32 %v3131, %v3175
      %v3195 = vmul.f32 %v3133, %v3175
      %v3196 = vmul.f32 %v3136, %v3175
      %v3197 = vmul.f32 %v3138, %v3175
      %v3198 = vmul.f32 %v3141, %v3175
      %v3199 = vmul.f32 %v3143, %v3175
      %v3200 = vmul.f32 %v3146, %v3175
      %v3201 = vmul.f32 %v3148, %v3175
      %v3202 = vmul.f32 %v3151, %v3175
      %v3203 = vmul.f32 %v3153, %v3175
      %v3204 = vmul.f32 %v3156, %v3175
      %v3205 = vmul.f32 %v3158, %v3175
      %v3206 = vmul.f32 %v3161, %v3175
      %v3207 = vmul.f32 %v3163, %v3175
      %v3208 = vmul.f32 %v3166, %v3175
      %v3209 = vmul.f32 %v3168, %v3175
      %v3210 = vmul.f32 %v3171, %v3175
      %v3211 = vmul.f32 %v3173, %v3175
      %v3212 = vperm.slane %v226, 1
      %v3213 = vadd.f32 %v3176, %v3212
      %v3214 = vadd.f32 %v3177, %v3212
      %v3215 = vadd.f32 %v3178, %v3212
      %v3216 = vadd.f32 %v3179, %v3212
      %v3217 = vadd.f32 %v3180, %v3212
      %v3218 = vadd.f32 %v3181, %v3212
      %v3219 = vadd.f32 %v3182, %v3212
      %v3220 = vadd.f32 %v3183, %v3212
      %v3221 = vadd.f32 %v3184, %v3212
      %v3222 = vadd.f32 %v3185, %v3212
      %v3223 = vadd.f32 %v3186, %v3212
      %v3224 = vadd.f32 %v3187, %v3212
      %v3225 = vadd.f32 %v3188, %v3212
      %v3226 = vadd.f32 %v3189, %v3212
      %v3227 = vadd.f32 %v3190, %v3212
      %v3228 = vadd.f32 %v3191, %v3212
      %v3229 = vadd.f32 %v3192, %v3212
      %v3230 = vadd.f32 %v3193, %v3212
      %v3231 = vadd.f32 %v3194, %v3212
      %v3232 = vadd.f32 %v3195, %v3212
      %v3233 = vadd.f32 %v3196, %v3212
      %v3234 = vadd.f32 %v3197, %v3212
      %v3235 = vadd.f32 %v3198, %v3212
      %v3236 = vadd.f32 %v3199, %v3212
      %v3237 = vadd.f32 %v3200, %v3212
      %v3238 = vadd.f32 %v3201, %v3212
      %v3239 = vadd.f32 %v3202, %v3212
      %v3240 = vadd.f32 %v3203, %v3212
      %v3241 = vadd.f32 %v3204, %v3212
      %v3242 = vadd.f32 %v3205, %v3212
      %v3243 = vadd.f32 %v3206, %v3212
      %v3244 = vadd.f32 %v3207, %v3212
      %v3245 = vadd.f32 %v3208, %v3212
      %v3246 = vadd.f32 %v3209, %v3212
      %v3247 = vadd.f32 %v3210, %v3212
      %v3248 = vadd.f32 %v3211, %v3212
      %v3249 = vmul.f32 %v3213, 0.5
      %v3250 = vmul.f32 %v3214, 0.5
      %v3251 = vmul.f32 %v3215, 0.5
      %v3252 = vmul.f32 %v3216, 0.5
      %v3253 = vmul.f32 %v3217, 0.5
      %v3254 = vmul.f32 %v3218, 0.5
      %v3255 = vmul.f32 %v3219, 0.5
      %v3256 = vmul.f32 %v3220, 0.5
      %v3257 = vmul.f32 %v3221, 0.5
      %v3258 = vmul.f32 %v3222, 0.5
      %v3259 = vmul.f32 %v3223, 0.5
      %v3260 = vmul.f32 %v3224, 0.5
      %v3261 = vmul.f32 %v3225, 0.5
      %v3262 = vmul.f32 %v3226, 0.5
      %v3263 = vmul.f32 %v3227, 0.5
      %v3264 = vmul.f32 %v3228, 0.5
      %v3265 = vmul.f32 %v3229, 0.5
      %v3266 = vmul.f32 %v3230, 0.5
      %v3267 = vmul.f32 %v3231, 0.5
      %v3268 = vmul.f32 %v3232, 0.5
      %v3269 = vmul.f32 %v3233, 0.5
      %v3270 = vmul.f32 %v3234, 0.5
      %v3271 = vmul.f32 %v3235, 0.5
      %v3272 = vmul.f32 %v3236, 0.5
      %v3273 = vmul.f32 %v3237, 0.5
      %v3274 = vmul.f32 %v3238, 0.5
      %v3275 = vmul.f32 %v3239, 0.5
      %v3276 = vmul.f32 %v3240, 0.5
      %v3277 = vmul.f32 %v3241, 0.5
      %v3278 = vmul.f32 %v3242, 0.5
      %v3279 = vmul.f32 %v3243, 0.5
      %v3280 = vmul.f32 %v3244, 0.5
      %v3281 = vmul.f32 %v3245, 0.5
      %v3282 = vmul.f32 %v3246, 0.5
      %v3283 = vmul.f32 %v3247, 0.5
      %v3284 = vmul.f32 %v3248, 0.5
      %v3285 = vtanh.pop %v3249
      %v3286 = vtanh.pop %v3250
      %v3287 = vtanh.pop %v3251
      %v3288 = vtanh.pop %v3252
      %v3289 = vtanh.pop %v3253
      %v3290 = vtanh.pop %v3254
      %v3291 = vtanh.pop %v3255
      %v3292 = vtanh.pop %v3256
      %v3293 = vtanh.pop %v3257
      %v3294 = vtanh.pop %v3258
      %v3295 = vtanh.pop %v3259
      %v3296 = vtanh.pop %v3260
      %v3297 = vtanh.pop %v3261
      %v3298 = vtanh.pop %v3262
      %v3299 = vtanh.pop %v3263
      %v3300 = vtanh.pop %v3264
      %v3301 = vtanh.pop %v3265
      %v3302 = vtanh.pop %v3266
      %v3303 = vtanh.pop %v3267
      %v3304 = vtanh.pop %v3268
      %v3305 = vtanh.pop %v3269
      %v3306 = vtanh.pop %v3270
      %v3307 = vtanh.pop %v3271
      %v3308 = vtanh.pop %v3272
      %v3309 = vtanh.pop %v3273
      %v3310 = vtanh.pop %v3274
      %v3311 = vtanh.pop %v3275
      %v3312 = vtanh.pop %v3276
      %v3313 = vtanh.pop %v3277
      %v3314 = vtanh.pop %v3278
      %v3315 = vtanh.pop %v3279
      %v3316 = vtanh.pop %v3280
      %v3317 = vtanh.pop %v3281
      %v3318 = vtanh.pop %v3282
      %v3319 = vtanh.pop %v3283
      %v3320 = vtanh.pop %v3284
      %v3321 = vadd.f32 %v3285, 1.0
      %v3322 = vadd.f32 %v3286, 1.0
      %v3323 = vadd.f32 %v3287, 1.0
      %v3324 = vadd.f32 %v3288, 1.0
      %v3325 = vadd.f32 %v3289, 1.0
      %v3326 = vadd.f32 %v3290, 1.0
      %v3327 = vadd.f32 %v3291, 1.0
      %v3328 = vadd.f32 %v3292, 1.0
      %v3329 = vadd.f32 %v3293, 1.0
      %v3330 = vadd.f32 %v3294, 1.0
      %v3331 = vadd.f32 %v3295, 1.0
      %v3332 = vadd.f32 %v3296, 1.0
      %v3333 = vadd.f32 %v3297, 1.0
      %v3334 = vadd.f32 %v3298, 1.0
      %v3335 = vadd.f32 %v3299, 1.0
      %v3336 = vadd.f32 %v3300, 1.0
      %v3337 = vadd.f32 %v3301, 1.0
      %v3338 = vadd.f32 %v3302, 1.0
      %v3339 = vadd.f32 %v3303, 1.0
      %v3340 = vadd.f32 %v3304, 1.0
      %v3341 = vadd.f32 %v3305, 1.0
      %v3342 = vadd.f32 %v3306, 1.0
      %v3343 = vadd.f32 %v3307, 1.0
      %v3344 = vadd.f32 %v3308, 1.0
      %v3345 = vadd.f32 %v3309, 1.0
      %v3346 = vadd.f32 %v3310, 1.0
      %v3347 = vadd.f32 %v3311, 1.0
      %v3348 = vadd.f32 %v3312, 1.0
      %v3349 = vadd.f32 %v3313, 1.0
      %v3350 = vadd.f32 %v3314, 1.0
      %v3351 = vadd.f32 %v3315, 1.0
      %v3352 = vadd.f32 %v3316, 1.0
      %v3353 = vadd.f32 %v3317, 1.0
      %v3354 = vadd.f32 %v3318, 1.0
      %v3355 = vadd.f32 %v3319, 1.0
      %v3356 = vadd.f32 %v3320, 1.0
      %v3357 = vmul.f32 %v3249, %v3321
      %v3358 = vmul.f32 %v3250, %v3322
      %v3359 = vmul.f32 %v3251, %v3323
      %v3360 = vmul.f32 %v3252, %v3324
      %v3361 = vmul.f32 %v3253, %v3325
      %v3362 = vmul.f32 %v3254, %v3326
      %v3363 = vmul.f32 %v3255, %v3327
      %v3364 = vmul.f32 %v3256, %v3328
      %v3365 = vmul.f32 %v3257, %v3329
      %v3366 = vmul.f32 %v3258, %v3330
      %v3367 = vmul.f32 %v3259, %v3331
      %v3368 = vmul.f32 %v3260, %v3332
      %v3369 = vmul.f32 %v3261, %v3333
      %v3370 = vmul.f32 %v3262, %v3334
      %v3371 = vmul.f32 %v3263, %v3335
      %v3372 = vmul.f32 %v3264, %v3336
      %v3373 = vmul.f32 %v3265, %v3337
      %v3374 = vmul.f32 %v3266, %v3338
      %v3375 = vmul.f32 %v3267, %v3339
      %v3376 = vmul.f32 %v3268, %v3340
      %v3377 = vmul.f32 %v3269, %v3341
      %v3378 = vmul.f32 %v3270, %v3342
      %v3379 = vmul.f32 %v3271, %v3343
      %v3380 = vmul.f32 %v3272, %v3344
      %v3381 = vmul.f32 %v3273, %v3345
      %v3382 = vmul.f32 %v3274, %v3346
      %v3383 = vmul.f32 %v3275, %v3347
      %v3384 = vmul.f32 %v3276, %v3348
      %v3385 = vmul.f32 %v3277, %v3349
      %v3386 = vmul.f32 %v3278, %v3350
      %v3387 = vmul.f32 %v3279, %v3351
      %v3388 = vmul.f32 %v3280, %v3352
      %v3389 = vmul.f32 %v3281, %v3353
      %v3390 = vmul.f32 %v3282, %v3354
      %v3391 = vmul.f32 %v3283, %v3355
      %v3392 = vmul.f32 %v3284, %v3356
      %v3393 = vld [vmem:[%s4] sm:$0xff]
      %v3394 = vld [vmem:[%s4 + $0x8] sm:$0xff]
      %v3395 = vld [vmem:[%s4 + $0x10] sm:$0xff]
      %v3396 = vld [vmem:[%s4 + $0x18] sm:$0xff]
      %v3397 = vld [vmem:[%s4 + $0x20] sm:$0xff]
      %v3398 = vld [vmem:[%s4 + $0x28] sm:$0xff]
      %v3399 = vld [vmem:[%s4 + $0x30] sm:$0xff]
      %v3400 = vld [vmem:[%s4 + $0x38] sm:$0xff]
      %v3401 = vld [vmem:[%s4 + $0x40] sm:$0xff]
      %v3402 = vld [vmem:[%s4 + $0x48] sm:$0xff]
      %v3403 = vld [vmem:[%s4 + $0x50] sm:$0xff]
      %v3404 = vld [vmem:[%s4 + $0x58] sm:$0xff]
      %v3405 = vld [vmem:[%s4 + $0x60] sm:$0xff]
      %v3406 = vld [vmem:[%s4 + $0x68] sm:$0xff]
      %v3407 = vld [vmem:[%s4 + $0x70] sm:$0xff]
      %v3408 = vld [vmem:[%s4 + $0x78] sm:$0xff]
      %v3409 = vld [vmem:[%s4 + $0x80] sm:$0xff]
      %v3410 = vld [vmem:[%s4 + $0x88] sm:$0xff]
      %v3411 = vld [vmem:[%s4 + $0x90] sm:$0xff]
      %v3412 = vld [vmem:[%s4 + $0x98] sm:$0xff]
      %v3413 = vld [vmem:[%s4 + $0xa0] sm:$0xff]
      %v3414 = vld [vmem:[%s4 + $0xa8] sm:$0xff]
      %v3415 = vld [vmem:[%s4 + $0xb0] sm:$0xff]
      %v3416 = vld [vmem:[%s4 + $0xb8] sm:$0xff]
      %v3417 = vld [vmem:[%s4 + $0xc0] sm:$0xff]
      %v3418 = vld [vmem:[%s4 + $0xc8] sm:$0xff]
      %v3419 = vld [vmem:[%s4 + $0xd0] sm:$0xff]
      %v3420 = vld [vmem:[%s4 + $0xd8] sm:$0xff]
      %v3421 = vld [vmem:[%s4 + $0xe0] sm:$0xff]
      %v3422 = vld [vmem:[%s4 + $0xe8] sm:$0xff]
      %v3423 = vld [vmem:[%s4 + $0xf0] sm:$0xff]
      %v3424 = vld [vmem:[%s4 + $0xf8] sm:$0xff]
      %v3425 = vld [vmem:[%s4 + $0x100] sm:$0xff]
      %v3426 = vld [vmem:[%s4 + $0x108] sm:$0xff]
      %v3427 = vld [vmem:[%s4 + $0x110] sm:$0xff]
      %v3428 = vld [vmem:[%s4 + $0x118] sm:$0x3f]
      %3430 = vset.pattern.permute.xlu0 0
      %3431 = vperm.xlu0 %3430, %v3393
      %v3432 = vpop.permute.xlu0 %3431
      %3435 = vset.pattern.permute.xlu0 0
      %3436 = vperm.xlu0 %3435, %v3394
      %v3437 = vpop.permute.xlu0 %3436
      %3440 = vset.pattern.permute.xlu0 0
      %3441 = vperm.xlu0 %3440, %v3395
      %v3442 = vpop.permute.xlu0 %3441
      %3445 = vset.pattern.permute.xlu0 0
      %3446 = vperm.xlu0 %3445, %v3396
      %v3447 = vpop.permute.xlu0 %3446
      %3450 = vset.pattern.permute.xlu0 0
      %3451 = vperm.xlu0 %3450, %v3397
      %v3452 = vpop.permute.xlu0 %3451
      %3455 = vset.pattern.permute.xlu0 0
      %3456 = vperm.xlu0 %3455, %v3398
      %v3457 = vpop.permute.xlu0 %3456
      %3460 = vset.pattern.permute.xlu0 0
      %3461 = vperm.xlu0 %3460, %v3399
      %v3462 = vpop.permute.xlu0 %3461
      %3465 = vset.pattern.permute.xlu0 0
      %3466 = vperm.xlu0 %3465, %v3400
      %v3467 = vpop.permute.xlu0 %3466
      %3470 = vset.pattern.permute.xlu0 0
      %3471 = vperm.xlu0 %3470, %v3401
      %v3472 = vpop.permute.xlu0 %3471
      %3475 = vset.pattern.permute.xlu0 0
      %3476 = vperm.xlu0 %3475, %v3402
      %v3477 = vpop.permute.xlu0 %3476
      %3480 = vset.pattern.permute.xlu0 0
      %3481 = vperm.xlu0 %3480, %v3403
      %v3482 = vpop.permute.xlu0 %3481
      %3485 = vset.pattern.permute.xlu0 0
      %3486 = vperm.xlu0 %3485, %v3404
      %v3487 = vpop.permute.xlu0 %3486
      %3490 = vset.pattern.permute.xlu0 0
      %3491 = vperm.xlu0 %3490, %v3405
      %v3492 = vpop.permute.xlu0 %3491
      %3495 = vset.pattern.permute.xlu0 0
      %3496 = vperm.xlu0 %3495, %v3406
      %v3497 = vpop.permute.xlu0 %3496
      %3500 = vset.pattern.permute.xlu0 0
      %3501 = vperm.xlu0 %3500, %v3407
      %v3502 = vpop.permute.xlu0 %3501
      %3505 = vset.pattern.permute.xlu0 0
      %3506 = vperm.xlu0 %3505, %v3408
      %v3507 = vpop.permute.xlu0 %3506
      %3510 = vset.pattern.permute.xlu0 0
      %3511 = vperm.xlu0 %3510, %v3409
      %v3512 = vpop.permute.xlu0 %3511
      %3515 = vset.pattern.permute.xlu0 0
      %3516 = vperm.xlu0 %3515, %v3410
      %v3517 = vpop.permute.xlu0 %3516
      %3520 = vset.pattern.permute.xlu0 0
      %3521 = vperm.xlu0 %3520, %v3411
      %v3522 = vpop.permute.xlu0 %3521
      %3525 = vset.pattern.permute.xlu0 0
      %3526 = vperm.xlu0 %3525, %v3412
      %v3527 = vpop.permute.xlu0 %3526
      %3530 = vset.pattern.permute.xlu0 0
      %3531 = vperm.xlu0 %3530, %v3413
      %v3532 = vpop.permute.xlu0 %3531
      %3535 = vset.pattern.permute.xlu0 0
      %3536 = vperm.xlu0 %3535, %v3414
      %v3537 = vpop.permute.xlu0 %3536
      %3540 = vset.pattern.permute.xlu0 0
      %3541 = vperm.xlu0 %3540, %v3415
      %v3542 = vpop.permute.xlu0 %3541
      %3545 = vset.pattern.permute.xlu0 0
      %3546 = vperm.xlu0 %3545, %v3416
      %v3547 = vpop.permute.xlu0 %3546
      %3550 = vset.pattern.permute.xlu0 0
      %3551 = vperm.xlu0 %3550, %v3417
      %v3552 = vpop.permute.xlu0 %3551
      %3555 = vset.pattern.permute.xlu0 0
      %3556 = vperm.xlu0 %3555, %v3418
      %v3557 = vpop.permute.xlu0 %3556
      %3560 = vset.pattern.permute.xlu0 0
      %3561 = vperm.xlu0 %3560, %v3419
      %v3562 = vpop.permute.xlu0 %3561
      %3565 = vset.pattern.permute.xlu0 0
      %3566 = vperm.xlu0 %3565, %v3420
      %v3567 = vpop.permute.xlu0 %3566
      %3570 = vset.pattern.permute.xlu0 0
      %3571 = vperm.xlu0 %3570, %v3421
      %v3572 = vpop.permute.xlu0 %3571
      %3575 = vset.pattern.permute.xlu0 0
      %3576 = vperm.xlu0 %3575, %v3422
      %v3577 = vpop.permute.xlu0 %3576
      %3580 = vset.pattern.permute.xlu0 0
      %3581 = vperm.xlu0 %3580, %v3423
      %v3582 = vpop.permute.xlu0 %3581
      %3585 = vset.pattern.permute.xlu0 0
      %3586 = vperm.xlu0 %3585, %v3424
      %v3587 = vpop.permute.xlu0 %3586
      %3590 = vset.pattern.permute.xlu0 0
      %3591 = vperm.xlu0 %3590, %v3425
      %v3592 = vpop.permute.xlu0 %3591
      %3595 = vset.pattern.permute.xlu0 0
      %3596 = vperm.xlu0 %3595, %v3426
      %v3597 = vpop.permute.xlu0 %3596
      %3600 = vset.pattern.permute.xlu0 0
      %3601 = vperm.xlu0 %3600, %v3427
      %v3602 = vpop.permute.xlu0 %3601
      %3605 = vset.pattern.permute.xlu0 0
      %3606 = vperm.xlu0 %3605, %v3428
      %v3607 = vpop.permute.xlu0 %3606
      %v3609 = vmul.f32 %v3357, %v3432
      %v3610 = vmul.f32 %v3358, %v3437
      %v3611 = vmul.f32 %v3359, %v3442
      %v3612 = vmul.f32 %v3360, %v3447
      %v3613 = vmul.f32 %v3361, %v3452
      %v3614 = vmul.f32 %v3362, %v3457
      %v3615 = vmul.f32 %v3363, %v3462
      %v3616 = vmul.f32 %v3364, %v3467
      %v3617 = vmul.f32 %v3365, %v3472
      %v3618 = vmul.f32 %v3366, %v3477
      %v3619 = vmul.f32 %v3367, %v3482
      %v3620 = vmul.f32 %v3368, %v3487
      %v3621 = vmul.f32 %v3369, %v3492
      %v3622 = vmul.f32 %v3370, %v3497
      %v3623 = vmul.f32 %v3371, %v3502
      %v3624 = vmul.f32 %v3372, %v3507
      %v3625 = vmul.f32 %v3373, %v3512
      %v3626 = vmul.f32 %v3374, %v3517
      %v3627 = vmul.f32 %v3375, %v3522
      %v3628 = vmul.f32 %v3376, %v3527
      %v3629 = vmul.f32 %v3377, %v3532
      %v3630 = vmul.f32 %v3378, %v3537
      %v3631 = vmul.f32 %v3379, %v3542
      %v3632 = vmul.f32 %v3380, %v3547
      %v3633 = vmul.f32 %v3381, %v3552
      %v3634 = vmul.f32 %v3382, %v3557
      %v3635 = vmul.f32 %v3383, %v3562
      %v3636 = vmul.f32 %v3384, %v3567
      %v3637 = vmul.f32 %v3385, %v3572
      %v3638 = vmul.f32 %v3386, %v3577
      %v3639 = vmul.f32 %v3387, %v3582
      %v3640 = vmul.f32 %v3388, %v3587
      %v3641 = vmul.f32 %v3389, %v3592
      %v3642 = vmul.f32 %v3390, %v3597
      %v3643 = vmul.f32 %v3391, %v3602
      %v3644 = vmul.f32 %v3392, %v3607
      %3645 = vst.msk [vmem:[#allocation3] sm:$0xff] %vm2625, 0.0
      %3646 = vst.msk [vmem:[#allocation3 + $0x8] sm:$0xff] %vm2625, 0.0
      %3647 = vst.msk [vmem:[#allocation3 + $0x10] sm:$0x7] %vm335, 0.0
      %3648 = vst.msk [vmem:[#allocation3 + $0x131] sm:$0xff] %vm2625, 0.0
      %3649 = vst.msk [vmem:[#allocation3 + $0x139] sm:$0xff] %vm2625, 0.0
      %3650 = vst.msk [vmem:[#allocation3 + $0x141] sm:$0x7] %vm335, 0.0
      %3651 = vst.msk [vmem:[#allocation3 + $0x13] sm:$0xff] %vm2625, %v3609
      %3652 = vst.msk [vmem:[#allocation3 + $0x1b] sm:$0xff] %vm2625, %v3610
      %3653 = vst.msk [vmem:[#allocation3 + $0x23] sm:$0xff] %vm2625, %v3611
      %3654 = vst.msk [vmem:[#allocation3 + $0x2b] sm:$0xff] %vm2625, %v3612
      %3655 = vst.msk [vmem:[#allocation3 + $0x33] sm:$0xff] %vm2625, %v3613
      %3656 = vst.msk [vmem:[#allocation3 + $0x3b] sm:$0xff] %vm2625, %v3614
      %3657 = vst.msk [vmem:[#allocation3 + $0x43] sm:$0xff] %vm2625, %v3615
      %3658 = vst.msk [vmem:[#allocation3 + $0x4b] sm:$0xff] %vm2625, %v3616
      %3659 = vst.msk [vmem:[#allocation3 + $0x53] sm:$0xff] %vm2625, %v3617
      %3660 = vst.msk [vmem:[#allocation3 + $0x5b] sm:$0xff] %vm2625, %v3618
      %3661 = vst.msk [vmem:[#allocation3 + $0x63] sm:$0xff] %vm2625, %v3619
      %3662 = vst.msk [vmem:[#allocation3 + $0x6b] sm:$0xff] %vm2625, %v3620
      %3663 = vst.msk [vmem:[#allocation3 + $0x73] sm:$0xff] %vm2625, %v3621
      %3664 = vst.msk [vmem:[#allocation3 + $0x7b] sm:$0xff] %vm2625, %v3622
      %3665 = vst.msk [vmem:[#allocation3 + $0x83] sm:$0xff] %vm2625, %v3623
      %3666 = vst.msk [vmem:[#allocation3 + $0x8b] sm:$0xff] %vm2625, %v3624
      %3667 = vst.msk [vmem:[#allocation3 + $0x93] sm:$0xff] %vm2625, %v3625
      %3668 = vst.msk [vmem:[#allocation3 + $0x9b] sm:$0xff] %vm2625, %v3626
      %3669 = vst.msk [vmem:[#allocation3 + $0xa3] sm:$0xff] %vm2625, %v3627
      %3670 = vst.msk [vmem:[#allocation3 + $0xab] sm:$0xff] %vm2625, %v3628
      %3671 = vst.msk [vmem:[#allocation3 + $0xb3] sm:$0xff] %vm2625, %v3629
      %3672 = vst.msk [vmem:[#allocation3 + $0xbb] sm:$0xff] %vm2625, %v3630
      %3673 = vst.msk [vmem:[#allocation3 + $0xc3] sm:$0xff] %vm2625, %v3631
      %3674 = vst.msk [vmem:[#allocation3 + $0xcb] sm:$0xff] %vm2625, %v3632
      %3675 = vst.msk [vmem:[#allocation3 + $0xd3] sm:$0xff] %vm2625, %v3633
      %3676 = vst.msk [vmem:[#allocation3 + $0xdb] sm:$0xff] %vm2625, %v3634
      %3677 = vst.msk [vmem:[#allocation3 + $0xe3] sm:$0xff] %vm2625, %v3635
      %3678 = vst.msk [vmem:[#allocation3 + $0xeb] sm:$0xff] %vm2625, %v3636
      %3679 = vst.msk [vmem:[#allocation3 + $0xf3] sm:$0xff] %vm2625, %v3637
      %3680 = vst.msk [vmem:[#allocation3 + $0xfb] sm:$0xff] %vm2625, %v3638
      %3681 = vst.msk [vmem:[#allocation3 + $0x103] sm:$0xff] %vm2625, %v3639
      %3682 = vst.msk [vmem:[#allocation3 + $0x10b] sm:$0xff] %vm2625, %v3640
      %3683 = vst.msk [vmem:[#allocation3 + $0x113] sm:$0xff] %vm2625, %v3641
      %3684 = vst.msk [vmem:[#allocation3 + $0x11b] sm:$0xff] %vm2625, %v3642
      %3685 = vst.msk [vmem:[#allocation3 + $0x123] sm:$0xff] %vm2625, %v3643
      %vm3686 = vcmask 521216
      %3687 = vst.msk [vmem:[#allocation3 + $0x12b] sm:$0x3f] %vm3686, %v3644
      %v3688 = vld [vmem:[#allocation3] sm:$0xff]
      %v3689 = vld [vmem:[#allocation3 + $0x8] sm:$0xff]
      %v3690 = vld [vmem:[#allocation3 + $0x10] sm:$0xff]
      %v3691 = vld [vmem:[#allocation3 + $0x18] sm:$0xff]
      %v3692 = vld [vmem:[#allocation3 + $0x20] sm:$0xff]
      %v3693 = vld [vmem:[#allocation3 + $0x28] sm:$0xff]
      %v3694 = vld [vmem:[#allocation3 + $0x30] sm:$0xff]
      %v3695 = vld [vmem:[#allocation3 + $0x38] sm:$0xff]
      %v3696 = vld [vmem:[#allocation3 + $0x40] sm:$0xff]
      %v3697 = vld [vmem:[#allocation3 + $0x48] sm:$0xff]
      %v3698 = vld [vmem:[#allocation3 + $0x50] sm:$0xff]
      %v3699 = vld [vmem:[#allocation3 + $0x58] sm:$0xff]
      %v3700 = vld [vmem:[#allocation3 + $0x60] sm:$0xff]
      %v3701 = vld [vmem:[#allocation3 + $0x68] sm:$0xff]
      %v3702 = vld [vmem:[#allocation3 + $0x70] sm:$0xff]
      %v3703 = vld [vmem:[#allocation3 + $0x78] sm:$0xff]
      %v3704 = vld [vmem:[#allocation3 + $0x80] sm:$0xff]
      %v3705 = vld [vmem:[#allocation3 + $0x88] sm:$0xff]
      %v3706 = vld [vmem:[#allocation3 + $0x90] sm:$0xff]
      %v3707 = vld [vmem:[#allocation3 + $0x98] sm:$0xff]
      %v3708 = vld [vmem:[#allocation3 + $0xa0] sm:$0xff]
      %v3709 = vld [vmem:[#allocation3 + $0xa8] sm:$0xff]
      %v3710 = vld [vmem:[#allocation3 + $0xb0] sm:$0xff]
      %v3711 = vld [vmem:[#allocation3 + $0xb8] sm:$0xff]
      %v3712 = vld [vmem:[#allocation3 + $0xc0] sm:$0xff]
      %v3713 = vld [vmem:[#allocation3 + $0xc8] sm:$0xff]
      %v3714 = vld [vmem:[#allocation3 + $0xd0] sm:$0xff]
      %v3715 = vld [vmem:[#allocation3 + $0xd8] sm:$0xff]
      %v3716 = vld [vmem:[#allocation3 + $0xe0] sm:$0xff]
      %v3717 = vld [vmem:[#allocation3 + $0xe8] sm:$0xff]
      %v3718 = vld [vmem:[#allocation3 + $0xf0] sm:$0xff]
      %v3719 = vld [vmem:[#allocation3 + $0xf8] sm:$0xff]
      %v3720 = vld [vmem:[#allocation3 + $0x100] sm:$0xff]
      %v3721 = vld [vmem:[#allocation3 + $0x108] sm:$0xff]
      %v3722 = vld [vmem:[#allocation3 + $0x110] sm:$0xff]
      %v3723 = vld [vmem:[#allocation3 + $0x118] sm:$0x3f]
      %v3724 = vpack.c.bf16 %v3688, %v3688
      %v3725 = vpack.c.bf16 %v3689, %v3689
      %v3726 = vpack.c.bf16 %v3690, %v3690
      %v3727 = vpack.c.bf16 %v3691, %v3691
      %v3728 = vpack.c.bf16 %v3692, %v3692
      %v3729 = vpack.c.bf16 %v3693, %v3693
      %v3730 = vpack.c.bf16 %v3694, %v3694
      %v3731 = vpack.c.bf16 %v3695, %v3695
      %v3732 = vpack.c.bf16 %v3696, %v3696
      %v3733 = vpack.c.bf16 %v3697, %v3697
      %v3734 = vpack.c.bf16 %v3698, %v3698
      %v3735 = vpack.c.bf16 %v3699, %v3699
      %v3736 = vpack.c.bf16 %v3700, %v3700
      %v3737 = vpack.c.bf16 %v3701, %v3701
      %v3738 = vpack.c.bf16 %v3702, %v3702
      %v3739 = vpack.c.bf16 %v3703, %v3703
      %v3740 = vpack.c.bf16 %v3704, %v3704
      %v3741 = vpack.c.bf16 %v3705, %v3705
      %v3742 = vpack.c.bf16 %v3706, %v3706
      %v3743 = vpack.c.bf16 %v3707, %v3707
      %v3744 = vpack.c.bf16 %v3708, %v3708
      %v3745 = vpack.c.bf16 %v3709, %v3709
      %v3746 = vpack.c.bf16 %v3710, %v3710
      %v3747 = vpack.c.bf16 %v3711, %v3711
      %v3748 = vpack.c.bf16 %v3712, %v3712
      %v3749 = vpack.c.bf16 %v3713, %v3713
      %v3750 = vpack.c.bf16 %v3714, %v3714
      %v3751 = vpack.c.bf16 %v3715, %v3715
      %v3752 = vpack.c.bf16 %v3716, %v3716
      %v3753 = vpack.c.bf16 %v3717, %v3717
      %v3754 = vpack.c.bf16 %v3718, %v3718
      %v3755 = vpack.c.bf16 %v3719, %v3719
      %v3756 = vpack.c.bf16 %v3720, %v3720
      %v3757 = vpack.c.bf16 %v3721, %v3721
      %v3758 = vpack.c.bf16 %v3722, %v3722
      %v3759 = vpack.c.bf16 %v3723, %v3723
      %3760 = vst.msk [vmem:[#allocation2] sm:$0xf] %vm299, %v3724
      %3761 = vst.msk [vmem:[#allocation2 + $0x14] sm:$0xf] %vm299, %v3725
      %3762 = vst.msk [vmem:[#allocation2 + $0x28] sm:$0xf] %vm299, %v3726
      %3763 = vst.msk [vmem:[#allocation2 + $0x3c] sm:$0xf] %vm299, %v3727
      %3764 = vst.msk [vmem:[#allocation2 + $0x50] sm:$0xf] %vm299, %v3728
      %3765 = vst.msk [vmem:[#allocation2 + $0x64] sm:$0xf] %vm299, %v3729
      %3766 = vst.msk [vmem:[#allocation2 + $0x78] sm:$0xf] %vm299, %v3730
      %3767 = vst.msk [vmem:[#allocation2 + $0x8c] sm:$0xf] %vm299, %v3731
      %3768 = vst.msk [vmem:[#allocation2 + $0xa0] sm:$0xf] %vm299, %v3732
      %3769 = vst.msk [vmem:[#allocation2 + $0xb4] sm:$0xf] %vm299, %v3733
      %3770 = vst.msk [vmem:[#allocation2 + $0xc8] sm:$0xf] %vm299, %v3734
      %3771 = vst.msk [vmem:[#allocation2 + $0xdc] sm:$0xf] %vm299, %v3735
      %3772 = vst.msk [vmem:[#allocation2 + $0xf0] sm:$0xf] %vm299, %v3736
      %3773 = vst.msk [vmem:[#allocation2 + $0x104] sm:$0xf] %vm299, %v3737
      %3774 = vst.msk [vmem:[#allocation2 + $0x118] sm:$0xf] %vm299, %v3738
      %3775 = vst.msk [vmem:[#allocation2 + $0x12c] sm:$0xf] %vm299, %v3739
      %3776 = vst.msk [vmem:[#allocation2 + $0x140] sm:$0xf] %vm299, %v3740
      %3777 = vst.msk [vmem:[#allocation2 + $0x154] sm:$0xf] %vm299, %v3741
      %3778 = vst.msk [vmem:[#allocation2 + $0x168] sm:$0xf] %vm299, %v3742
      %3779 = vst.msk [vmem:[#allocation2 + $0x17c] sm:$0xf] %vm299, %v3743
      %3780 = vst.msk [vmem:[#allocation2 + $0x190] sm:$0xf] %vm299, %v3744
      %3781 = vst.msk [vmem:[#allocation2 + $0x1a4] sm:$0xf] %vm299, %v3745
      %3782 = vst.msk [vmem:[#allocation2 + $0x1b8] sm:$0xf] %vm299, %v3746
      %3783 = vst.msk [vmem:[#allocation2 + $0x1cc] sm:$0xf] %vm299, %v3747
      %3784 = vst.msk [vmem:[#allocation2 + $0x1e0] sm:$0xf] %vm299, %v3748
      %3785 = vst.msk [vmem:[#allocation2 + $0x1f4] sm:$0xf] %vm299, %v3749
      %3786 = vst.msk [vmem:[#allocation2 + $0x208] sm:$0xf] %vm299, %v3750
      %3787 = vst.msk [vmem:[#allocation2 + $0x21c] sm:$0xf] %vm299, %v3751
      %3788 = vst.msk [vmem:[#allocation2 + $0x230] sm:$0xf] %vm299, %v3752
      %3789 = vst.msk [vmem:[#allocation2 + $0x244] sm:$0xf] %vm299, %v3753
      %3790 = vst.msk [vmem:[#allocation2 + $0x258] sm:$0xf] %vm299, %v3754
      %3791 = vst.msk [vmem:[#allocation2 + $0x26c] sm:$0xf] %vm299, %v3755
      %3792 = vst.msk [vmem:[#allocation2 + $0x280] sm:$0xf] %vm299, %v3756
      %3793 = vst.msk [vmem:[#allocation2 + $0x294] sm:$0xf] %vm299, %v3757
      %3794 = vst.msk [vmem:[#allocation2 + $0x2a8] sm:$0xf] %vm299, %v3758
      %3795 = vst.msk [vmem:[#allocation2 + $0x2bc] sm:$0x7] %vm335, %v3759
      %v3796 = vld [vmem:[#allocation3 + $0x1] sm:$0xff]
      %v3797 = vld [vmem:[#allocation3 + $0x9] sm:$0xff]
      %v3798 = vld [vmem:[#allocation3 + $0x11] sm:$0xff]
      %v3799 = vld [vmem:[#allocation3 + $0x19] sm:$0xff]
      %v3800 = vld [vmem:[#allocation3 + $0x21] sm:$0xff]
      %v3801 = vld [vmem:[#allocation3 + $0x29] sm:$0xff]
      %v3802 = vld [vmem:[#allocation3 + $0x31] sm:$0xff]
      %v3803 = vld [vmem:[#allocation3 + $0x39] sm:$0xff]
      %v3804 = vld [vmem:[#allocation3 + $0x41] sm:$0xff]
      %v3805 = vld [vmem:[#allocation3 + $0x49] sm:$0xff]
      %v3806 = vld [vmem:[#allocation3 + $0x51] sm:$0xff]
      %v3807 = vld [vmem:[#allocation3 + $0x59] sm:$0xff]
      %v3808 = vld [vmem:[#allocation3 + $0x61] sm:$0xff]
      %v3809 = vld [vmem:[#allocation3 + $0x69] sm:$0xff]
      %v3810 = vld [vmem:[#allocation3 + $0x71] sm:$0xff]
      %v3811 = vld [vmem:[#allocation3 + $0x79] sm:$0xff]
      %v3812 = vld [vmem:[#allocation3 + $0x81] sm:$0xff]
      %v3813 = vld [vmem:[#allocation3 + $0x89] sm:$0xff]
      %v3814 = vld [vmem:[#allocation3 + $0x91] sm:$0xff]
      %v3815 = vld [vmem:[#allocation3 + $0x99] sm:$0xff]
      %v3816 = vld [vmem:[#allocation3 + $0xa1] sm:$0xff]
      %v3817 = vld [vmem:[#allocation3 + $0xa9] sm:$0xff]
      %v3818 = vld [vmem:[#allocation3 + $0xb1] sm:$0xff]
      %v3819 = vld [vmem:[#allocation3 + $0xb9] sm:$0xff]
      %v3820 = vld [vmem:[#allocation3 + $0xc1] sm:$0xff]
      %v3821 = vld [vmem:[#allocation3 + $0xc9] sm:$0xff]
      %v3822 = vld [vmem:[#allocation3 + $0xd1] sm:$0xff]
      %v3823 = vld [vmem:[#allocation3 + $0xd9] sm:$0xff]
      %v3824 = vld [vmem:[#allocation3 + $0xe1] sm:$0xff]
      %v3825 = vld [vmem:[#allocation3 + $0xe9] sm:$0xff]
      %v3826 = vld [vmem:[#allocation3 + $0xf1] sm:$0xff]
      %v3827 = vld [vmem:[#allocation3 + $0xf9] sm:$0xff]
      %v3828 = vld [vmem:[#allocation3 + $0x101] sm:$0xff]
      %v3829 = vld [vmem:[#allocation3 + $0x109] sm:$0xff]
      %v3830 = vld [vmem:[#allocation3 + $0x111] sm:$0xff]
      %v3831 = vld [vmem:[#allocation3 + $0x119] sm:$0x3f]
      %v3832 = vpack.c.bf16 %v3796, %v3796
      %v3833 = vpack.c.bf16 %v3797, %v3797
      %v3834 = vpack.c.bf16 %v3798, %v3798
      %v3835 = vpack.c.bf16 %v3799, %v3799
      %v3836 = vpack.c.bf16 %v3800, %v3800
      %v3837 = vpack.c.bf16 %v3801, %v3801
      %v3838 = vpack.c.bf16 %v3802, %v3802
      %v3839 = vpack.c.bf16 %v3803, %v3803
      %v3840 = vpack.c.bf16 %v3804, %v3804
      %v3841 = vpack.c.bf16 %v3805, %v3805
      %v3842 = vpack.c.bf16 %v3806, %v3806
      %v3843 = vpack.c.bf16 %v3807, %v3807
      %v3844 = vpack.c.bf16 %v3808, %v3808
      %v3845 = vpack.c.bf16 %v3809, %v3809
      %v3846 = vpack.c.bf16 %v3810, %v3810
      %v3847 = vpack.c.bf16 %v3811, %v3811
      %v3848 = vpack.c.bf16 %v3812, %v3812
      %v3849 = vpack.c.bf16 %v3813, %v3813
      %v3850 = vpack.c.bf16 %v3814, %v3814
      %v3851 = vpack.c.bf16 %v3815, %v3815
      %v3852 = vpack.c.bf16 %v3816, %v3816
      %v3853 = vpack.c.bf16 %v3817, %v3817
      %v3854 = vpack.c.bf16 %v3818, %v3818
      %v3855 = vpack.c.bf16 %v3819, %v3819
      %v3856 = vpack.c.bf16 %v3820, %v3820
      %v3857 = vpack.c.bf16 %v3821, %v3821
      %v3858 = vpack.c.bf16 %v3822, %v3822
      %v3859 = vpack.c.bf16 %v3823, %v3823
      %v3860 = vpack.c.bf16 %v3824, %v3824
      %v3861 = vpack.c.bf16 %v3825, %v3825
      %v3862 = vpack.c.bf16 %v3826, %v3826
      %v3863 = vpack.c.bf16 %v3827, %v3827
      %v3864 = vpack.c.bf16 %v3828, %v3828
      %v3865 = vpack.c.bf16 %v3829, %v3829
      %v3866 = vpack.c.bf16 %v3830, %v3830
      %v3867 = vpack.c.bf16 %v3831, %v3831
      %3904 = vrot.lane.b32.xlu0 %v3832, 64
      %v3905 = vpop.permute.xlu0 %3904
      %3906 = vrot.lane.b32.xlu0 %v3833, 64
      %v3907 = vpop.permute.xlu0 %3906
      %3908 = vrot.lane.b32.xlu0 %v3834, 64
      %v3909 = vpop.permute.xlu0 %3908
      %3910 = vrot.lane.b32.xlu0 %v3835, 64
      %v3911 = vpop.permute.xlu0 %3910
      %3912 = vrot.lane.b32.xlu0 %v3836, 64
      %v3913 = vpop.permute.xlu0 %3912
      %3914 = vrot.lane.b32.xlu0 %v3837, 64
      %v3915 = vpop.permute.xlu0 %3914
      %3916 = vrot.lane.b32.xlu0 %v3838, 64
      %v3917 = vpop.permute.xlu0 %3916
      %3918 = vrot.lane.b32.xlu0 %v3839, 64
      %v3919 = vpop.permute.xlu0 %3918
      %3920 = vrot.lane.b32.xlu0 %v3840, 64
      %v3921 = vpop.permute.xlu0 %3920
      %3922 = vrot.lane.b32.xlu0 %v3841, 64
      %v3923 = vpop.permute.xlu0 %3922
      %3924 = vrot.lane.b32.xlu0 %v3842, 64
      %v3925 = vpop.permute.xlu0 %3924
      %3926 = vrot.lane.b32.xlu0 %v3843, 64
      %v3927 = vpop.permute.xlu0 %3926
      %3928 = vrot.lane.b32.xlu0 %v3844, 64
      %v3929 = vpop.permute.xlu0 %3928
      %3930 = vrot.lane.b32.xlu0 %v3845, 64
      %v3931 = vpop.permute.xlu0 %3930
      %3932 = vrot.lane.b32.xlu0 %v3846, 64
      %v3933 = vpop.permute.xlu0 %3932
      %3934 = vrot.lane.b32.xlu0 %v3847, 64
      %v3935 = vpop.permute.xlu0 %3934
      %3936 = vrot.lane.b32.xlu0 %v3848, 64
      %v3937 = vpop.permute.xlu0 %3936
      %3938 = vrot.lane.b32.xlu0 %v3849, 64
      %v3939 = vpop.permute.xlu0 %3938
      %3940 = vrot.lane.b32.xlu0 %v3850, 64
      %v3941 = vpop.permute.xlu0 %3940
      %3942 = vrot.lane.b32.xlu0 %v3851, 64
      %v3943 = vpop.permute.xlu0 %3942
      %3944 = vrot.lane.b32.xlu0 %v3852, 64
      %v3945 = vpop.permute.xlu0 %3944
      %3946 = vrot.lane.b32.xlu0 %v3853, 64
      %v3947 = vpop.permute.xlu0 %3946
      %3948 = vrot.lane.b32.xlu0 %v3854, 64
      %v3949 = vpop.permute.xlu0 %3948
      %3950 = vrot.lane.b32.xlu0 %v3855, 64
      %v3951 = vpop.permute.xlu0 %3950
      %3952 = vrot.lane.b32.xlu0 %v3856, 64
      %v3953 = vpop.permute.xlu0 %3952
      %3954 = vrot.lane.b32.xlu0 %v3857, 64
      %v3955 = vpop.permute.xlu0 %3954
      %3956 = vrot.lane.b32.xlu0 %v3858, 64
      %v3957 = vpop.permute.xlu0 %3956
      %3958 = vrot.lane.b32.xlu0 %v3859, 64
      %v3959 = vpop.permute.xlu0 %3958
      %3960 = vrot.lane.b32.xlu0 %v3860, 64
      %v3961 = vpop.permute.xlu0 %3960
      %3962 = vrot.lane.b32.xlu0 %v3861, 64
      %v3963 = vpop.permute.xlu0 %3962
      %3964 = vrot.lane.b32.xlu0 %v3862, 64
      %v3965 = vpop.permute.xlu0 %3964
      %3966 = vrot.lane.b32.xlu0 %v3863, 64
      %v3967 = vpop.permute.xlu0 %3966
      %3968 = vrot.lane.b32.xlu0 %v3864, 64
      %v3969 = vpop.permute.xlu0 %3968
      %3970 = vrot.lane.b32.xlu0 %v3865, 64
      %v3971 = vpop.permute.xlu0 %3970
      %3972 = vrot.lane.b32.xlu0 %v3866, 64
      %v3973 = vpop.permute.xlu0 %3972
      %3974 = vrot.lane.b32.xlu0 %v3867, 64
      %v3975 = vpop.permute.xlu0 %3974
      %4012 = vst.msk [vmem:[#allocation2] sm:$0xf] %vm553, %v3905
      %4013 = vst.msk [vmem:[#allocation2 + $0x14] sm:$0xf] %vm553, %v3907
      %4014 = vst.msk [vmem:[#allocation2 + $0x28] sm:$0xf] %vm553, %v3909
      %4015 = vst.msk [vmem:[#allocation2 + $0x3c] sm:$0xf] %vm553, %v3911
      %4016 = vst.msk [vmem:[#allocation2 + $0x50] sm:$0xf] %vm553, %v3913
      %4017 = vst.msk [vmem:[#allocation2 + $0x64] sm:$0xf] %vm553, %v3915
      %4018 = vst.msk [vmem:[#allocation2 + $0x78] sm:$0xf] %vm553, %v3917
      %4019 = vst.msk [vmem:[#allocation2 + $0x8c] sm:$0xf] %vm553, %v3919
      %4020 = vst.msk [vmem:[#allocation2 + $0xa0] sm:$0xf] %vm553, %v3921
      %4021 = vst.msk [vmem:[#allocation2 + $0xb4] sm:$0xf] %vm553, %v3923
      %4022 = vst.msk [vmem:[#allocation2 + $0xc8] sm:$0xf] %vm553, %v3925
      %4023 = vst.msk [vmem:[#allocation2 + $0xdc] sm:$0xf] %vm553, %v3927
      %4024 = vst.msk [vmem:[#allocation2 + $0xf0] sm:$0xf] %vm553, %v3929
      %4025 = vst.msk [vmem:[#allocation2 + $0x104] sm:$0xf] %vm553, %v3931
      %4026 = vst.msk [vmem:[#allocation2 + $0x118] sm:$0xf] %vm553, %v3933
      %4027 = vst.msk [vmem:[#allocation2 + $0x12c] sm:$0xf] %vm553, %v3935
      %4028 = vst.msk [vmem:[#allocation2 + $0x140] sm:$0xf] %vm553, %v3937
      %4029 = vst.msk [vmem:[#allocation2 + $0x154] sm:$0xf] %vm553, %v3939
      %4030 = vst.msk [vmem:[#allocation2 + $0x168] sm:$0xf] %vm553, %v3941
      %4031 = vst.msk [vmem:[#allocation2 + $0x17c] sm:$0xf] %vm553, %v3943
      %4032 = vst.msk [vmem:[#allocation2 + $0x190] sm:$0xf] %vm553, %v3945
      %4033 = vst.msk [vmem:[#allocation2 + $0x1a4] sm:$0xf] %vm553, %v3947
      %4034 = vst.msk [vmem:[#allocation2 + $0x1b8] sm:$0xf] %vm553, %v3949
      %4035 = vst.msk [vmem:[#allocation2 + $0x1cc] sm:$0xf] %vm553, %v3951
      %4036 = vst.msk [vmem:[#allocation2 + $0x1e0] sm:$0xf] %vm553, %v3953
      %4037 = vst.msk [vmem:[#allocation2 + $0x1f4] sm:$0xf] %vm553, %v3955
      %4038 = vst.msk [vmem:[#allocation2 + $0x208] sm:$0xf] %vm553, %v3957
      %4039 = vst.msk [vmem:[#allocation2 + $0x21c] sm:$0xf] %vm553, %v3959
      %4040 = vst.msk [vmem:[#allocation2 + $0x230] sm:$0xf] %vm553, %v3961
      %4041 = vst.msk [vmem:[#allocation2 + $0x244] sm:$0xf] %vm553, %v3963
      %4042 = vst.msk [vmem:[#allocation2 + $0x258] sm:$0xf] %vm553, %v3965
      %4043 = vst.msk [vmem:[#allocation2 + $0x26c] sm:$0xf] %vm553, %v3967
      %4044 = vst.msk [vmem:[#allocation2 + $0x280] sm:$0xf] %vm553, %v3969
      %4045 = vst.msk [vmem:[#allocation2 + $0x294] sm:$0xf] %vm553, %v3971
      %4046 = vst.msk [vmem:[#allocation2 + $0x2a8] sm:$0xf] %vm553, %v3973
      %4047 = vst.msk [vmem:[#allocation2 + $0x2bc] sm:$0x7] %vm589, %v3975
      %v4048 = vld [vmem:[#allocation3 + $0x2] sm:$0xff]
      %v4049 = vld [vmem:[#allocation3 + $0xa] sm:$0xff]
      %v4050 = vld [vmem:[#allocation3 + $0x12] sm:$0xff]
      %v4051 = vld [vmem:[#allocation3 + $0x1a] sm:$0xff]
      %v4052 = vld [vmem:[#allocation3 + $0x22] sm:$0xff]
      %v4053 = vld [vmem:[#allocation3 + $0x2a] sm:$0xff]
      %v4054 = vld [vmem:[#allocation3 + $0x32] sm:$0xff]
      %v4055 = vld [vmem:[#allocation3 + $0x3a] sm:$0xff]
      %v4056 = vld [vmem:[#allocation3 + $0x42] sm:$0xff]
      %v4057 = vld [vmem:[#allocation3 + $0x4a] sm:$0xff]
      %v4058 = vld [vmem:[#allocation3 + $0x52] sm:$0xff]
      %v4059 = vld [vmem:[#allocation3 + $0x5a] sm:$0xff]
      %v4060 = vld [vmem:[#allocation3 + $0x62] sm:$0xff]
      %v4061 = vld [vmem:[#allocation3 + $0x6a] sm:$0xff]
      %v4062 = vld [vmem:[#allocation3 + $0x72] sm:$0xff]
      %v4063 = vld [vmem:[#allocation3 + $0x7a] sm:$0xff]
      %v4064 = vld [vmem:[#allocation3 + $0x82] sm:$0xff]
      %v4065 = vld [vmem:[#allocation3 + $0x8a] sm:$0xff]
      %v4066 = vld [vmem:[#allocation3 + $0x92] sm:$0xff]
      %v4067 = vld [vmem:[#allocation3 + $0x9a] sm:$0xff]
      %v4068 = vld [vmem:[#allocation3 + $0xa2] sm:$0xff]
      %v4069 = vld [vmem:[#allocation3 + $0xaa] sm:$0xff]
      %v4070 = vld [vmem:[#allocation3 + $0xb2] sm:$0xff]
      %v4071 = vld [vmem:[#allocation3 + $0xba] sm:$0xff]
      %v4072 = vld [vmem:[#allocation3 + $0xc2] sm:$0xff]
      %v4073 = vld [vmem:[#allocation3 + $0xca] sm:$0xff]
      %v4074 = vld [vmem:[#allocation3 + $0xd2] sm:$0xff]
      %v4075 = vld [vmem:[#allocation3 + $0xda] sm:$0xff]
      %v4076 = vld [vmem:[#allocation3 + $0xe2] sm:$0xff]
      %v4077 = vld [vmem:[#allocation3 + $0xea] sm:$0xff]
      %v4078 = vld [vmem:[#allocation3 + $0xf2] sm:$0xff]
      %v4079 = vld [vmem:[#allocation3 + $0xfa] sm:$0xff]
      %v4080 = vld [vmem:[#allocation3 + $0x102] sm:$0xff]
      %v4081 = vld [vmem:[#allocation3 + $0x10a] sm:$0xff]
      %v4082 = vld [vmem:[#allocation3 + $0x112] sm:$0xff]
      %v4083 = vld [vmem:[#allocation3 + $0x11a] sm:$0x3f]
      %v4084 = vpack.c.bf16 %v4048, %v4048
      %v4085 = vpack.c.bf16 %v4049, %v4049
      %v4086 = vpack.c.bf16 %v4050, %v4050
      %v4087 = vpack.c.bf16 %v4051, %v4051
      %v4088 = vpack.c.bf16 %v4052, %v4052
      %v4089 = vpack.c.bf16 %v4053, %v4053
      %v4090 = vpack.c.bf16 %v4054, %v4054
      %v4091 = vpack.c.bf16 %v4055, %v4055
      %v4092 = vpack.c.bf16 %v4056, %v4056
      %v4093 = vpack.c.bf16 %v4057, %v4057
      %v4094 = vpack.c.bf16 %v4058, %v4058
      %v4095 = vpack.c.bf16 %v4059, %v4059
      %v4096 = vpack.c.bf16 %v4060, %v4060
      %v4097 = vpack.c.bf16 %v4061, %v4061
      %v4098 = vpack.c.bf16 %v4062, %v4062
      %v4099 = vpack.c.bf16 %v4063, %v4063
      %v4100 = vpack.c.bf16 %v4064, %v4064
      %v4101 = vpack.c.bf16 %v4065, %v4065
      %v4102 = vpack.c.bf16 %v4066, %v4066
      %v4103 = vpack.c.bf16 %v4067, %v4067
      %v4104 = vpack.c.bf16 %v4068, %v4068
      %v4105 = vpack.c.bf16 %v4069, %v4069
      %v4106 = vpack.c.bf16 %v4070, %v4070
      %v4107 = vpack.c.bf16 %v4071, %v4071
      %v4108 = vpack.c.bf16 %v4072, %v4072
      %v4109 = vpack.c.bf16 %v4073, %v4073
      %v4110 = vpack.c.bf16 %v4074, %v4074
      %v4111 = vpack.c.bf16 %v4075, %v4075
      %v4112 = vpack.c.bf16 %v4076, %v4076
      %v4113 = vpack.c.bf16 %v4077, %v4077
      %v4114 = vpack.c.bf16 %v4078, %v4078
      %v4115 = vpack.c.bf16 %v4079, %v4079
      %v4116 = vpack.c.bf16 %v4080, %v4080
      %v4117 = vpack.c.bf16 %v4081, %v4081
      %v4118 = vpack.c.bf16 %v4082, %v4082
      %v4119 = vpack.c.bf16 %v4083, %v4083
      %4120 = vst.msk [vmem:[#allocation2 + $0x4] sm:$0xf] %vm299, %v4084
      %4121 = vst.msk [vmem:[#allocation2 + $0x18] sm:$0xf] %vm299, %v4085
      %4122 = vst.msk [vmem:[#allocation2 + $0x2c] sm:$0xf] %vm299, %v4086
      %4123 = vst.msk [vmem:[#allocation2 + $0x40] sm:$0xf] %vm299, %v4087
      %4124 = vst.msk [vmem:[#allocation2 + $0x54] sm:$0xf] %vm299, %v4088
      %4125 = vst.msk [vmem:[#allocation2 + $0x68] sm:$0xf] %vm299, %v4089
      %4126 = vst.msk [vmem:[#allocation2 + $0x7c] sm:$0xf] %vm299, %v4090
      %4127 = vst.msk [vmem:[#allocation2 + $0x90] sm:$0xf] %vm299, %v4091
      %4128 = vst.msk [vmem:[#allocation2 + $0xa4] sm:$0xf] %vm299, %v4092
      %4129 = vst.msk [vmem:[#allocation2 + $0xb8] sm:$0xf] %vm299, %v4093
      %4130 = vst.msk [vmem:[#allocation2 + $0xcc] sm:$0xf] %vm299, %v4094
      %4131 = vst.msk [vmem:[#allocation2 + $0xe0] sm:$0xf] %vm299, %v4095
      %4132 = vst.msk [vmem:[#allocation2 + $0xf4] sm:$0xf] %vm299, %v4096
      %4133 = vst.msk [vmem:[#allocation2 + $0x108] sm:$0xf] %vm299, %v4097
      %4134 = vst.msk [vmem:[#allocation2 + $0x11c] sm:$0xf] %vm299, %v4098
      %4135 = vst.msk [vmem:[#allocation2 + $0x130] sm:$0xf] %vm299, %v4099
      %4136 = vst.msk [vmem:[#allocation2 + $0x144] sm:$0xf] %vm299, %v4100
      %4137 = vst.msk [vmem:[#allocation2 + $0x158] sm:$0xf] %vm299, %v4101
      %4138 = vst.msk [vmem:[#allocation2 + $0x16c] sm:$0xf] %vm299, %v4102
      %4139 = vst.msk [vmem:[#allocation2 + $0x180] sm:$0xf] %vm299, %v4103
      %4140 = vst.msk [vmem:[#allocation2 + $0x194] sm:$0xf] %vm299, %v4104
      %4141 = vst.msk [vmem:[#allocation2 + $0x1a8] sm:$0xf] %vm299, %v4105
      %4142 = vst.msk [vmem:[#allocation2 + $0x1bc] sm:$0xf] %vm299, %v4106
      %4143 = vst.msk [vmem:[#allocation2 + $0x1d0] sm:$0xf] %vm299, %v4107
      %4144 = vst.msk [vmem:[#allocation2 + $0x1e4] sm:$0xf] %vm299, %v4108
      %4145 = vst.msk [vmem:[#allocation2 + $0x1f8] sm:$0xf] %vm299, %v4109
      %4146 = vst.msk [vmem:[#allocation2 + $0x20c] sm:$0xf] %vm299, %v4110
      %4147 = vst.msk [vmem:[#allocation2 + $0x220] sm:$0xf] %vm299, %v4111
      %4148 = vst.msk [vmem:[#allocation2 + $0x234] sm:$0xf] %vm299, %v4112
      %4149 = vst.msk [vmem:[#allocation2 + $0x248] sm:$0xf] %vm299, %v4113
      %4150 = vst.msk [vmem:[#allocation2 + $0x25c] sm:$0xf] %vm299, %v4114
      %4151 = vst.msk [vmem:[#allocation2 + $0x270] sm:$0xf] %vm299, %v4115
      %4152 = vst.msk [vmem:[#allocation2 + $0x284] sm:$0xf] %vm299, %v4116
      %4153 = vst.msk [vmem:[#allocation2 + $0x298] sm:$0xf] %vm299, %v4117
      %4154 = vst.msk [vmem:[#allocation2 + $0x2ac] sm:$0xf] %vm299, %v4118
      %4155 = vst.msk [vmem:[#allocation2 + $0x2c0] sm:$0x7] %vm335, %v4119
      %v4156 = vld [vmem:[#allocation3 + $0x12] sm:$0xff]
      %v4157 = vld [vmem:[#allocation3 + $0x1a] sm:$0xff]
      %v4158 = vld [vmem:[#allocation3 + $0x22] sm:$0xff]
      %v4159 = vld [vmem:[#allocation3 + $0x2a] sm:$0xff]
      %v4160 = vld [vmem:[#allocation3 + $0x32] sm:$0xff]
      %v4161 = vld [vmem:[#allocation3 + $0x3a] sm:$0xff]
      %v4162 = vld [vmem:[#allocation3 + $0x42] sm:$0xff]
      %v4163 = vld [vmem:[#allocation3 + $0x4a] sm:$0xff]
      %v4164 = vld [vmem:[#allocation3 + $0x52] sm:$0xff]
      %v4165 = vld [vmem:[#allocation3 + $0x5a] sm:$0xff]
      %v4166 = vld [vmem:[#allocation3 + $0x62] sm:$0xff]
      %v4167 = vld [vmem:[#allocation3 + $0x6a] sm:$0xff]
      %v4168 = vld [vmem:[#allocation3 + $0x72] sm:$0xff]
      %v4169 = vld [vmem:[#allocation3 + $0x7a] sm:$0xff]
      %v4170 = vld [vmem:[#allocation3 + $0x82] sm:$0xff]
      %v4171 = vld [vmem:[#allocation3 + $0x8a] sm:$0xff]
      %v4172 = vld [vmem:[#allocation3 + $0x92] sm:$0xff]
      %v4173 = vld [vmem:[#allocation3 + $0x9a] sm:$0xff]
      %v4174 = vld [vmem:[#allocation3 + $0xa2] sm:$0xff]
      %v4175 = vld [vmem:[#allocation3 + $0xaa] sm:$0xff]
      %v4176 = vld [vmem:[#allocation3 + $0xb2] sm:$0xff]
      %v4177 = vld [vmem:[#allocation3 + $0xba] sm:$0xff]
      %v4178 = vld [vmem:[#allocation3 + $0xc2] sm:$0xff]
      %v4179 = vld [vmem:[#allocation3 + $0xca] sm:$0xff]
      %v4180 = vld [vmem:[#allocation3 + $0xd2] sm:$0xff]
      %v4181 = vld [vmem:[#allocation3 + $0xda] sm:$0xff]
      %v4182 = vld [vmem:[#allocation3 + $0xe2] sm:$0xff]
      %v4183 = vld [vmem:[#allocation3 + $0xea] sm:$0xff]
      %v4184 = vld [vmem:[#allocation3 + $0xf2] sm:$0xff]
      %v4185 = vld [vmem:[#allocation3 + $0xfa] sm:$0xff]
      %v4186 = vld [vmem:[#allocation3 + $0x102] sm:$0xff]
      %v4187 = vld [vmem:[#allocation3 + $0x10a] sm:$0xff]
      %v4188 = vld [vmem:[#allocation3 + $0x112] sm:$0xff]
      %v4189 = vld [vmem:[#allocation3 + $0x11a] sm:$0xff]
      %v4190 = vld [vmem:[#allocation3 + $0x122] sm:$0xff]
      %v4191 = vld [vmem:[#allocation3 + $0x12a] sm:$0x3f]
      %v4192 = vpack.c.bf16 %v4156, %v4156
      %v4193 = vpack.c.bf16 %v4157, %v4157
      %v4194 = vpack.c.bf16 %v4158, %v4158
      %v4195 = vpack.c.bf16 %v4159, %v4159
      %v4196 = vpack.c.bf16 %v4160, %v4160
      %v4197 = vpack.c.bf16 %v4161, %v4161
      %v4198 = vpack.c.bf16 %v4162, %v4162
      %v4199 = vpack.c.bf16 %v4163, %v4163
      %v4200 = vpack.c.bf16 %v4164, %v4164
      %v4201 = vpack.c.bf16 %v4165, %v4165
      %v4202 = vpack.c.bf16 %v4166, %v4166
      %v4203 = vpack.c.bf16 %v4167, %v4167
      %v4204 = vpack.c.bf16 %v4168, %v4168
      %v4205 = vpack.c.bf16 %v4169, %v4169
      %v4206 = vpack.c.bf16 %v4170, %v4170
      %v4207 = vpack.c.bf16 %v4171, %v4171
      %v4208 = vpack.c.bf16 %v4172, %v4172
      %v4209 = vpack.c.bf16 %v4173, %v4173
      %v4210 = vpack.c.bf16 %v4174, %v4174
      %v4211 = vpack.c.bf16 %v4175, %v4175
      %v4212 = vpack.c.bf16 %v4176, %v4176
      %v4213 = vpack.c.bf16 %v4177, %v4177
      %v4214 = vpack.c.bf16 %v4178, %v4178
      %v4215 = vpack.c.bf16 %v4179, %v4179
      %v4216 = vpack.c.bf16 %v4180, %v4180
      %v4217 = vpack.c.bf16 %v4181, %v4181
      %v4218 = vpack.c.bf16 %v4182, %v4182
      %v4219 = vpack.c.bf16 %v4183, %v4183
      %v4220 = vpack.c.bf16 %v4184, %v4184
      %v4221 = vpack.c.bf16 %v4185, %v4185
      %v4222 = vpack.c.bf16 %v4186, %v4186
      %v4223 = vpack.c.bf16 %v4187, %v4187
      %v4224 = vpack.c.bf16 %v4188, %v4188
      %v4225 = vpack.c.bf16 %v4189, %v4189
      %v4226 = vpack.c.bf16 %v4190, %v4190
      %v4227 = vpack.c.bf16 %v4191, %v4191
      %4264 = vrot.lane.b32.xlu0 %v4192, 64
      %v4265 = vpop.permute.xlu0 %4264
      %4266 = vrot.lane.b32.xlu0 %v4193, 64
      %v4267 = vpop.permute.xlu0 %4266
      %4268 = vrot.lane.b32.xlu0 %v4194, 64
      %v4269 = vpop.permute.xlu0 %4268
      %4270 = vrot.lane.b32.xlu0 %v4195, 64
      %v4271 = vpop.permute.xlu0 %4270
      %4272 = vrot.lane.b32.xlu0 %v4196, 64
      %v4273 = vpop.permute.xlu0 %4272
      %4274 = vrot.lane.b32.xlu0 %v4197, 64
      %v4275 = vpop.permute.xlu0 %4274
      %4276 = vrot.lane.b32.xlu0 %v4198, 64
      %v4277 = vpop.permute.xlu0 %4276
      %4278 = vrot.lane.b32.xlu0 %v4199, 64
      %v4279 = vpop.permute.xlu0 %4278
      %4280 = vrot.lane.b32.xlu0 %v4200, 64
      %v4281 = vpop.permute.xlu0 %4280
      %4282 = vrot.lane.b32.xlu0 %v4201, 64
      %v4283 = vpop.permute.xlu0 %4282
      %4284 = vrot.lane.b32.xlu0 %v4202, 64
      %v4285 = vpop.permute.xlu0 %4284
      %4286 = vrot.lane.b32.xlu0 %v4203, 64
      %v4287 = vpop.permute.xlu0 %4286
      %4288 = vrot.lane.b32.xlu0 %v4204, 64
      %v4289 = vpop.permute.xlu0 %4288
      %4290 = vrot.lane.b32.xlu0 %v4205, 64
      %v4291 = vpop.permute.xlu0 %4290
      %4292 = vrot.lane.b32.xlu0 %v4206, 64
      %v4293 = vpop.permute.xlu0 %4292
      %4294 = vrot.lane.b32.xlu0 %v4207, 64
      %v4295 = vpop.permute.xlu0 %4294
      %4296 = vrot.lane.b32.xlu0 %v4208, 64
      %v4297 = vpop.permute.xlu0 %4296
      %4298 = vrot.lane.b32.xlu0 %v4209, 64
      %v4299 = vpop.permute.xlu0 %4298
      %4300 = vrot.lane.b32.xlu0 %v4210, 64
      %v4301 = vpop.permute.xlu0 %4300
      %4302 = vrot.lane.b32.xlu0 %v4211, 64
      %v4303 = vpop.permute.xlu0 %4302
      %4304 = vrot.lane.b32.xlu0 %v4212, 64
      %v4305 = vpop.permute.xlu0 %4304
      %4306 = vrot.lane.b32.xlu0 %v4213, 64
      %v4307 = vpop.permute.xlu0 %4306
      %4308 = vrot.lane.b32.xlu0 %v4214, 64
      %v4309 = vpop.permute.xlu0 %4308
      %4310 = vrot.lane.b32.xlu0 %v4215, 64
      %v4311 = vpop.permute.xlu0 %4310
      %4312 = vrot.lane.b32.xlu0 %v4216, 64
      %v4313 = vpop.permute.xlu0 %4312
      %4314 = vrot.lane.b32.xlu0 %v4217, 64
      %v4315 = vpop.permute.xlu0 %4314
      %4316 = vrot.lane.b32.xlu0 %v4218, 64
      %v4317 = vpop.permute.xlu0 %4316
      %4318 = vrot.lane.b32.xlu0 %v4219, 64
      %v4319 = vpop.permute.xlu0 %4318
      %4320 = vrot.lane.b32.xlu0 %v4220, 64
      %v4321 = vpop.permute.xlu0 %4320
      %4322 = vrot.lane.b32.xlu0 %v4221, 64
      %v4323 = vpop.permute.xlu0 %4322
      %4324 = vrot.lane.b32.xlu0 %v4222, 64
      %v4325 = vpop.permute.xlu0 %4324
      %4326 = vrot.lane.b32.xlu0 %v4223, 64
      %v4327 = vpop.permute.xlu0 %4326
      %4328 = vrot.lane.b32.xlu0 %v4224, 64
      %v4329 = vpop.permute.xlu0 %4328
      %4330 = vrot.lane.b32.xlu0 %v4225, 64
      %v4331 = vpop.permute.xlu0 %4330
      %4332 = vrot.lane.b32.xlu0 %v4226, 64
      %v4333 = vpop.permute.xlu0 %4332
      %4334 = vrot.lane.b32.xlu0 %v4227, 64
      %v4335 = vpop.permute.xlu0 %4334
      %4372 = vst.msk [vmem:[#allocation2 + $0x4] sm:$0xf] %vm553, %v4265
      %4373 = vst.msk [vmem:[#allocation2 + $0x18] sm:$0xf] %vm553, %v4267
      %4374 = vst.msk [vmem:[#allocation2 + $0x2c] sm:$0xf] %vm553, %v4269
      %4375 = vst.msk [vmem:[#allocation2 + $0x40] sm:$0xf] %vm553, %v4271
      %4376 = vst.msk [vmem:[#allocation2 + $0x54] sm:$0xf] %vm553, %v4273
      %4377 = vst.msk [vmem:[#allocation2 + $0x68] sm:$0xf] %vm553, %v4275
      %4378 = vst.msk [vmem:[#allocation2 + $0x7c] sm:$0xf] %vm553, %v4277
      %4379 = vst.msk [vmem:[#allocation2 + $0x90] sm:$0xf] %vm553, %v4279
      %4380 = vst.msk [vmem:[#allocation2 + $0xa4] sm:$0xf] %vm553, %v4281
      %4381 = vst.msk [vmem:[#allocation2 + $0xb8] sm:$0xf] %vm553, %v4283
      %4382 = vst.msk [vmem:[#allocation2 + $0xcc] sm:$0xf] %vm553, %v4285
      %4383 = vst.msk [vmem:[#allocation2 + $0xe0] sm:$0xf] %vm553, %v4287
      %4384 = vst.msk [vmem:[#allocation2 + $0xf4] sm:$0xf] %vm553, %v4289
      %4385 = vst.msk [vmem:[#allocation2 + $0x108] sm:$0xf] %vm553, %v4291
      %4386 = vst.msk [vmem:[#allocation2 + $0x11c] sm:$0xf] %vm553, %v4293
      %4387 = vst.msk [vmem:[#allocation2 + $0x130] sm:$0xf] %vm553, %v4295
      %4388 = vst.msk [vmem:[#allocation2 + $0x144] sm:$0xf] %vm553, %v4297
      %4389 = vst.msk [vmem:[#allocation2 + $0x158] sm:$0xf] %vm553, %v4299
      %4390 = vst.msk [vmem:[#allocation2 + $0x16c] sm:$0xf] %vm553, %v4301
      %4391 = vst.msk [vmem:[#allocation2 + $0x180] sm:$0xf] %vm553, %v4303
      %4392 = vst.msk [vmem:[#allocation2 + $0x194] sm:$0xf] %vm553, %v4305
      %4393 = vst.msk [vmem:[#allocation2 + $0x1a8] sm:$0xf] %vm553, %v4307
      %4394 = vst.msk [vmem:[#allocation2 + $0x1bc] sm:$0xf] %vm553, %v4309
      %4395 = vst.msk [vmem:[#allocation2 + $0x1d0] sm:$0xf] %vm553, %v4311
      %4396 = vst.msk [vmem:[#allocation2 + $0x1e4] sm:$0xf] %vm553, %v4313
      %4397 = vst.msk [vmem:[#allocation2 + $0x1f8] sm:$0xf] %vm553, %v4315
      %4398 = vst.msk [vmem:[#allocation2 + $0x20c] sm:$0xf] %vm553, %v4317
      %4399 = vst.msk [vmem:[#allocation2 + $0x220] sm:$0xf] %vm553, %v4319
      %4400 = vst.msk [vmem:[#allocation2 + $0x234] sm:$0xf] %vm553, %v4321
      %4401 = vst.msk [vmem:[#allocation2 + $0x248] sm:$0xf] %vm553, %v4323
      %4402 = vst.msk [vmem:[#allocation2 + $0x25c] sm:$0xf] %vm553, %v4325
      %4403 = vst.msk [vmem:[#allocation2 + $0x270] sm:$0xf] %vm553, %v4327
      %4404 = vst.msk [vmem:[#allocation2 + $0x284] sm:$0xf] %vm553, %v4329
      %4405 = vst.msk [vmem:[#allocation2 + $0x298] sm:$0xf] %vm553, %v4331
      %4406 = vst.msk [vmem:[#allocation2 + $0x2ac] sm:$0xf] %vm553, %v4333
      %4407 = vst.msk [vmem:[#allocation2 + $0x2c0] sm:$0x7] %vm589, %v4335
      %v4408 = vld [vmem:[#allocation3 + $0x13] sm:$0xff]
      %v4409 = vld [vmem:[#allocation3 + $0x1b] sm:$0xff]
      %v4410 = vld [vmem:[#allocation3 + $0x23] sm:$0xff]
      %v4411 = vld [vmem:[#allocation3 + $0x2b] sm:$0xff]
      %v4412 = vld [vmem:[#allocation3 + $0x33] sm:$0xff]
      %v4413 = vld [vmem:[#allocation3 + $0x3b] sm:$0xff]
      %v4414 = vld [vmem:[#allocation3 + $0x43] sm:$0xff]
      %v4415 = vld [vmem:[#allocation3 + $0x4b] sm:$0xff]
      %v4416 = vld [vmem:[#allocation3 + $0x53] sm:$0xff]
      %v4417 = vld [vmem:[#allocation3 + $0x5b] sm:$0xff]
      %v4418 = vld [vmem:[#allocation3 + $0x63] sm:$0xff]
      %v4419 = vld [vmem:[#allocation3 + $0x6b] sm:$0xff]
      %v4420 = vld [vmem:[#allocation3 + $0x73] sm:$0xff]
      %v4421 = vld [vmem:[#allocation3 + $0x7b] sm:$0xff]
      %v4422 = vld [vmem:[#allocation3 + $0x83] sm:$0xff]
      %v4423 = vld [vmem:[#allocation3 + $0x8b] sm:$0xff]
      %v4424 = vld [vmem:[#allocation3 + $0x93] sm:$0xff]
      %v4425 = vld [vmem:[#allocation3 + $0x9b] sm:$0xff]
      %v4426 = vld [vmem:[#allocation3 + $0xa3] sm:$0xff]
      %v4427 = vld [vmem:[#allocation3 + $0xab] sm:$0xff]
      %v4428 = vld [vmem:[#allocation3 + $0xb3] sm:$0xff]
      %v4429 = vld [vmem:[#allocation3 + $0xbb] sm:$0xff]
      %v4430 = vld [vmem:[#allocation3 + $0xc3] sm:$0xff]
      %v4431 = vld [vmem:[#allocation3 + $0xcb] sm:$0xff]
      %v4432 = vld [vmem:[#allocation3 + $0xd3] sm:$0xff]
      %v4433 = vld [vmem:[#allocation3 + $0xdb] sm:$0xff]
      %v4434 = vld [vmem:[#allocation3 + $0xe3] sm:$0xff]
      %v4435 = vld [vmem:[#allocation3 + $0xeb] sm:$0xff]
      %v4436 = vld [vmem:[#allocation3 + $0xf3] sm:$0xff]
      %v4437 = vld [vmem:[#allocation3 + $0xfb] sm:$0xff]
      %v4438 = vld [vmem:[#allocation3 + $0x103] sm:$0xff]
      %v4439 = vld [vmem:[#allocation3 + $0x10b] sm:$0xff]
      %v4440 = vld [vmem:[#allocation3 + $0x113] sm:$0xff]
      %v4441 = vld [vmem:[#allocation3 + $0x11b] sm:$0xff]
      %v4442 = vld [vmem:[#allocation3 + $0x123] sm:$0xff]
      %v4443 = vld [vmem:[#allocation3 + $0x12b] sm:$0x3f]
      %v4444 = vpack.c.bf16 %v4408, %v4408
      %v4445 = vpack.c.bf16 %v4409, %v4409
      %v4446 = vpack.c.bf16 %v4410, %v4410
      %v4447 = vpack.c.bf16 %v4411, %v4411
      %v4448 = vpack.c.bf16 %v4412, %v4412
      %v4449 = vpack.c.bf16 %v4413, %v4413
      %v4450 = vpack.c.bf16 %v4414, %v4414
      %v4451 = vpack.c.bf16 %v4415, %v4415
      %v4452 = vpack.c.bf16 %v4416, %v4416
      %v4453 = vpack.c.bf16 %v4417, %v4417
      %v4454 = vpack.c.bf16 %v4418, %v4418
      %v4455 = vpack.c.bf16 %v4419, %v4419
      %v4456 = vpack.c.bf16 %v4420, %v4420
      %v4457 = vpack.c.bf16 %v4421, %v4421
      %v4458 = vpack.c.bf16 %v4422, %v4422
      %v4459 = vpack.c.bf16 %v4423, %v4423
      %v4460 = vpack.c.bf16 %v4424, %v4424
      %v4461 = vpack.c.bf16 %v4425, %v4425
      %v4462 = vpack.c.bf16 %v4426, %v4426
      %v4463 = vpack.c.bf16 %v4427, %v4427
      %v4464 = vpack.c.bf16 %v4428, %v4428
      %v4465 = vpack.c.bf16 %v4429, %v4429
      %v4466 = vpack.c.bf16 %v4430, %v4430
      %v4467 = vpack.c.bf16 %v4431, %v4431
      %v4468 = vpack.c.bf16 %v4432, %v4432
      %v4469 = vpack.c.bf16 %v4433, %v4433
      %v4470 = vpack.c.bf16 %v4434, %v4434
      %v4471 = vpack.c.bf16 %v4435, %v4435
      %v4472 = vpack.c.bf16 %v4436, %v4436
      %v4473 = vpack.c.bf16 %v4437, %v4437
      %v4474 = vpack.c.bf16 %v4438, %v4438
      %v4475 = vpack.c.bf16 %v4439, %v4439
      %v4476 = vpack.c.bf16 %v4440, %v4440
      %v4477 = vpack.c.bf16 %v4441, %v4441
      %v4478 = vpack.c.bf16 %v4442, %v4442
      %v4479 = vpack.c.bf16 %v4443, %v4443
      %4480 = vst.msk [vmem:[#allocation2 + $0x8] sm:$0xf] %vm299, %v4444
      %4481 = vst.msk [vmem:[#allocation2 + $0x1c] sm:$0xf] %vm299, %v4445
      %4482 = vst.msk [vmem:[#allocation2 + $0x30] sm:$0xf] %vm299, %v4446
      %4483 = vst.msk [vmem:[#allocation2 + $0x44] sm:$0xf] %vm299, %v4447
      %4484 = vst.msk [vmem:[#allocation2 + $0x58] sm:$0xf] %vm299, %v4448
      %4485 = vst.msk [vmem:[#allocation2 + $0x6c] sm:$0xf] %vm299, %v4449
      %4486 = vst.msk [vmem:[#allocation2 + $0x80] sm:$0xf] %vm299, %v4450
      %4487 = vst.msk [vmem:[#allocation2 + $0x94] sm:$0xf] %vm299, %v4451
      %4488 = vst.msk [vmem:[#allocation2 + $0xa8] sm:$0xf] %vm299, %v4452
      %4489 = vst.msk [vmem:[#allocation2 + $0xbc] sm:$0xf] %vm299, %v4453
      %4490 = vst.msk [vmem:[#allocation2 + $0xd0] sm:$0xf] %vm299, %v4454
      %4491 = vst.msk [vmem:[#allocation2 + $0xe4] sm:$0xf] %vm299, %v4455
      %4492 = vst.msk [vmem:[#allocation2 + $0xf8] sm:$0xf] %vm299, %v4456
      %4493 = vst.msk [vmem:[#allocation2 + $0x10c] sm:$0xf] %vm299, %v4457
      %4494 = vst.msk [vmem:[#allocation2 + $0x120] sm:$0xf] %vm299, %v4458
      %4495 = vst.msk [vmem:[#allocation2 + $0x134] sm:$0xf] %vm299, %v4459
      %4496 = vst.msk [vmem:[#allocation2 + $0x148] sm:$0xf] %vm299, %v4460
      %4497 = vst.msk [vmem:[#allocation2 + $0x15c] sm:$0xf] %vm299, %v4461
      %4498 = vst.msk [vmem:[#allocation2 + $0x170] sm:$0xf] %vm299, %v4462
      %4499 = vst.msk [vmem:[#allocation2 + $0x184] sm:$0xf] %vm299, %v4463
      %4500 = vst.msk [vmem:[#allocation2 + $0x198] sm:$0xf] %vm299, %v4464
      %4501 = vst.msk [vmem:[#allocation2 + $0x1ac] sm:$0xf] %vm299, %v4465
      %4502 = vst.msk [vmem:[#allocation2 + $0x1c0] sm:$0xf] %vm299, %v4466
      %4503 = vst.msk [vmem:[#allocation2 + $0x1d4] sm:$0xf] %vm299, %v4467
      %4504 = vst.msk [vmem:[#allocation2 + $0x1e8] sm:$0xf] %vm299, %v4468
      %4505 = vst.msk [vmem:[#allocation2 + $0x1fc] sm:$0xf] %vm299, %v4469
      %4506 = vst.msk [vmem:[#allocation2 + $0x210] sm:$0xf] %vm299, %v4470
      %4507 = vst.msk [vmem:[#allocation2 + $0x224] sm:$0xf] %vm299, %v4471
      %4508 = vst.msk [vmem:[#allocation2 + $0x238] sm:$0xf] %vm299, %v4472
      %4509 = vst.msk [vmem:[#allocation2 + $0x24c] sm:$0xf] %vm299, %v4473
      %4510 = vst.msk [vmem:[#allocation2 + $0x260] sm:$0xf] %vm299, %v4474
      %4511 = vst.msk [vmem:[#allocation2 + $0x274] sm:$0xf] %vm299, %v4475
      %4512 = vst.msk [vmem:[#allocation2 + $0x288] sm:$0xf] %vm299, %v4476
      %4513 = vst.msk [vmem:[#allocation2 + $0x29c] sm:$0xf] %vm299, %v4477
      %4514 = vst.msk [vmem:[#allocation2 + $0x2b0] sm:$0xf] %vm299, %v4478
      %4515 = vst.msk [vmem:[#allocation2 + $0x2c4] sm:$0x7] %vm335, %v4479
      %v4516 = vld [vmem:[#allocation3 + $0x14] sm:$0xff]
      %v4517 = vld [vmem:[#allocation3 + $0x1c] sm:$0xff]
      %v4518 = vld [vmem:[#allocation3 + $0x24] sm:$0xff]
      %v4519 = vld [vmem:[#allocation3 + $0x2c] sm:$0xff]
      %v4520 = vld [vmem:[#allocation3 + $0x34] sm:$0xff]
      %v4521 = vld [vmem:[#allocation3 + $0x3c] sm:$0xff]
      %v4522 = vld [vmem:[#allocation3 + $0x44] sm:$0xff]
      %v4523 = vld [vmem:[#allocation3 + $0x4c] sm:$0xff]
      %v4524 = vld [vmem:[#allocation3 + $0x54] sm:$0xff]
      %v4525 = vld [vmem:[#allocation3 + $0x5c] sm:$0xff]
      %v4526 = vld [vmem:[#allocation3 + $0x64] sm:$0xff]
      %v4527 = vld [vmem:[#allocation3 + $0x6c] sm:$0xff]
      %v4528 = vld [vmem:[#allocation3 + $0x74] sm:$0xff]
      %v4529 = vld [vmem:[#allocation3 + $0x7c] sm:$0xff]
      %v4530 = vld [vmem:[#allocation3 + $0x84] sm:$0xff]
      %v4531 = vld [vmem:[#allocation3 + $0x8c] sm:$0xff]
      %v4532 = vld [vmem:[#allocation3 + $0x94] sm:$0xff]
      %v4533 = vld [vmem:[#allocation3 + $0x9c] sm:$0xff]
      %v4534 = vld [vmem:[#allocation3 + $0xa4] sm:$0xff]
      %v4535 = vld [vmem:[#allocation3 + $0xac] sm:$0xff]
      %v4536 = vld [vmem:[#allocation3 + $0xb4] sm:$0xff]
      %v4537 = vld [vmem:[#allocation3 + $0xbc] sm:$0xff]
      %v4538 = vld [vmem:[#allocation3 + $0xc4] sm:$0xff]
      %v4539 = vld [vmem:[#allocation3 + $0xcc] sm:$0xff]
      %v4540 = vld [vmem:[#allocation3 + $0xd4] sm:$0xff]
      %v4541 = vld [vmem:[#allocation3 + $0xdc] sm:$0xff]
      %v4542 = vld [vmem:[#allocation3 + $0xe4] sm:$0xff]
      %v4543 = vld [vmem:[#allocation3 + $0xec] sm:$0xff]
      %v4544 = vld [vmem:[#allocation3 + $0xf4] sm:$0xff]
      %v4545 = vld [vmem:[#allocation3 + $0xfc] sm:$0xff]
      %v4546 = vld [vmem:[#allocation3 + $0x104] sm:$0xff]
      %v4547 = vld [vmem:[#allocation3 + $0x10c] sm:$0xff]
      %v4548 = vld [vmem:[#allocation3 + $0x114] sm:$0xff]
      %v4549 = vld [vmem:[#allocation3 + $0x11c] sm:$0xff]
      %v4550 = vld [vmem:[#allocation3 + $0x124] sm:$0xff]
      %v4551 = vld [vmem:[#allocation3 + $0x12c] sm:$0x3f]
      %v4552 = vpack.c.bf16 %v4516, %v4516
      %v4553 = vpack.c.bf16 %v4517, %v4517
      %v4554 = vpack.c.bf16 %v4518, %v4518
      %v4555 = vpack.c.bf16 %v4519, %v4519
      %v4556 = vpack.c.bf16 %v4520, %v4520
      %v4557 = vpack.c.bf16 %v4521, %v4521
      %v4558 = vpack.c.bf16 %v4522, %v4522
      %v4559 = vpack.c.bf16 %v4523, %v4523
      %v4560 = vpack.c.bf16 %v4524, %v4524
      %v4561 = vpack.c.bf16 %v4525, %v4525
      %v4562 = vpack.c.bf16 %v4526, %v4526
      %v4563 = vpack.c.bf16 %v4527, %v4527
      %v4564 = vpack.c.bf16 %v4528, %v4528
      %v4565 = vpack.c.bf16 %v4529, %v4529
      %v4566 = vpack.c.bf16 %v4530, %v4530
      %v4567 = vpack.c.bf16 %v4531, %v4531
      %v4568 = vpack.c.bf16 %v4532, %v4532
      %v4569 = vpack.c.bf16 %v4533, %v4533
      %v4570 = vpack.c.bf16 %v4534, %v4534
      %v4571 = vpack.c.bf16 %v4535, %v4535
      %v4572 = vpack.c.bf16 %v4536, %v4536
      %v4573 = vpack.c.bf16 %v4537, %v4537
      %v4574 = vpack.c.bf16 %v4538, %v4538
      %v4575 = vpack.c.bf16 %v4539, %v4539
      %v4576 = vpack.c.bf16 %v4540, %v4540
      %v4577 = vpack.c.bf16 %v4541, %v4541
      %v4578 = vpack.c.bf16 %v4542, %v4542
      %v4579 = vpack.c.bf16 %v4543, %v4543
      %v4580 = vpack.c.bf16 %v4544, %v4544
      %v4581 = vpack.c.bf16 %v4545, %v4545
      %v4582 = vpack.c.bf16 %v4546, %v4546
      %v4583 = vpack.c.bf16 %v4547, %v4547
      %v4584 = vpack.c.bf16 %v4548, %v4548
      %v4585 = vpack.c.bf16 %v4549, %v4549
      %v4586 = vpack.c.bf16 %v4550, %v4550
      %v4587 = vpack.c.bf16 %v4551, %v4551
      %4624 = vrot.lane.b32.xlu0 %v4552, 64
      %v4625 = vpop.permute.xlu0 %4624
      %4626 = vrot.lane.b32.xlu0 %v4553, 64
      %v4627 = vpop.permute.xlu0 %4626
      %4628 = vrot.lane.b32.xlu0 %v4554, 64
      %v4629 = vpop.permute.xlu0 %4628
      %4630 = vrot.lane.b32.xlu0 %v4555, 64
      %v4631 = vpop.permute.xlu0 %4630
      %4632 = vrot.lane.b32.xlu0 %v4556, 64
      %v4633 = vpop.permute.xlu0 %4632
      %4634 = vrot.lane.b32.xlu0 %v4557, 64
      %v4635 = vpop.permute.xlu0 %4634
      %4636 = vrot.lane.b32.xlu0 %v4558, 64
      %v4637 = vpop.permute.xlu0 %4636
      %4638 = vrot.lane.b32.xlu0 %v4559, 64
      %v4639 = vpop.permute.xlu0 %4638
      %4640 = vrot.lane.b32.xlu0 %v4560, 64
      %v4641 = vpop.permute.xlu0 %4640
      %4642 = vrot.lane.b32.xlu0 %v4561, 64
      %v4643 = vpop.permute.xlu0 %4642
      %4644 = vrot.lane.b32.xlu0 %v4562, 64
      %v4645 = vpop.permute.xlu0 %4644
      %4646 = vrot.lane.b32.xlu0 %v4563, 64
      %v4647 = vpop.permute.xlu0 %4646
      %4648 = vrot.lane.b32.xlu0 %v4564, 64
      %v4649 = vpop.permute.xlu0 %4648
      %4650 = vrot.lane.b32.xlu0 %v4565, 64
      %v4651 = vpop.permute.xlu0 %4650
      %4652 = vrot.lane.b32.xlu0 %v4566, 64
      %v4653 = vpop.permute.xlu0 %4652
      %4654 = vrot.lane.b32.xlu0 %v4567, 64
      %v4655 = vpop.permute.xlu0 %4654
      %4656 = vrot.lane.b32.xlu0 %v4568, 64
      %v4657 = vpop.permute.xlu0 %4656
      %4658 = vrot.lane.b32.xlu0 %v4569, 64
      %v4659 = vpop.permute.xlu0 %4658
      %4660 = vrot.lane.b32.xlu0 %v4570, 64
      %v4661 = vpop.permute.xlu0 %4660
      %4662 = vrot.lane.b32.xlu0 %v4571, 64
      %v4663 = vpop.permute.xlu0 %4662
      %4664 = vrot.lane.b32.xlu0 %v4572, 64
      %v4665 = vpop.permute.xlu0 %4664
      %4666 = vrot.lane.b32.xlu0 %v4573, 64
      %v4667 = vpop.permute.xlu0 %4666
      %4668 = vrot.lane.b32.xlu0 %v4574, 64
      %v4669 = vpop.permute.xlu0 %4668
      %4670 = vrot.lane.b32.xlu0 %v4575, 64
      %v4671 = vpop.permute.xlu0 %4670
      %4672 = vrot.lane.b32.xlu0 %v4576, 64
      %v4673 = vpop.permute.xlu0 %4672
      %4674 = vrot.lane.b32.xlu0 %v4577, 64
      %v4675 = vpop.permute.xlu0 %4674
      %4676 = vrot.lane.b32.xlu0 %v4578, 64
      %v4677 = vpop.permute.xlu0 %4676
      %4678 = vrot.lane.b32.xlu0 %v4579, 64
      %v4679 = vpop.permute.xlu0 %4678
      %4680 = vrot.lane.b32.xlu0 %v4580, 64
      %v4681 = vpop.permute.xlu0 %4680
      %4682 = vrot.lane.b32.xlu0 %v4581, 64
      %v4683 = vpop.permute.xlu0 %4682
      %4684 = vrot.lane.b32.xlu0 %v4582, 64
      %v4685 = vpop.permute.xlu0 %4684
      %4686 = vrot.lane.b32.xlu0 %v4583, 64
      %v4687 = vpop.permute.xlu0 %4686
      %4688 = vrot.lane.b32.xlu0 %v4584, 64
      %v4689 = vpop.permute.xlu0 %4688
      %4690 = vrot.lane.b32.xlu0 %v4585, 64
      %v4691 = vpop.permute.xlu0 %4690
      %4692 = vrot.lane.b32.xlu0 %v4586, 64
      %v4693 = vpop.permute.xlu0 %4692
      %4694 = vrot.lane.b32.xlu0 %v4587, 64
      %v4695 = vpop.permute.xlu0 %4694
      %4732 = vst.msk [vmem:[#allocation2 + $0x8] sm:$0xf] %vm553, %v4625
      %4733 = vst.msk [vmem:[#allocation2 + $0x1c] sm:$0xf] %vm553, %v4627
      %4734 = vst.msk [vmem:[#allocation2 + $0x30] sm:$0xf] %vm553, %v4629
      %4735 = vst.msk [vmem:[#allocation2 + $0x44] sm:$0xf] %vm553, %v4631
      %4736 = vst.msk [vmem:[#allocation2 + $0x58] sm:$0xf] %vm553, %v4633
      %4737 = vst.msk [vmem:[#allocation2 + $0x6c] sm:$0xf] %vm553, %v4635
      %4738 = vst.msk [vmem:[#allocation2 + $0x80] sm:$0xf] %vm553, %v4637
      %4739 = vst.msk [vmem:[#allocation2 + $0x94] sm:$0xf] %vm553, %v4639
      %4740 = vst.msk [vmem:[#allocation2 + $0xa8] sm:$0xf] %vm553, %v4641
      %4741 = vst.msk [vmem:[#allocation2 + $0xbc] sm:$0xf] %vm553, %v4643
      %4742 = vst.msk [vmem:[#allocation2 + $0xd0] sm:$0xf] %vm553, %v4645
      %4743 = vst.msk [vmem:[#allocation2 + $0xe4] sm:$0xf] %vm553, %v4647
      %4744 = vst.msk [vmem:[#allocation2 + $0xf8] sm:$0xf] %vm553, %v4649
      %4745 = vst.msk [vmem:[#allocation2 + $0x10c] sm:$0xf] %vm553, %v4651
      %4746 = vst.msk [vmem:[#allocation2 + $0x120] sm:$0xf] %vm553, %v4653
      %4747 = vst.msk [vmem:[#allocation2 + $0x134] sm:$0xf] %vm553, %v4655
      %4748 = vst.msk [vmem:[#allocation2 + $0x148] sm:$0xf] %vm553, %v4657
      %4749 = vst.msk [vmem:[#allocation2 + $0x15c] sm:$0xf] %vm553, %v4659
      %4750 = vst.msk [vmem:[#allocation2 + $0x170] sm:$0xf] %vm553, %v4661
      %4751 = vst.msk [vmem:[#allocation2 + $0x184] sm:$0xf] %vm553, %v4663
      %4752 = vst.msk [vmem:[#allocation2 + $0x198] sm:$0xf] %vm553, %v4665
      %4753 = vst.msk [vmem:[#allocation2 + $0x1ac] sm:$0xf] %vm553, %v4667
      %4754 = vst.msk [vmem:[#allocation2 + $0x1c0] sm:$0xf] %vm553, %v4669
      %4755 = vst.msk [vmem:[#allocation2 + $0x1d4] sm:$0xf] %vm553, %v4671
      %4756 = vst.msk [vmem:[#allocation2 + $0x1e8] sm:$0xf] %vm553, %v4673
      %4757 = vst.msk [vmem:[#allocation2 + $0x1fc] sm:$0xf] %vm553, %v4675
      %4758 = vst.msk [vmem:[#allocation2 + $0x210] sm:$0xf] %vm553, %v4677
      %4759 = vst.msk [vmem:[#allocation2 + $0x224] sm:$0xf] %vm553, %v4679
      %4760 = vst.msk [vmem:[#allocation2 + $0x238] sm:$0xf] %vm553, %v4681
      %4761 = vst.msk [vmem:[#allocation2 + $0x24c] sm:$0xf] %vm553, %v4683
      %4762 = vst.msk [vmem:[#allocation2 + $0x260] sm:$0xf] %vm553, %v4685
      %4763 = vst.msk [vmem:[#allocation2 + $0x274] sm:$0xf] %vm553, %v4687
      %4764 = vst.msk [vmem:[#allocation2 + $0x288] sm:$0xf] %vm553, %v4689
      %4765 = vst.msk [vmem:[#allocation2 + $0x29c] sm:$0xf] %vm553, %v4691
      %4766 = vst.msk [vmem:[#allocation2 + $0x2b0] sm:$0xf] %vm553, %v4693
      %4767 = vst.msk [vmem:[#allocation2 + $0x2c4] sm:$0x7] %vm589, %v4695
      %v4768 = vld [vmem:[#allocation3 + $0x24] sm:$0xff]
      %v4769 = vld [vmem:[#allocation3 + $0x2c] sm:$0xff]
      %v4770 = vld [vmem:[#allocation3 + $0x34] sm:$0xff]
      %v4771 = vld [vmem:[#allocation3 + $0x3c] sm:$0xff]
      %v4772 = vld [vmem:[#allocation3 + $0x44] sm:$0xff]
      %v4773 = vld [vmem:[#allocation3 + $0x4c] sm:$0xff]
      %v4774 = vld [vmem:[#allocation3 + $0x54] sm:$0xff]
      %v4775 = vld [vmem:[#allocation3 + $0x5c] sm:$0xff]
      %v4776 = vld [vmem:[#allocation3 + $0x64] sm:$0xff]
      %v4777 = vld [vmem:[#allocation3 + $0x6c] sm:$0xff]
      %v4778 = vld [vmem:[#allocation3 + $0x74] sm:$0xff]
      %v4779 = vld [vmem:[#allocation3 + $0x7c] sm:$0xff]
      %v4780 = vld [vmem:[#allocation3 + $0x84] sm:$0xff]
      %v4781 = vld [vmem:[#allocation3 + $0x8c] sm:$0xff]
      %v4782 = vld [vmem:[#allocation3 + $0x94] sm:$0xff]
      %v4783 = vld [vmem:[#allocation3 + $0x9c] sm:$0xff]
      %v4784 = vld [vmem:[#allocation3 + $0xa4] sm:$0xff]
      %v4785 = vld [vmem:[#allocation3 + $0xac] sm:$0xff]
      %v4786 = vld [vmem:[#allocation3 + $0xb4] sm:$0xff]
      %v4787 = vld [vmem:[#allocation3 + $0xbc] sm:$0xff]
      %v4788 = vld [vmem:[#allocation3 + $0xc4] sm:$0xff]
      %v4789 = vld [vmem:[#allocation3 + $0xcc] sm:$0xff]
      %v4790 = vld [vmem:[#allocation3 + $0xd4] sm:$0xff]
      %v4791 = vld [vmem:[#allocation3 + $0xdc] sm:$0xff]
      %v4792 = vld [vmem:[#allocation3 + $0xe4] sm:$0xff]
      %v4793 = vld [vmem:[#allocation3 + $0xec] sm:$0xff]
      %v4794 = vld [vmem:[#allocation3 + $0xf4] sm:$0xff]
      %v4795 = vld [vmem:[#allocation3 + $0xfc] sm:$0xff]
      %v4796 = vld [vmem:[#allocation3 + $0x104] sm:$0xff]
      %v4797 = vld [vmem:[#allocation3 + $0x10c] sm:$0xff]
      %v4798 = vld [vmem:[#allocation3 + $0x114] sm:$0xff]
      %v4799 = vld [vmem:[#allocation3 + $0x11c] sm:$0xff]
      %v4800 = vld [vmem:[#allocation3 + $0x124] sm:$0xff]
      %v4801 = vld [vmem:[#allocation3 + $0x12c] sm:$0xff]
      %v4802 = vld [vmem:[#allocation3 + $0x134] sm:$0xff]
      %v4803 = vld [vmem:[#allocation3 + $0x13c] sm:$0x3f]
      %v4804 = vpack.c.bf16 %v4768, %v4768
      %v4805 = vpack.c.bf16 %v4769, %v4769
      %v4806 = vpack.c.bf16 %v4770, %v4770
      %v4807 = vpack.c.bf16 %v4771, %v4771
      %v4808 = vpack.c.bf16 %v4772, %v4772
      %v4809 = vpack.c.bf16 %v4773, %v4773
      %v4810 = vpack.c.bf16 %v4774, %v4774
      %v4811 = vpack.c.bf16 %v4775, %v4775
      %v4812 = vpack.c.bf16 %v4776, %v4776
      %v4813 = vpack.c.bf16 %v4777, %v4777
      %v4814 = vpack.c.bf16 %v4778, %v4778
      %v4815 = vpack.c.bf16 %v4779, %v4779
      %v4816 = vpack.c.bf16 %v4780, %v4780
      %v4817 = vpack.c.bf16 %v4781, %v4781
      %v4818 = vpack.c.bf16 %v4782, %v4782
      %v4819 = vpack.c.bf16 %v4783, %v4783
      %v4820 = vpack.c.bf16 %v4784, %v4784
      %v4821 = vpack.c.bf16 %v4785, %v4785
      %v4822 = vpack.c.bf16 %v4786, %v4786
      %v4823 = vpack.c.bf16 %v4787, %v4787
      %v4824 = vpack.c.bf16 %v4788, %v4788
      %v4825 = vpack.c.bf16 %v4789, %v4789
      %v4826 = vpack.c.bf16 %v4790, %v4790
      %v4827 = vpack.c.bf16 %v4791, %v4791
      %v4828 = vpack.c.bf16 %v4792, %v4792
      %v4829 = vpack.c.bf16 %v4793, %v4793
      %v4830 = vpack.c.bf16 %v4794, %v4794
      %v4831 = vpack.c.bf16 %v4795, %v4795
      %v4832 = vpack.c.bf16 %v4796, %v4796
      %v4833 = vpack.c.bf16 %v4797, %v4797
      %v4834 = vpack.c.bf16 %v4798, %v4798
      %v4835 = vpack.c.bf16 %v4799, %v4799
      %v4836 = vpack.c.bf16 %v4800, %v4800
      %v4837 = vpack.c.bf16 %v4801, %v4801
      %v4838 = vpack.c.bf16 %v4802, %v4802
      %v4839 = vpack.c.bf16 %v4803, %v4803
      %4840 = vst.msk [vmem:[#allocation2 + $0xc] sm:$0xf] %vm299, %v4804
      %4841 = vst.msk [vmem:[#allocation2 + $0x20] sm:$0xf] %vm299, %v4805
      %4842 = vst.msk [vmem:[#allocation2 + $0x34] sm:$0xf] %vm299, %v4806
      %4843 = vst.msk [vmem:[#allocation2 + $0x48] sm:$0xf] %vm299, %v4807
      %4844 = vst.msk [vmem:[#allocation2 + $0x5c] sm:$0xf] %vm299, %v4808
      %4845 = vst.msk [vmem:[#allocation2 + $0x70] sm:$0xf] %vm299, %v4809
      %4846 = vst.msk [vmem:[#allocation2 + $0x84] sm:$0xf] %vm299, %v4810
      %4847 = vst.msk [vmem:[#allocation2 + $0x98] sm:$0xf] %vm299, %v4811
      %4848 = vst.msk [vmem:[#allocation2 + $0xac] sm:$0xf] %vm299, %v4812
      %4849 = vst.msk [vmem:[#allocation2 + $0xc0] sm:$0xf] %vm299, %v4813
      %4850 = vst.msk [vmem:[#allocation2 + $0xd4] sm:$0xf] %vm299, %v4814
      %4851 = vst.msk [vmem:[#allocation2 + $0xe8] sm:$0xf] %vm299, %v4815
      %4852 = vst.msk [vmem:[#allocation2 + $0xfc] sm:$0xf] %vm299, %v4816
      %4853 = vst.msk [vmem:[#allocation2 + $0x110] sm:$0xf] %vm299, %v4817
      %4854 = vst.msk [vmem:[#allocation2 + $0x124] sm:$0xf] %vm299, %v4818
      %4855 = vst.msk [vmem:[#allocation2 + $0x138] sm:$0xf] %vm299, %v4819
      %4856 = vst.msk [vmem:[#allocation2 + $0x14c] sm:$0xf] %vm299, %v4820
      %4857 = vst.msk [vmem:[#allocation2 + $0x160] sm:$0xf] %vm299, %v4821
      %4858 = vst.msk [vmem:[#allocation2 + $0x174] sm:$0xf] %vm299, %v4822
      %4859 = vst.msk [vmem:[#allocation2 + $0x188] sm:$0xf] %vm299, %v4823
      %4860 = vst.msk [vmem:[#allocation2 + $0x19c] sm:$0xf] %vm299, %v4824
      %4861 = vst.msk [vmem:[#allocation2 + $0x1b0] sm:$0xf] %vm299, %v4825
      %4862 = vst.msk [vmem:[#allocation2 + $0x1c4] sm:$0xf] %vm299, %v4826
      %4863 = vst.msk [vmem:[#allocation2 + $0x1d8] sm:$0xf] %vm299, %v4827
      %4864 = vst.msk [vmem:[#allocation2 + $0x1ec] sm:$0xf] %vm299, %v4828
      %4865 = vst.msk [vmem:[#allocation2 + $0x200] sm:$0xf] %vm299, %v4829
      %4866 = vst.msk [vmem:[#allocation2 + $0x214] sm:$0xf] %vm299, %v4830
      %4867 = vst.msk [vmem:[#allocation2 + $0x228] sm:$0xf] %vm299, %v4831
      %4868 = vst.msk [vmem:[#allocation2 + $0x23c] sm:$0xf] %vm299, %v4832
      %4869 = vst.msk [vmem:[#allocation2 + $0x250] sm:$0xf] %vm299, %v4833
      %4870 = vst.msk [vmem:[#allocation2 + $0x264] sm:$0xf] %vm299, %v4834
      %4871 = vst.msk [vmem:[#allocation2 + $0x278] sm:$0xf] %vm299, %v4835
      %4872 = vst.msk [vmem:[#allocation2 + $0x28c] sm:$0xf] %vm299, %v4836
      %4873 = vst.msk [vmem:[#allocation2 + $0x2a0] sm:$0xf] %vm299, %v4837
      %4874 = vst.msk [vmem:[#allocation2 + $0x2b4] sm:$0xf] %vm299, %v4838
      %4875 = vst.msk [vmem:[#allocation2 + $0x2c8] sm:$0x7] %vm335, %v4839
      %v4876 = vld [vmem:[#allocation3 + $0x25] sm:$0xff]
      %v4877 = vld [vmem:[#allocation3 + $0x2d] sm:$0xff]
      %v4878 = vld [vmem:[#allocation3 + $0x35] sm:$0xff]
      %v4879 = vld [vmem:[#allocation3 + $0x3d] sm:$0xff]
      %v4880 = vld [vmem:[#allocation3 + $0x45] sm:$0xff]
      %v4881 = vld [vmem:[#allocation3 + $0x4d] sm:$0xff]
      %v4882 = vld [vmem:[#allocation3 + $0x55] sm:$0xff]
      %v4883 = vld [vmem:[#allocation3 + $0x5d] sm:$0xff]
      %v4884 = vld [vmem:[#allocation3 + $0x65] sm:$0xff]
      %v4885 = vld [vmem:[#allocation3 + $0x6d] sm:$0xff]
      %v4886 = vld [vmem:[#allocation3 + $0x75] sm:$0xff]
      %v4887 = vld [vmem:[#allocation3 + $0x7d] sm:$0xff]
      %v4888 = vld [vmem:[#allocation3 + $0x85] sm:$0xff]
      %v4889 = vld [vmem:[#allocation3 + $0x8d] sm:$0xff]
      %v4890 = vld [vmem:[#allocation3 + $0x95] sm:$0xff]
      %v4891 = vld [vmem:[#allocation3 + $0x9d] sm:$0xff]
      %v4892 = vld [vmem:[#allocation3 + $0xa5] sm:$0xff]
      %v4893 = vld [vmem:[#allocation3 + $0xad] sm:$0xff]
      %v4894 = vld [vmem:[#allocation3 + $0xb5] sm:$0xff]
      %v4895 = vld [vmem:[#allocation3 + $0xbd] sm:$0xff]
      %v4896 = vld [vmem:[#allocation3 + $0xc5] sm:$0xff]
      %v4897 = vld [vmem:[#allocation3 + $0xcd] sm:$0xff]
      %v4898 = vld [vmem:[#allocation3 + $0xd5] sm:$0xff]
      %v4899 = vld [vmem:[#allocation3 + $0xdd] sm:$0xff]
      %v4900 = vld [vmem:[#allocation3 + $0xe5] sm:$0xff]
      %v4901 = vld [vmem:[#allocation3 + $0xed] sm:$0xff]
      %v4902 = vld [vmem:[#allocation3 + $0xf5] sm:$0xff]
      %v4903 = vld [vmem:[#allocation3 + $0xfd] sm:$0xff]
      %v4904 = vld [vmem:[#allocation3 + $0x105] sm:$0xff]
      %v4905 = vld [vmem:[#allocation3 + $0x10d] sm:$0xff]
      %v4906 = vld [vmem:[#allocation3 + $0x115] sm:$0xff]
      %v4907 = vld [vmem:[#allocation3 + $0x11d] sm:$0xff]
      %v4908 = vld [vmem:[#allocation3 + $0x125] sm:$0xff]
      %v4909 = vld [vmem:[#allocation3 + $0x12d] sm:$0xff]
      %v4910 = vld [vmem:[#allocation3 + $0x135] sm:$0xff]
      %v4911 = vld [vmem:[#allocation3 + $0x13d] sm:$0x3f]
      %v4912 = vpack.c.bf16 %v4876, %v4876
      %v4913 = vpack.c.bf16 %v4877, %v4877
      %v4914 = vpack.c.bf16 %v4878, %v4878
      %v4915 = vpack.c.bf16 %v4879, %v4879
      %v4916 = vpack.c.bf16 %v4880, %v4880
      %v4917 = vpack.c.bf16 %v4881, %v4881
      %v4918 = vpack.c.bf16 %v4882, %v4882
      %v4919 = vpack.c.bf16 %v4883, %v4883
      %v4920 = vpack.c.bf16 %v4884, %v4884
      %v4921 = vpack.c.bf16 %v4885, %v4885
      %v4922 = vpack.c.bf16 %v4886, %v4886
      %v4923 = vpack.c.bf16 %v4887, %v4887
      %v4924 = vpack.c.bf16 %v4888, %v4888
      %v4925 = vpack.c.bf16 %v4889, %v4889
      %v4926 = vpack.c.bf16 %v4890, %v4890
      %v4927 = vpack.c.bf16 %v4891, %v4891
      %v4928 = vpack.c.bf16 %v4892, %v4892
      %v4929 = vpack.c.bf16 %v4893, %v4893
      %v4930 = vpack.c.bf16 %v4894, %v4894
      %v4931 = vpack.c.bf16 %v4895, %v4895
      %v4932 = vpack.c.bf16 %v4896, %v4896
      %v4933 = vpack.c.bf16 %v4897, %v4897
      %v4934 = vpack.c.bf16 %v4898, %v4898
      %v4935 = vpack.c.bf16 %v4899, %v4899
      %v4936 = vpack.c.bf16 %v4900, %v4900
      %v4937 = vpack.c.bf16 %v4901, %v4901
      %v4938 = vpack.c.bf16 %v4902, %v4902
      %v4939 = vpack.c.bf16 %v4903, %v4903
      %v4940 = vpack.c.bf16 %v4904, %v4904
      %v4941 = vpack.c.bf16 %v4905, %v4905
      %v4942 = vpack.c.bf16 %v4906, %v4906
      %v4943 = vpack.c.bf16 %v4907, %v4907
      %v4944 = vpack.c.bf16 %v4908, %v4908
      %v4945 = vpack.c.bf16 %v4909, %v4909
      %v4946 = vpack.c.bf16 %v4910, %v4910
      %v4947 = vpack.c.bf16 %v4911, %v4911
      %4984 = vrot.lane.b32.xlu0 %v4912, 64
      %v4985 = vpop.permute.xlu0 %4984
      %4986 = vrot.lane.b32.xlu0 %v4913, 64
      %v4987 = vpop.permute.xlu0 %4986
      %4988 = vrot.lane.b32.xlu0 %v4914, 64
      %v4989 = vpop.permute.xlu0 %4988
      %4990 = vrot.lane.b32.xlu0 %v4915, 64
      %v4991 = vpop.permute.xlu0 %4990
      %4992 = vrot.lane.b32.xlu0 %v4916, 64
      %v4993 = vpop.permute.xlu0 %4992
      %4994 = vrot.lane.b32.xlu0 %v4917, 64
      %v4995 = vpop.permute.xlu0 %4994
      %4996 = vrot.lane.b32.xlu0 %v4918, 64
      %v4997 = vpop.permute.xlu0 %4996
      %4998 = vrot.lane.b32.xlu0 %v4919, 64
      %v4999 = vpop.permute.xlu0 %4998
      %5000 = vrot.lane.b32.xlu0 %v4920, 64
      %v5001 = vpop.permute.xlu0 %5000
      %5002 = vrot.lane.b32.xlu0 %v4921, 64
      %v5003 = vpop.permute.xlu0 %5002
      %5004 = vrot.lane.b32.xlu0 %v4922, 64
      %v5005 = vpop.permute.xlu0 %5004
      %5006 = vrot.lane.b32.xlu0 %v4923, 64
      %v5007 = vpop.permute.xlu0 %5006
      %5008 = vrot.lane.b32.xlu0 %v4924, 64
      %v5009 = vpop.permute.xlu0 %5008
      %5010 = vrot.lane.b32.xlu0 %v4925, 64
      %v5011 = vpop.permute.xlu0 %5010
      %5012 = vrot.lane.b32.xlu0 %v4926, 64
      %v5013 = vpop.permute.xlu0 %5012
      %5014 = vrot.lane.b32.xlu0 %v4927, 64
      %v5015 = vpop.permute.xlu0 %5014
      %5016 = vrot.lane.b32.xlu0 %v4928, 64
      %v5017 = vpop.permute.xlu0 %5016
      %5018 = vrot.lane.b32.xlu0 %v4929, 64
      %v5019 = vpop.permute.xlu0 %5018
      %5020 = vrot.lane.b32.xlu0 %v4930, 64
      %v5021 = vpop.permute.xlu0 %5020
      %5022 = vrot.lane.b32.xlu0 %v4931, 64
      %v5023 = vpop.permute.xlu0 %5022
      %5024 = vrot.lane.b32.xlu0 %v4932, 64
      %v5025 = vpop.permute.xlu0 %5024
      %5026 = vrot.lane.b32.xlu0 %v4933, 64
      %v5027 = vpop.permute.xlu0 %5026
      %5028 = vrot.lane.b32.xlu0 %v4934, 64
      %v5029 = vpop.permute.xlu0 %5028
      %5030 = vrot.lane.b32.xlu0 %v4935, 64
      %v5031 = vpop.permute.xlu0 %5030
      %5032 = vrot.lane.b32.xlu0 %v4936, 64
      %v5033 = vpop.permute.xlu0 %5032
      %5034 = vrot.lane.b32.xlu0 %v4937, 64
      %v5035 = vpop.permute.xlu0 %5034
      %5036 = vrot.lane.b32.xlu0 %v4938, 64
      %v5037 = vpop.permute.xlu0 %5036
      %5038 = vrot.lane.b32.xlu0 %v4939, 64
      %v5039 = vpop.permute.xlu0 %5038
      %5040 = vrot.lane.b32.xlu0 %v4940, 64
      %v5041 = vpop.permute.xlu0 %5040
      %5042 = vrot.lane.b32.xlu0 %v4941, 64
      %v5043 = vpop.permute.xlu0 %5042
      %5044 = vrot.lane.b32.xlu0 %v4942, 64
      %v5045 = vpop.permute.xlu0 %5044
      %5046 = vrot.lane.b32.xlu0 %v4943, 64
      %v5047 = vpop.permute.xlu0 %5046
      %5048 = vrot.lane.b32.xlu0 %v4944, 64
      %v5049 = vpop.permute.xlu0 %5048
      %5050 = vrot.lane.b32.xlu0 %v4945, 64
      %v5051 = vpop.permute.xlu0 %5050
      %5052 = vrot.lane.b32.xlu0 %v4946, 64
      %v5053 = vpop.permute.xlu0 %5052
      %5054 = vrot.lane.b32.xlu0 %v4947, 64
      %v5055 = vpop.permute.xlu0 %5054
      %5092 = vst.msk [vmem:[#allocation2 + $0xc] sm:$0xf] %vm553, %v4985
      %5093 = vst.msk [vmem:[#allocation2 + $0x20] sm:$0xf] %vm553, %v4987
      %5094 = vst.msk [vmem:[#allocation2 + $0x34] sm:$0xf] %vm553, %v4989
      %5095 = vst.msk [vmem:[#allocation2 + $0x48] sm:$0xf] %vm553, %v4991
      %5096 = vst.msk [vmem:[#allocation2 + $0x5c] sm:$0xf] %vm553, %v4993
      %5097 = vst.msk [vmem:[#allocation2 + $0x70] sm:$0xf] %vm553, %v4995
      %5098 = vst.msk [vmem:[#allocation2 + $0x84] sm:$0xf] %vm553, %v4997
      %5099 = vst.msk [vmem:[#allocation2 + $0x98] sm:$0xf] %vm553, %v4999
      %5100 = vst.msk [vmem:[#allocation2 + $0xac] sm:$0xf] %vm553, %v5001
      %5101 = vst.msk [vmem:[#allocation2 + $0xc0] sm:$0xf] %vm553, %v5003
      %5102 = vst.msk [vmem:[#allocation2 + $0xd4] sm:$0xf] %vm553, %v5005
      %5103 = vst.msk [vmem:[#allocation2 + $0xe8] sm:$0xf] %vm553, %v5007
      %5104 = vst.msk [vmem:[#allocation2 + $0xfc] sm:$0xf] %vm553, %v5009
      %5105 = vst.msk [vmem:[#allocation2 + $0x110] sm:$0xf] %vm553, %v5011
      %5106 = vst.msk [vmem:[#allocation2 + $0x124] sm:$0xf] %vm553, %v5013
      %5107 = vst.msk [vmem:[#allocation2 + $0x138] sm:$0xf] %vm553, %v5015
      %5108 = vst.msk [vmem:[#allocation2 + $0x14c] sm:$0xf] %vm553, %v5017
      %5109 = vst.msk [vmem:[#allocation2 + $0x160] sm:$0xf] %vm553, %v5019
      %5110 = vst.msk [vmem:[#allocation2 + $0x174] sm:$0xf] %vm553, %v5021
      %5111 = vst.msk [vmem:[#allocation2 + $0x188] sm:$0xf] %vm553, %v5023
      %5112 = vst.msk [vmem:[#allocation2 + $0x19c] sm:$0xf] %vm553, %v5025
      %5113 = vst.msk [vmem:[#allocation2 + $0x1b0] sm:$0xf] %vm553, %v5027
      %5114 = vst.msk [vmem:[#allocation2 + $0x1c4] sm:$0xf] %vm553, %v5029
      %5115 = vst.msk [vmem:[#allocation2 + $0x1d8] sm:$0xf] %vm553, %v5031
      %5116 = vst.msk [vmem:[#allocation2 + $0x1ec] sm:$0xf] %vm553, %v5033
      %5117 = vst.msk [vmem:[#allocation2 + $0x200] sm:$0xf] %vm553, %v5035
      %5118 = vst.msk [vmem:[#allocation2 + $0x214] sm:$0xf] %vm553, %v5037
      %5119 = vst.msk [vmem:[#allocation2 + $0x228] sm:$0xf] %vm553, %v5039
      %5120 = vst.msk [vmem:[#allocation2 + $0x23c] sm:$0xf] %vm553, %v5041
      %5121 = vst.msk [vmem:[#allocation2 + $0x250] sm:$0xf] %vm553, %v5043
      %5122 = vst.msk [vmem:[#allocation2 + $0x264] sm:$0xf] %vm553, %v5045
      %5123 = vst.msk [vmem:[#allocation2 + $0x278] sm:$0xf] %vm553, %v5047
      %5124 = vst.msk [vmem:[#allocation2 + $0x28c] sm:$0xf] %vm553, %v5049
      %5125 = vst.msk [vmem:[#allocation2 + $0x2a0] sm:$0xf] %vm553, %v5051
      %5126 = vst.msk [vmem:[#allocation2 + $0x2b4] sm:$0xf] %vm553, %v5053
      %5127 = vst.msk [vmem:[#allocation2 + $0x2c8] sm:$0x7] %vm589, %v5055
      %v5128 = vld [vmem:[#allocation3 + $0x26] sm:$0xff]
      %v5129 = vld [vmem:[#allocation3 + $0x2e] sm:$0xff]
      %v5130 = vld [vmem:[#allocation3 + $0x36] sm:$0xff]
      %v5131 = vld [vmem:[#allocation3 + $0x3e] sm:$0xff]
      %v5132 = vld [vmem:[#allocation3 + $0x46] sm:$0xff]
      %v5133 = vld [vmem:[#allocation3 + $0x4e] sm:$0xff]
      %v5134 = vld [vmem:[#allocation3 + $0x56] sm:$0xff]
      %v5135 = vld [vmem:[#allocation3 + $0x5e] sm:$0xff]
      %v5136 = vld [vmem:[#allocation3 + $0x66] sm:$0xff]
      %v5137 = vld [vmem:[#allocation3 + $0x6e] sm:$0xff]
      %v5138 = vld [vmem:[#allocation3 + $0x76] sm:$0xff]
      %v5139 = vld [vmem:[#allocation3 + $0x7e] sm:$0xff]
      %v5140 = vld [vmem:[#allocation3 + $0x86] sm:$0xff]
      %v5141 = vld [vmem:[#allocation3 + $0x8e] sm:$0xff]
      %v5142 = vld [vmem:[#allocation3 + $0x96] sm:$0xff]
      %v5143 = vld [vmem:[#allocation3 + $0x9e] sm:$0xff]
      %v5144 = vld [vmem:[#allocation3 + $0xa6] sm:$0xff]
      %v5145 = vld [vmem:[#allocation3 + $0xae] sm:$0xff]
      %v5146 = vld [vmem:[#allocation3 + $0xb6] sm:$0xff]
      %v5147 = vld [vmem:[#allocation3 + $0xbe] sm:$0xff]
      %v5148 = vld [vmem:[#allocation3 + $0xc6] sm:$0xff]
      %v5149 = vld [vmem:[#allocation3 + $0xce] sm:$0xff]
      %v5150 = vld [vmem:[#allocation3 + $0xd6] sm:$0xff]
      %v5151 = vld [vmem:[#allocation3 + $0xde] sm:$0xff]
      %v5152 = vld [vmem:[#allocation3 + $0xe6] sm:$0xff]
      %v5153 = vld [vmem:[#allocation3 + $0xee] sm:$0xff]
      %v5154 = vld [vmem:[#allocation3 + $0xf6] sm:$0xff]
      %v5155 = vld [vmem:[#allocation3 + $0xfe] sm:$0xff]
      %v5156 = vld [vmem:[#allocation3 + $0x106] sm:$0xff]
      %v5157 = vld [vmem:[#allocation3 + $0x10e] sm:$0xff]
      %v5158 = vld [vmem:[#allocation3 + $0x116] sm:$0xff]
      %v5159 = vld [vmem:[#allocation3 + $0x11e] sm:$0xff]
      %v5160 = vld [vmem:[#allocation3 + $0x126] sm:$0xff]
      %v5161 = vld [vmem:[#allocation3 + $0x12e] sm:$0xff]
      %v5162 = vld [vmem:[#allocation3 + $0x136] sm:$0xff]
      %v5163 = vld [vmem:[#allocation3 + $0x13e] sm:$0x3f]
      %v5164 = vpack.c.bf16 %v5128, %v5128
      %v5165 = vpack.c.bf16 %v5129, %v5129
      %v5166 = vpack.c.bf16 %v5130, %v5130
      %v5167 = vpack.c.bf16 %v5131, %v5131
      %v5168 = vpack.c.bf16 %v5132, %v5132
      %v5169 = vpack.c.bf16 %v5133, %v5133
      %v5170 = vpack.c.bf16 %v5134, %v5134
      %v5171 = vpack.c.bf16 %v5135, %v5135
      %v5172 = vpack.c.bf16 %v5136, %v5136
      %v5173 = vpack.c.bf16 %v5137, %v5137
      %v5174 = vpack.c.bf16 %v5138, %v5138
      %v5175 = vpack.c.bf16 %v5139, %v5139
      %v5176 = vpack.c.bf16 %v5140, %v5140
      %v5177 = vpack.c.bf16 %v5141, %v5141
      %v5178 = vpack.c.bf16 %v5142, %v5142
      %v5179 = vpack.c.bf16 %v5143, %v5143
      %v5180 = vpack.c.bf16 %v5144, %v5144
      %v5181 = vpack.c.bf16 %v5145, %v5145
      %v5182 = vpack.c.bf16 %v5146, %v5146
      %v5183 = vpack.c.bf16 %v5147, %v5147
      %v5184 = vpack.c.bf16 %v5148, %v5148
      %v5185 = vpack.c.bf16 %v5149, %v5149
      %v5186 = vpack.c.bf16 %v5150, %v5150
      %v5187 = vpack.c.bf16 %v5151, %v5151
      %v5188 = vpack.c.bf16 %v5152, %v5152
      %v5189 = vpack.c.bf16 %v5153, %v5153
      %v5190 = vpack.c.bf16 %v5154, %v5154
      %v5191 = vpack.c.bf16 %v5155, %v5155
      %v5192 = vpack.c.bf16 %v5156, %v5156
      %v5193 = vpack.c.bf16 %v5157, %v5157
      %v5194 = vpack.c.bf16 %v5158, %v5158
      %v5195 = vpack.c.bf16 %v5159, %v5159
      %v5196 = vpack.c.bf16 %v5160, %v5160
      %v5197 = vpack.c.bf16 %v5161, %v5161
      %v5198 = vpack.c.bf16 %v5162, %v5162
      %v5199 = vpack.c.bf16 %v5163, %v5163
      %5200 = vst.msk [vmem:[#allocation2 + $0x10] sm:$0xf] %vm299, %v5164
      %5201 = vst.msk [vmem:[#allocation2 + $0x24] sm:$0xf] %vm299, %v5165
      %5202 = vst.msk [vmem:[#allocation2 + $0x38] sm:$0xf] %vm299, %v5166
      %5203 = vst.msk [vmem:[#allocation2 + $0x4c] sm:$0xf] %vm299, %v5167
      %5204 = vst.msk [vmem:[#allocation2 + $0x60] sm:$0xf] %vm299, %v5168
      %5205 = vst.msk [vmem:[#allocation2 + $0x74] sm:$0xf] %vm299, %v5169
      %5206 = vst.msk [vmem:[#allocation2 + $0x88] sm:$0xf] %vm299, %v5170
      %5207 = vst.msk [vmem:[#allocation2 + $0x9c] sm:$0xf] %vm299, %v5171
      %5208 = vst.msk [vmem:[#allocation2 + $0xb0] sm:$0xf] %vm299, %v5172
      %5209 = vst.msk [vmem:[#allocation2 + $0xc4] sm:$0xf] %vm299, %v5173
      %5210 = vst.msk [vmem:[#allocation2 + $0xd8] sm:$0xf] %vm299, %v5174
      %5211 = vst.msk [vmem:[#allocation2 + $0xec] sm:$0xf] %vm299, %v5175
      %5212 = vst.msk [vmem:[#allocation2 + $0x100] sm:$0xf] %vm299, %v5176
      %5213 = vst.msk [vmem:[#allocation2 + $0x114] sm:$0xf] %vm299, %v5177
      %5214 = vst.msk [vmem:[#allocation2 + $0x128] sm:$0xf] %vm299, %v5178
      %5215 = vst.msk [vmem:[#allocation2 + $0x13c] sm:$0xf] %vm299, %v5179
      %5216 = vst.msk [vmem:[#allocation2 + $0x150] sm:$0xf] %vm299, %v5180
      %5217 = vst.msk [vmem:[#allocation2 + $0x164] sm:$0xf] %vm299, %v5181
      %5218 = vst.msk [vmem:[#allocation2 + $0x178] sm:$0xf] %vm299, %v5182
      %5219 = vst.msk [vmem:[#allocation2 + $0x18c] sm:$0xf] %vm299, %v5183
      %5220 = vst.msk [vmem:[#allocation2 + $0x1a0] sm:$0xf] %vm299, %v5184
      %5221 = vst.msk [vmem:[#allocation2 + $0x1b4] sm:$0xf] %vm299, %v5185
      %5222 = vst.msk [vmem:[#allocation2 + $0x1c8] sm:$0xf] %vm299, %v5186
      %5223 = vst.msk [vmem:[#allocation2 + $0x1dc] sm:$0xf] %vm299, %v5187
      %5224 = vst.msk [vmem:[#allocation2 + $0x1f0] sm:$0xf] %vm299, %v5188
      %5225 = vst.msk [vmem:[#allocation2 + $0x204] sm:$0xf] %vm299, %v5189
      %5226 = vst.msk [vmem:[#allocation2 + $0x218] sm:$0xf] %vm299, %v5190
      %5227 = vst.msk [vmem:[#allocation2 + $0x22c] sm:$0xf] %vm299, %v5191
      %5228 = vst.msk [vmem:[#allocation2 + $0x240] sm:$0xf] %vm299, %v5192
      %5229 = vst.msk [vmem:[#allocation2 + $0x254] sm:$0xf] %vm299, %v5193
      %5230 = vst.msk [vmem:[#allocation2 + $0x268] sm:$0xf] %vm299, %v5194
      %5231 = vst.msk [vmem:[#allocation2 + $0x27c] sm:$0xf] %vm299, %v5195
      %5232 = vst.msk [vmem:[#allocation2 + $0x290] sm:$0xf] %vm299, %v5196
      %5233 = vst.msk [vmem:[#allocation2 + $0x2a4] sm:$0xf] %vm299, %v5197
      %5234 = vst.msk [vmem:[#allocation2 + $0x2b8] sm:$0xf] %vm299, %v5198
      %5235 = vst.msk [vmem:[#allocation2 + $0x2cc] sm:$0x7] %vm335, %v5199
      %v5236 = vld [vmem:[#allocation2] sm:$0xff]
      %v5237 = vld [vmem:[#allocation2 + $0x8] sm:$0xff]
      %v5238 = vld [vmem:[#allocation2 + $0x10] sm:$0xf]
      %v5239 = vld [vmem:[#allocation2 + $0x14] sm:$0xff]
      %v5240 = vld [vmem:[#allocation2 + $0x1c] sm:$0xff]
      %v5241 = vld [vmem:[#allocation2 + $0x24] sm:$0xf]
      %v5242 = vld [vmem:[#allocation2 + $0x28] sm:$0xff]
      %v5243 = vld [vmem:[#allocation2 + $0x30] sm:$0xff]
      %v5244 = vld [vmem:[#allocation2 + $0x38] sm:$0xf]
      %v5245 = vld [vmem:[#allocation2 + $0x3c] sm:$0xff]
      %v5246 = vld [vmem:[#allocation2 + $0x44] sm:$0xff]
      %v5247 = vld [vmem:[#allocation2 + $0x4c] sm:$0xf]
      %v5248 = vld [vmem:[#allocation2 + $0x50] sm:$0xff]
      %v5249 = vld [vmem:[#allocation2 + $0x58] sm:$0xff]
      %v5250 = vld [vmem:[#allocation2 + $0x60] sm:$0xf]
      %v5251 = vld [vmem:[#allocation2 + $0x64] sm:$0xff]
      %v5252 = vld [vmem:[#allocation2 + $0x6c] sm:$0xff]
      %v5253 = vld [vmem:[#allocation2 + $0x74] sm:$0xf]
      %v5254 = vld [vmem:[#allocation2 + $0x78] sm:$0xff]
      %v5255 = vld [vmem:[#allocation2 + $0x80] sm:$0xff]
      %v5256 = vld [vmem:[#allocation2 + $0x88] sm:$0xf]
      %v5257 = vld [vmem:[#allocation2 + $0x8c] sm:$0xff]
      %v5258 = vld [vmem:[#allocation2 + $0x94] sm:$0xff]
      %v5259 = vld [vmem:[#allocation2 + $0x9c] sm:$0xf]
      %v5260 = vld [vmem:[#allocation2 + $0xa0] sm:$0xff]
      %v5261 = vld [vmem:[#allocation2 + $0xa8] sm:$0xff]
      %v5262 = vld [vmem:[#allocation2 + $0xb0] sm:$0xf]
      %v5263 = vld [vmem:[#allocation2 + $0xb4] sm:$0xff]
      %v5264 = vld [vmem:[#allocation2 + $0xbc] sm:$0xff]
      %v5265 = vld [vmem:[#allocation2 + $0xc4] sm:$0xf]
      %v5266 = vld [vmem:[#allocation2 + $0xc8] sm:$0xff]
      %v5267 = vld [vmem:[#allocation2 + $0xd0] sm:$0xff]
      %v5268 = vld [vmem:[#allocation2 + $0xd8] sm:$0xf]
      %v5269 = vld [vmem:[#allocation2 + $0xdc] sm:$0xff]
      %v5270 = vld [vmem:[#allocation2 + $0xe4] sm:$0xff]
      %v5271 = vld [vmem:[#allocation2 + $0xec] sm:$0xf]
      %v5272 = vld [vmem:[#allocation2 + $0xf0] sm:$0xff]
      %v5273 = vld [vmem:[#allocation2 + $0xf8] sm:$0xff]
      %v5274 = vld [vmem:[#allocation2 + $0x100] sm:$0xf]
      %v5275 = vld [vmem:[#allocation2 + $0x104] sm:$0xff]
      %v5276 = vld [vmem:[#allocation2 + $0x10c] sm:$0xff]
      %v5277 = vld [vmem:[#allocation2 + $0x114] sm:$0xf]
      %v5278 = vld [vmem:[#allocation2 + $0x118] sm:$0xff]
      %v5279 = vld [vmem:[#allocation2 + $0x120] sm:$0xff]
      %v5280 = vld [vmem:[#allocation2 + $0x128] sm:$0xf]
      %v5281 = vld [vmem:[#allocation2 + $0x12c] sm:$0xff]
      %v5282 = vld [vmem:[#allocation2 + $0x134] sm:$0xff]
      %v5283 = vld [vmem:[#allocation2 + $0x13c] sm:$0xf]
      %v5284 = vld [vmem:[#allocation2 + $0x140] sm:$0xff]
      %v5285 = vld [vmem:[#allocation2 + $0x148] sm:$0xff]
      %v5286 = vld [vmem:[#allocation2 + $0x150] sm:$0xf]
      %v5287 = vld [vmem:[#allocation2 + $0x154] sm:$0xff]
      %v5288 = vld [vmem:[#allocation2 + $0x15c] sm:$0xff]
      %v5289 = vld [vmem:[#allocation2 + $0x164] sm:$0xf]
      %v5290 = vld [vmem:[#allocation2 + $0x168] sm:$0xff]
      %v5291 = vld [vmem:[#allocation2 + $0x170] sm:$0xff]
      %v5292 = vld [vmem:[#allocation2 + $0x178] sm:$0xf]
      %v5293 = vld [vmem:[#allocation2 + $0x17c] sm:$0xff]
      %v5294 = vld [vmem:[#allocation2 + $0x184] sm:$0xff]
      %v5295 = vld [vmem:[#allocation2 + $0x18c] sm:$0xf]
      %v5296 = vld [vmem:[#allocation2 + $0x190] sm:$0xff]
      %v5297 = vld [vmem:[#allocation2 + $0x198] sm:$0xff]
      %v5298 = vld [vmem:[#allocation2 + $0x1a0] sm:$0xf]
      %v5299 = vld [vmem:[#allocation2 + $0x1a4] sm:$0xff]
      %v5300 = vld [vmem:[#allocation2 + $0x1ac] sm:$0xff]
      %v5301 = vld [vmem:[#allocation2 + $0x1b4] sm:$0xf]
      %v5302 = vld [vmem:[#allocation2 + $0x1b8] sm:$0xff]
      %v5303 = vld [vmem:[#allocation2 + $0x1c0] sm:$0xff]
      %v5304 = vld [vmem:[#allocation2 + $0x1c8] sm:$0xf]
      %v5305 = vld [vmem:[#allocation2 + $0x1cc] sm:$0xff]
      %v5306 = vld [vmem:[#allocation2 + $0x1d4] sm:$0xff]
      %v5307 = vld [vmem:[#allocation2 + $0x1dc] sm:$0xf]
      %v5308 = vld [vmem:[#allocation2 + $0x1e0] sm:$0xff]
      %v5309 = vld [vmem:[#allocation2 + $0x1e8] sm:$0xff]
      %v5310 = vld [vmem:[#allocation2 + $0x1f0] sm:$0xf]
      %v5311 = vld [vmem:[#allocation2 + $0x1f4] sm:$0xff]
      %v5312 = vld [vmem:[#allocation2 + $0x1fc] sm:$0xff]
      %v5313 = vld [vmem:[#allocation2 + $0x204] sm:$0xf]
      %v5314 = vld [vmem:[#allocation2 + $0x208] sm:$0xff]
      %v5315 = vld [vmem:[#allocation2 + $0x210] sm:$0xff]
      %v5316 = vld [vmem:[#allocation2 + $0x218] sm:$0xf]
      %v5317 = vld [vmem:[#allocation2 + $0x21c] sm:$0xff]
      %v5318 = vld [vmem:[#allocation2 + $0x224] sm:$0xff]
      %v5319 = vld [vmem:[#allocation2 + $0x22c] sm:$0xf]
      %v5320 = vld [vmem:[#allocation2 + $0x230] sm:$0xff]
      %v5321 = vld [vmem:[#allocation2 + $0x238] sm:$0xff]
      %v5322 = vld [vmem:[#allocation2 + $0x240] sm:$0xf]
      %v5323 = vld [vmem:[#allocation2 + $0x244] sm:$0xff]
      %v5324 = vld [vmem:[#allocation2 + $0x24c] sm:$0xff]
      %v5325 = vld [vmem:[#allocation2 + $0x254] sm:$0xf]
      %v5326 = vld [vmem:[#allocation2 + $0x258] sm:$0xff]
      %v5327 = vld [vmem:[#allocation2 + $0x260] sm:$0xff]
      %v5328 = vld [vmem:[#allocation2 + $0x268] sm:$0xf]
      %v5329 = vld [vmem:[#allocation2 + $0x26c] sm:$0xff]
      %v5330 = vld [vmem:[#allocation2 + $0x274] sm:$0xff]
      %v5331 = vld [vmem:[#allocation2 + $0x27c] sm:$0xf]
      %v5332 = vld [vmem:[#allocation2 + $0x280] sm:$0xff]
      %v5333 = vld [vmem:[#allocation2 + $0x288] sm:$0xff]
      %v5334 = vld [vmem:[#allocation2 + $0x290] sm:$0xf]
      %v5335 = vld [vmem:[#allocation2 + $0x294] sm:$0xff]
      %v5336 = vld [vmem:[#allocation2 + $0x29c] sm:$0xff]
      %v5337 = vld [vmem:[#allocation2 + $0x2a4] sm:$0xf]
      %v5338 = vld [vmem:[#allocation2 + $0x2a8] sm:$0xff]
      %v5339 = vld [vmem:[#allocation2 + $0x2b0] sm:$0xff]
      %v5340 = vld [vmem:[#allocation2 + $0x2b8] sm:$0xf]
      %v5341 = vld [vmem:[#allocation2 + $0x2bc] sm:$0x77]
      %v5342 = vld [vmem:[#allocation2 + $0x2c4] sm:$0x77]
      %v5343 = vld [vmem:[#allocation2 + $0x2cc] sm:$0x7]
      %v5344 = vld [vmem:[%s2] sm:$0xf]
      %v5345 = vld [vmem:[%s2 + $0x4] sm:$0xf]
      %v5346 = vld [vmem:[%s2 + $0x8] sm:$0xf]
      %v5347 = vld [vmem:[%s2 + $0xc] sm:$0xf]
      %v5348 = vld [vmem:[%s2 + $0x10] sm:$0xf]
      %v5349 = vld [vmem:[%s2 + $0x14] sm:$0xf]
      %v5350 = vld [vmem:[%s2 + $0x18] sm:$0xf]
      %v5351 = vld [vmem:[%s2 + $0x1c] sm:$0xf]
      %v5352 = vld [vmem:[%s2 + $0x20] sm:$0xf]
      %v5353 = vld [vmem:[%s2 + $0x24] sm:$0xf]
      %v5354 = vld [vmem:[%s2 + $0x28] sm:$0xf]
      %v5355 = vld [vmem:[%s2 + $0x2c] sm:$0xf]
      %v5356 = vld [vmem:[%s2 + $0x30] sm:$0xf]
      %v5357 = vld [vmem:[%s2 + $0x34] sm:$0xf]
      %v5358 = vld [vmem:[%s2 + $0x38] sm:$0xf]
      %v5359 = vld [vmem:[%s2 + $0x3c] sm:$0xf]
      %v5360 = vld [vmem:[%s2 + $0x40] sm:$0xf]
      %v5361 = vld [vmem:[%s2 + $0x44] sm:$0xf]
      %v5362 = vld [vmem:[%s2 + $0x48] sm:$0xf]
      %v5363 = vld [vmem:[%s2 + $0x4c] sm:$0xf]
      %v5364 = vld [vmem:[%s2 + $0x50] sm:$0xf]
      %v5365 = vld [vmem:[%s2 + $0x54] sm:$0xf]
      %v5366 = vld [vmem:[%s2 + $0x58] sm:$0xf]
      %v5367 = vld [vmem:[%s2 + $0x5c] sm:$0xf]
      %v5368 = vld [vmem:[%s2 + $0x60] sm:$0xf]
      %v5369 = vld [vmem:[%s2 + $0x64] sm:$0xf]
      %v5370 = vld [vmem:[%s2 + $0x68] sm:$0xf]
      %v5371 = vld [vmem:[%s2 + $0x6c] sm:$0xf]
      %v5372 = vld [vmem:[%s2 + $0x70] sm:$0xf]
      %v5373 = vld [vmem:[%s2 + $0x74] sm:$0xf]
      %v5374 = vld [vmem:[%s2 + $0x78] sm:$0xf]
      %v5375 = vld [vmem:[%s2 + $0x7c] sm:$0xf]
      %v5376 = vld [vmem:[%s2 + $0x80] sm:$0xf]
      %v5377 = vld [vmem:[%s2 + $0x84] sm:$0xf]
      %v5378 = vld [vmem:[%s2 + $0x88] sm:$0xf]
      %v5379 = vld [vmem:[%s2 + $0x8c] sm:$0xf]
      %v5380 = vld [vmem:[%s2 + $0x90] sm:$0xf]
      %v5381 = vld [vmem:[%s2 + $0x94] sm:$0xf]
      %v5382 = vld [vmem:[%s2 + $0x98] sm:$0xf]
      %v5383 = vld [vmem:[%s2 + $0x9c] sm:$0xf]
      %v5384 = vld [vmem:[%s2 + $0xa0] sm:$0xf]
      %v5385 = vld [vmem:[%s2 + $0xa4] sm:$0xf]
      %v5386 = vld [vmem:[%s2 + $0xa8] sm:$0xf]
      %v5387 = vld [vmem:[%s2 + $0xac] sm:$0xf]
      %v5388 = vld [vmem:[%s2 + $0xb0] sm:$0xf]
      %v5389 = vld [vmem:[%s2 + $0xb4] sm:$0xf]
      %v5390 = vld [vmem:[%s2 + $0xb8] sm:$0xf]
      %v5391 = vld [vmem:[%s2 + $0xbc] sm:$0xf]
      %v5392 = vld [vmem:[%s2 + $0xc0] sm:$0xf]
      %v5393 = vld [vmem:[%s2 + $0xc4] sm:$0xf]
      %v5394 = vld [vmem:[%s2 + $0xc8] sm:$0xf]
      %v5395 = vld [vmem:[%s2 + $0xcc] sm:$0xf]
      %v5396 = vld [vmem:[%s2 + $0xd0] sm:$0xf]
      %v5397 = vld [vmem:[%s2 + $0xd4] sm:$0xf]
      %v5398 = vld [vmem:[%s2 + $0xd8] sm:$0xf]
      %v5399 = vld [vmem:[%s2 + $0xdc] sm:$0xf]
      %v5400 = vld [vmem:[%s2 + $0xe0] sm:$0xf]
      %v5401 = vld [vmem:[%s2 + $0xe4] sm:$0xf]
      %v5402 = vld [vmem:[%s2 + $0xe8] sm:$0xf]
      %v5403 = vld [vmem:[%s2 + $0xec] sm:$0xf]
      %v5404 = vld [vmem:[%s2 + $0xf0] sm:$0xf]
      %v5405 = vld [vmem:[%s2 + $0xf4] sm:$0xf]
      %v5406 = vld [vmem:[%s2 + $0xf8] sm:$0xf]
      %v5407 = vld [vmem:[%s2 + $0xfc] sm:$0xf]
      %v5408 = vld [vmem:[%s2 + $0x100] sm:$0xf]
      %v5409 = vld [vmem:[%s2 + $0x104] sm:$0xf]
      %v5410 = vld [vmem:[%s2 + $0x108] sm:$0xf]
      %v5411 = vld [vmem:[%s2 + $0x10c] sm:$0xf]
      %v5412 = vld [vmem:[%s2 + $0x110] sm:$0xf]
      %v5413 = vld [vmem:[%s2 + $0x114] sm:$0xf]
      %v5414 = vld [vmem:[%s2 + $0x118] sm:$0xf]
      %v5415 = vld [vmem:[%s2 + $0x11c] sm:$0xf]
      %v5524 = vunpack.c.l.b16 %v5236
      %v5525 = vunpack.c.h.b16 %v5236
      %v5526 = vunpack.c.l.b16 %v5237
      %v5527 = vunpack.c.h.b16 %v5237
      %v5528 = vunpack.c.l.b16 %v5238
      %v5529 = vunpack.c.l.b16 %v5239
      %v5530 = vunpack.c.h.b16 %v5239
      %v5531 = vunpack.c.l.b16 %v5240
      %v5532 = vunpack.c.h.b16 %v5240
      %v5533 = vunpack.c.l.b16 %v5241
      %v5534 = vunpack.c.l.b16 %v5242
      %v5535 = vunpack.c.h.b16 %v5242
      %v5536 = vunpack.c.l.b16 %v5243
      %v5537 = vunpack.c.h.b16 %v5243
      %v5538 = vunpack.c.l.b16 %v5244
      %v5539 = vunpack.c.l.b16 %v5245
      %v5540 = vunpack.c.h.b16 %v5245
      %v5541 = vunpack.c.l.b16 %v5246
      %v5542 = vunpack.c.h.b16 %v5246
      %v5543 = vunpack.c.l.b16 %v5247
      %v5544 = vunpack.c.l.b16 %v5248
      %v5545 = vunpack.c.h.b16 %v5248
      %v5546 = vunpack.c.l.b16 %v5249
      %v5547 = vunpack.c.h.b16 %v5249
      %v5548 = vunpack.c.l.b16 %v5250
      %v5549 = vunpack.c.l.b16 %v5251
      %v5550 = vunpack.c.h.b16 %v5251
      %v5551 = vunpack.c.l.b16 %v5252
      %v5552 = vunpack.c.h.b16 %v5252
      %v5553 = vunpack.c.l.b16 %v5253
      %v5554 = vunpack.c.l.b16 %v5254
      %v5555 = vunpack.c.h.b16 %v5254
      %v5556 = vunpack.c.l.b16 %v5255
      %v5557 = vunpack.c.h.b16 %v5255
      %v5558 = vunpack.c.l.b16 %v5256
      %v5559 = vunpack.c.l.b16 %v5257
      %v5560 = vunpack.c.h.b16 %v5257
      %v5561 = vunpack.c.l.b16 %v5258
      %v5562 = vunpack.c.h.b16 %v5258
      %v5563 = vunpack.c.l.b16 %v5259
      %v5564 = vunpack.c.l.b16 %v5260
      %v5565 = vunpack.c.h.b16 %v5260
      %v5566 = vunpack.c.l.b16 %v5261
      %v5567 = vunpack.c.h.b16 %v5261
      %v5568 = vunpack.c.l.b16 %v5262
      %v5569 = vunpack.c.l.b16 %v5263
      %v5570 = vunpack.c.h.b16 %v5263
      %v5571 = vunpack.c.l.b16 %v5264
      %v5572 = vunpack.c.h.b16 %v5264
      %v5573 = vunpack.c.l.b16 %v5265
      %v5574 = vunpack.c.l.b16 %v5266
      %v5575 = vunpack.c.h.b16 %v5266
      %v5576 = vunpack.c.l.b16 %v5267
      %v5577 = vunpack.c.h.b16 %v5267
      %v5578 = vunpack.c.l.b16 %v5268
      %v5579 = vunpack.c.l.b16 %v5269
      %v5580 = vunpack.c.h.b16 %v5269
      %v5581 = vunpack.c.l.b16 %v5270
      %v5582 = vunpack.c.h.b16 %v5270
      %v5583 = vunpack.c.l.b16 %v5271
      %v5584 = vunpack.c.l.b16 %v5272
      %v5585 = vunpack.c.h.b16 %v5272
      %v5586 = vunpack.c.l.b16 %v5273
      %v5587 = vunpack.c.h.b16 %v5273
      %v5588 = vunpack.c.l.b16 %v5274
      %v5589 = vunpack.c.l.b16 %v5275
      %v5590 = vunpack.c.h.b16 %v5275
      %v5591 = vunpack.c.l.b16 %v5276
      %v5592 = vunpack.c.h.b16 %v5276
      %v5593 = vunpack.c.l.b16 %v5277
      %v5594 = vunpack.c.l.b16 %v5278
      %v5595 = vunpack.c.h.b16 %v5278
      %v5596 = vunpack.c.l.b16 %v5279
      %v5597 = vunpack.c.h.b16 %v5279
      %v5598 = vunpack.c.l.b16 %v5280
      %v5599 = vunpack.c.l.b16 %v5281
      %v5600 = vunpack.c.h.b16 %v5281
      %v5601 = vunpack.c.l.b16 %v5282
      %v5602 = vunpack.c.h.b16 %v5282
      %v5603 = vunpack.c.l.b16 %v5283
      %v5604 = vunpack.c.l.b16 %v5284
      %v5605 = vunpack.c.h.b16 %v5284
      %v5606 = vunpack.c.l.b16 %v5285
      %v5607 = vunpack.c.h.b16 %v5285
      %v5608 = vunpack.c.l.b16 %v5286
      %v5609 = vunpack.c.l.b16 %v5287
      %v5610 = vunpack.c.h.b16 %v5287
      %v5611 = vunpack.c.l.b16 %v5288
      %v5612 = vunpack.c.h.b16 %v5288
      %v5613 = vunpack.c.l.b16 %v5289
      %v5614 = vunpack.c.l.b16 %v5290
      %v5615 = vunpack.c.h.b16 %v5290
      %v5616 = vunpack.c.l.b16 %v5291
      %v5617 = vunpack.c.h.b16 %v5291
      %v5618 = vunpack.c.l.b16 %v5292
      %v5619 = vunpack.c.l.b16 %v5293
      %v5620 = vunpack.c.h.b16 %v5293
      %v5621 = vunpack.c.l.b16 %v5294
      %v5622 = vunpack.c.h.b16 %v5294
      %v5623 = vunpack.c.l.b16 %v5295
      %v5624 = vunpack.c.l.b16 %v5296
      %v5625 = vunpack.c.h.b16 %v5296
      %v5626 = vunpack.c.l.b16 %v5297
      %v5627 = vunpack.c.h.b16 %v5297
      %v5628 = vunpack.c.l.b16 %v5298
      %v5629 = vunpack.c.l.b16 %v5299
      %v5630 = vunpack.c.h.b16 %v5299
      %v5631 = vunpack.c.l.b16 %v5300
      %v5632 = vunpack.c.h.b16 %v5300
      %v5633 = vunpack.c.l.b16 %v5301
      %v5634 = vunpack.c.l.b16 %v5302
      %v5635 = vunpack.c.h.b16 %v5302
      %v5636 = vunpack.c.l.b16 %v5303
      %v5637 = vunpack.c.h.b16 %v5303
      %v5638 = vunpack.c.l.b16 %v5304
      %v5639 = vunpack.c.l.b16 %v5305
      %v5640 = vunpack.c.h.b16 %v5305
      %v5641 = vunpack.c.l.b16 %v5306
      %v5642 = vunpack.c.h.b16 %v5306
      %v5643 = vunpack.c.l.b16 %v5307
      %v5644 = vunpack.c.l.b16 %v5308
      %v5645 = vunpack.c.h.b16 %v5308
      %v5646 = vunpack.c.l.b16 %v5309
      %v5647 = vunpack.c.h.b16 %v5309
      %v5648 = vunpack.c.l.b16 %v5310
      %v5649 = vunpack.c.l.b16 %v5311
      %v5650 = vunpack.c.h.b16 %v5311
      %v5651 = vunpack.c.l.b16 %v5312
      %v5652 = vunpack.c.h.b16 %v5312
      %v5653 = vunpack.c.l.b16 %v5313
      %v5654 = vunpack.c.l.b16 %v5314
      %v5655 = vunpack.c.h.b16 %v5314
      %v5656 = vunpack.c.l.b16 %v5315
      %v5657 = vunpack.c.h.b16 %v5315
      %v5658 = vunpack.c.l.b16 %v5316
      %v5659 = vunpack.c.l.b16 %v5317
      %v5660 = vunpack.c.h.b16 %v5317
      %v5661 = vunpack.c.l.b16 %v5318
      %v5662 = vunpack.c.h.b16 %v5318
      %v5663 = vunpack.c.l.b16 %v5319
      %v5664 = vunpack.c.l.b16 %v5320
      %v5665 = vunpack.c.h.b16 %v5320
      %v5666 = vunpack.c.l.b16 %v5321
      %v5667 = vunpack.c.h.b16 %v5321
      %v5668 = vunpack.c.l.b16 %v5322
      %v5669 = vunpack.c.l.b16 %v5323
      %v5670 = vunpack.c.h.b16 %v5323
      %v5671 = vunpack.c.l.b16 %v5324
      %v5672 = vunpack.c.h.b16 %v5324
      %v5673 = vunpack.c.l.b16 %v5325
      %v5674 = vunpack.c.l.b16 %v5326
      %v5675 = vunpack.c.h.b16 %v5326
      %v5676 = vunpack.c.l.b16 %v5327
      %v5677 = vunpack.c.h.b16 %v5327
      %v5678 = vunpack.c.l.b16 %v5328
      %v5679 = vunpack.c.l.b16 %v5329
      %v5680 = vunpack.c.h.b16 %v5329
      %v5681 = vunpack.c.l.b16 %v5330
      %v5682 = vunpack.c.h.b16 %v5330
      %v5683 = vunpack.c.l.b16 %v5331
      %v5684 = vunpack.c.l.b16 %v5332
      %v5685 = vunpack.c.h.b16 %v5332
      %v5686 = vunpack.c.l.b16 %v5333
      %v5687 = vunpack.c.h.b16 %v5333
      %v5688 = vunpack.c.l.b16 %v5334
      %v5689 = vunpack.c.l.b16 %v5335
      %v5690 = vunpack.c.h.b16 %v5335
      %v5691 = vunpack.c.l.b16 %v5336
      %v5692 = vunpack.c.h.b16 %v5336
      %v5693 = vunpack.c.l.b16 %v5337
      %v5694 = vunpack.c.l.b16 %v5338
      %v5695 = vunpack.c.h.b16 %v5338
      %v5696 = vunpack.c.l.b16 %v5339
      %v5697 = vunpack.c.h.b16 %v5339
      %v5698 = vunpack.c.l.b16 %v5340
      %v5699 = vunpack.c.l.b16 %v5341
      %v5700 = vunpack.c.h.b16 %v5341
      %v5701 = vunpack.c.l.b16 %v5342
      %v5702 = vunpack.c.h.b16 %v5342
      %v5703 = vunpack.c.l.b16 %v5343
      %v5704 = vpack.c.b16 %v5529, %v5524
      %v5705 = vpack.c.b16 %v5530, %v5525
      %v5706 = vpack.c.b16 %v5531, %v5526
      %v5707 = vpack.c.b16 %v5532, %v5527
      %v5708 = vpack.c.b16 %v5533, %v5528
      %v5709 = vpack.c.b16 %v5539, %v5534
      %v5710 = vpack.c.b16 %v5540, %v5535
      %v5711 = vpack.c.b16 %v5541, %v5536
      %v5712 = vpack.c.b16 %v5542, %v5537
      %v5713 = vpack.c.b16 %v5543, %v5538
      %v5714 = vpack.c.b16 %v5549, %v5544
      %v5715 = vpack.c.b16 %v5550, %v5545
      %v5716 = vpack.c.b16 %v5551, %v5546
      %v5717 = vpack.c.b16 %v5552, %v5547
      %v5718 = vpack.c.b16 %v5553, %v5548
      %v5719 = vpack.c.b16 %v5559, %v5554
      %v5720 = vpack.c.b16 %v5560, %v5555
      %v5721 = vpack.c.b16 %v5561, %v5556
      %v5722 = vpack.c.b16 %v5562, %v5557
      %v5723 = vpack.c.b16 %v5563, %v5558
      %v5724 = vpack.c.b16 %v5569, %v5564
      %v5725 = vpack.c.b16 %v5570, %v5565
      %v5726 = vpack.c.b16 %v5571, %v5566
      %v5727 = vpack.c.b16 %v5572, %v5567
      %v5728 = vpack.c.b16 %v5573, %v5568
      %v5729 = vpack.c.b16 %v5579, %v5574
      %v5730 = vpack.c.b16 %v5580, %v5575
      %v5731 = vpack.c.b16 %v5581, %v5576
      %v5732 = vpack.c.b16 %v5582, %v5577
      %v5733 = vpack.c.b16 %v5583, %v5578
      %v5734 = vpack.c.b16 %v5589, %v5584
      %v5735 = vpack.c.b16 %v5590, %v5585
      %v5736 = vpack.c.b16 %v5591, %v5586
      %v5737 = vpack.c.b16 %v5592, %v5587
      %v5738 = vpack.c.b16 %v5593, %v5588
      %v5739 = vpack.c.b16 %v5599, %v5594
      %v5740 = vpack.c.b16 %v5600, %v5595
      %v5741 = vpack.c.b16 %v5601, %v5596
      %v5742 = vpack.c.b16 %v5602, %v5597
      %v5743 = vpack.c.b16 %v5603, %v5598
      %v5744 = vpack.c.b16 %v5609, %v5604
      %v5745 = vpack.c.b16 %v5610, %v5605
      %v5746 = vpack.c.b16 %v5611, %v5606
      %v5747 = vpack.c.b16 %v5612, %v5607
      %v5748 = vpack.c.b16 %v5613, %v5608
      %v5749 = vpack.c.b16 %v5619, %v5614
      %v5750 = vpack.c.b16 %v5620, %v5615
      %v5751 = vpack.c.b16 %v5621, %v5616
      %v5752 = vpack.c.b16 %v5622, %v5617
      %v5753 = vpack.c.b16 %v5623, %v5618
      %v5754 = vpack.c.b16 %v5629, %v5624
      %v5755 = vpack.c.b16 %v5630, %v5625
      %v5756 = vpack.c.b16 %v5631, %v5626
      %v5757 = vpack.c.b16 %v5632, %v5627
      %v5758 = vpack.c.b16 %v5633, %v5628
      %v5759 = vpack.c.b16 %v5639, %v5634
      %v5760 = vpack.c.b16 %v5640, %v5635
      %v5761 = vpack.c.b16 %v5641, %v5636
      %v5762 = vpack.c.b16 %v5642, %v5637
      %v5763 = vpack.c.b16 %v5643, %v5638
      %v5764 = vpack.c.b16 %v5649, %v5644
      %v5765 = vpack.c.b16 %v5650, %v5645
      %v5766 = vpack.c.b16 %v5651, %v5646
      %v5767 = vpack.c.b16 %v5652, %v5647
      %v5768 = vpack.c.b16 %v5653, %v5648
      %v5769 = vpack.c.b16 %v5659, %v5654
      %v5770 = vpack.c.b16 %v5660, %v5655
      %v5771 = vpack.c.b16 %v5661, %v5656
      %v5772 = vpack.c.b16 %v5662, %v5657
      %v5773 = vpack.c.b16 %v5663, %v5658
      %v5774 = vpack.c.b16 %v5669, %v5664
      %v5775 = vpack.c.b16 %v5670, %v5665
      %v5776 = vpack.c.b16 %v5671, %v5666
      %v5777 = vpack.c.b16 %v5672, %v5667
      %v5778 = vpack.c.b16 %v5673, %v5668
      %v5779 = vpack.c.b16 %v5679, %v5674
      %v5780 = vpack.c.b16 %v5680, %v5675
      %v5781 = vpack.c.b16 %v5681, %v5676
      %v5782 = vpack.c.b16 %v5682, %v5677
      %v5783 = vpack.c.b16 %v5683, %v5678
      %v5784 = vpack.c.b16 %v5689, %v5684
      %v5785 = vpack.c.b16 %v5690, %v5685
      %v5786 = vpack.c.b16 %v5691, %v5686
      %v5787 = vpack.c.b16 %v5692, %v5687
      %v5788 = vpack.c.b16 %v5693, %v5688
      %v5789 = vpack.c.b16 %v5699, %v5694
      %v5790 = vpack.c.b16 %v5700, %v5695
      %v5791 = vpack.c.b16 %v5701, %v5696
      %v5792 = vpack.c.b16 %v5702, %v5697
      %v5793 = vpack.c.b16 %v5703, %v5698
      %v5938 = vunpack.c.l.b16 %v5344
      %v5939 = vunpack.c.l.b16 %v5345
      %v5940 = vunpack.c.l.b16 %v5346
      %v5941 = vunpack.c.l.b16 %v5347
      %v5942 = vunpack.c.l.b16 %v5348
      %v5943 = vunpack.c.l.b16 %v5349
      %v5944 = vunpack.c.l.b16 %v5350
      %v5945 = vunpack.c.l.b16 %v5351
      %v5946 = vunpack.c.l.b16 %v5352
      %v5947 = vunpack.c.l.b16 %v5353
      %v5948 = vunpack.c.l.b16 %v5354
      %v5949 = vunpack.c.l.b16 %v5355
      %v5950 = vunpack.c.l.b16 %v5356
      %v5951 = vunpack.c.l.b16 %v5357
      %v5952 = vunpack.c.l.b16 %v5358
      %v5953 = vunpack.c.l.b16 %v5359
      %v5954 = vunpack.c.l.b16 %v5360
      %v5955 = vunpack.c.l.b16 %v5361
      %v5956 = vunpack.c.l.b16 %v5362
      %v5957 = vunpack.c.l.b16 %v5363
      %v5958 = vunpack.c.l.b16 %v5364
      %v5959 = vunpack.c.l.b16 %v5365
      %v5960 = vunpack.c.l.b16 %v5366
      %v5961 = vunpack.c.l.b16 %v5367
      %v5962 = vunpack.c.l.b16 %v5368
      %v5963 = vunpack.c.l.b16 %v5369
      %v5964 = vunpack.c.l.b16 %v5370
      %v5965 = vunpack.c.l.b16 %v5371
      %v5966 = vunpack.c.l.b16 %v5372
      %v5967 = vunpack.c.l.b16 %v5373
      %v5968 = vunpack.c.l.b16 %v5374
      %v5969 = vunpack.c.l.b16 %v5375
      %v5970 = vunpack.c.l.b16 %v5376
      %v5971 = vunpack.c.l.b16 %v5377
      %v5972 = vunpack.c.l.b16 %v5378
      %v5973 = vunpack.c.l.b16 %v5379
      %v5974 = vunpack.c.l.b16 %v5380
      %v5975 = vunpack.c.l.b16 %v5381
      %v5976 = vunpack.c.l.b16 %v5382
      %v5977 = vunpack.c.l.b16 %v5383
      %v5978 = vunpack.c.l.b16 %v5384
      %v5979 = vunpack.c.l.b16 %v5385
      %v5980 = vunpack.c.l.b16 %v5386
      %v5981 = vunpack.c.l.b16 %v5387
      %v5982 = vunpack.c.l.b16 %v5388
      %v5983 = vunpack.c.l.b16 %v5389
      %v5984 = vunpack.c.l.b16 %v5390
      %v5985 = vunpack.c.l.b16 %v5391
      %v5986 = vunpack.c.l.b16 %v5392
      %v5987 = vunpack.c.l.b16 %v5393
      %v5988 = vunpack.c.l.b16 %v5394
      %v5989 = vunpack.c.l.b16 %v5395
      %v5990 = vunpack.c.l.b16 %v5396
      %v5991 = vunpack.c.l.b16 %v5397
      %v5992 = vunpack.c.l.b16 %v5398
      %v5993 = vunpack.c.l.b16 %v5399
      %v5994 = vunpack.c.l.b16 %v5400
      %v5995 = vunpack.c.l.b16 %v5401
      %v5996 = vunpack.c.l.b16 %v5402
      %v5997 = vunpack.c.l.b16 %v5403
      %v5998 = vunpack.c.l.b16 %v5404
      %v5999 = vunpack.c.l.b16 %v5405
      %v6000 = vunpack.c.l.b16 %v5406
      %v6001 = vunpack.c.l.b16 %v5407
      %v6002 = vunpack.c.l.b16 %v5408
      %v6003 = vunpack.c.l.b16 %v5409
      %v6004 = vunpack.c.l.b16 %v5410
      %v6005 = vunpack.c.l.b16 %v5411
      %v6006 = vunpack.c.l.b16 %v5412
      %v6007 = vunpack.c.l.b16 %v5413
      %v6008 = vunpack.c.l.b16 %v5414
      %v6009 = vunpack.c.l.b16 %v5415
      %v6010 = vpack.c.b16 %v5939, %v5938
      %v6011 = vpack.c.b16 %v5941, %v5940
      %v6012 = vpack.c.b16 %v5943, %v5942
      %v6013 = vpack.c.b16 %v5945, %v5944
      %v6014 = vpack.c.b16 %v5947, %v5946
      %v6015 = vpack.c.b16 %v5949, %v5948
      %v6016 = vpack.c.b16 %v5951, %v5950
      %v6017 = vpack.c.b16 %v5953, %v5952
      %v6018 = vpack.c.b16 %v5955, %v5954
      %v6019 = vpack.c.b16 %v5957, %v5956
      %v6020 = vpack.c.b16 %v5959, %v5958
      %v6021 = vpack.c.b16 %v5961, %v5960
      %v6022 = vpack.c.b16 %v5963, %v5962
      %v6023 = vpack.c.b16 %v5965, %v5964
      %v6024 = vpack.c.b16 %v5967, %v5966
      %v6025 = vpack.c.b16 %v5969, %v5968
      %v6026 = vpack.c.b16 %v5971, %v5970
      %v6027 = vpack.c.b16 %v5973, %v5972
      %v6028 = vpack.c.b16 %v5975, %v5974
      %v6029 = vpack.c.b16 %v5977, %v5976
      %v6030 = vpack.c.b16 %v5979, %v5978
      %v6031 = vpack.c.b16 %v5981, %v5980
      %v6032 = vpack.c.b16 %v5983, %v5982
      %v6033 = vpack.c.b16 %v5985, %v5984
      %v6034 = vpack.c.b16 %v5987, %v5986
      %v6035 = vpack.c.b16 %v5989, %v5988
      %v6036 = vpack.c.b16 %v5991, %v5990
      %v6037 = vpack.c.b16 %v5993, %v5992
      %v6038 = vpack.c.b16 %v5995, %v5994
      %v6039 = vpack.c.b16 %v5997, %v5996
      %v6040 = vpack.c.b16 %v5999, %v5998
      %v6041 = vpack.c.b16 %v6001, %v6000
      %v6042 = vpack.c.b16 %v6003, %v6002
      %v6043 = vpack.c.b16 %v6005, %v6004
      %v6044 = vpack.c.b16 %v6007, %v6006
      %v6045 = vpack.c.b16 %v6009, %v6008
      %v6083 = vsel %vm2625, %v5708, 0
      %v6086 = vsel %vm2625, %v5713, 0
      %v6089 = vsel %vm2625, %v5718, 0
      %v6092 = vsel %vm2625, %v5723, 0
      %v6095 = vsel %vm2625, %v5728, 0
      %v6098 = vsel %vm2625, %v5733, 0
      %v6101 = vsel %vm2625, %v5738, 0
      %v6104 = vsel %vm2625, %v5743, 0
      %v6107 = vsel %vm2625, %v5748, 0
      %v6110 = vsel %vm2625, %v5753, 0
      %v6113 = vsel %vm2625, %v5758, 0
      %v6116 = vsel %vm2625, %v5763, 0
      %v6119 = vsel %vm2625, %v5768, 0
      %v6122 = vsel %vm2625, %v5773, 0
      %v6125 = vsel %vm2625, %v5778, 0
      %v6128 = vsel %vm2625, %v5783, 0
      %v6131 = vsel %vm2625, %v5788, 0
      %v6134 = vsel %vm2625, %v5793, 0
      %6136 = vmatpush.bf16.msra.mxu0 %v6017
      %6137 = vmatpush.bf16.msra.mxu0 %v6016
      %6138 = vmatpush.bf16.msra.mxu0 %v6015
      %6139 = vmatpush.bf16.msra.mxu0 %v6014
      %6140 = vmatpush.bf16.msra.mxu0 %v6013
      %6141 = vmatpush.bf16.msra.mxu0 %v6012
      %6142 = vmatpush.bf16.msra.mxu0 %v6011
      %6143 = vmatpush.bf16.msra.mxu0 %v6010
      %6144 = vmatmul.bf16.gmra.mxu0 %v5704
      %v6145 = vpop.f32.mrf.mxu0
      %v6146 = vadd.f32 0.0, %v6145
      %v6147 = vpop.f32.mrf.mxu0
      %v6148 = vadd.f32 0.0, %v6147
      %6149 = vmatmul.bf16.gmra.mxu0 %v5709
      %v6150 = vpop.f32.mrf.mxu0
      %v6151 = vadd.f32 0.0, %v6150
      %v6152 = vpop.f32.mrf.mxu0
      %v6153 = vadd.f32 0.0, %v6152
      %6154 = vmatmul.bf16.gmra.mxu0 %v5714
      %v6155 = vpop.f32.mrf.mxu0
      %v6156 = vadd.f32 0.0, %v6155
      %v6157 = vpop.f32.mrf.mxu0
      %v6158 = vadd.f32 0.0, %v6157
      %6159 = vmatmul.bf16.gmra.mxu0 %v5719
      %v6160 = vpop.f32.mrf.mxu0
      %v6161 = vadd.f32 0.0, %v6160
      %v6162 = vpop.f32.mrf.mxu0
      %v6163 = vadd.f32 0.0, %v6162
      %6164 = vmatmul.bf16.gmra.mxu0 %v5724
      %v6165 = vpop.f32.mrf.mxu0
      %v6166 = vadd.f32 0.0, %v6165
      %v6167 = vpop.f32.mrf.mxu0
      %v6168 = vadd.f32 0.0, %v6167
      %6169 = vmatmul.bf16.gmra.mxu0 %v5729
      %v6170 = vpop.f32.mrf.mxu0
      %v6171 = vadd.f32 0.0, %v6170
      %v6172 = vpop.f32.mrf.mxu0
      %v6173 = vadd.f32 0.0, %v6172
      %6174 = vmatmul.bf16.gmra.mxu0 %v5734
      %v6175 = vpop.f32.mrf.mxu0
      %v6176 = vadd.f32 0.0, %v6175
      %v6177 = vpop.f32.mrf.mxu0
      %v6178 = vadd.f32 0.0, %v6177
      %6179 = vmatmul.bf16.gmra.mxu0 %v5739
      %v6180 = vpop.f32.mrf.mxu0
      %v6181 = vadd.f32 0.0, %v6180
      %v6182 = vpop.f32.mrf.mxu0
      %v6183 = vadd.f32 0.0, %v6182
      %6184 = vmatmul.bf16.gmra.mxu0 %v5744
      %v6185 = vpop.f32.mrf.mxu0
      %v6186 = vadd.f32 0.0, %v6185
      %v6187 = vpop.f32.mrf.mxu0
      %v6188 = vadd.f32 0.0, %v6187
      %6189 = vmatmul.bf16.gmra.mxu0 %v5749
      %v6190 = vpop.f32.mrf.mxu0
      %v6191 = vadd.f32 0.0, %v6190
      %v6192 = vpop.f32.mrf.mxu0
      %v6193 = vadd.f32 0.0, %v6192
      %6194 = vmatmul.bf16.gmra.mxu0 %v5754
      %v6195 = vpop.f32.mrf.mxu0
      %v6196 = vadd.f32 0.0, %v6195
      %v6197 = vpop.f32.mrf.mxu0
      %v6198 = vadd.f32 0.0, %v6197
      %6199 = vmatmul.bf16.gmra.mxu0 %v5759
      %v6200 = vpop.f32.mrf.mxu0
      %v6201 = vadd.f32 0.0, %v6200
      %v6202 = vpop.f32.mrf.mxu0
      %v6203 = vadd.f32 0.0, %v6202
      %6204 = vmatmul.bf16.gmra.mxu0 %v5764
      %v6205 = vpop.f32.mrf.mxu0
      %v6206 = vadd.f32 0.0, %v6205
      %v6207 = vpop.f32.mrf.mxu0
      %v6208 = vadd.f32 0.0, %v6207
      %6209 = vmatmul.bf16.gmra.mxu0 %v5769
      %v6210 = vpop.f32.mrf.mxu0
      %v6211 = vadd.f32 0.0, %v6210
      %v6212 = vpop.f32.mrf.mxu0
      %v6213 = vadd.f32 0.0, %v6212
      %6214 = vmatmul.bf16.gmra.mxu0 %v5774
      %v6215 = vpop.f32.mrf.mxu0
      %v6216 = vadd.f32 0.0, %v6215
      %v6217 = vpop.f32.mrf.mxu0
      %v6218 = vadd.f32 0.0, %v6217
      %6219 = vmatmul.bf16.gmra.mxu0 %v5779
      %v6220 = vpop.f32.mrf.mxu0
      %v6221 = vadd.f32 0.0, %v6220
      %v6222 = vpop.f32.mrf.mxu0
      %v6223 = vadd.f32 0.0, %v6222
      %6224 = vmatmul.bf16.gmra.mxu0 %v5784
      %v6225 = vpop.f32.mrf.mxu0
      %v6226 = vadd.f32 0.0, %v6225
      %v6227 = vpop.f32.mrf.mxu0
      %v6228 = vadd.f32 0.0, %v6227
      %6229 = vmatmul.bf16.gmra.mxu0 %v5789
      %v6230 = vpop.f32.mrf.mxu0
      %v6231 = vadd.f32 0.0, %v6230
      %v6232 = vpop.f32.mrf.mxu0
      %v6233 = vadd.f32 0.0, %v6232
      %6234 = vdwg.mxu0
      %6235 = vmatpush.bf16.msra.mxu0 %v6025
      %6236 = vmatpush.bf16.msra.mxu0 %v6024
      %6237 = vmatpush.bf16.msra.mxu0 %v6023
      %6238 = vmatpush.bf16.msra.mxu0 %v6022
      %6239 = vmatpush.bf16.msra.mxu0 %v6021
      %6240 = vmatpush.bf16.msra.mxu0 %v6020
      %6241 = vmatpush.bf16.msra.mxu0 %v6019
      %6242 = vmatpush.bf16.msra.mxu0 %v6018
      %6243 = vmatmul.bf16.gmra.mxu0 %v5705
      %v6244 = vpop.f32.mrf.mxu0
      %v6245 = vadd.f32 %v6146, %v6244
      %v6246 = vpop.f32.mrf.mxu0
      %v6247 = vadd.f32 %v6148, %v6246
      %6248 = vmatmul.bf16.gmra.mxu0 %v5710
      %v6249 = vpop.f32.mrf.mxu0
      %v6250 = vadd.f32 %v6151, %v6249
      %v6251 = vpop.f32.mrf.mxu0
      %v6252 = vadd.f32 %v6153, %v6251
      %6253 = vmatmul.bf16.gmra.mxu0 %v5715
      %v6254 = vpop.f32.mrf.mxu0
      %v6255 = vadd.f32 %v6156, %v6254
      %v6256 = vpop.f32.mrf.mxu0
      %v6257 = vadd.f32 %v6158, %v6256
      %6258 = vmatmul.bf16.gmra.mxu0 %v5720
      %v6259 = vpop.f32.mrf.mxu0
      %v6260 = vadd.f32 %v6161, %v6259
      %v6261 = vpop.f32.mrf.mxu0
      %v6262 = vadd.f32 %v6163, %v6261
      %6263 = vmatmul.bf16.gmra.mxu0 %v5725
      %v6264 = vpop.f32.mrf.mxu0
      %v6265 = vadd.f32 %v6166, %v6264
      %v6266 = vpop.f32.mrf.mxu0
      %v6267 = vadd.f32 %v6168, %v6266
      %6268 = vmatmul.bf16.gmra.mxu0 %v5730
      %v6269 = vpop.f32.mrf.mxu0
      %v6270 = vadd.f32 %v6171, %v6269
      %v6271 = vpop.f32.mrf.mxu0
      %v6272 = vadd.f32 %v6173, %v6271
      %6273 = vmatmul.bf16.gmra.mxu0 %v5735
      %v6274 = vpop.f32.mrf.mxu0
      %v6275 = vadd.f32 %v6176, %v6274
      %v6276 = vpop.f32.mrf.mxu0
      %v6277 = vadd.f32 %v6178, %v6276
      %6278 = vmatmul.bf16.gmra.mxu0 %v5740
      %v6279 = vpop.f32.mrf.mxu0
      %v6280 = vadd.f32 %v6181, %v6279
      %v6281 = vpop.f32.mrf.mxu0
      %v6282 = vadd.f32 %v6183, %v6281
      %6283 = vmatmul.bf16.gmra.mxu0 %v5745
      %v6284 = vpop.f32.mrf.mxu0
      %v6285 = vadd.f32 %v6186, %v6284
      %v6286 = vpop.f32.mrf.mxu0
      %v6287 = vadd.f32 %v6188, %v6286
      %6288 = vmatmul.bf16.gmra.mxu0 %v5750
      %v6289 = vpop.f32.mrf.mxu0
      %v6290 = vadd.f32 %v6191, %v6289
      %v6291 = vpop.f32.mrf.mxu0
      %v6292 = vadd.f32 %v6193, %v6291
      %6293 = vmatmul.bf16.gmra.mxu0 %v5755
      %v6294 = vpop.f32.mrf.mxu0
      %v6295 = vadd.f32 %v6196, %v6294
      %v6296 = vpop.f32.mrf.mxu0
      %v6297 = vadd.f32 %v6198, %v6296
      %6298 = vmatmul.bf16.gmra.mxu0 %v5760
      %v6299 = vpop.f32.mrf.mxu0
      %v6300 = vadd.f32 %v6201, %v6299
      %v6301 = vpop.f32.mrf.mxu0
      %v6302 = vadd.f32 %v6203, %v6301
      %6303 = vmatmul.bf16.gmra.mxu0 %v5765
      %v6304 = vpop.f32.mrf.mxu0
      %v6305 = vadd.f32 %v6206, %v6304
      %v6306 = vpop.f32.mrf.mxu0
      %v6307 = vadd.f32 %v6208, %v6306
      %6308 = vmatmul.bf16.gmra.mxu0 %v5770
      %v6309 = vpop.f32.mrf.mxu0
      %v6310 = vadd.f32 %v6211, %v6309
      %v6311 = vpop.f32.mrf.mxu0
      %v6312 = vadd.f32 %v6213, %v6311
      %6313 = vmatmul.bf16.gmra.mxu0 %v5775
      %v6314 = vpop.f32.mrf.mxu0
      %v6315 = vadd.f32 %v6216, %v6314
      %v6316 = vpop.f32.mrf.mxu0
      %v6317 = vadd.f32 %v6218, %v6316
      %6318 = vmatmul.bf16.gmra.mxu0 %v5780
      %v6319 = vpop.f32.mrf.mxu0
      %v6320 = vadd.f32 %v6221, %v6319
      %v6321 = vpop.f32.mrf.mxu0
      %v6322 = vadd.f32 %v6223, %v6321
      %6323 = vmatmul.bf16.gmra.mxu0 %v5785
      %v6324 = vpop.f32.mrf.mxu0
      %v6325 = vadd.f32 %v6226, %v6324
      %v6326 = vpop.f32.mrf.mxu0
      %v6327 = vadd.f32 %v6228, %v6326
      %6328 = vmatmul.bf16.gmra.mxu0 %v5790
      %v6329 = vpop.f32.mrf.mxu0
      %v6330 = vadd.f32 %v6231, %v6329
      %v6331 = vpop.f32.mrf.mxu0
      %v6332 = vadd.f32 %v6233, %v6331
      %6333 = vdwg.mxu0
      %6334 = vmatpush.bf16.msra.mxu0 %v6033
      %6335 = vmatpush.bf16.msra.mxu0 %v6032
      %6336 = vmatpush.bf16.msra.mxu0 %v6031
      %6337 = vmatpush.bf16.msra.mxu0 %v6030
      %6338 = vmatpush.bf16.msra.mxu0 %v6029
      %6339 = vmatpush.bf16.msra.mxu0 %v6028
      %6340 = vmatpush.bf16.msra.mxu0 %v6027
      %6341 = vmatpush.bf16.msra.mxu0 %v6026
      %6342 = vmatmul.bf16.gmra.mxu0 %v5706
      %v6343 = vpop.f32.mrf.mxu0
      %v6344 = vadd.f32 %v6245, %v6343
      %v6345 = vpop.f32.mrf.mxu0
      %v6346 = vadd.f32 %v6247, %v6345
      %6347 = vmatmul.bf16.gmra.mxu0 %v5711
      %v6348 = vpop.f32.mrf.mxu0
      %v6349 = vadd.f32 %v6250, %v6348
      %v6350 = vpop.f32.mrf.mxu0
      %v6351 = vadd.f32 %v6252, %v6350
      %6352 = vmatmul.bf16.gmra.mxu0 %v5716
      %v6353 = vpop.f32.mrf.mxu0
      %v6354 = vadd.f32 %v6255, %v6353
      %v6355 = vpop.f32.mrf.mxu0
      %v6356 = vadd.f32 %v6257, %v6355
      %6357 = vmatmul.bf16.gmra.mxu0 %v5721
      %v6358 = vpop.f32.mrf.mxu0
      %v6359 = vadd.f32 %v6260, %v6358
      %v6360 = vpop.f32.mrf.mxu0
      %v6361 = vadd.f32 %v6262, %v6360
      %6362 = vmatmul.bf16.gmra.mxu0 %v5726
      %v6363 = vpop.f32.mrf.mxu0
      %v6364 = vadd.f32 %v6265, %v6363
      %v6365 = vpop.f32.mrf.mxu0
      %v6366 = vadd.f32 %v6267, %v6365
      %6367 = vmatmul.bf16.gmra.mxu0 %v5731
      %v6368 = vpop.f32.mrf.mxu0
      %v6369 = vadd.f32 %v6270, %v6368
      %v6370 = vpop.f32.mrf.mxu0
      %v6371 = vadd.f32 %v6272, %v6370
      %6372 = vmatmul.bf16.gmra.mxu0 %v5736
      %v6373 = vpop.f32.mrf.mxu0
      %v6374 = vadd.f32 %v6275, %v6373
      %v6375 = vpop.f32.mrf.mxu0
      %v6376 = vadd.f32 %v6277, %v6375
      %6377 = vmatmul.bf16.gmra.mxu0 %v5741
      %v6378 = vpop.f32.mrf.mxu0
      %v6379 = vadd.f32 %v6280, %v6378
      %v6380 = vpop.f32.mrf.mxu0
      %v6381 = vadd.f32 %v6282, %v6380
      %6382 = vmatmul.bf16.gmra.mxu0 %v5746
      %v6383 = vpop.f32.mrf.mxu0
      %v6384 = vadd.f32 %v6285, %v6383
      %v6385 = vpop.f32.mrf.mxu0
      %v6386 = vadd.f32 %v6287, %v6385
      %6387 = vmatmul.bf16.gmra.mxu0 %v5751
      %v6388 = vpop.f32.mrf.mxu0
      %v6389 = vadd.f32 %v6290, %v6388
      %v6390 = vpop.f32.mrf.mxu0
      %v6391 = vadd.f32 %v6292, %v6390
      %6392 = vmatmul.bf16.gmra.mxu0 %v5756
      %v6393 = vpop.f32.mrf.mxu0
      %v6394 = vadd.f32 %v6295, %v6393
      %v6395 = vpop.f32.mrf.mxu0
      %v6396 = vadd.f32 %v6297, %v6395
      %6397 = vmatmul.bf16.gmra.mxu0 %v5761
      %v6398 = vpop.f32.mrf.mxu0
      %v6399 = vadd.f32 %v6300, %v6398
      %v6400 = vpop.f32.mrf.mxu0
      %v6401 = vadd.f32 %v6302, %v6400
      %6402 = vmatmul.bf16.gmra.mxu0 %v5766
      %v6403 = vpop.f32.mrf.mxu0
      %v6404 = vadd.f32 %v6305, %v6403
      %v6405 = vpop.f32.mrf.mxu0
      %v6406 = vadd.f32 %v6307, %v6405
      %6407 = vmatmul.bf16.gmra.mxu0 %v5771
      %v6408 = vpop.f32.mrf.mxu0
      %v6409 = vadd.f32 %v6310, %v6408
      %v6410 = vpop.f32.mrf.mxu0
      %v6411 = vadd.f32 %v6312, %v6410
      %6412 = vmatmul.bf16.gmra.mxu0 %v5776
      %v6413 = vpop.f32.mrf.mxu0
      %v6414 = vadd.f32 %v6315, %v6413
      %v6415 = vpop.f32.mrf.mxu0
      %v6416 = vadd.f32 %v6317, %v6415
      %6417 = vmatmul.bf16.gmra.mxu0 %v5781
      %v6418 = vpop.f32.mrf.mxu0
      %v6419 = vadd.f32 %v6320, %v6418
      %v6420 = vpop.f32.mrf.mxu0
      %v6421 = vadd.f32 %v6322, %v6420
      %6422 = vmatmul.bf16.gmra.mxu0 %v5786
      %v6423 = vpop.f32.mrf.mxu0
      %v6424 = vadd.f32 %v6325, %v6423
      %v6425 = vpop.f32.mrf.mxu0
      %v6426 = vadd.f32 %v6327, %v6425
      %6427 = vmatmul.bf16.gmra.mxu0 %v5791
      %v6428 = vpop.f32.mrf.mxu0
      %v6429 = vadd.f32 %v6330, %v6428
      %v6430 = vpop.f32.mrf.mxu0
      %v6431 = vadd.f32 %v6332, %v6430
      %6432 = vdwg.mxu0
      %6433 = vmatpush.bf16.msra.mxu0 %v6041
      %6434 = vmatpush.bf16.msra.mxu0 %v6040
      %6435 = vmatpush.bf16.msra.mxu0 %v6039
      %6436 = vmatpush.bf16.msra.mxu0 %v6038
      %6437 = vmatpush.bf16.msra.mxu0 %v6037
      %6438 = vmatpush.bf16.msra.mxu0 %v6036
      %6439 = vmatpush.bf16.msra.mxu0 %v6035
      %6440 = vmatpush.bf16.msra.mxu0 %v6034
      %6441 = vmatmul.bf16.gmra.mxu0 %v5707
      %v6442 = vpop.f32.mrf.mxu0
      %v6443 = vadd.f32 %v6344, %v6442
      %v6444 = vpop.f32.mrf.mxu0
      %v6445 = vadd.f32 %v6346, %v6444
      %6446 = vmatmul.bf16.gmra.mxu0 %v5712
      %v6447 = vpop.f32.mrf.mxu0
      %v6448 = vadd.f32 %v6349, %v6447
      %v6449 = vpop.f32.mrf.mxu0
      %v6450 = vadd.f32 %v6351, %v6449
      %6451 = vmatmul.bf16.gmra.mxu0 %v5717
      %v6452 = vpop.f32.mrf.mxu0
      %v6453 = vadd.f32 %v6354, %v6452
      %v6454 = vpop.f32.mrf.mxu0
      %v6455 = vadd.f32 %v6356, %v6454
      %6456 = vmatmul.bf16.gmra.mxu0 %v5722
      %v6457 = vpop.f32.mrf.mxu0
      %v6458 = vadd.f32 %v6359, %v6457
      %v6459 = vpop.f32.mrf.mxu0
      %v6460 = vadd.f32 %v6361, %v6459
      %6461 = vmatmul.bf16.gmra.mxu0 %v5727
      %v6462 = vpop.f32.mrf.mxu0
      %v6463 = vadd.f32 %v6364, %v6462
      %v6464 = vpop.f32.mrf.mxu0
      %v6465 = vadd.f32 %v6366, %v6464
      %6466 = vmatmul.bf16.gmra.mxu0 %v5732
      %v6467 = vpop.f32.mrf.mxu0
      %v6468 = vadd.f32 %v6369, %v6467
      %v6469 = vpop.f32.mrf.mxu0
      %v6470 = vadd.f32 %v6371, %v6469
      %6471 = vmatmul.bf16.gmra.mxu0 %v5737
      %v6472 = vpop.f32.mrf.mxu0
      %v6473 = vadd.f32 %v6374, %v6472
      %v6474 = vpop.f32.mrf.mxu0
      %v6475 = vadd.f32 %v6376, %v6474
      %6476 = vmatmul.bf16.gmra.mxu0 %v5742
      %v6477 = vpop.f32.mrf.mxu0
      %v6478 = vadd.f32 %v6379, %v6477
      %v6479 = vpop.f32.mrf.mxu0
      %v6480 = vadd.f32 %v6381, %v6479
      %6481 = vmatmul.bf16.gmra.mxu0 %v5747
      %v6482 = vpop.f32.mrf.mxu0
      %v6483 = vadd.f32 %v6384, %v6482
      %v6484 = vpop.f32.mrf.mxu0
      %v6485 = vadd.f32 %v6386, %v6484
      %6486 = vmatmul.bf16.gmra.mxu0 %v5752
      %v6487 = vpop.f32.mrf.mxu0
      %v6488 = vadd.f32 %v6389, %v6487
      %v6489 = vpop.f32.mrf.mxu0
      %v6490 = vadd.f32 %v6391, %v6489
      %6491 = vmatmul.bf16.gmra.mxu0 %v5757
      %v6492 = vpop.f32.mrf.mxu0
      %v6493 = vadd.f32 %v6394, %v6492
      %v6494 = vpop.f32.mrf.mxu0
      %v6495 = vadd.f32 %v6396, %v6494
      %6496 = vmatmul.bf16.gmra.mxu0 %v5762
      %v6497 = vpop.f32.mrf.mxu0
      %v6498 = vadd.f32 %v6399, %v6497
      %v6499 = vpop.f32.mrf.mxu0
      %v6500 = vadd.f32 %v6401, %v6499
      %6501 = vmatmul.bf16.gmra.mxu0 %v5767
      %v6502 = vpop.f32.mrf.mxu0
      %v6503 = vadd.f32 %v6404, %v6502
      %v6504 = vpop.f32.mrf.mxu0
      %v6505 = vadd.f32 %v6406, %v6504
      %6506 = vmatmul.bf16.gmra.mxu0 %v5772
      %v6507 = vpop.f32.mrf.mxu0
      %v6508 = vadd.f32 %v6409, %v6507
      %v6509 = vpop.f32.mrf.mxu0
      %v6510 = vadd.f32 %v6411, %v6509
      %6511 = vmatmul.bf16.gmra.mxu0 %v5777
      %v6512 = vpop.f32.mrf.mxu0
      %v6513 = vadd.f32 %v6414, %v6512
      %v6514 = vpop.f32.mrf.mxu0
      %v6515 = vadd.f32 %v6416, %v6514
      %6516 = vmatmul.bf16.gmra.mxu0 %v5782
      %v6517 = vpop.f32.mrf.mxu0
      %v6518 = vadd.f32 %v6419, %v6517
      %v6519 = vpop.f32.mrf.mxu0
      %v6520 = vadd.f32 %v6421, %v6519
      %6521 = vmatmul.bf16.gmra.mxu0 %v5787
      %v6522 = vpop.f32.mrf.mxu0
      %v6523 = vadd.f32 %v6424, %v6522
      %v6524 = vpop.f32.mrf.mxu0
      %v6525 = vadd.f32 %v6426, %v6524
      %6526 = vmatmul.bf16.gmra.mxu0 %v5792
      %v6527 = vpop.f32.mrf.mxu0
      %v6528 = vadd.f32 %v6429, %v6527
      %v6529 = vpop.f32.mrf.mxu0
      %v6530 = vadd.f32 %v6431, %v6529
      %6531 = vdwg.mxu0
      %6532 = vmatpush.bf16.msra.mxu0 0
      %6533 = vmatpush.bf16.msra.mxu0 0
      %6534 = vmatpush.bf16.msra.mxu0 0
      %6535 = vmatpush.bf16.msra.mxu0 0
      %6536 = vmatpush.bf16.msra.mxu0 %v6045
      %6537 = vmatpush.bf16.msra.mxu0 %v6044
      %6538 = vmatpush.bf16.msra.mxu0 %v6043
      %6539 = vmatpush.bf16.msra.mxu0 %v6042
      %6540 = vmatmul.bf16.gmra.mxu0 %v6083
      %v6541 = vpop.f32.mrf.mxu0
      %v6542 = vadd.f32 %v6443, %v6541
      %v6543 = vpop.f32.mrf.mxu0
      %v6544 = vadd.f32 %v6445, %v6543
      %6545 = vmatmul.bf16.gmra.mxu0 %v6086
      %v6546 = vpop.f32.mrf.mxu0
      %v6547 = vadd.f32 %v6448, %v6546
      %v6548 = vpop.f32.mrf.mxu0
      %v6549 = vadd.f32 %v6450, %v6548
      %6550 = vmatmul.bf16.gmra.mxu0 %v6089
      %v6551 = vpop.f32.mrf.mxu0
      %v6552 = vadd.f32 %v6453, %v6551
      %v6553 = vpop.f32.mrf.mxu0
      %v6554 = vadd.f32 %v6455, %v6553
      %6555 = vmatmul.bf16.gmra.mxu0 %v6092
      %v6556 = vpop.f32.mrf.mxu0
      %v6557 = vadd.f32 %v6458, %v6556
      %v6558 = vpop.f32.mrf.mxu0
      %v6559 = vadd.f32 %v6460, %v6558
      %6560 = vmatmul.bf16.gmra.mxu0 %v6095
      %v6561 = vpop.f32.mrf.mxu0
      %v6562 = vadd.f32 %v6463, %v6561
      %v6563 = vpop.f32.mrf.mxu0
      %v6564 = vadd.f32 %v6465, %v6563
      %6565 = vmatmul.bf16.gmra.mxu0 %v6098
      %v6566 = vpop.f32.mrf.mxu0
      %v6567 = vadd.f32 %v6468, %v6566
      %v6568 = vpop.f32.mrf.mxu0
      %v6569 = vadd.f32 %v6470, %v6568
      %6570 = vmatmul.bf16.gmra.mxu0 %v6101
      %v6571 = vpop.f32.mrf.mxu0
      %v6572 = vadd.f32 %v6473, %v6571
      %v6573 = vpop.f32.mrf.mxu0
      %v6574 = vadd.f32 %v6475, %v6573
      %6575 = vmatmul.bf16.gmra.mxu0 %v6104
      %v6576 = vpop.f32.mrf.mxu0
      %v6577 = vadd.f32 %v6478, %v6576
      %v6578 = vpop.f32.mrf.mxu0
      %v6579 = vadd.f32 %v6480, %v6578
      %6580 = vmatmul.bf16.gmra.mxu0 %v6107
      %v6581 = vpop.f32.mrf.mxu0
      %v6582 = vadd.f32 %v6483, %v6581
      %v6583 = vpop.f32.mrf.mxu0
      %v6584 = vadd.f32 %v6485, %v6583
      %6585 = vmatmul.bf16.gmra.mxu0 %v6110
      %v6586 = vpop.f32.mrf.mxu0
      %v6587 = vadd.f32 %v6488, %v6586
      %v6588 = vpop.f32.mrf.mxu0
      %v6589 = vadd.f32 %v6490, %v6588
      %6590 = vmatmul.bf16.gmra.mxu0 %v6113
      %v6591 = vpop.f32.mrf.mxu0
      %v6592 = vadd.f32 %v6493, %v6591
      %v6593 = vpop.f32.mrf.mxu0
      %v6594 = vadd.f32 %v6495, %v6593
      %6595 = vmatmul.bf16.gmra.mxu0 %v6116
      %v6596 = vpop.f32.mrf.mxu0
      %v6597 = vadd.f32 %v6498, %v6596
      %v6598 = vpop.f32.mrf.mxu0
      %v6599 = vadd.f32 %v6500, %v6598
      %6600 = vmatmul.bf16.gmra.mxu0 %v6119
      %v6601 = vpop.f32.mrf.mxu0
      %v6602 = vadd.f32 %v6503, %v6601
      %v6603 = vpop.f32.mrf.mxu0
      %v6604 = vadd.f32 %v6505, %v6603
      %6605 = vmatmul.bf16.gmra.mxu0 %v6122
      %v6606 = vpop.f32.mrf.mxu0
      %v6607 = vadd.f32 %v6508, %v6606
      %v6608 = vpop.f32.mrf.mxu0
      %v6609 = vadd.f32 %v6510, %v6608
      %6610 = vmatmul.bf16.gmra.mxu0 %v6125
      %v6611 = vpop.f32.mrf.mxu0
      %v6612 = vadd.f32 %v6513, %v6611
      %v6613 = vpop.f32.mrf.mxu0
      %v6614 = vadd.f32 %v6515, %v6613
      %6615 = vmatmul.bf16.gmra.mxu0 %v6128
      %v6616 = vpop.f32.mrf.mxu0
      %v6617 = vadd.f32 %v6518, %v6616
      %v6618 = vpop.f32.mrf.mxu0
      %v6619 = vadd.f32 %v6520, %v6618
      %6620 = vmatmul.bf16.gmra.mxu0 %v6131
      %v6621 = vpop.f32.mrf.mxu0
      %v6622 = vadd.f32 %v6523, %v6621
      %v6623 = vpop.f32.mrf.mxu0
      %v6624 = vadd.f32 %v6525, %v6623
      %6625 = vmatmul.bf16.gmra.mxu0 %v6134
      %v6626 = vpop.f32.mrf.mxu0
      %v6627 = vadd.f32 %v6528, %v6626
      %v6628 = vpop.f32.mrf.mxu0
      %v6629 = vadd.f32 %v6530, %v6628
      %6630 = vdwg.mxu0
      %v6631 = vld [vmem:[%s219 + $0x13] sm:$0xff]
      %v6632 = vld [vmem:[%s219 + $0x1b] sm:$0xff]
      %v6633 = vld [vmem:[%s219 + $0x23] sm:$0xff]
      %v6634 = vld [vmem:[%s219 + $0x2b] sm:$0xff]
      %v6635 = vld [vmem:[%s219 + $0x33] sm:$0xff]
      %v6636 = vld [vmem:[%s219 + $0x3b] sm:$0xff]
      %v6637 = vld [vmem:[%s219 + $0x43] sm:$0xff]
      %v6638 = vld [vmem:[%s219 + $0x4b] sm:$0xff]
      %v6639 = vld [vmem:[%s219 + $0x53] sm:$0xff]
      %v6640 = vld [vmem:[%s219 + $0x5b] sm:$0xff]
      %v6641 = vld [vmem:[%s219 + $0x63] sm:$0xff]
      %v6642 = vld [vmem:[%s219 + $0x6b] sm:$0xff]
      %v6643 = vld [vmem:[%s219 + $0x73] sm:$0xff]
      %v6644 = vld [vmem:[%s219 + $0x7b] sm:$0xff]
      %v6645 = vld [vmem:[%s219 + $0x83] sm:$0xff]
      %v6646 = vld [vmem:[%s219 + $0x8b] sm:$0xff]
      %v6647 = vld [vmem:[%s219 + $0x93] sm:$0xff]
      %v6648 = vld [vmem:[%s219 + $0x9b] sm:$0xff]
      %v6649 = vld [vmem:[%s219 + $0xa3] sm:$0xff]
      %v6650 = vld [vmem:[%s219 + $0xab] sm:$0xff]
      %v6651 = vld [vmem:[%s219 + $0xb3] sm:$0xff]
      %v6652 = vld [vmem:[%s219 + $0xbb] sm:$0xff]
      %v6653 = vld [vmem:[%s219 + $0xc3] sm:$0xff]
      %v6654 = vld [vmem:[%s219 + $0xcb] sm:$0xff]
      %v6655 = vld [vmem:[%s219 + $0xd3] sm:$0xff]
      %v6656 = vld [vmem:[%s219 + $0xdb] sm:$0xff]
      %v6657 = vld [vmem:[%s219 + $0xe3] sm:$0xff]
      %v6658 = vld [vmem:[%s219 + $0xeb] sm:$0xff]
      %v6659 = vld [vmem:[%s219 + $0xf3] sm:$0xff]
      %v6660 = vld [vmem:[%s219 + $0xfb] sm:$0xff]
      %v6661 = vld [vmem:[%s219 + $0x103] sm:$0xff]
      %v6662 = vld [vmem:[%s219 + $0x10b] sm:$0xff]
      %v6663 = vld [vmem:[%s219 + $0x113] sm:$0xff]
      %v6664 = vld [vmem:[%s219 + $0x11b] sm:$0xff]
      %v6665 = vld [vmem:[%s219 + $0x123] sm:$0xff]
      %v6666 = vld [vmem:[%s219 + $0x12b] sm:$0x3f]
      %v6667 = vperm.slane %v226, 2
      %v6668 = vmul.f32 %v6542, %v6667
      %v6669 = vmul.f32 %v6544, %v6667
      %v6670 = vmul.f32 %v6547, %v6667
      %v6671 = vmul.f32 %v6549, %v6667
      %v6672 = vmul.f32 %v6552, %v6667
      %v6673 = vmul.f32 %v6554, %v6667
      %v6674 = vmul.f32 %v6557, %v6667
      %v6675 = vmul.f32 %v6559, %v6667
      %v6676 = vmul.f32 %v6562, %v6667
      %v6677 = vmul.f32 %v6564, %v6667
      %v6678 = vmul.f32 %v6567, %v6667
      %v6679 = vmul.f32 %v6569, %v6667
      %v6680 = vmul.f32 %v6572, %v6667
      %v6681 = vmul.f32 %v6574, %v6667
      %v6682 = vmul.f32 %v6577, %v6667
      %v6683 = vmul.f32 %v6579, %v6667
      %v6684 = vmul.f32 %v6582, %v6667
      %v6685 = vmul.f32 %v6584, %v6667
      %v6686 = vmul.f32 %v6587, %v6667
      %v6687 = vmul.f32 %v6589, %v6667
      %v6688 = vmul.f32 %v6592, %v6667
      %v6689 = vmul.f32 %v6594, %v6667
      %v6690 = vmul.f32 %v6597, %v6667
      %v6691 = vmul.f32 %v6599, %v6667
      %v6692 = vmul.f32 %v6602, %v6667
      %v6693 = vmul.f32 %v6604, %v6667
      %v6694 = vmul.f32 %v6607, %v6667
      %v6695 = vmul.f32 %v6609, %v6667
      %v6696 = vmul.f32 %v6612, %v6667
      %v6697 = vmul.f32 %v6614, %v6667
      %v6698 = vmul.f32 %v6617, %v6667
      %v6699 = vmul.f32 %v6619, %v6667
      %v6700 = vmul.f32 %v6622, %v6667
      %v6701 = vmul.f32 %v6624, %v6667
      %v6702 = vmul.f32 %v6627, %v6667
      %v6703 = vmul.f32 %v6629, %v6667
      %v6704 = vperm.slane %v226, 3
      %v6705 = vadd.f32 %v6668, %v6704
      %v6706 = vadd.f32 %v6669, %v6704
      %v6707 = vadd.f32 %v6670, %v6704
      %v6708 = vadd.f32 %v6671, %v6704
      %v6709 = vadd.f32 %v6672, %v6704
      %v6710 = vadd.f32 %v6673, %v6704
      %v6711 = vadd.f32 %v6674, %v6704
      %v6712 = vadd.f32 %v6675, %v6704
      %v6713 = vadd.f32 %v6676, %v6704
      %v6714 = vadd.f32 %v6677, %v6704
      %v6715 = vadd.f32 %v6678, %v6704
      %v6716 = vadd.f32 %v6679, %v6704
      %v6717 = vadd.f32 %v6680, %v6704
      %v6718 = vadd.f32 %v6681, %v6704
      %v6719 = vadd.f32 %v6682, %v6704
      %v6720 = vadd.f32 %v6683, %v6704
      %v6721 = vadd.f32 %v6684, %v6704
      %v6722 = vadd.f32 %v6685, %v6704
      %v6723 = vadd.f32 %v6686, %v6704
      %v6724 = vadd.f32 %v6687, %v6704
      %v6725 = vadd.f32 %v6688, %v6704
      %v6726 = vadd.f32 %v6689, %v6704
      %v6727 = vadd.f32 %v6690, %v6704
      %v6728 = vadd.f32 %v6691, %v6704
      %v6729 = vadd.f32 %v6692, %v6704
      %v6730 = vadd.f32 %v6693, %v6704
      %v6731 = vadd.f32 %v6694, %v6704
      %v6732 = vadd.f32 %v6695, %v6704
      %v6733 = vadd.f32 %v6696, %v6704
      %v6734 = vadd.f32 %v6697, %v6704
      %v6735 = vadd.f32 %v6698, %v6704
      %v6736 = vadd.f32 %v6699, %v6704
      %v6737 = vadd.f32 %v6700, %v6704
      %v6738 = vadd.f32 %v6701, %v6704
      %v6739 = vadd.f32 %v6702, %v6704
      %v6740 = vadd.f32 %v6703, %v6704
      %v6741 = vadd.f32 %v6705, %v6631
      %v6742 = vadd.f32 %v6706, %v6632
      %v6743 = vadd.f32 %v6707, %v6633
      %v6744 = vadd.f32 %v6708, %v6634
      %v6745 = vadd.f32 %v6709, %v6635
      %v6746 = vadd.f32 %v6710, %v6636
      %v6747 = vadd.f32 %v6711, %v6637
      %v6748 = vadd.f32 %v6712, %v6638
      %v6749 = vadd.f32 %v6713, %v6639
      %v6750 = vadd.f32 %v6714, %v6640
      %v6751 = vadd.f32 %v6715, %v6641
      %v6752 = vadd.f32 %v6716, %v6642
      %v6753 = vadd.f32 %v6717, %v6643
      %v6754 = vadd.f32 %v6718, %v6644
      %v6755 = vadd.f32 %v6719, %v6645
      %v6756 = vadd.f32 %v6720, %v6646
      %v6757 = vadd.f32 %v6721, %v6647
      %v6758 = vadd.f32 %v6722, %v6648
      %v6759 = vadd.f32 %v6723, %v6649
      %v6760 = vadd.f32 %v6724, %v6650
      %v6761 = vadd.f32 %v6725, %v6651
      %v6762 = vadd.f32 %v6726, %v6652
      %v6763 = vadd.f32 %v6727, %v6653
      %v6764 = vadd.f32 %v6728, %v6654
      %v6765 = vadd.f32 %v6729, %v6655
      %v6766 = vadd.f32 %v6730, %v6656
      %v6767 = vadd.f32 %v6731, %v6657
      %v6768 = vadd.f32 %v6732, %v6658
      %v6769 = vadd.f32 %v6733, %v6659
      %v6770 = vadd.f32 %v6734, %v6660
      %v6771 = vadd.f32 %v6735, %v6661
      %v6772 = vadd.f32 %v6736, %v6662
      %v6773 = vadd.f32 %v6737, %v6663
      %v6774 = vadd.f32 %v6738, %v6664
      %v6775 = vadd.f32 %v6739, %v6665
      %v6776 = vadd.f32 %v6740, %v6666
      %6777 = vst.msk [vmem:[%s224] sm:$0xff] %vm2625, %v6741
      %6778 = vst.msk [vmem:[%s224 + $0x8] sm:$0xff] %vm2625, %v6742
      %6779 = vst.msk [vmem:[%s224 + $0x10] sm:$0xff] %vm2625, %v6743
      %6780 = vst.msk [vmem:[%s224 + $0x18] sm:$0xff] %vm2625, %v6744
      %6781 = vst.msk [vmem:[%s224 + $0x20] sm:$0xff] %vm2625, %v6745
      %6782 = vst.msk [vmem:[%s224 + $0x28] sm:$0xff] %vm2625, %v6746
      %6783 = vst.msk [vmem:[%s224 + $0x30] sm:$0xff] %vm2625, %v6747
      %6784 = vst.msk [vmem:[%s224 + $0x38] sm:$0xff] %vm2625, %v6748
      %6785 = vst.msk [vmem:[%s224 + $0x40] sm:$0xff] %vm2625, %v6749
      %6786 = vst.msk [vmem:[%s224 + $0x48] sm:$0xff] %vm2625, %v6750
      %6787 = vst.msk [vmem:[%s224 + $0x50] sm:$0xff] %vm2625, %v6751
      %6788 = vst.msk [vmem:[%s224 + $0x58] sm:$0xff] %vm2625, %v6752
      %6789 = vst.msk [vmem:[%s224 + $0x60] sm:$0xff] %vm2625, %v6753
      %6790 = vst.msk [vmem:[%s224 + $0x68] sm:$0xff] %vm2625, %v6754
      %6791 = vst.msk [vmem:[%s224 + $0x70] sm:$0xff] %vm2625, %v6755
      %6792 = vst.msk [vmem:[%s224 + $0x78] sm:$0xff] %vm2625, %v6756
      %6793 = vst.msk [vmem:[%s224 + $0x80] sm:$0xff] %vm2625, %v6757
      %6794 = vst.msk [vmem:[%s224 + $0x88] sm:$0xff] %vm2625, %v6758
      %6795 = vst.msk [vmem:[%s224 + $0x90] sm:$0xff] %vm2625, %v6759
      %6796 = vst.msk [vmem:[%s224 + $0x98] sm:$0xff] %vm2625, %v6760
      %6797 = vst.msk [vmem:[%s224 + $0xa0] sm:$0xff] %vm2625, %v6761
      %6798 = vst.msk [vmem:[%s224 + $0xa8] sm:$0xff] %vm2625, %v6762
      %6799 = vst.msk [vmem:[%s224 + $0xb0] sm:$0xff] %vm2625, %v6763
      %6800 = vst.msk [vmem:[%s224 + $0xb8] sm:$0xff] %vm2625, %v6764
      %6801 = vst.msk [vmem:[%s224 + $0xc0] sm:$0xff] %vm2625, %v6765
      %6802 = vst.msk [vmem:[%s224 + $0xc8] sm:$0xff] %vm2625, %v6766
      %6803 = vst.msk [vmem:[%s224 + $0xd0] sm:$0xff] %vm2625, %v6767
      %6804 = vst.msk [vmem:[%s224 + $0xd8] sm:$0xff] %vm2625, %v6768
      %6805 = vst.msk [vmem:[%s224 + $0xe0] sm:$0xff] %vm2625, %v6769
      %6806 = vst.msk [vmem:[%s224 + $0xe8] sm:$0xff] %vm2625, %v6770
      %6807 = vst.msk [vmem:[%s224 + $0xf0] sm:$0xff] %vm2625, %v6771
      %6808 = vst.msk [vmem:[%s224 + $0xf8] sm:$0xff] %vm2625, %v6772
      %6809 = vst.msk [vmem:[%s224 + $0x100] sm:$0xff] %vm2625, %v6773
      %6810 = vst.msk [vmem:[%s224 + $0x108] sm:$0xff] %vm2625, %v6774
      %6811 = vst.msk [vmem:[%s224 + $0x110] sm:$0xff] %vm2625, %v6775
      %6812 = vst.msk [vmem:[%s224 + $0x118] sm:$0x3f] %vm3686, %v6776
      %p6813 = scmp.lt.s32.totalorder %s16, 1
      %s6814 = scalar_select %p6813, %s16, 1
      %s6815 = smul.addr %s6814, 36
      %s6816 = smul.addr %s6815, 8
      %s6817 = scalar_lea.vmem %s5, %s6816
      // Predicated region
      $region41: #{residual_block_forward.1} parent=39 // pred_check
        %p6818 = pneg %p144
      $region42: #{residual_block_forward.1} parent=39 // pred_check_branch
        %6820 = sbr.rel (%p6818) target = $region44
      $region43: #{residual_block_forward.1} parent=39 // pred_region
        _
      $region44: #{residual_block_forward.1} parent=39 // pred_fallthru
        _
    $region40: #{residual_block_forward.1} parent=5 // pred_fallthru
      _
    %p6821 = scmp.le.s32.totalorder 2, %s11
    // Predicated region
    $region45: #{residual_block_forward.1} parent=5 // pred_check
      %p6822 = pneg %p6821
    $region46: #{residual_block_forward.1} parent=5 // pred_check_branch
      %6824 = sbr.rel (%p6822) target = $region48
    $region47: #{residual_block_forward.1} parent=5 // pred_region
      %s6825 = ssub.s32 %s11, 2
      // Predicated region
      $region49: #{residual_block_forward.1} parent=47 // pred_check
        %p6826 = pneg %p150
      $region50: #{residual_block_forward.1} parent=47 // pred_check_branch
        %6828 = sbr.rel (%p6826) target = $region52
      $region51: #{residual_block_forward.1} parent=47 // pred_region
        %p6829 = scmp.lt.s32.totalorder %s17, 1
        %s6830 = scalar_select %p6829, %s17, 1
        %s6831 = smul.addr %s6830, 36
        %s6832 = smul.addr %s6831, 8
        %s6833 = scalar_lea.vmem %s5, %s6832
      $region52: #{residual_block_forward.1} parent=47 // pred_fallthru
        _
    $region48: #{residual_block_forward.1} parent=5 // pred_fallthru
      _
  $region6: #{residual_block_forward.1} parent=0 // loop_footer
    %s15 = sadd.s32 1, %s11
  $region7: #{residual_block_forward.1} parent=0 // loop_footer_branch
    %10 = sbr.rel target = $region3
  $region8: #{residual_block_forward.1} parent=0 // loop_exit
    _

</llo_original>
